<compile_context>
chip_gen: v7x
topology: tpu7x:2x2x1
jax: 0.10.0
libtpu: 0.0.40
codegen_flags: <defaults>
</compile_context>

<pallas_src>
import jax
import jax.numpy as jnp
import numpy as np
from jax.experimental import pallas as pl
from jax.experimental.pallas import tpu as pltpu

EPS = 1e-5
NEG_SLOPE = 0.01


# ---------------------------------------------------------------------------
# Fused kernel: one batch image per grid step.
# ---------------------------------------------------------------------------
def fused_resnet_block_kernel(xblk_ref, mask_ref, w1_ref, w11_ref, w2_ref,
                              b1_ref, bout_ref, o_ref):
    """Fully fused ResNetBlock forward for one image.

    xblk_ref: (1, 5, 5, M, Cin) bf16   xblk[0,s,t,oi*Wo+oj,:] = padx2[3*oi+s, 3*oj+t, :]
    mask_ref: (3, 3, M, 1)     f32     0 where conv2 tap (u,v) lands on out1's
                                       zero-pad ring, 1 elsewhere
    w1_ref  : (3, 3, Cin, D)   bf16    conv1 weights, BN folded, (kh,kw,I,O)
    w11_ref : (3, 3, Cin, D)   bf16    conv11 weights, (kh,kw,I,O)
    w2_ref  : (3, 3, D, D)     bf16    conv2 weights, (kh,kw,I,O)
    b1_ref  : (1, D)           f32     conv1 bias with BN folded
    bout_ref: (1, D)           f32     conv2 bias + conv11 bias
    o_ref   : (1, M, D)        f32     fused block output (flattened spatial)
    """
    m, d = o_ref.shape[1], o_ref.shape[2]

    # 25 distinct stride-3 shifted views of (padded) x, each (M, Cin).
    xs = [[xblk_ref[0, s, t] for t in range(5)] for s in range(5)]
    w1t = [[w1_ref[ai, aj] for aj in range(3)] for ai in range(3)]
    b1 = b1_ref[...]
    bout = bout_ref[...]

    acc = jnp.zeros((m, d), jnp.float32) + bout          # conv2 + conv11 biases

    # Main path: conv2(dropout(lrelu(bn1(conv1(x))))), one conv2 tap (u,v)
    # at a time.  The out1 values needed by tap (u,v) live on the stride-3
    # grid (3*oi + u - 1, 3*oj + v - 1); they are recomputed on the fly from
    # the pre-blocked x and never round-trip through HBM.
    for u in range(3):
        for v in range(3):
            h = jnp.zeros((m, d), jnp.float32) + b1
            for ai in range(3):                          # conv1 taps
                for aj in range(3):
                    h = h + jnp.dot(xs[u + ai][v + aj], w1t[ai][aj],
                                    preferred_element_type=jnp.float32)
            h = jnp.where(h >= 0.0, h, NEG_SLOPE * h)    # LeakyReLU(0.01)
            h = h * mask_ref[u, v]                       # conv2 pad ring -> 0
            acc = acc + jnp.dot(h.astype(jnp.bfloat16), w2_ref[u, v],
                                preferred_element_type=jnp.float32)

    # Shortcut path: conv11(x).  Its stride-3 / pad-1 receptive field is
    # exactly the (s, t) = (ai + 1, aj + 1) shifted views.
    for ai in range(3):
        for aj in range(3):
            acc = acc + jnp.dot(xs[ai + 1][aj + 1], w11_ref[ai, aj],
                                preferred_element_type=jnp.float32)

    o_ref[0] = acc.astype(o_ref.dtype)


# ---------------------------------------------------------------------------
# Wrapper: weight/BN folding, stride-3 block regroup of x, pallas_call.
# ---------------------------------------------------------------------------
def _conv_w_taps(w):
    # PyTorch conv weight (O, I, kh, kw) -> (kh, kw, I, O)
    return jnp.transpose(w, (2, 3, 1, 0))


def resnet_block_forward(x_nchw, params):
    x = jnp.transpose(x_nchw, (0, 2, 3, 1)).astype(jnp.float32)      # NHWC
    B, H, W, Cin = x.shape
    D = params["w1"].shape[0]
    Ho = (H + 2 - 3) // 3 + 1
    Wo = (W + 2 - 3) // 3 + 1
    M = Ho * Wo

    # ---- stride-3 block regroup of x (only host-side data prep) ------------
    # xblk[b, s, t, oi*Wo + oj, c] = pad(x, 2)[b, 3*oi + s, 3*oj + t, c]
    xpp = jnp.pad(x, ((0, 0), (2, 2), (2, 2), (0, 0)))               # (B,H+4,W+4,Cin)
    xblk = jnp.stack(
        [jnp.stack([xpp[:, s:s + 3 * Ho:3, t:t + 3 * Wo:3, :] for t in range(5)],
                   axis=1) for s in range(5)],
        axis=1)                                                      # (B,5,5,Ho,Wo,Cin)
    xblk = xblk.reshape(B, 5, 5, M, Cin).astype(jnp.bfloat16)

    # ---- pad-ring mask for conv2 (out1 is zero-padded by 1, not conv1(xpad))
    mask_np = np.ones((3, 3, Ho, Wo, 1), np.float32)
    for u in range(3):
        for v in range(3):
            for oi in range(Ho):
                for oj in range(Wo):
                    r, c = 3 * oi + u, 3 * oj + v
                    if r == 0 or r == H + 1 or c == 0 or c == W + 1:
                        mask_np[u, v, oi, oj, 0] = 0.0
    mask = jnp.asarray(mask_np.reshape(3, 3, M, 1))

    # ---- weights: fold eval-mode BN into conv1, tap-major (kh,kw,I,O) -------
    scale = params["gamma1"] / jnp.sqrt(params["var1"] + EPS)         # (D,)
    w1f = (_conv_w_taps(params["w1"]) * scale).astype(jnp.bfloat16)   # (3,3,Cin,D)
    b1f = ((params["b1"] - params["mean1"]) * scale
           + params["beta1"]).reshape(1, D).astype(jnp.float32)
    w11 = _conv_w_taps(params["w11"]).astype(jnp.bfloat16)            # (3,3,Cin,D)
    w2 = _conv_w_taps(params["w2"]).astype(jnp.bfloat16)              # (3,3,D,D)
    bout = (params["b2"] + params["b11"]).reshape(1, D).astype(jnp.float32)

    flops = 2 * B * M * (81 * Cin * D + 9 * D * D + 9 * Cin * D)
    bytes_accessed = (xblk.size * 2 + mask.size * 4 + w1f.size * 2
                      + w11.size * 2 + w2.size * 2 + b1f.size * 4
                      + bout.size * 4 + B * M * D * 4)

    out_flat = pl.pallas_call(
        fused_resnet_block_kernel,
        out_shape=jax.ShapeDtypeStruct((B, M, D), jnp.float32),
        grid_spec=pltpu.PrefetchScalarGridSpec(
            num_scalar_prefetch=0,
            grid=(B,),
            in_specs=[
                pl.BlockSpec((1, 5, 5, M, Cin), lambda b: (b, 0, 0, 0, 0)),
                pl.BlockSpec((3, 3, M, 1), lambda b: (0, 0, 0, 0)),
                pl.BlockSpec((3, 3, Cin, D), lambda b: (0, 0, 0, 0)),
                pl.BlockSpec((3, 3, Cin, D), lambda b: (0, 0, 0, 0)),
                pl.BlockSpec((3, 3, D, D), lambda b: (0, 0, 0, 0)),
                pl.BlockSpec((1, D), lambda b: (0, 0)),
                pl.BlockSpec((1, D), lambda b: (0, 0)),
            ],
            out_specs=pl.BlockSpec((1, M, D), lambda b: (b, 0, 0)),
        ),
        compiler_params=pltpu.CompilerParams(
            dimension_semantics=("parallel",),
            vmem_limit_bytes=32 * 1024 * 1024,
        ),
        cost_estimate=pl.CostEstimate(flops=flops, transcendentals=0,
                                      bytes_accessed=bytes_accessed),
    )(xblk, mask, w1f, w11, w2, b1f, bout)

    out = out_flat.reshape(B, Ho, Wo, D)
    return jnp.transpose(out, (0, 3, 1, 2))                           # NCHW


# ---------------------------------------------------------------------------
# Pure-JAX reference (lax.conv) for validation
# ---------------------------------------------------------------------------
def ref_forward(x, params):
    def conv(inp, w, b, stride):
        y = jax.lax.conv_general_dilated(
            inp, w, (stride, stride), [(1, 1), (1, 1)],
            dimension_numbers=("NCHW", "OIHW", "NCHW"))
        return y + b[None, :, None, None]

    prev_mp = conv(x, params["w11"], params["b11"], 3)
    out = conv(x, params["w1"], params["b1"], 1)
    out = ((out - params["mean1"][None, :, None, None])
           / jnp.sqrt(params["var1"][None, :, None, None] + EPS)
           * params["gamma1"][None, :, None, None]
           + params["beta1"][None, :, None, None])
    out = jnp.where(out >= 0.0, out, NEG_SLOPE * out)
    out = conv(out, params["w2"], params["b2"], 3)
    return out + prev_mp


# ---------------------------------------------------------------------------
if __name__ == "__main__":
    B, in_depth, H, W = 2, 4, 16, 16
    depth = 8

    key = jax.random.PRNGKey(0)
    ks = jax.random.split(key, 12)
    x = jax.random.normal(ks[0], (B, in_depth, H, W), jnp.float32)

    params = {
        "w1":  jax.random.normal(ks[1], (depth, in_depth, 3, 3), jnp.float32) * 0.1,
        "b1":  jax.random.normal(ks[2], (depth,), jnp.float32) * 0.1,
        "w2":  jax.random.normal(ks[3], (depth, depth, 3, 3), jnp.float32) * 0.1,
        "b2":  jax.random.normal(ks[4], (depth,), jnp.float32) * 0.1,
        "w11": jax.random.normal(ks[5], (depth, in_depth, 3, 3), jnp.float32) * 0.1,
        "b11": jax.random.normal(ks[6], (depth,), jnp.float32) * 0.1,
        "gamma1": 1.0 + 0.1 * jax.random.normal(ks[7], (depth,), jnp.float32),
        "beta1":  0.1 * jax.random.normal(ks[8], (depth,), jnp.float32),
        "mean1":  0.1 * jax.random.normal(ks[9], (depth,), jnp.float32),
        "var1":   1.0 + 0.1 * jnp.abs(jax.random.normal(ks[10], (depth,), jnp.float32)),
    }

    fwd = jax.jit(resnet_block_forward)
    out = jax.block_until_ready(fwd(x, params))

    ref = jax.block_until_ready(ref_forward(x, params))
    assert out.shape == ref.shape == (B, depth, 6, 6), (out.shape, ref.shape)
    np.testing.assert_allclose(np.asarray(out), np.asarray(ref),
                               rtol=5e-2, atol=5e-2)

    print("KERNEL_OK")
</pallas_src>

<mosaic_0001>
module attributes {stable_mosaic.version = 11 : i64} {
  func.func @fused_resnet_block_kernel(%arg0: i32, %arg1: memref<1x5x5x36x4xbf16, #tpu.memory_space<vmem>>, %arg2: memref<3x3x36x1xf32, #tpu.memory_space<vmem>>, %arg3: memref<3x3x4x8xbf16, #tpu.memory_space<vmem>>, %arg4: memref<3x3x4x8xbf16, #tpu.memory_space<vmem>>, %arg5: memref<3x3x8x8xbf16, #tpu.memory_space<vmem>>, %arg6: memref<1x8xf32, #tpu.memory_space<vmem>>, %arg7: memref<1x8xf32, #tpu.memory_space<vmem>>, %arg8: memref<1x36x8xf32, #tpu.memory_space<vmem>>) attributes {dimension_semantics = [#tpu.dimension_semantics<parallel>], iteration_bounds = array<i64: 2>, scalar_prefetch = 0 : i64, scratch_operands = 0 : i64, tpu.core_type = #tpu.core_type<tc>, window_params = [{transform_indices = @transform_0, window_bounds = array<i64: 1, 5, 5, 36, 4>}, {pipeline_mode = #tpu.pipeline_mode<synchronous>, transform_indices = @transform_1, window_bounds = array<i64: 3, 3, 36, 1>}, {pipeline_mode = #tpu.pipeline_mode<synchronous>, transform_indices = @transform_2, window_bounds = array<i64: 3, 3, 4, 8>}, {pipeline_mode = #tpu.pipeline_mode<synchronous>, transform_indices = @transform_3, window_bounds = array<i64: 3, 3, 4, 8>}, {pipeline_mode = #tpu.pipeline_mode<synchronous>, transform_indices = @transform_4, window_bounds = array<i64: 3, 3, 8, 8>}, {pipeline_mode = #tpu.pipeline_mode<synchronous>, transform_indices = @transform_5, window_bounds = array<i64: 1, 8>}, {pipeline_mode = #tpu.pipeline_mode<synchronous>, transform_indices = @transform_6, window_bounds = array<i64: 1, 8>}, {transform_indices = @transform_7, window_bounds = array<i64: 1, 36, 8>}]} {
    %c0 = arith.constant 0 : index
    %c0_0 = arith.constant 0 : index
    %c0_1 = arith.constant 0 : index
    %c0_2 = arith.constant 0 : index
    %c0_3 = arith.constant 0 : index
    %0 = vector.load %arg1[%c0, %c0_0, %c0_1, %c0_2, %c0_3] : memref<1x5x5x36x4xbf16, #tpu.memory_space<vmem>>, vector<1x1x1x36x4xbf16>
    %1 = vector.shape_cast %0 : vector<1x1x1x36x4xbf16> to vector<36x4xbf16>
    %c0_4 = arith.constant 0 : index
    %c0_5 = arith.constant 0 : index
    %c1 = arith.constant 1 : index
    %c0_6 = arith.constant 0 : index
    %c0_7 = arith.constant 0 : index
    %2 = vector.load %arg1[%c0_4, %c0_5, %c1, %c0_6, %c0_7] : memref<1x5x5x36x4xbf16, #tpu.memory_space<vmem>>, vector<1x1x1x36x4xbf16>
    %3 = vector.shape_cast %2 : vector<1x1x1x36x4xbf16> to vector<36x4xbf16>
    %c0_8 = arith.constant 0 : index
    %c0_9 = arith.constant 0 : index
    %c2 = arith.constant 2 : index
    %c0_10 = arith.constant 0 : index
    %c0_11 = arith.constant 0 : index
    %4 = vector.load %arg1[%c0_8, %c0_9, %c2, %c0_10, %c0_11] : memref<1x5x5x36x4xbf16, #tpu.memory_space<vmem>>, vector<1x1x1x36x4xbf16>
    %5 = vector.shape_cast %4 : vector<1x1x1x36x4xbf16> to vector<36x4xbf16>
    %c0_12 = arith.constant 0 : index
    %c0_13 = arith.constant 0 : index
    %c3 = arith.constant 3 : index
    %c0_14 = arith.constant 0 : index
    %c0_15 = arith.constant 0 : index
    %6 = vector.load %arg1[%c0_12, %c0_13, %c3, %c0_14, %c0_15] : memref<1x5x5x36x4xbf16, #tpu.memory_space<vmem>>, vector<1x1x1x36x4xbf16>
    %7 = vector.shape_cast %6 : vector<1x1x1x36x4xbf16> to vector<36x4xbf16>
    %c0_16 = arith.constant 0 : index
    %c0_17 = arith.constant 0 : index
    %c4 = arith.constant 4 : index
    %c0_18 = arith.constant 0 : index
    %c0_19 = arith.constant 0 : index
    %8 = vector.load %arg1[%c0_16, %c0_17, %c4, %c0_18, %c0_19] : memref<1x5x5x36x4xbf16, #tpu.memory_space<vmem>>, vector<1x1x1x36x4xbf16>
    %9 = vector.shape_cast %8 : vector<1x1x1x36x4xbf16> to vector<36x4xbf16>
    %c0_20 = arith.constant 0 : index
    %c1_21 = arith.constant 1 : index
    %c0_22 = arith.constant 0 : index
    %c0_23 = arith.constant 0 : index
    %c0_24 = arith.constant 0 : index
    %10 = vector.load %arg1[%c0_20, %c1_21, %c0_22, %c0_23, %c0_24] : memref<1x5x5x36x4xbf16, #tpu.memory_space<vmem>>, vector<1x1x1x36x4xbf16>
    %11 = vector.shape_cast %10 : vector<1x1x1x36x4xbf16> to vector<36x4xbf16>
    %c0_25 = arith.constant 0 : index
    %c1_26 = arith.constant 1 : index
    %c1_27 = arith.constant 1 : index
    %c0_28 = arith.constant 0 : index
    %c0_29 = arith.constant 0 : index
    %12 = vector.load %arg1[%c0_25, %c1_26, %c1_27, %c0_28, %c0_29] : memref<1x5x5x36x4xbf16, #tpu.memory_space<vmem>>, vector<1x1x1x36x4xbf16>
    %13 = vector.shape_cast %12 : vector<1x1x1x36x4xbf16> to vector<36x4xbf16>
    %c0_30 = arith.constant 0 : index
    %c1_31 = arith.constant 1 : index
    %c2_32 = arith.constant 2 : index
    %c0_33 = arith.constant 0 : index
    %c0_34 = arith.constant 0 : index
    %14 = vector.load %arg1[%c0_30, %c1_31, %c2_32, %c0_33, %c0_34] : memref<1x5x5x36x4xbf16, #tpu.memory_space<vmem>>, vector<1x1x1x36x4xbf16>
    %15 = vector.shape_cast %14 : vector<1x1x1x36x4xbf16> to vector<36x4xbf16>
    %c0_35 = arith.constant 0 : index
    %c1_36 = arith.constant 1 : index
    %c3_37 = arith.constant 3 : index
    %c0_38 = arith.constant 0 : index
    %c0_39 = arith.constant 0 : index
    %16 = vector.load %arg1[%c0_35, %c1_36, %c3_37, %c0_38, %c0_39] : memref<1x5x5x36x4xbf16, #tpu.memory_space<vmem>>, vector<1x1x1x36x4xbf16>
    %17 = vector.shape_cast %16 : vector<1x1x1x36x4xbf16> to vector<36x4xbf16>
    %c0_40 = arith.constant 0 : index
    %c1_41 = arith.constant 1 : index
    %c4_42 = arith.constant 4 : index
    %c0_43 = arith.constant 0 : index
    %c0_44 = arith.constant 0 : index
    %18 = vector.load %arg1[%c0_40, %c1_41, %c4_42, %c0_43, %c0_44] : memref<1x5x5x36x4xbf16, #tpu.memory_space<vmem>>, vector<1x1x1x36x4xbf16>
    %19 = vector.shape_cast %18 : vector<1x1x1x36x4xbf16> to vector<36x4xbf16>
    %c0_45 = arith.constant 0 : index
    %c2_46 = arith.constant 2 : index
    %c0_47 = arith.constant 0 : index
    %c0_48 = arith.constant 0 : index
    %c0_49 = arith.constant 0 : index
    %20 = vector.load %arg1[%c0_45, %c2_46, %c0_47, %c0_48, %c0_49] : memref<1x5x5x36x4xbf16, #tpu.memory_space<vmem>>, vector<1x1x1x36x4xbf16>
    %21 = vector.shape_cast %20 : vector<1x1x1x36x4xbf16> to vector<36x4xbf16>
    %c0_50 = arith.constant 0 : index
    %c2_51 = arith.constant 2 : index
    %c1_52 = arith.constant 1 : index
    %c0_53 = arith.constant 0 : index
    %c0_54 = arith.constant 0 : index
    %22 = vector.load %arg1[%c0_50, %c2_51, %c1_52, %c0_53, %c0_54] : memref<1x5x5x36x4xbf16, #tpu.memory_space<vmem>>, vector<1x1x1x36x4xbf16>
    %23 = vector.shape_cast %22 : vector<1x1x1x36x4xbf16> to vector<36x4xbf16>
    %c0_55 = arith.constant 0 : index
    %c2_56 = arith.constant 2 : index
    %c2_57 = arith.constant 2 : index
    %c0_58 = arith.constant 0 : index
    %c0_59 = arith.constant 0 : index
    %24 = vector.load %arg1[%c0_55, %c2_56, %c2_57, %c0_58, %c0_59] : memref<1x5x5x36x4xbf16, #tpu.memory_space<vmem>>, vector<1x1x1x36x4xbf16>
    %25 = vector.shape_cast %24 : vector<1x1x1x36x4xbf16> to vector<36x4xbf16>
    %c0_60 = arith.constant 0 : index
    %c2_61 = arith.constant 2 : index
    %c3_62 = arith.constant 3 : index
    %c0_63 = arith.constant 0 : index
    %c0_64 = arith.constant 0 : index
    %26 = vector.load %arg1[%c0_60, %c2_61, %c3_62, %c0_63, %c0_64] : memref<1x5x5x36x4xbf16, #tpu.memory_space<vmem>>, vector<1x1x1x36x4xbf16>
    %27 = vector.shape_cast %26 : vector<1x1x1x36x4xbf16> to vector<36x4xbf16>
    %c0_65 = arith.constant 0 : index
    %c2_66 = arith.constant 2 : index
    %c4_67 = arith.constant 4 : index
    %c0_68 = arith.constant 0 : index
    %c0_69 = arith.constant 0 : index
    %28 = vector.load %arg1[%c0_65, %c2_66, %c4_67, %c0_68, %c0_69] : memref<1x5x5x36x4xbf16, #tpu.memory_space<vmem>>, vector<1x1x1x36x4xbf16>
    %29 = vector.shape_cast %28 : vector<1x1x1x36x4xbf16> to vector<36x4xbf16>
    %c0_70 = arith.constant 0 : index
    %c3_71 = arith.constant 3 : index
    %c0_72 = arith.constant 0 : index
    %c0_73 = arith.constant 0 : index
    %c0_74 = arith.constant 0 : index
    %30 = vector.load %arg1[%c0_70, %c3_71, %c0_72, %c0_73, %c0_74] : memref<1x5x5x36x4xbf16, #tpu.memory_space<vmem>>, vector<1x1x1x36x4xbf16>
    %31 = vector.shape_cast %30 : vector<1x1x1x36x4xbf16> to vector<36x4xbf16>
    %c0_75 = arith.constant 0 : index
    %c3_76 = arith.constant 3 : index
    %c1_77 = arith.constant 1 : index
    %c0_78 = arith.constant 0 : index
    %c0_79 = arith.constant 0 : index
    %32 = vector.load %arg1[%c0_75, %c3_76, %c1_77, %c0_78, %c0_79] : memref<1x5x5x36x4xbf16, #tpu.memory_space<vmem>>, vector<1x1x1x36x4xbf16>
    %33 = vector.shape_cast %32 : vector<1x1x1x36x4xbf16> to vector<36x4xbf16>
    %c0_80 = arith.constant 0 : index
    %c3_81 = arith.constant 3 : index
    %c2_82 = arith.constant 2 : index
    %c0_83 = arith.constant 0 : index
    %c0_84 = arith.constant 0 : index
    %34 = vector.load %arg1[%c0_80, %c3_81, %c2_82, %c0_83, %c0_84] : memref<1x5x5x36x4xbf16, #tpu.memory_space<vmem>>, vector<1x1x1x36x4xbf16>
    %35 = vector.shape_cast %34 : vector<1x1x1x36x4xbf16> to vector<36x4xbf16>
    %c0_85 = arith.constant 0 : index
    %c3_86 = arith.constant 3 : index
    %c3_87 = arith.constant 3 : index
    %c0_88 = arith.constant 0 : index
    %c0_89 = arith.constant 0 : index
    %36 = vector.load %arg1[%c0_85, %c3_86, %c3_87, %c0_88, %c0_89] : memref<1x5x5x36x4xbf16, #tpu.memory_space<vmem>>, vector<1x1x1x36x4xbf16>
    %37 = vector.shape_cast %36 : vector<1x1x1x36x4xbf16> to vector<36x4xbf16>
    %c0_90 = arith.constant 0 : index
    %c3_91 = arith.constant 3 : index
    %c4_92 = arith.constant 4 : index
    %c0_93 = arith.constant 0 : index
    %c0_94 = arith.constant 0 : index
    %38 = vector.load %arg1[%c0_90, %c3_91, %c4_92, %c0_93, %c0_94] : memref<1x5x5x36x4xbf16, #tpu.memory_space<vmem>>, vector<1x1x1x36x4xbf16>
    %39 = vector.shape_cast %38 : vector<1x1x1x36x4xbf16> to vector<36x4xbf16>
    %c0_95 = arith.constant 0 : index
    %c4_96 = arith.constant 4 : index
    %c0_97 = arith.constant 0 : index
    %c0_98 = arith.constant 0 : index
    %c0_99 = arith.constant 0 : index
    %40 = vector.load %arg1[%c0_95, %c4_96, %c0_97, %c0_98, %c0_99] : memref<1x5x5x36x4xbf16, #tpu.memory_space<vmem>>, vector<1x1x1x36x4xbf16>
    %41 = vector.shape_cast %40 : vector<1x1x1x36x4xbf16> to vector<36x4xbf16>
    %c0_100 = arith.constant 0 : index
    %c4_101 = arith.constant 4 : index
    %c1_102 = arith.constant 1 : index
    %c0_103 = arith.constant 0 : index
    %c0_104 = arith.constant 0 : index
    %42 = vector.load %arg1[%c0_100, %c4_101, %c1_102, %c0_103, %c0_104] : memref<1x5x5x36x4xbf16, #tpu.memory_space<vmem>>, vector<1x1x1x36x4xbf16>
    %43 = vector.shape_cast %42 : vector<1x1x1x36x4xbf16> to vector<36x4xbf16>
    %c0_105 = arith.constant 0 : index
    %c4_106 = arith.constant 4 : index
    %c2_107 = arith.constant 2 : index
    %c0_108 = arith.constant 0 : index
    %c0_109 = arith.constant 0 : index
    %44 = vector.load %arg1[%c0_105, %c4_106, %c2_107, %c0_108, %c0_109] : memref<1x5x5x36x4xbf16, #tpu.memory_space<vmem>>, vector<1x1x1x36x4xbf16>
    %45 = vector.shape_cast %44 : vector<1x1x1x36x4xbf16> to vector<36x4xbf16>
    %c0_110 = arith.constant 0 : index
    %c4_111 = arith.constant 4 : index
    %c3_112 = arith.constant 3 : index
    %c0_113 = arith.constant 0 : index
    %c0_114 = arith.constant 0 : index
    %46 = vector.load %arg1[%c0_110, %c4_111, %c3_112, %c0_113, %c0_114] : memref<1x5x5x36x4xbf16, #tpu.memory_space<vmem>>, vector<1x1x1x36x4xbf16>
    %47 = vector.shape_cast %46 : vector<1x1x1x36x4xbf16> to vector<36x4xbf16>
    %c0_115 = arith.constant 0 : index
    %c4_116 = arith.constant 4 : index
    %c4_117 = arith.constant 4 : index
    %c0_118 = arith.constant 0 : index
    %c0_119 = arith.constant 0 : index
    %48 = vector.load %arg1[%c0_115, %c4_116, %c4_117, %c0_118, %c0_119] : memref<1x5x5x36x4xbf16, #tpu.memory_space<vmem>>, vector<1x1x1x36x4xbf16>
    %49 = vector.shape_cast %48 : vector<1x1x1x36x4xbf16> to vector<36x4xbf16>
    %c0_120 = arith.constant 0 : index
    %c0_121 = arith.constant 0 : index
    %c0_122 = arith.constant 0 : index
    %c0_123 = arith.constant 0 : index
    %50 = vector.load %arg3[%c0_120, %c0_121, %c0_122, %c0_123] : memref<3x3x4x8xbf16, #tpu.memory_space<vmem>>, vector<1x1x4x8xbf16>
    %51 = vector.shape_cast %50 : vector<1x1x4x8xbf16> to vector<4x8xbf16>
    %c0_124 = arith.constant 0 : index
    %c1_125 = arith.constant 1 : index
    %c0_126 = arith.constant 0 : index
    %c0_127 = arith.constant 0 : index
    %52 = vector.load %arg3[%c0_124, %c1_125, %c0_126, %c0_127] : memref<3x3x4x8xbf16, #tpu.memory_space<vmem>>, vector<1x1x4x8xbf16>
    %53 = vector.shape_cast %52 : vector<1x1x4x8xbf16> to vector<4x8xbf16>
    %c0_128 = arith.constant 0 : index
    %c2_129 = arith.constant 2 : index
    %c0_130 = arith.constant 0 : index
    %c0_131 = arith.constant 0 : index
    %54 = vector.load %arg3[%c0_128, %c2_129, %c0_130, %c0_131] : memref<3x3x4x8xbf16, #tpu.memory_space<vmem>>, vector<1x1x4x8xbf16>
    %55 = vector.shape_cast %54 : vector<1x1x4x8xbf16> to vector<4x8xbf16>
    %c1_132 = arith.constant 1 : index
    %c0_133 = arith.constant 0 : index
    %c0_134 = arith.constant 0 : index
    %c0_135 = arith.constant 0 : index
    %56 = vector.load %arg3[%c1_132, %c0_133, %c0_134, %c0_135] : memref<3x3x4x8xbf16, #tpu.memory_space<vmem>>, vector<1x1x4x8xbf16>
    %57 = vector.shape_cast %56 : vector<1x1x4x8xbf16> to vector<4x8xbf16>
    %c1_136 = arith.constant 1 : index
    %c1_137 = arith.constant 1 : index
    %c0_138 = arith.constant 0 : index
    %c0_139 = arith.constant 0 : index
    %58 = vector.load %arg3[%c1_136, %c1_137, %c0_138, %c0_139] : memref<3x3x4x8xbf16, #tpu.memory_space<vmem>>, vector<1x1x4x8xbf16>
    %59 = vector.shape_cast %58 : vector<1x1x4x8xbf16> to vector<4x8xbf16>
    %c1_140 = arith.constant 1 : index
    %c2_141 = arith.constant 2 : index
    %c0_142 = arith.constant 0 : index
    %c0_143 = arith.constant 0 : index
    %60 = vector.load %arg3[%c1_140, %c2_141, %c0_142, %c0_143] : memref<3x3x4x8xbf16, #tpu.memory_space<vmem>>, vector<1x1x4x8xbf16>
    %61 = vector.shape_cast %60 : vector<1x1x4x8xbf16> to vector<4x8xbf16>
    %c2_144 = arith.constant 2 : index
    %c0_145 = arith.constant 0 : index
    %c0_146 = arith.constant 0 : index
    %c0_147 = arith.constant 0 : index
    %62 = vector.load %arg3[%c2_144, %c0_145, %c0_146, %c0_147] : memref<3x3x4x8xbf16, #tpu.memory_space<vmem>>, vector<1x1x4x8xbf16>
    %63 = vector.shape_cast %62 : vector<1x1x4x8xbf16> to vector<4x8xbf16>
    %c2_148 = arith.constant 2 : index
    %c1_149 = arith.constant 1 : index
    %c0_150 = arith.constant 0 : index
    %c0_151 = arith.constant 0 : index
    %64 = vector.load %arg3[%c2_148, %c1_149, %c0_150, %c0_151] : memref<3x3x4x8xbf16, #tpu.memory_space<vmem>>, vector<1x1x4x8xbf16>
    %65 = vector.shape_cast %64 : vector<1x1x4x8xbf16> to vector<4x8xbf16>
    %c2_152 = arith.constant 2 : index
    %c2_153 = arith.constant 2 : index
    %c0_154 = arith.constant 0 : index
    %c0_155 = arith.constant 0 : index
    %66 = vector.load %arg3[%c2_152, %c2_153, %c0_154, %c0_155] : memref<3x3x4x8xbf16, #tpu.memory_space<vmem>>, vector<1x1x4x8xbf16>
    %67 = vector.shape_cast %66 : vector<1x1x4x8xbf16> to vector<4x8xbf16>
    %c0_156 = arith.constant 0 : index
    %c0_157 = arith.constant 0 : index
    %68 = vector.load %arg6[%c0_156, %c0_157] : memref<1x8xf32, #tpu.memory_space<vmem>>, vector<1x8xf32>
    %c0_158 = arith.constant 0 : index
    %c0_159 = arith.constant 0 : index
    %69 = vector.load %arg7[%c0_158, %c0_159] : memref<1x8xf32, #tpu.memory_space<vmem>>, vector<1x8xf32>
    %cst = arith.constant 0.000000e+00 : f32
    %70 = vector.broadcast %cst : f32 to vector<36x8xf32>
    %71 = vector.broadcast %69 : vector<1x8xf32> to vector<36x8xf32>
    %72 = arith.addf %70, %71 : vector<36x8xf32>
    %cst_160 = arith.constant 0.000000e+00 : f32
    %73 = vector.broadcast %cst_160 : f32 to vector<36x8xf32>
    %74 = vector.broadcast %68 : vector<1x8xf32> to vector<36x8xf32>
    %75 = arith.addf %73, %74 : vector<36x8xf32>
    %cst_161 = arith.constant dense<0.000000e+00> : vector<36x8xf32>
    %76 = tpu.matmul %1, %51, %cst_161 {dimension_numbers = #tpu.dot_dimension_numbers<[1], [0], [0], [1], [0, 0, 1, 1], [], []>} : vector<36x4xbf16>, vector<4x8xbf16>, vector<36x8xf32> -> vector<36x8xf32>
    %77 = arith.addf %75, %76 : vector<36x8xf32>
    %cst_162 = arith.constant dense<0.000000e+00> : vector<36x8xf32>
    %78 = tpu.matmul %3, %53, %cst_162 {dimension_numbers = #tpu.dot_dimension_numbers<[1], [0], [0], [1], [0, 0, 1, 1], [], []>} : vector<36x4xbf16>, vector<4x8xbf16>, vector<36x8xf32> -> vector<36x8xf32>
    %79 = arith.addf %77, %78 : vector<36x8xf32>
    %cst_163 = arith.constant dense<0.000000e+00> : vector<36x8xf32>
    %80 = tpu.matmul %5, %55, %cst_163 {dimension_numbers = #tpu.dot_dimension_numbers<[1], [0], [0], [1], [0, 0, 1, 1], [], []>} : vector<36x4xbf16>, vector<4x8xbf16>, vector<36x8xf32> -> vector<36x8xf32>
    %81 = arith.addf %79, %80 : vector<36x8xf32>
    %cst_164 = arith.constant dense<0.000000e+00> : vector<36x8xf32>
    %82 = tpu.matmul %11, %57, %cst_164 {dimension_numbers = #tpu.dot_dimension_numbers<[1], [0], [0], [1], [0, 0, 1, 1], [], []>} : vector<36x4xbf16>, vector<4x8xbf16>, vector<36x8xf32> -> vector<36x8xf32>
    %83 = arith.addf %81, %82 : vector<36x8xf32>
    %cst_165 = arith.constant dense<0.000000e+00> : vector<36x8xf32>
    %84 = tpu.matmul %13, %59, %cst_165 {dimension_numbers = #tpu.dot_dimension_numbers<[1], [0], [0], [1], [0, 0, 1, 1], [], []>} : vector<36x4xbf16>, vector<4x8xbf16>, vector<36x8xf32> -> vector<36x8xf32>
    %85 = arith.addf %83, %84 : vector<36x8xf32>
    %cst_166 = arith.constant dense<0.000000e+00> : vector<36x8xf32>
    %86 = tpu.matmul %15, %61, %cst_166 {dimension_numbers = #tpu.dot_dimension_numbers<[1], [0], [0], [1], [0, 0, 1, 1], [], []>} : vector<36x4xbf16>, vector<4x8xbf16>, vector<36x8xf32> -> vector<36x8xf32>
    %87 = arith.addf %85, %86 : vector<36x8xf32>
    %cst_167 = arith.constant dense<0.000000e+00> : vector<36x8xf32>
    %88 = tpu.matmul %21, %63, %cst_167 {dimension_numbers = #tpu.dot_dimension_numbers<[1], [0], [0], [1], [0, 0, 1, 1], [], []>} : vector<36x4xbf16>, vector<4x8xbf16>, vector<36x8xf32> -> vector<36x8xf32>
    %89 = arith.addf %87, %88 : vector<36x8xf32>
    %cst_168 = arith.constant dense<0.000000e+00> : vector<36x8xf32>
    %90 = tpu.matmul %23, %65, %cst_168 {dimension_numbers = #tpu.dot_dimension_numbers<[1], [0], [0], [1], [0, 0, 1, 1], [], []>} : vector<36x4xbf16>, vector<4x8xbf16>, vector<36x8xf32> -> vector<36x8xf32>
    %91 = arith.addf %89, %90 : vector<36x8xf32>
    %cst_169 = arith.constant dense<0.000000e+00> : vector<36x8xf32>
    %92 = tpu.matmul %25, %67, %cst_169 {dimension_numbers = #tpu.dot_dimension_numbers<[1], [0], [0], [1], [0, 0, 1, 1], [], []>} : vector<36x4xbf16>, vector<4x8xbf16>, vector<36x8xf32> -> vector<36x8xf32>
    %93 = arith.addf %91, %92 : vector<36x8xf32>
    %cst_170 = arith.constant 0.000000e+00 : f32
    %94 = vector.broadcast %cst_170 : f32 to vector<36x8xf32>
    %95 = arith.cmpf oge, %93, %94 : vector<36x8xf32>
    %cst_171 = arith.constant 0.00999999977 : f32
    %96 = vector.broadcast %cst_171 : f32 to vector<36x8xf32>
    %97 = arith.mulf %96, %93 : vector<36x8xf32>
    %98 = arith.select %95, %93, %97 : vector<36x8xi1>, vector<36x8xf32>
    %c0_172 = arith.constant 0 : index
    %c0_173 = arith.constant 0 : index
    %c0_174 = arith.constant 0 : index
    %c0_175 = arith.constant 0 : index
    %99 = vector.load %arg2[%c0_172, %c0_173, %c0_174, %c0_175] : memref<3x3x36x1xf32, #tpu.memory_space<vmem>>, vector<1x1x36x1xf32>
    %100 = vector.shape_cast %99 : vector<1x1x36x1xf32> to vector<36x1xf32>
    %101 = vector.broadcast %100 : vector<36x1xf32> to vector<36x8xf32>
    %102 = arith.mulf %98, %101 : vector<36x8xf32>
    %103 = arith.truncf %102 : vector<36x8xf32> to vector<36x8xbf16>
    %c0_176 = arith.constant 0 : index
    %c0_177 = arith.constant 0 : index
    %c0_178 = arith.constant 0 : index
    %c0_179 = arith.constant 0 : index
    %104 = vector.load %arg5[%c0_176, %c0_177, %c0_178, %c0_179] : memref<3x3x8x8xbf16, #tpu.memory_space<vmem>>, vector<1x1x8x8xbf16>
    %105 = vector.shape_cast %104 : vector<1x1x8x8xbf16> to vector<8x8xbf16>
    %cst_180 = arith.constant dense<0.000000e+00> : vector<36x8xf32>
    %106 = tpu.matmul %103, %105, %cst_180 {dimension_numbers = #tpu.dot_dimension_numbers<[1], [0], [0], [1], [0, 0, 1, 1], [], []>} : vector<36x8xbf16>, vector<8x8xbf16>, vector<36x8xf32> -> vector<36x8xf32>
    %107 = arith.addf %72, %106 : vector<36x8xf32>
    %cst_181 = arith.constant 0.000000e+00 : f32
    %108 = vector.broadcast %cst_181 : f32 to vector<36x8xf32>
    %109 = vector.broadcast %68 : vector<1x8xf32> to vector<36x8xf32>
    %110 = arith.addf %108, %109 : vector<36x8xf32>
    %cst_182 = arith.constant dense<0.000000e+00> : vector<36x8xf32>
    %111 = tpu.matmul %3, %51, %cst_182 {dimension_numbers = #tpu.dot_dimension_numbers<[1], [0], [0], [1], [0, 0, 1, 1], [], []>} : vector<36x4xbf16>, vector<4x8xbf16>, vector<36x8xf32> -> vector<36x8xf32>
    %112 = arith.addf %110, %111 : vector<36x8xf32>
    %cst_183 = arith.constant dense<0.000000e+00> : vector<36x8xf32>
    %113 = tpu.matmul %5, %53, %cst_183 {dimension_numbers = #tpu.dot_dimension_numbers<[1], [0], [0], [1], [0, 0, 1, 1], [], []>} : vector<36x4xbf16>, vector<4x8xbf16>, vector<36x8xf32> -> vector<36x8xf32>
    %114 = arith.addf %112, %113 : vector<36x8xf32>
    %cst_184 = arith.constant dense<0.000000e+00> : vector<36x8xf32>
    %115 = tpu.matmul %7, %55, %cst_184 {dimension_numbers = #tpu.dot_dimension_numbers<[1], [0], [0], [1], [0, 0, 1, 1], [], []>} : vector<36x4xbf16>, vector<4x8xbf16>, vector<36x8xf32> -> vector<36x8xf32>
    %116 = arith.addf %114, %115 : vector<36x8xf32>
    %cst_185 = arith.constant dense<0.000000e+00> : vector<36x8xf32>
    %117 = tpu.matmul %13, %57, %cst_185 {dimension_numbers = #tpu.dot_dimension_numbers<[1], [0], [0], [1], [0, 0, 1, 1], [], []>} : vector<36x4xbf16>, vector<4x8xbf16>, vector<36x8xf32> -> vector<36x8xf32>
    %118 = arith.addf %116, %117 : vector<36x8xf32>
    %cst_186 = arith.constant dense<0.000000e+00> : vector<36x8xf32>
    %119 = tpu.matmul %15, %59, %cst_186 {dimension_numbers = #tpu.dot_dimension_numbers<[1], [0], [0], [1], [0, 0, 1, 1], [], []>} : vector<36x4xbf16>, vector<4x8xbf16>, vector<36x8xf32> -> vector<36x8xf32>
    %120 = arith.addf %118, %119 : vector<36x8xf32>
    %cst_187 = arith.constant dense<0.000000e+00> : vector<36x8xf32>
    %121 = tpu.matmul %17, %61, %cst_187 {dimension_numbers = #tpu.dot_dimension_numbers<[1], [0], [0], [1], [0, 0, 1, 1], [], []>} : vector<36x4xbf16>, vector<4x8xbf16>, vector<36x8xf32> -> vector<36x8xf32>
    %122 = arith.addf %120, %121 : vector<36x8xf32>
    %cst_188 = arith.constant dense<0.000000e+00> : vector<36x8xf32>
    %123 = tpu.matmul %23, %63, %cst_188 {dimension_numbers = #tpu.dot_dimension_numbers<[1], [0], [0], [1], [0, 0, 1, 1], [], []>} : vector<36x4xbf16>, vector<4x8xbf16>, vector<36x8xf32> -> vector<36x8xf32>
    %124 = arith.addf %122, %123 : vector<36x8xf32>
    %cst_189 = arith.constant dense<0.000000e+00> : vector<36x8xf32>
    %125 = tpu.matmul %25, %65, %cst_189 {dimension_numbers = #tpu.dot_dimension_numbers<[1], [0], [0], [1], [0, 0, 1, 1], [], []>} : vector<36x4xbf16>, vector<4x8xbf16>, vector<36x8xf32> -> vector<36x8xf32>
    %126 = arith.addf %124, %125 : vector<36x8xf32>
    %cst_190 = arith.constant dense<0.000000e+00> : vector<36x8xf32>
    %127 = tpu.matmul %27, %67, %cst_190 {dimension_numbers = #tpu.dot_dimension_numbers<[1], [0], [0], [1], [0, 0, 1, 1], [], []>} : vector<36x4xbf16>, vector<4x8xbf16>, vector<36x8xf32> -> vector<36x8xf32>
    %128 = arith.addf %126, %127 : vector<36x8xf32>
    %cst_191 = arith.constant 0.000000e+00 : f32
    %129 = vector.broadcast %cst_191 : f32 to vector<36x8xf32>
    %130 = arith.cmpf oge, %128, %129 : vector<36x8xf32>
    %cst_192 = arith.constant 0.00999999977 : f32
    %131 = vector.broadcast %cst_192 : f32 to vector<36x8xf32>
    %132 = arith.mulf %131, %128 : vector<36x8xf32>
    %133 = arith.select %130, %128, %132 : vector<36x8xi1>, vector<36x8xf32>
    %c0_193 = arith.constant 0 : index
    %c1_194 = arith.constant 1 : index
    %c0_195 = arith.constant 0 : index
    %c0_196 = arith.constant 0 : index
    %134 = vector.load %arg2[%c0_193, %c1_194, %c0_195, %c0_196] : memref<3x3x36x1xf32, #tpu.memory_space<vmem>>, vector<1x1x36x1xf32>
    %135 = vector.shape_cast %134 : vector<1x1x36x1xf32> to vector<36x1xf32>
    %136 = vector.broadcast %135 : vector<36x1xf32> to vector<36x8xf32>
    %137 = arith.mulf %133, %136 : vector<36x8xf32>
    %138 = arith.truncf %137 : vector<36x8xf32> to vector<36x8xbf16>
    %c0_197 = arith.constant 0 : index
    %c1_198 = arith.constant 1 : index
    %c0_199 = arith.constant 0 : index
    %c0_200 = arith.constant 0 : index
    %139 = vector.load %arg5[%c0_197, %c1_198, %c0_199, %c0_200] : memref<3x3x8x8xbf16, #tpu.memory_space<vmem>>, vector<1x1x8x8xbf16>
    %140 = vector.shape_cast %139 : vector<1x1x8x8xbf16> to vector<8x8xbf16>
    %cst_201 = arith.constant dense<0.000000e+00> : vector<36x8xf32>
    %141 = tpu.matmul %138, %140, %cst_201 {dimension_numbers = #tpu.dot_dimension_numbers<[1], [0], [0], [1], [0, 0, 1, 1], [], []>} : vector<36x8xbf16>, vector<8x8xbf16>, vector<36x8xf32> -> vector<36x8xf32>
    %142 = arith.addf %107, %141 : vector<36x8xf32>
    %cst_202 = arith.constant 0.000000e+00 : f32
    %143 = vector.broadcast %cst_202 : f32 to vector<36x8xf32>
    %144 = vector.broadcast %68 : vector<1x8xf32> to vector<36x8xf32>
    %145 = arith.addf %143, %144 : vector<36x8xf32>
    %cst_203 = arith.constant dense<0.000000e+00> : vector<36x8xf32>
    %146 = tpu.matmul %5, %51, %cst_203 {dimension_numbers = #tpu.dot_dimension_numbers<[1], [0], [0], [1], [0, 0, 1, 1], [], []>} : vector<36x4xbf16>, vector<4x8xbf16>, vector<36x8xf32> -> vector<36x8xf32>
    %147 = arith.addf %145, %146 : vector<36x8xf32>
    %cst_204 = arith.constant dense<0.000000e+00> : vector<36x8xf32>
    %148 = tpu.matmul %7, %53, %cst_204 {dimension_numbers = #tpu.dot_dimension_numbers<[1], [0], [0], [1], [0, 0, 1, 1], [], []>} : vector<36x4xbf16>, vector<4x8xbf16>, vector<36x8xf32> -> vector<36x8xf32>
    %149 = arith.addf %147, %148 : vector<36x8xf32>
    %cst_205 = arith.constant dense<0.000000e+00> : vector<36x8xf32>
    %150 = tpu.matmul %9, %55, %cst_205 {dimension_numbers = #tpu.dot_dimension_numbers<[1], [0], [0], [1], [0, 0, 1, 1], [], []>} : vector<36x4xbf16>, vector<4x8xbf16>, vector<36x8xf32> -> vector<36x8xf32>
    %151 = arith.addf %149, %150 : vector<36x8xf32>
    %cst_206 = arith.constant dense<0.000000e+00> : vector<36x8xf32>
    %152 = tpu.matmul %15, %57, %cst_206 {dimension_numbers = #tpu.dot_dimension_numbers<[1], [0], [0], [1], [0, 0, 1, 1], [], []>} : vector<36x4xbf16>, vector<4x8xbf16>, vector<36x8xf32> -> vector<36x8xf32>
    %153 = arith.addf %151, %152 : vector<36x8xf32>
    %cst_207 = arith.constant dense<0.000000e+00> : vector<36x8xf32>
    %154 = tpu.matmul %17, %59, %cst_207 {dimension_numbers = #tpu.dot_dimension_numbers<[1], [0], [0], [1], [0, 0, 1, 1], [], []>} : vector<36x4xbf16>, vector<4x8xbf16>, vector<36x8xf32> -> vector<36x8xf32>
    %155 = arith.addf %153, %154 : vector<36x8xf32>
    %cst_208 = arith.constant dense<0.000000e+00> : vector<36x8xf32>
    %156 = tpu.matmul %19, %61, %cst_208 {dimension_numbers = #tpu.dot_dimension_numbers<[1], [0], [0], [1], [0, 0, 1, 1], [], []>} : vector<36x4xbf16>, vector<4x8xbf16>, vector<36x8xf32> -> vector<36x8xf32>
    %157 = arith.addf %155, %156 : vector<36x8xf32>
    %cst_209 = arith.constant dense<0.000000e+00> : vector<36x8xf32>
    %158 = tpu.matmul %25, %63, %cst_209 {dimension_numbers = #tpu.dot_dimension_numbers<[1], [0], [0], [1], [0, 0, 1, 1], [], []>} : vector<36x4xbf16>, vector<4x8xbf16>, vector<36x8xf32> -> vector<36x8xf32>
    %159 = arith.addf %157, %158 : vector<36x8xf32>
    %cst_210 = arith.constant dense<0.000000e+00> : vector<36x8xf32>
    %160 = tpu.matmul %27, %65, %cst_210 {dimension_numbers = #tpu.dot_dimension_numbers<[1], [0], [0], [1], [0, 0, 1, 1], [], []>} : vector<36x4xbf16>, vector<4x8xbf16>, vector<36x8xf32> -> vector<36x8xf32>
    %161 = arith.addf %159, %160 : vector<36x8xf32>
    %cst_211 = arith.constant dense<0.000000e+00> : vector<36x8xf32>
    %162 = tpu.matmul %29, %67, %cst_211 {dimension_numbers = #tpu.dot_dimension_numbers<[1], [0], [0], [1], [0, 0, 1, 1], [], []>} : vector<36x4xbf16>, vector<4x8xbf16>, vector<36x8xf32> -> vector<36x8xf32>
    %163 = arith.addf %161, %162 : vector<36x8xf32>
    %cst_212 = arith.constant 0.000000e+00 : f32
    %164 = vector.broadcast %cst_212 : f32 to vector<36x8xf32>
    %165 = arith.cmpf oge, %163, %164 : vector<36x8xf32>
    %cst_213 = arith.constant 0.00999999977 : f32
    %166 = vector.broadcast %cst_213 : f32 to vector<36x8xf32>
    %167 = arith.mulf %166, %163 : vector<36x8xf32>
    %168 = arith.select %165, %163, %167 : vector<36x8xi1>, vector<36x8xf32>
    %c0_214 = arith.constant 0 : index
    %c2_215 = arith.constant 2 : index
    %c0_216 = arith.constant 0 : index
    %c0_217 = arith.constant 0 : index
    %169 = vector.load %arg2[%c0_214, %c2_215, %c0_216, %c0_217] : memref<3x3x36x1xf32, #tpu.memory_space<vmem>>, vector<1x1x36x1xf32>
    %170 = vector.shape_cast %169 : vector<1x1x36x1xf32> to vector<36x1xf32>
    %171 = vector.broadcast %170 : vector<36x1xf32> to vector<36x8xf32>
    %172 = arith.mulf %168, %171 : vector<36x8xf32>
    %173 = arith.truncf %172 : vector<36x8xf32> to vector<36x8xbf16>
    %c0_218 = arith.constant 0 : index
    %c2_219 = arith.constant 2 : index
    %c0_220 = arith.constant 0 : index
    %c0_221 = arith.constant 0 : index
    %174 = vector.load %arg5[%c0_218, %c2_219, %c0_220, %c0_221] : memref<3x3x8x8xbf16, #tpu.memory_space<vmem>>, vector<1x1x8x8xbf16>
    %175 = vector.shape_cast %174 : vector<1x1x8x8xbf16> to vector<8x8xbf16>
    %cst_222 = arith.constant dense<0.000000e+00> : vector<36x8xf32>
    %176 = tpu.matmul %173, %175, %cst_222 {dimension_numbers = #tpu.dot_dimension_numbers<[1], [0], [0], [1], [0, 0, 1, 1], [], []>} : vector<36x8xbf16>, vector<8x8xbf16>, vector<36x8xf32> -> vector<36x8xf32>
    %177 = arith.addf %142, %176 : vector<36x8xf32>
    %cst_223 = arith.constant 0.000000e+00 : f32
    %178 = vector.broadcast %cst_223 : f32 to vector<36x8xf32>
    %179 = vector.broadcast %68 : vector<1x8xf32> to vector<36x8xf32>
    %180 = arith.addf %178, %179 : vector<36x8xf32>
    %cst_224 = arith.constant dense<0.000000e+00> : vector<36x8xf32>
    %181 = tpu.matmul %11, %51, %cst_224 {dimension_numbers = #tpu.dot_dimension_numbers<[1], [0], [0], [1], [0, 0, 1, 1], [], []>} : vector<36x4xbf16>, vector<4x8xbf16>, vector<36x8xf32> -> vector<36x8xf32>
    %182 = arith.addf %180, %181 : vector<36x8xf32>
    %cst_225 = arith.constant dense<0.000000e+00> : vector<36x8xf32>
    %183 = tpu.matmul %13, %53, %cst_225 {dimension_numbers = #tpu.dot_dimension_numbers<[1], [0], [0], [1], [0, 0, 1, 1], [], []>} : vector<36x4xbf16>, vector<4x8xbf16>, vector<36x8xf32> -> vector<36x8xf32>
    %184 = arith.addf %182, %183 : vector<36x8xf32>
    %cst_226 = arith.constant dense<0.000000e+00> : vector<36x8xf32>
    %185 = tpu.matmul %15, %55, %cst_226 {dimension_numbers = #tpu.dot_dimension_numbers<[1], [0], [0], [1], [0, 0, 1, 1], [], []>} : vector<36x4xbf16>, vector<4x8xbf16>, vector<36x8xf32> -> vector<36x8xf32>
    %186 = arith.addf %184, %185 : vector<36x8xf32>
    %cst_227 = arith.constant dense<0.000000e+00> : vector<36x8xf32>
    %187 = tpu.matmul %21, %57, %cst_227 {dimension_numbers = #tpu.dot_dimension_numbers<[1], [0], [0], [1], [0, 0, 1, 1], [], []>} : vector<36x4xbf16>, vector<4x8xbf16>, vector<36x8xf32> -> vector<36x8xf32>
    %188 = arith.addf %186, %187 : vector<36x8xf32>
    %cst_228 = arith.constant dense<0.000000e+00> : vector<36x8xf32>
    %189 = tpu.matmul %23, %59, %cst_228 {dimension_numbers = #tpu.dot_dimension_numbers<[1], [0], [0], [1], [0, 0, 1, 1], [], []>} : vector<36x4xbf16>, vector<4x8xbf16>, vector<36x8xf32> -> vector<36x8xf32>
    %190 = arith.addf %188, %189 : vector<36x8xf32>
    %cst_229 = arith.constant dense<0.000000e+00> : vector<36x8xf32>
    %191 = tpu.matmul %25, %61, %cst_229 {dimension_numbers = #tpu.dot_dimension_numbers<[1], [0], [0], [1], [0, 0, 1, 1], [], []>} : vector<36x4xbf16>, vector<4x8xbf16>, vector<36x8xf32> -> vector<36x8xf32>
    %192 = arith.addf %190, %191 : vector<36x8xf32>
    %cst_230 = arith.constant dense<0.000000e+00> : vector<36x8xf32>
    %193 = tpu.matmul %31, %63, %cst_230 {dimension_numbers = #tpu.dot_dimension_numbers<[1], [0], [0], [1], [0, 0, 1, 1], [], []>} : vector<36x4xbf16>, vector<4x8xbf16>, vector<36x8xf32> -> vector<36x8xf32>
    %194 = arith.addf %192, %193 : vector<36x8xf32>
    %cst_231 = arith.constant dense<0.000000e+00> : vector<36x8xf32>
    %195 = tpu.matmul %33, %65, %cst_231 {dimension_numbers = #tpu.dot_dimension_numbers<[1], [0], [0], [1], [0, 0, 1, 1], [], []>} : vector<36x4xbf16>, vector<4x8xbf16>, vector<36x8xf32> -> vector<36x8xf32>
    %196 = arith.addf %194, %195 : vector<36x8xf32>
    %cst_232 = arith.constant dense<0.000000e+00> : vector<36x8xf32>
    %197 = tpu.matmul %35, %67, %cst_232 {dimension_numbers = #tpu.dot_dimension_numbers<[1], [0], [0], [1], [0, 0, 1, 1], [], []>} : vector<36x4xbf16>, vector<4x8xbf16>, vector<36x8xf32> -> vector<36x8xf32>
    %198 = arith.addf %196, %197 : vector<36x8xf32>
    %cst_233 = arith.constant 0.000000e+00 : f32
    %199 = vector.broadcast %cst_233 : f32 to vector<36x8xf32>
    %200 = arith.cmpf oge, %198, %199 : vector<36x8xf32>
    %cst_234 = arith.constant 0.00999999977 : f32
    %201 = vector.broadcast %cst_234 : f32 to vector<36x8xf32>
    %202 = arith.mulf %201, %198 : vector<36x8xf32>
    %203 = arith.select %200, %198, %202 : vector<36x8xi1>, vector<36x8xf32>
    %c1_235 = arith.constant 1 : index
    %c0_236 = arith.constant 0 : index
    %c0_237 = arith.constant 0 : index
    %c0_238 = arith.constant 0 : index
    %204 = vector.load %arg2[%c1_235, %c0_236, %c0_237, %c0_238] : memref<3x3x36x1xf32, #tpu.memory_space<vmem>>, vector<1x1x36x1xf32>
    %205 = vector.shape_cast %204 : vector<1x1x36x1xf32> to vector<36x1xf32>
    %206 = vector.broadcast %205 : vector<36x1xf32> to vector<36x8xf32>
    %207 = arith.mulf %203, %206 : vector<36x8xf32>
    %208 = arith.truncf %207 : vector<36x8xf32> to vector<36x8xbf16>
    %c1_239 = arith.constant 1 : index
    %c0_240 = arith.constant 0 : index
    %c0_241 = arith.constant 0 : index
    %c0_242 = arith.constant 0 : index
    %209 = vector.load %arg5[%c1_239, %c0_240, %c0_241, %c0_242] : memref<3x3x8x8xbf16, #tpu.memory_space<vmem>>, vector<1x1x8x8xbf16>
    %210 = vector.shape_cast %209 : vector<1x1x8x8xbf16> to vector<8x8xbf16>
    %cst_243 = arith.constant dense<0.000000e+00> : vector<36x8xf32>
    %211 = tpu.matmul %208, %210, %cst_243 {dimension_numbers = #tpu.dot_dimension_numbers<[1], [0], [0], [1], [0, 0, 1, 1], [], []>} : vector<36x8xbf16>, vector<8x8xbf16>, vector<36x8xf32> -> vector<36x8xf32>
    %212 = arith.addf %177, %211 : vector<36x8xf32>
    %cst_244 = arith.constant 0.000000e+00 : f32
    %213 = vector.broadcast %cst_244 : f32 to vector<36x8xf32>
    %214 = vector.broadcast %68 : vector<1x8xf32> to vector<36x8xf32>
    %215 = arith.addf %213, %214 : vector<36x8xf32>
    %cst_245 = arith.constant dense<0.000000e+00> : vector<36x8xf32>
    %216 = tpu.matmul %13, %51, %cst_245 {dimension_numbers = #tpu.dot_dimension_numbers<[1], [0], [0], [1], [0, 0, 1, 1], [], []>} : vector<36x4xbf16>, vector<4x8xbf16>, vector<36x8xf32> -> vector<36x8xf32>
    %217 = arith.addf %215, %216 : vector<36x8xf32>
    %cst_246 = arith.constant dense<0.000000e+00> : vector<36x8xf32>
    %218 = tpu.matmul %15, %53, %cst_246 {dimension_numbers = #tpu.dot_dimension_numbers<[1], [0], [0], [1], [0, 0, 1, 1], [], []>} : vector<36x4xbf16>, vector<4x8xbf16>, vector<36x8xf32> -> vector<36x8xf32>
    %219 = arith.addf %217, %218 : vector<36x8xf32>
    %cst_247 = arith.constant dense<0.000000e+00> : vector<36x8xf32>
    %220 = tpu.matmul %17, %55, %cst_247 {dimension_numbers = #tpu.dot_dimension_numbers<[1], [0], [0], [1], [0, 0, 1, 1], [], []>} : vector<36x4xbf16>, vector<4x8xbf16>, vector<36x8xf32> -> vector<36x8xf32>
    %221 = arith.addf %219, %220 : vector<36x8xf32>
    %cst_248 = arith.constant dense<0.000000e+00> : vector<36x8xf32>
    %222 = tpu.matmul %23, %57, %cst_248 {dimension_numbers = #tpu.dot_dimension_numbers<[1], [0], [0], [1], [0, 0, 1, 1], [], []>} : vector<36x4xbf16>, vector<4x8xbf16>, vector<36x8xf32> -> vector<36x8xf32>
    %223 = arith.addf %221, %222 : vector<36x8xf32>
    %cst_249 = arith.constant dense<0.000000e+00> : vector<36x8xf32>
    %224 = tpu.matmul %25, %59, %cst_249 {dimension_numbers = #tpu.dot_dimension_numbers<[1], [0], [0], [1], [0, 0, 1, 1], [], []>} : vector<36x4xbf16>, vector<4x8xbf16>, vector<36x8xf32> -> vector<36x8xf32>
    %225 = arith.addf %223, %224 : vector<36x8xf32>
    %cst_250 = arith.constant dense<0.000000e+00> : vector<36x8xf32>
    %226 = tpu.matmul %27, %61, %cst_250 {dimension_numbers = #tpu.dot_dimension_numbers<[1], [0], [0], [1], [0, 0, 1, 1], [], []>} : vector<36x4xbf16>, vector<4x8xbf16>, vector<36x8xf32> -> vector<36x8xf32>
    %227 = arith.addf %225, %226 : vector<36x8xf32>
    %cst_251 = arith.constant dense<0.000000e+00> : vector<36x8xf32>
    %228 = tpu.matmul %33, %63, %cst_251 {dimension_numbers = #tpu.dot_dimension_numbers<[1], [0], [0], [1], [0, 0, 1, 1], [], []>} : vector<36x4xbf16>, vector<4x8xbf16>, vector<36x8xf32> -> vector<36x8xf32>
    %229 = arith.addf %227, %228 : vector<36x8xf32>
    %cst_252 = arith.constant dense<0.000000e+00> : vector<36x8xf32>
    %230 = tpu.matmul %35, %65, %cst_252 {dimension_numbers = #tpu.dot_dimension_numbers<[1], [0], [0], [1], [0, 0, 1, 1], [], []>} : vector<36x4xbf16>, vector<4x8xbf16>, vector<36x8xf32> -> vector<36x8xf32>
    %231 = arith.addf %229, %230 : vector<36x8xf32>
    %cst_253 = arith.constant dense<0.000000e+00> : vector<36x8xf32>
    %232 = tpu.matmul %37, %67, %cst_253 {dimension_numbers = #tpu.dot_dimension_numbers<[1], [0], [0], [1], [0, 0, 1, 1], [], []>} : vector<36x4xbf16>, vector<4x8xbf16>, vector<36x8xf32> -> vector<36x8xf32>
    %233 = arith.addf %231, %232 : vector<36x8xf32>
    %cst_254 = arith.constant 0.000000e+00 : f32
    %234 = vector.broadcast %cst_254 : f32 to vector<36x8xf32>
    %235 = arith.cmpf oge, %233, %234 : vector<36x8xf32>
    %cst_255 = arith.constant 0.00999999977 : f32
    %236 = vector.broadcast %cst_255 : f32 to vector<36x8xf32>
    %237 = arith.mulf %236, %233 : vector<36x8xf32>
    %238 = arith.select %235, %233, %237 : vector<36x8xi1>, vector<36x8xf32>
    %c1_256 = arith.constant 1 : index
    %c1_257 = arith.constant 1 : index
    %c0_258 = arith.constant 0 : index
    %c0_259 = arith.constant 0 : index
    %239 = vector.load %arg2[%c1_256, %c1_257, %c0_258, %c0_259] : memref<3x3x36x1xf32, #tpu.memory_space<vmem>>, vector<1x1x36x1xf32>
    %240 = vector.shape_cast %239 : vector<1x1x36x1xf32> to vector<36x1xf32>
    %241 = vector.broadcast %240 : vector<36x1xf32> to vector<36x8xf32>
    %242 = arith.mulf %238, %241 : vector<36x8xf32>
    %243 = arith.truncf %242 : vector<36x8xf32> to vector<36x8xbf16>
    %c1_260 = arith.constant 1 : index
    %c1_261 = arith.constant 1 : index
    %c0_262 = arith.constant 0 : index
    %c0_263 = arith.constant 0 : index
    %244 = vector.load %arg5[%c1_260, %c1_261, %c0_262, %c0_263] : memref<3x3x8x8xbf16, #tpu.memory_space<vmem>>, vector<1x1x8x8xbf16>
    %245 = vector.shape_cast %244 : vector<1x1x8x8xbf16> to vector<8x8xbf16>
    %cst_264 = arith.constant dense<0.000000e+00> : vector<36x8xf32>
    %246 = tpu.matmul %243, %245, %cst_264 {dimension_numbers = #tpu.dot_dimension_numbers<[1], [0], [0], [1], [0, 0, 1, 1], [], []>} : vector<36x8xbf16>, vector<8x8xbf16>, vector<36x8xf32> -> vector<36x8xf32>
    %247 = arith.addf %212, %246 : vector<36x8xf32>
    %cst_265 = arith.constant 0.000000e+00 : f32
    %248 = vector.broadcast %cst_265 : f32 to vector<36x8xf32>
    %249 = vector.broadcast %68 : vector<1x8xf32> to vector<36x8xf32>
    %250 = arith.addf %248, %249 : vector<36x8xf32>
    %cst_266 = arith.constant dense<0.000000e+00> : vector<36x8xf32>
    %251 = tpu.matmul %15, %51, %cst_266 {dimension_numbers = #tpu.dot_dimension_numbers<[1], [0], [0], [1], [0, 0, 1, 1], [], []>} : vector<36x4xbf16>, vector<4x8xbf16>, vector<36x8xf32> -> vector<36x8xf32>
    %252 = arith.addf %250, %251 : vector<36x8xf32>
    %cst_267 = arith.constant dense<0.000000e+00> : vector<36x8xf32>
    %253 = tpu.matmul %17, %53, %cst_267 {dimension_numbers = #tpu.dot_dimension_numbers<[1], [0], [0], [1], [0, 0, 1, 1], [], []>} : vector<36x4xbf16>, vector<4x8xbf16>, vector<36x8xf32> -> vector<36x8xf32>
    %254 = arith.addf %252, %253 : vector<36x8xf32>
    %cst_268 = arith.constant dense<0.000000e+00> : vector<36x8xf32>
    %255 = tpu.matmul %19, %55, %cst_268 {dimension_numbers = #tpu.dot_dimension_numbers<[1], [0], [0], [1], [0, 0, 1, 1], [], []>} : vector<36x4xbf16>, vector<4x8xbf16>, vector<36x8xf32> -> vector<36x8xf32>
    %256 = arith.addf %254, %255 : vector<36x8xf32>
    %cst_269 = arith.constant dense<0.000000e+00> : vector<36x8xf32>
    %257 = tpu.matmul %25, %57, %cst_269 {dimension_numbers = #tpu.dot_dimension_numbers<[1], [0], [0], [1], [0, 0, 1, 1], [], []>} : vector<36x4xbf16>, vector<4x8xbf16>, vector<36x8xf32> -> vector<36x8xf32>
    %258 = arith.addf %256, %257 : vector<36x8xf32>
    %cst_270 = arith.constant dense<0.000000e+00> : vector<36x8xf32>
    %259 = tpu.matmul %27, %59, %cst_270 {dimension_numbers = #tpu.dot_dimension_numbers<[1], [0], [0], [1], [0, 0, 1, 1], [], []>} : vector<36x4xbf16>, vector<4x8xbf16>, vector<36x8xf32> -> vector<36x8xf32>
    %260 = arith.addf %258, %259 : vector<36x8xf32>
    %cst_271 = arith.constant dense<0.000000e+00> : vector<36x8xf32>
    %261 = tpu.matmul %29, %61, %cst_271 {dimension_numbers = #tpu.dot_dimension_numbers<[1], [0], [0], [1], [0, 0, 1, 1], [], []>} : vector<36x4xbf16>, vector<4x8xbf16>, vector<36x8xf32> -> vector<36x8xf32>
    %262 = arith.addf %260, %261 : vector<36x8xf32>
    %cst_272 = arith.constant dense<0.000000e+00> : vector<36x8xf32>
    %263 = tpu.matmul %35, %63, %cst_272 {dimension_numbers = #tpu.dot_dimension_numbers<[1], [0], [0], [1], [0, 0, 1, 1], [], []>} : vector<36x4xbf16>, vector<4x8xbf16>, vector<36x8xf32> -> vector<36x8xf32>
    %264 = arith.addf %262, %263 : vector<36x8xf32>
    %cst_273 = arith.constant dense<0.000000e+00> : vector<36x8xf32>
    %265 = tpu.matmul %37, %65, %cst_273 {dimension_numbers = #tpu.dot_dimension_numbers<[1], [0], [0], [1], [0, 0, 1, 1], [], []>} : vector<36x4xbf16>, vector<4x8xbf16>, vector<36x8xf32> -> vector<36x8xf32>
    %266 = arith.addf %264, %265 : vector<36x8xf32>
    %cst_274 = arith.constant dense<0.000000e+00> : vector<36x8xf32>
    %267 = tpu.matmul %39, %67, %cst_274 {dimension_numbers = #tpu.dot_dimension_numbers<[1], [0], [0], [1], [0, 0, 1, 1], [], []>} : vector<36x4xbf16>, vector<4x8xbf16>, vector<36x8xf32> -> vector<36x8xf32>
    %268 = arith.addf %266, %267 : vector<36x8xf32>
    %cst_275 = arith.constant 0.000000e+00 : f32
    %269 = vector.broadcast %cst_275 : f32 to vector<36x8xf32>
    %270 = arith.cmpf oge, %268, %269 : vector<36x8xf32>
    %cst_276 = arith.constant 0.00999999977 : f32
    %271 = vector.broadcast %cst_276 : f32 to vector<36x8xf32>
    %272 = arith.mulf %271, %268 : vector<36x8xf32>
    %273 = arith.select %270, %268, %272 : vector<36x8xi1>, vector<36x8xf32>
    %c1_277 = arith.constant 1 : index
    %c2_278 = arith.constant 2 : index
    %c0_279 = arith.constant 0 : index
    %c0_280 = arith.constant 0 : index
    %274 = vector.load %arg2[%c1_277, %c2_278, %c0_279, %c0_280] : memref<3x3x36x1xf32, #tpu.memory_space<vmem>>, vector<1x1x36x1xf32>
    %275 = vector.shape_cast %274 : vector<1x1x36x1xf32> to vector<36x1xf32>
    %276 = vector.broadcast %275 : vector<36x1xf32> to vector<36x8xf32>
    %277 = arith.mulf %273, %276 : vector<36x8xf32>
    %278 = arith.truncf %277 : vector<36x8xf32> to vector<36x8xbf16>
    %c1_281 = arith.constant 1 : index
    %c2_282 = arith.constant 2 : index
    %c0_283 = arith.constant 0 : index
    %c0_284 = arith.constant 0 : index
    %279 = vector.load %arg5[%c1_281, %c2_282, %c0_283, %c0_284] : memref<3x3x8x8xbf16, #tpu.memory_space<vmem>>, vector<1x1x8x8xbf16>
    %280 = vector.shape_cast %279 : vector<1x1x8x8xbf16> to vector<8x8xbf16>
    %cst_285 = arith.constant dense<0.000000e+00> : vector<36x8xf32>
    %281 = tpu.matmul %278, %280, %cst_285 {dimension_numbers = #tpu.dot_dimension_numbers<[1], [0], [0], [1], [0, 0, 1, 1], [], []>} : vector<36x8xbf16>, vector<8x8xbf16>, vector<36x8xf32> -> vector<36x8xf32>
    %282 = arith.addf %247, %281 : vector<36x8xf32>
    %cst_286 = arith.constant 0.000000e+00 : f32
    %283 = vector.broadcast %cst_286 : f32 to vector<36x8xf32>
    %284 = vector.broadcast %68 : vector<1x8xf32> to vector<36x8xf32>
    %285 = arith.addf %283, %284 : vector<36x8xf32>
    %cst_287 = arith.constant dense<0.000000e+00> : vector<36x8xf32>
    %286 = tpu.matmul %21, %51, %cst_287 {dimension_numbers = #tpu.dot_dimension_numbers<[1], [0], [0], [1], [0, 0, 1, 1], [], []>} : vector<36x4xbf16>, vector<4x8xbf16>, vector<36x8xf32> -> vector<36x8xf32>
    %287 = arith.addf %285, %286 : vector<36x8xf32>
    %cst_288 = arith.constant dense<0.000000e+00> : vector<36x8xf32>
    %288 = tpu.matmul %23, %53, %cst_288 {dimension_numbers = #tpu.dot_dimension_numbers<[1], [0], [0], [1], [0, 0, 1, 1], [], []>} : vector<36x4xbf16>, vector<4x8xbf16>, vector<36x8xf32> -> vector<36x8xf32>
    %289 = arith.addf %287, %288 : vector<36x8xf32>
    %cst_289 = arith.constant dense<0.000000e+00> : vector<36x8xf32>
    %290 = tpu.matmul %25, %55, %cst_289 {dimension_numbers = #tpu.dot_dimension_numbers<[1], [0], [0], [1], [0, 0, 1, 1], [], []>} : vector<36x4xbf16>, vector<4x8xbf16>, vector<36x8xf32> -> vector<36x8xf32>
    %291 = arith.addf %289, %290 : vector<36x8xf32>
    %cst_290 = arith.constant dense<0.000000e+00> : vector<36x8xf32>
    %292 = tpu.matmul %31, %57, %cst_290 {dimension_numbers = #tpu.dot_dimension_numbers<[1], [0], [0], [1], [0, 0, 1, 1], [], []>} : vector<36x4xbf16>, vector<4x8xbf16>, vector<36x8xf32> -> vector<36x8xf32>
    %293 = arith.addf %291, %292 : vector<36x8xf32>
    %cst_291 = arith.constant dense<0.000000e+00> : vector<36x8xf32>
    %294 = tpu.matmul %33, %59, %cst_291 {dimension_numbers = #tpu.dot_dimension_numbers<[1], [0], [0], [1], [0, 0, 1, 1], [], []>} : vector<36x4xbf16>, vector<4x8xbf16>, vector<36x8xf32> -> vector<36x8xf32>
    %295 = arith.addf %293, %294 : vector<36x8xf32>
    %cst_292 = arith.constant dense<0.000000e+00> : vector<36x8xf32>
    %296 = tpu.matmul %35, %61, %cst_292 {dimension_numbers = #tpu.dot_dimension_numbers<[1], [0], [0], [1], [0, 0, 1, 1], [], []>} : vector<36x4xbf16>, vector<4x8xbf16>, vector<36x8xf32> -> vector<36x8xf32>
    %297 = arith.addf %295, %296 : vector<36x8xf32>
    %cst_293 = arith.constant dense<0.000000e+00> : vector<36x8xf32>
    %298 = tpu.matmul %41, %63, %cst_293 {dimension_numbers = #tpu.dot_dimension_numbers<[1], [0], [0], [1], [0, 0, 1, 1], [], []>} : vector<36x4xbf16>, vector<4x8xbf16>, vector<36x8xf32> -> vector<36x8xf32>
    %299 = arith.addf %297, %298 : vector<36x8xf32>
    %cst_294 = arith.constant dense<0.000000e+00> : vector<36x8xf32>
    %300 = tpu.matmul %43, %65, %cst_294 {dimension_numbers = #tpu.dot_dimension_numbers<[1], [0], [0], [1], [0, 0, 1, 1], [], []>} : vector<36x4xbf16>, vector<4x8xbf16>, vector<36x8xf32> -> vector<36x8xf32>
    %301 = arith.addf %299, %300 : vector<36x8xf32>
    %cst_295 = arith.constant dense<0.000000e+00> : vector<36x8xf32>
    %302 = tpu.matmul %45, %67, %cst_295 {dimension_numbers = #tpu.dot_dimension_numbers<[1], [0], [0], [1], [0, 0, 1, 1], [], []>} : vector<36x4xbf16>, vector<4x8xbf16>, vector<36x8xf32> -> vector<36x8xf32>
    %303 = arith.addf %301, %302 : vector<36x8xf32>
    %cst_296 = arith.constant 0.000000e+00 : f32
    %304 = vector.broadcast %cst_296 : f32 to vector<36x8xf32>
    %305 = arith.cmpf oge, %303, %304 : vector<36x8xf32>
    %cst_297 = arith.constant 0.00999999977 : f32
    %306 = vector.broadcast %cst_297 : f32 to vector<36x8xf32>
    %307 = arith.mulf %306, %303 : vector<36x8xf32>
    %308 = arith.select %305, %303, %307 : vector<36x8xi1>, vector<36x8xf32>
    %c2_298 = arith.constant 2 : index
    %c0_299 = arith.constant 0 : index
    %c0_300 = arith.constant 0 : index
    %c0_301 = arith.constant 0 : index
    %309 = vector.load %arg2[%c2_298, %c0_299, %c0_300, %c0_301] : memref<3x3x36x1xf32, #tpu.memory_space<vmem>>, vector<1x1x36x1xf32>
    %310 = vector.shape_cast %309 : vector<1x1x36x1xf32> to vector<36x1xf32>
    %311 = vector.broadcast %310 : vector<36x1xf32> to vector<36x8xf32>
    %312 = arith.mulf %308, %311 : vector<36x8xf32>
    %313 = arith.truncf %312 : vector<36x8xf32> to vector<36x8xbf16>
    %c2_302 = arith.constant 2 : index
    %c0_303 = arith.constant 0 : index
    %c0_304 = arith.constant 0 : index
    %c0_305 = arith.constant 0 : index
    %314 = vector.load %arg5[%c2_302, %c0_303, %c0_304, %c0_305] : memref<3x3x8x8xbf16, #tpu.memory_space<vmem>>, vector<1x1x8x8xbf16>
    %315 = vector.shape_cast %314 : vector<1x1x8x8xbf16> to vector<8x8xbf16>
    %cst_306 = arith.constant dense<0.000000e+00> : vector<36x8xf32>
    %316 = tpu.matmul %313, %315, %cst_306 {dimension_numbers = #tpu.dot_dimension_numbers<[1], [0], [0], [1], [0, 0, 1, 1], [], []>} : vector<36x8xbf16>, vector<8x8xbf16>, vector<36x8xf32> -> vector<36x8xf32>
    %317 = arith.addf %282, %316 : vector<36x8xf32>
    %cst_307 = arith.constant 0.000000e+00 : f32
    %318 = vector.broadcast %cst_307 : f32 to vector<36x8xf32>
    %319 = vector.broadcast %68 : vector<1x8xf32> to vector<36x8xf32>
    %320 = arith.addf %318, %319 : vector<36x8xf32>
    %cst_308 = arith.constant dense<0.000000e+00> : vector<36x8xf32>
    %321 = tpu.matmul %23, %51, %cst_308 {dimension_numbers = #tpu.dot_dimension_numbers<[1], [0], [0], [1], [0, 0, 1, 1], [], []>} : vector<36x4xbf16>, vector<4x8xbf16>, vector<36x8xf32> -> vector<36x8xf32>
    %322 = arith.addf %320, %321 : vector<36x8xf32>
    %cst_309 = arith.constant dense<0.000000e+00> : vector<36x8xf32>
    %323 = tpu.matmul %25, %53, %cst_309 {dimension_numbers = #tpu.dot_dimension_numbers<[1], [0], [0], [1], [0, 0, 1, 1], [], []>} : vector<36x4xbf16>, vector<4x8xbf16>, vector<36x8xf32> -> vector<36x8xf32>
    %324 = arith.addf %322, %323 : vector<36x8xf32>
    %cst_310 = arith.constant dense<0.000000e+00> : vector<36x8xf32>
    %325 = tpu.matmul %27, %55, %cst_310 {dimension_numbers = #tpu.dot_dimension_numbers<[1], [0], [0], [1], [0, 0, 1, 1], [], []>} : vector<36x4xbf16>, vector<4x8xbf16>, vector<36x8xf32> -> vector<36x8xf32>
    %326 = arith.addf %324, %325 : vector<36x8xf32>
    %cst_311 = arith.constant dense<0.000000e+00> : vector<36x8xf32>
    %327 = tpu.matmul %33, %57, %cst_311 {dimension_numbers = #tpu.dot_dimension_numbers<[1], [0], [0], [1], [0, 0, 1, 1], [], []>} : vector<36x4xbf16>, vector<4x8xbf16>, vector<36x8xf32> -> vector<36x8xf32>
    %328 = arith.addf %326, %327 : vector<36x8xf32>
    %cst_312 = arith.constant dense<0.000000e+00> : vector<36x8xf32>
    %329 = tpu.matmul %35, %59, %cst_312 {dimension_numbers = #tpu.dot_dimension_numbers<[1], [0], [0], [1], [0, 0, 1, 1], [], []>} : vector<36x4xbf16>, vector<4x8xbf16>, vector<36x8xf32> -> vector<36x8xf32>
    %330 = arith.addf %328, %329 : vector<36x8xf32>
    %cst_313 = arith.constant dense<0.000000e+00> : vector<36x8xf32>
    %331 = tpu.matmul %37, %61, %cst_313 {dimension_numbers = #tpu.dot_dimension_numbers<[1], [0], [0], [1], [0, 0, 1, 1], [], []>} : vector<36x4xbf16>, vector<4x8xbf16>, vector<36x8xf32> -> vector<36x8xf32>
    %332 = arith.addf %330, %331 : vector<36x8xf32>
    %cst_314 = arith.constant dense<0.000000e+00> : vector<36x8xf32>
    %333 = tpu.matmul %43, %63, %cst_314 {dimension_numbers = #tpu.dot_dimension_numbers<[1], [0], [0], [1], [0, 0, 1, 1], [], []>} : vector<36x4xbf16>, vector<4x8xbf16>, vector<36x8xf32> -> vector<36x8xf32>
    %334 = arith.addf %332, %333 : vector<36x8xf32>
    %cst_315 = arith.constant dense<0.000000e+00> : vector<36x8xf32>
    %335 = tpu.matmul %45, %65, %cst_315 {dimension_numbers = #tpu.dot_dimension_numbers<[1], [0], [0], [1], [0, 0, 1, 1], [], []>} : vector<36x4xbf16>, vector<4x8xbf16>, vector<36x8xf32> -> vector<36x8xf32>
    %336 = arith.addf %334, %335 : vector<36x8xf32>
    %cst_316 = arith.constant dense<0.000000e+00> : vector<36x8xf32>
    %337 = tpu.matmul %47, %67, %cst_316 {dimension_numbers = #tpu.dot_dimension_numbers<[1], [0], [0], [1], [0, 0, 1, 1], [], []>} : vector<36x4xbf16>, vector<4x8xbf16>, vector<36x8xf32> -> vector<36x8xf32>
    %338 = arith.addf %336, %337 : vector<36x8xf32>
    %cst_317 = arith.constant 0.000000e+00 : f32
    %339 = vector.broadcast %cst_317 : f32 to vector<36x8xf32>
    %340 = arith.cmpf oge, %338, %339 : vector<36x8xf32>
    %cst_318 = arith.constant 0.00999999977 : f32
    %341 = vector.broadcast %cst_318 : f32 to vector<36x8xf32>
    %342 = arith.mulf %341, %338 : vector<36x8xf32>
    %343 = arith.select %340, %338, %342 : vector<36x8xi1>, vector<36x8xf32>
    %c2_319 = arith.constant 2 : index
    %c1_320 = arith.constant 1 : index
    %c0_321 = arith.constant 0 : index
    %c0_322 = arith.constant 0 : index
    %344 = vector.load %arg2[%c2_319, %c1_320, %c0_321, %c0_322] : memref<3x3x36x1xf32, #tpu.memory_space<vmem>>, vector<1x1x36x1xf32>
    %345 = vector.shape_cast %344 : vector<1x1x36x1xf32> to vector<36x1xf32>
    %346 = vector.broadcast %345 : vector<36x1xf32> to vector<36x8xf32>
    %347 = arith.mulf %343, %346 : vector<36x8xf32>
    %348 = arith.truncf %347 : vector<36x8xf32> to vector<36x8xbf16>
    %c2_323 = arith.constant 2 : index
    %c1_324 = arith.constant 1 : index
    %c0_325 = arith.constant 0 : index
    %c0_326 = arith.constant 0 : index
    %349 = vector.load %arg5[%c2_323, %c1_324, %c0_325, %c0_326] : memref<3x3x8x8xbf16, #tpu.memory_space<vmem>>, vector<1x1x8x8xbf16>
    %350 = vector.shape_cast %349 : vector<1x1x8x8xbf16> to vector<8x8xbf16>
    %cst_327 = arith.constant dense<0.000000e+00> : vector<36x8xf32>
    %351 = tpu.matmul %348, %350, %cst_327 {dimension_numbers = #tpu.dot_dimension_numbers<[1], [0], [0], [1], [0, 0, 1, 1], [], []>} : vector<36x8xbf16>, vector<8x8xbf16>, vector<36x8xf32> -> vector<36x8xf32>
    %352 = arith.addf %317, %351 : vector<36x8xf32>
    %cst_328 = arith.constant 0.000000e+00 : f32
    %353 = vector.broadcast %cst_328 : f32 to vector<36x8xf32>
    %354 = vector.broadcast %68 : vector<1x8xf32> to vector<36x8xf32>
    %355 = arith.addf %353, %354 : vector<36x8xf32>
    %cst_329 = arith.constant dense<0.000000e+00> : vector<36x8xf32>
    %356 = tpu.matmul %25, %51, %cst_329 {dimension_numbers = #tpu.dot_dimension_numbers<[1], [0], [0], [1], [0, 0, 1, 1], [], []>} : vector<36x4xbf16>, vector<4x8xbf16>, vector<36x8xf32> -> vector<36x8xf32>
    %357 = arith.addf %355, %356 : vector<36x8xf32>
    %cst_330 = arith.constant dense<0.000000e+00> : vector<36x8xf32>
    %358 = tpu.matmul %27, %53, %cst_330 {dimension_numbers = #tpu.dot_dimension_numbers<[1], [0], [0], [1], [0, 0, 1, 1], [], []>} : vector<36x4xbf16>, vector<4x8xbf16>, vector<36x8xf32> -> vector<36x8xf32>
    %359 = arith.addf %357, %358 : vector<36x8xf32>
    %cst_331 = arith.constant dense<0.000000e+00> : vector<36x8xf32>
    %360 = tpu.matmul %29, %55, %cst_331 {dimension_numbers = #tpu.dot_dimension_numbers<[1], [0], [0], [1], [0, 0, 1, 1], [], []>} : vector<36x4xbf16>, vector<4x8xbf16>, vector<36x8xf32> -> vector<36x8xf32>
    %361 = arith.addf %359, %360 : vector<36x8xf32>
    %cst_332 = arith.constant dense<0.000000e+00> : vector<36x8xf32>
    %362 = tpu.matmul %35, %57, %cst_332 {dimension_numbers = #tpu.dot_dimension_numbers<[1], [0], [0], [1], [0, 0, 1, 1], [], []>} : vector<36x4xbf16>, vector<4x8xbf16>, vector<36x8xf32> -> vector<36x8xf32>
    %363 = arith.addf %361, %362 : vector<36x8xf32>
    %cst_333 = arith.constant dense<0.000000e+00> : vector<36x8xf32>
    %364 = tpu.matmul %37, %59, %cst_333 {dimension_numbers = #tpu.dot_dimension_numbers<[1], [0], [0], [1], [0, 0, 1, 1], [], []>} : vector<36x4xbf16>, vector<4x8xbf16>, vector<36x8xf32> -> vector<36x8xf32>
    %365 = arith.addf %363, %364 : vector<36x8xf32>
    %cst_334 = arith.constant dense<0.000000e+00> : vector<36x8xf32>
    %366 = tpu.matmul %39, %61, %cst_334 {dimension_numbers = #tpu.dot_dimension_numbers<[1], [0], [0], [1], [0, 0, 1, 1], [], []>} : vector<36x4xbf16>, vector<4x8xbf16>, vector<36x8xf32> -> vector<36x8xf32>
    %367 = arith.addf %365, %366 : vector<36x8xf32>
    %cst_335 = arith.constant dense<0.000000e+00> : vector<36x8xf32>
    %368 = tpu.matmul %45, %63, %cst_335 {dimension_numbers = #tpu.dot_dimension_numbers<[1], [0], [0], [1], [0, 0, 1, 1], [], []>} : vector<36x4xbf16>, vector<4x8xbf16>, vector<36x8xf32> -> vector<36x8xf32>
    %369 = arith.addf %367, %368 : vector<36x8xf32>
    %cst_336 = arith.constant dense<0.000000e+00> : vector<36x8xf32>
    %370 = tpu.matmul %47, %65, %cst_336 {dimension_numbers = #tpu.dot_dimension_numbers<[1], [0], [0], [1], [0, 0, 1, 1], [], []>} : vector<36x4xbf16>, vector<4x8xbf16>, vector<36x8xf32> -> vector<36x8xf32>
    %371 = arith.addf %369, %370 : vector<36x8xf32>
    %cst_337 = arith.constant dense<0.000000e+00> : vector<36x8xf32>
    %372 = tpu.matmul %49, %67, %cst_337 {dimension_numbers = #tpu.dot_dimension_numbers<[1], [0], [0], [1], [0, 0, 1, 1], [], []>} : vector<36x4xbf16>, vector<4x8xbf16>, vector<36x8xf32> -> vector<36x8xf32>
    %373 = arith.addf %371, %372 : vector<36x8xf32>
    %cst_338 = arith.constant 0.000000e+00 : f32
    %374 = vector.broadcast %cst_338 : f32 to vector<36x8xf32>
    %375 = arith.cmpf oge, %373, %374 : vector<36x8xf32>
    %cst_339 = arith.constant 0.00999999977 : f32
    %376 = vector.broadcast %cst_339 : f32 to vector<36x8xf32>
    %377 = arith.mulf %376, %373 : vector<36x8xf32>
    %378 = arith.select %375, %373, %377 : vector<36x8xi1>, vector<36x8xf32>
    %c2_340 = arith.constant 2 : index
    %c2_341 = arith.constant 2 : index
    %c0_342 = arith.constant 0 : index
    %c0_343 = arith.constant 0 : index
    %379 = vector.load %arg2[%c2_340, %c2_341, %c0_342, %c0_343] : memref<3x3x36x1xf32, #tpu.memory_space<vmem>>, vector<1x1x36x1xf32>
    %380 = vector.shape_cast %379 : vector<1x1x36x1xf32> to vector<36x1xf32>
    %381 = vector.broadcast %380 : vector<36x1xf32> to vector<36x8xf32>
    %382 = arith.mulf %378, %381 : vector<36x8xf32>
    %383 = arith.truncf %382 : vector<36x8xf32> to vector<36x8xbf16>
    %c2_344 = arith.constant 2 : index
    %c2_345 = arith.constant 2 : index
    %c0_346 = arith.constant 0 : index
    %c0_347 = arith.constant 0 : index
    %384 = vector.load %arg5[%c2_344, %c2_345, %c0_346, %c0_347] : memref<3x3x8x8xbf16, #tpu.memory_space<vmem>>, vector<1x1x8x8xbf16>
    %385 = vector.shape_cast %384 : vector<1x1x8x8xbf16> to vector<8x8xbf16>
    %cst_348 = arith.constant dense<0.000000e+00> : vector<36x8xf32>
    %386 = tpu.matmul %383, %385, %cst_348 {dimension_numbers = #tpu.dot_dimension_numbers<[1], [0], [0], [1], [0, 0, 1, 1], [], []>} : vector<36x8xbf16>, vector<8x8xbf16>, vector<36x8xf32> -> vector<36x8xf32>
    %387 = arith.addf %352, %386 : vector<36x8xf32>
    %c0_349 = arith.constant 0 : index
    %c0_350 = arith.constant 0 : index
    %c0_351 = arith.constant 0 : index
    %c0_352 = arith.constant 0 : index
    %388 = vector.load %arg4[%c0_349, %c0_350, %c0_351, %c0_352] : memref<3x3x4x8xbf16, #tpu.memory_space<vmem>>, vector<1x1x4x8xbf16>
    %389 = vector.shape_cast %388 : vector<1x1x4x8xbf16> to vector<4x8xbf16>
    %cst_353 = arith.constant dense<0.000000e+00> : vector<36x8xf32>
    %390 = tpu.matmul %13, %389, %cst_353 {dimension_numbers = #tpu.dot_dimension_numbers<[1], [0], [0], [1], [0, 0, 1, 1], [], []>} : vector<36x4xbf16>, vector<4x8xbf16>, vector<36x8xf32> -> vector<36x8xf32>
    %391 = arith.addf %387, %390 : vector<36x8xf32>
    %c0_354 = arith.constant 0 : index
    %c1_355 = arith.constant 1 : index
    %c0_356 = arith.constant 0 : index
    %c0_357 = arith.constant 0 : index
    %392 = vector.load %arg4[%c0_354, %c1_355, %c0_356, %c0_357] : memref<3x3x4x8xbf16, #tpu.memory_space<vmem>>, vector<1x1x4x8xbf16>
    %393 = vector.shape_cast %392 : vector<1x1x4x8xbf16> to vector<4x8xbf16>
    %cst_358 = arith.constant dense<0.000000e+00> : vector<36x8xf32>
    %394 = tpu.matmul %15, %393, %cst_358 {dimension_numbers = #tpu.dot_dimension_numbers<[1], [0], [0], [1], [0, 0, 1, 1], [], []>} : vector<36x4xbf16>, vector<4x8xbf16>, vector<36x8xf32> -> vector<36x8xf32>
    %395 = arith.addf %391, %394 : vector<36x8xf32>
    %c0_359 = arith.constant 0 : index
    %c2_360 = arith.constant 2 : index
    %c0_361 = arith.constant 0 : index
    %c0_362 = arith.constant 0 : index
    %396 = vector.load %arg4[%c0_359, %c2_360, %c0_361, %c0_362] : memref<3x3x4x8xbf16, #tpu.memory_space<vmem>>, vector<1x1x4x8xbf16>
    %397 = vector.shape_cast %396 : vector<1x1x4x8xbf16> to vector<4x8xbf16>
    %cst_363 = arith.constant dense<0.000000e+00> : vector<36x8xf32>
    %398 = tpu.matmul %17, %397, %cst_363 {dimension_numbers = #tpu.dot_dimension_numbers<[1], [0], [0], [1], [0, 0, 1, 1], [], []>} : vector<36x4xbf16>, vector<4x8xbf16>, vector<36x8xf32> -> vector<36x8xf32>
    %399 = arith.addf %395, %398 : vector<36x8xf32>
    %c1_364 = arith.constant 1 : index
    %c0_365 = arith.constant 0 : index
    %c0_366 = arith.constant 0 : index
    %c0_367 = arith.constant 0 : index
    %400 = vector.load %arg4[%c1_364, %c0_365, %c0_366, %c0_367] : memref<3x3x4x8xbf16, #tpu.memory_space<vmem>>, vector<1x1x4x8xbf16>
    %401 = vector.shape_cast %400 : vector<1x1x4x8xbf16> to vector<4x8xbf16>
    %cst_368 = arith.constant dense<0.000000e+00> : vector<36x8xf32>
    %402 = tpu.matmul %23, %401, %cst_368 {dimension_numbers = #tpu.dot_dimension_numbers<[1], [0], [0], [1], [0, 0, 1, 1], [], []>} : vector<36x4xbf16>, vector<4x8xbf16>, vector<36x8xf32> -> vector<36x8xf32>
    %403 = arith.addf %399, %402 : vector<36x8xf32>
    %c1_369 = arith.constant 1 : index
    %c1_370 = arith.constant 1 : index
    %c0_371 = arith.constant 0 : index
    %c0_372 = arith.constant 0 : index
    %404 = vector.load %arg4[%c1_369, %c1_370, %c0_371, %c0_372] : memref<3x3x4x8xbf16, #tpu.memory_space<vmem>>, vector<1x1x4x8xbf16>
    %405 = vector.shape_cast %404 : vector<1x1x4x8xbf16> to vector<4x8xbf16>
    %cst_373 = arith.constant dense<0.000000e+00> : vector<36x8xf32>
    %406 = tpu.matmul %25, %405, %cst_373 {dimension_numbers = #tpu.dot_dimension_numbers<[1], [0], [0], [1], [0, 0, 1, 1], [], []>} : vector<36x4xbf16>, vector<4x8xbf16>, vector<36x8xf32> -> vector<36x8xf32>
    %407 = arith.addf %403, %406 : vector<36x8xf32>
    %c1_374 = arith.constant 1 : index
    %c2_375 = arith.constant 2 : index
    %c0_376 = arith.constant 0 : index
    %c0_377 = arith.constant 0 : index
    %408 = vector.load %arg4[%c1_374, %c2_375, %c0_376, %c0_377] : memref<3x3x4x8xbf16, #tpu.memory_space<vmem>>, vector<1x1x4x8xbf16>
    %409 = vector.shape_cast %408 : vector<1x1x4x8xbf16> to vector<4x8xbf16>
    %cst_378 = arith.constant dense<0.000000e+00> : vector<36x8xf32>
    %410 = tpu.matmul %27, %409, %cst_378 {dimension_numbers = #tpu.dot_dimension_numbers<[1], [0], [0], [1], [0, 0, 1, 1], [], []>} : vector<36x4xbf16>, vector<4x8xbf16>, vector<36x8xf32> -> vector<36x8xf32>
    %411 = arith.addf %407, %410 : vector<36x8xf32>
    %c2_379 = arith.constant 2 : index
    %c0_380 = arith.constant 0 : index
    %c0_381 = arith.constant 0 : index
    %c0_382 = arith.constant 0 : index
    %412 = vector.load %arg4[%c2_379, %c0_380, %c0_381, %c0_382] : memref<3x3x4x8xbf16, #tpu.memory_space<vmem>>, vector<1x1x4x8xbf16>
    %413 = vector.shape_cast %412 : vector<1x1x4x8xbf16> to vector<4x8xbf16>
    %cst_383 = arith.constant dense<0.000000e+00> : vector<36x8xf32>
    %414 = tpu.matmul %33, %413, %cst_383 {dimension_numbers = #tpu.dot_dimension_numbers<[1], [0], [0], [1], [0, 0, 1, 1], [], []>} : vector<36x4xbf16>, vector<4x8xbf16>, vector<36x8xf32> -> vector<36x8xf32>
    %415 = arith.addf %411, %414 : vector<36x8xf32>
    %c2_384 = arith.constant 2 : index
    %c1_385 = arith.constant 1 : index
    %c0_386 = arith.constant 0 : index
    %c0_387 = arith.constant 0 : index
    %416 = vector.load %arg4[%c2_384, %c1_385, %c0_386, %c0_387] : memref<3x3x4x8xbf16, #tpu.memory_space<vmem>>, vector<1x1x4x8xbf16>
    %417 = vector.shape_cast %416 : vector<1x1x4x8xbf16> to vector<4x8xbf16>
    %cst_388 = arith.constant dense<0.000000e+00> : vector<36x8xf32>
    %418 = tpu.matmul %35, %417, %cst_388 {dimension_numbers = #tpu.dot_dimension_numbers<[1], [0], [0], [1], [0, 0, 1, 1], [], []>} : vector<36x4xbf16>, vector<4x8xbf16>, vector<36x8xf32> -> vector<36x8xf32>
    %419 = arith.addf %415, %418 : vector<36x8xf32>
    %c2_389 = arith.constant 2 : index
    %c2_390 = arith.constant 2 : index
    %c0_391 = arith.constant 0 : index
    %c0_392 = arith.constant 0 : index
    %420 = vector.load %arg4[%c2_389, %c2_390, %c0_391, %c0_392] : memref<3x3x4x8xbf16, #tpu.memory_space<vmem>>, vector<1x1x4x8xbf16>
    %421 = vector.shape_cast %420 : vector<1x1x4x8xbf16> to vector<4x8xbf16>
    %cst_393 = arith.constant dense<0.000000e+00> : vector<36x8xf32>
    %422 = tpu.matmul %37, %421, %cst_393 {dimension_numbers = #tpu.dot_dimension_numbers<[1], [0], [0], [1], [0, 0, 1, 1], [], []>} : vector<36x4xbf16>, vector<4x8xbf16>, vector<36x8xf32> -> vector<36x8xf32>
    %423 = arith.addf %419, %422 : vector<36x8xf32>
    %c0_394 = arith.constant 0 : index
    %c0_395 = arith.constant 0 : index
    %c0_396 = arith.constant 0 : index
    %424 = vector.load %arg8[%c0_394, %c0_395, %c0_396] : memref<1x36x8xf32, #tpu.memory_space<vmem>>, vector<1x36x8xf32>
    %425 = vector.shape_cast %424 : vector<1x36x8xf32> to vector<36x8xf32>
    %426 = vector.shape_cast %423 : vector<36x8xf32> to vector<1x36x8xf32>
    tpu.vector_store %arg8[%c0_394, %c0_395, %c0_396], %426 {strides = array<i32>} : memref<1x36x8xf32, #tpu.memory_space<vmem>>, vector<1x36x8xf32>,
    return
  }
  func.func @transform_0(%arg0: i32) -> (i32, i32, i32, i32, i32) {
    %c0_i32 = arith.constant 0 : i32
    %c0_i32_0 = arith.constant 0 : i32
    %c0_i32_1 = arith.constant 0 : i32
    %c0_i32_2 = arith.constant 0 : i32
    %c0_i32_3 = arith.constant 0 : i32
    return %arg0, %c0_i32, %c0_i32_0, %c0_i32_1, %c0_i32_2 : i32, i32, i32, i32, i32
  }
  func.func @transform_1(%arg0: i32) -> (i32, i32, i32, i32) {
    %c0_i32 = arith.constant 0 : i32
    %c0_i32_0 = arith.constant 0 : i32
    %c0_i32_1 = arith.constant 0 : i32
    %c0_i32_2 = arith.constant 0 : i32
    %c0_i32_3 = arith.constant 0 : i32
    return %c0_i32, %c0_i32_0, %c0_i32_1, %c0_i32_2 : i32, i32, i32, i32
  }
  func.func @transform_2(%arg0: i32) -> (i32, i32, i32, i32) {
    %c0_i32 = arith.constant 0 : i32
    %c0_i32_0 = arith.constant 0 : i32
    %c0_i32_1 = arith.constant 0 : i32
    %c0_i32_2 = arith.constant 0 : i32
    %c0_i32_3 = arith.constant 0 : i32
    return %c0_i32, %c0_i32_0, %c0_i32_1, %c0_i32_2 : i32, i32, i32, i32
  }
  func.func @transform_3(%arg0: i32) -> (i32, i32, i32, i32) {
    %c0_i32 = arith.constant 0 : i32
    %c0_i32_0 = arith.constant 0 : i32
    %c0_i32_1 = arith.constant 0 : i32
    %c0_i32_2 = arith.constant 0 : i32
    %c0_i32_3 = arith.constant 0 : i32
    return %c0_i32, %c0_i32_0, %c0_i32_1, %c0_i32_2 : i32, i32, i32, i32
  }
  func.func @transform_4(%arg0: i32) -> (i32, i32, i32, i32) {
    %c0_i32 = arith.constant 0 : i32
    %c0_i32_0 = arith.constant 0 : i32
    %c0_i32_1 = arith.constant 0 : i32
    %c0_i32_2 = arith.constant 0 : i32
    %c0_i32_3 = arith.constant 0 : i32
    return %c0_i32, %c0_i32_0, %c0_i32_1, %c0_i32_2 : i32, i32, i32, i32
  }
  func.func @transform_5(%arg0: i32) -> (i32, i32) {
    %c0_i32 = arith.constant 0 : i32
    %c0_i32_0 = arith.constant 0 : i32
    %c0_i32_1 = arith.constant 0 : i32
    return %c0_i32, %c0_i32_0 : i32, i32
  }
  func.func @transform_6(%arg0: i32) -> (i32, i32) {
    %c0_i32 = arith.constant 0 : i32
    %c0_i32_0 = arith.constant 0 : i32
    %c0_i32_1 = arith.constant 0 : i32
    return %c0_i32, %c0_i32_0 : i32, i32
  }
  func.func @transform_7(%arg0: i32) -> (i32, i32, i32) {
    %c0_i32 = arith.constant 0 : i32
    %c0_i32_0 = arith.constant 0 : i32
    %c0_i32_1 = arith.constant 0 : i32
    return %arg0, %c0_i32, %c0_i32_0 : i32, i32, i32
  }
}

</mosaic_0001>

<llo_original>
// kernel: resnet_block_forward.1
$region0: #{resnet_block_forward.1}
  #allocation0 [shape = 'u32[]', space=smem, size = 0x4, offset = 0x4, fixed_abs, tag = 'smem constant byte address 0x4 - core index']
  #allocation1 [shape = 'u32[144,128]{1,0:T(1,128)}', space=vmem, size = 0x12000, scoped, tag = 'internal scratch']
  %s0 = inlined_call_operand.vmem [shape: bf16[2,5,5,36,4], index: 0, kind: input, shape index: {}]
  %s1 = inlined_call_operand.vmem [shape: f32[3,3,36,1], index: 1, kind: input, shape index: {}]
  %s2 = inlined_call_operand.vmem [shape: bf16[3,3,4,8], index: 2, kind: input, shape index: {}]
  %s3 = inlined_call_operand.vmem [shape: bf16[3,3,4,8], index: 3, kind: input, shape index: {}]
  %s4 = inlined_call_operand.vmem [shape: bf16[3,3,8,8], index: 4, kind: input, shape index: {}]
  %s5 = inlined_call_operand.vmem [shape: f32[1,8], index: 5, kind: input, shape index: {}]
  %s6 = inlined_call_operand.vmem [shape: f32[1,8], index: 6, kind: input, shape index: {}]
  %s7 = inlined_call_operand.vmem [shape: f32[2,36,8], index: 7, kind: output, shape index: {}]
  %s8 = sld [smem:[#allocation0]]
  $region61: #{resnet_block_forward.1} parent=0
    _
  %s10 = ssub.s32 1, %s8
  %s11 = scalar_select 0, %s10, %s8
  loop: start=0, step=1, limit=4
  $region2: #{resnet_block_forward.1} parent=0 // loop_pre_header
    _
  $region3: #{resnet_block_forward.1} parent=0 // loop_header
    %s13 = sphi 0, %s17
    %p14 = scmp.ge.s32.totalorder %s13, 4
    %s23 = sphi 0, %s25
    %s26 = sphi 0, %s23
    %s27 = sphi 0, %s26
    %s43 = sphi 0, %s27
    %s47 = sphi 0, %s47
    %s49 = sphi 0, %s47
    %s50 = sphi 0, %s49
    %s64 = sphi 0, %s50
    %s68 = sphi 0, %s68
    %s70 = sphi 0, %s68
    %s71 = sphi 0, %s70
    %s85 = sphi 0, %s71
    %s89 = sphi 0, %s89
    %s91 = sphi 0, %s89
    %s92 = sphi 0, %s91
    %s106 = sphi 0, %s92
    %s110 = sphi 0, %s110
    %s112 = sphi 0, %s110
    %s113 = sphi 0, %s112
    %s127 = sphi 0, %s113
    %s131 = sphi 0, %s131
    %s133 = sphi 0, %s131
    %s134 = sphi 0, %s133
    %s148 = sphi 0, %s134
    %s152 = sphi 0, %s152
    %s154 = sphi 0, %s152
    %s155 = sphi 0, %s154
    %s169 = sphi 0, %s155
    %s175 = sphi 0, %s177
    %s178 = sphi 0, %s175
    %s179 = sphi 0, %s178
    %s195 = sphi 0, %s179
  $region4: #{resnet_block_forward.1} parent=0 // loop_header_branch
    %16 = sbr.rel (%p14) target = $region8
  $region5: #{resnet_block_forward.1} parent=0 // loop_body
    %s18 = ssub.s32 %s13, 1
    %s19 = ssub.s32 %s13, 2
    %s20 = sadd.s32 %s13, 1
    %s21 = ssub.s32 %s13, %s20
    %p22 = scmp.eq.s32.totalorder %s21, 0
    %s24 = sadd.s32 %s23, 1
    %s25 = scalar_select %p22, %s23, %s24
    %p28 = pneg %p22
    %p29 = scmp.eq.s32.totalorder %s13, 1
    %p30 = por %p28, %p29
    %p31 = scmp.ne.s32.totalorder %s23, %s26
    %p32 = scmp.eq.s32.totalorder %s13, 0
    %p33 = por %p31, %p32
    %p34 = scmp.ne.s32.totalorder %s23, %s26
    %p35 = scmp.eq.s32.totalorder %s18, 1
    %p36 = por %p34, %p35
    %p37 = scmp.ne.s32.totalorder %s26, %s27
    %p38 = scmp.eq.s32.totalorder %s18, 0
    %p39 = por %p37, %p38
    %p40 = scmp.ne.s32.totalorder %s26, %s27
    %p41 = scmp.eq.s32.totalorder %s19, 1
    %p42 = por %p40, %p41
    %p44 = scmp.ne.s32.totalorder %s27, %s43
    %p45 = scmp.eq.s32.totalorder %s19, 0
    %p46 = por %p44, %p45
    %s48 = sadd.s32 %s47, 1
    %p51 = scmp.eq.s32.totalorder %s13, 1
    %p52 = scmp.ne.s32.totalorder %s47, %s49
    %p53 = scmp.eq.s32.totalorder %s13, 0
    %p54 = por %p52, %p53
    %p55 = scmp.ne.s32.totalorder %s47, %s49
    %p56 = scmp.eq.s32.totalorder %s18, 1
    %p57 = por %p55, %p56
    %p58 = scmp.ne.s32.totalorder %s49, %s50
    %p59 = scmp.eq.s32.totalorder %s18, 0
    %p60 = por %p58, %p59
    %p61 = scmp.ne.s32.totalorder %s49, %s50
    %p62 = scmp.eq.s32.totalorder %s19, 1
    %p63 = por %p61, %p62
    %p65 = scmp.ne.s32.totalorder %s50, %s64
    %p66 = scmp.eq.s32.totalorder %s19, 0
    %p67 = por %p65, %p66
    %s69 = sadd.s32 %s68, 1
    %p72 = scmp.eq.s32.totalorder %s13, 1
    %p73 = scmp.ne.s32.totalorder %s68, %s70
    %p74 = scmp.eq.s32.totalorder %s13, 0
    %p75 = por %p73, %p74
    %p76 = scmp.ne.s32.totalorder %s68, %s70
    %p77 = scmp.eq.s32.totalorder %s18, 1
    %p78 = por %p76, %p77
    %p79 = scmp.ne.s32.totalorder %s70, %s71
    %p80 = scmp.eq.s32.totalorder %s18, 0
    %p81 = por %p79, %p80
    %p82 = scmp.ne.s32.totalorder %s70, %s71
    %p83 = scmp.eq.s32.totalorder %s19, 1
    %p84 = por %p82, %p83
    %p86 = scmp.ne.s32.totalorder %s71, %s85
    %p87 = scmp.eq.s32.totalorder %s19, 0
    %p88 = por %p86, %p87
    %s90 = sadd.s32 %s89, 1
    %p93 = scmp.eq.s32.totalorder %s13, 1
    %p94 = scmp.ne.s32.totalorder %s89, %s91
    %p95 = scmp.eq.s32.totalorder %s13, 0
    %p96 = por %p94, %p95
    %p97 = scmp.ne.s32.totalorder %s89, %s91
    %p98 = scmp.eq.s32.totalorder %s18, 1
    %p99 = por %p97, %p98
    %p100 = scmp.ne.s32.totalorder %s91, %s92
    %p101 = scmp.eq.s32.totalorder %s18, 0
    %p102 = por %p100, %p101
    %p103 = scmp.ne.s32.totalorder %s91, %s92
    %p104 = scmp.eq.s32.totalorder %s19, 1
    %p105 = por %p103, %p104
    %p107 = scmp.ne.s32.totalorder %s92, %s106
    %p108 = scmp.eq.s32.totalorder %s19, 0
    %p109 = por %p107, %p108
    %s111 = sadd.s32 %s110, 1
    %p114 = scmp.eq.s32.totalorder %s13, 1
    %p115 = scmp.ne.s32.totalorder %s110, %s112
    %p116 = scmp.eq.s32.totalorder %s13, 0
    %p117 = por %p115, %p116
    %p118 = scmp.ne.s32.totalorder %s110, %s112
    %p119 = scmp.eq.s32.totalorder %s18, 1
    %p120 = por %p118, %p119
    %p121 = scmp.ne.s32.totalorder %s112, %s113
    %p122 = scmp.eq.s32.totalorder %s18, 0
    %p123 = por %p121, %p122
    %p124 = scmp.ne.s32.totalorder %s112, %s113
    %p125 = scmp.eq.s32.totalorder %s19, 1
    %p126 = por %p124, %p125
    %p128 = scmp.ne.s32.totalorder %s113, %s127
    %p129 = scmp.eq.s32.totalorder %s19, 0
    %p130 = por %p128, %p129
    %s132 = sadd.s32 %s131, 1
    %p135 = scmp.eq.s32.totalorder %s13, 1
    %p136 = scmp.ne.s32.totalorder %s131, %s133
    %p137 = scmp.eq.s32.totalorder %s13, 0
    %p138 = por %p136, %p137
    %p139 = scmp.ne.s32.totalorder %s131, %s133
    %p140 = scmp.eq.s32.totalorder %s18, 1
    %p141 = por %p139, %p140
    %p142 = scmp.ne.s32.totalorder %s133, %s134
    %p143 = scmp.eq.s32.totalorder %s18, 0
    %p144 = por %p142, %p143
    %p145 = scmp.ne.s32.totalorder %s133, %s134
    %p146 = scmp.eq.s32.totalorder %s19, 1
    %p147 = por %p145, %p146
    %p149 = scmp.ne.s32.totalorder %s134, %s148
    %p150 = scmp.eq.s32.totalorder %s19, 0
    %p151 = por %p149, %p150
    %s153 = sadd.s32 %s152, 1
    %p156 = scmp.eq.s32.totalorder %s13, 1
    %p157 = scmp.ne.s32.totalorder %s152, %s154
    %p158 = scmp.eq.s32.totalorder %s13, 0
    %p159 = por %p157, %p158
    %p160 = scmp.ne.s32.totalorder %s152, %s154
    %p161 = scmp.eq.s32.totalorder %s18, 1
    %p162 = por %p160, %p161
    %p163 = scmp.ne.s32.totalorder %s154, %s155
    %p164 = scmp.eq.s32.totalorder %s18, 0
    %p165 = por %p163, %p164
    %p166 = scmp.ne.s32.totalorder %s154, %s155
    %p167 = scmp.eq.s32.totalorder %s19, 1
    %p168 = por %p166, %p167
    %p170 = scmp.ne.s32.totalorder %s155, %s169
    %p171 = scmp.eq.s32.totalorder %s19, 0
    %p172 = por %p170, %p171
    %s173 = ssub.s32 %s13, %s20
    %p174 = scmp.eq.s32.totalorder %s173, 0
    %s176 = sadd.s32 %s175, 1
    %s177 = scalar_select %p174, %s175, %s176
    %p180 = pneg %p174
    %p181 = scmp.eq.s32.totalorder %s13, 1
    %p182 = por %p180, %p181
    %p183 = scmp.ne.s32.totalorder %s175, %s178
    %p184 = scmp.eq.s32.totalorder %s13, 0
    %p185 = por %p183, %p184
    %p186 = scmp.ne.s32.totalorder %s175, %s178
    %p187 = scmp.eq.s32.totalorder %s18, 1
    %p188 = por %p186, %p187
    %p189 = scmp.ne.s32.totalorder %s178, %s179
    %p190 = scmp.eq.s32.totalorder %s18, 0
    %p191 = por %p189, %p190
    %p192 = scmp.ne.s32.totalorder %s178, %s179
    %p193 = scmp.eq.s32.totalorder %s19, 1
    %p194 = por %p192, %p193
    %p196 = scmp.ne.s32.totalorder %s179, %s195
    %p197 = scmp.eq.s32.totalorder %s19, 0
    %p198 = por %p196, %p197
    %p199 = scmp.le.s32.totalorder 1, %s13
    %p200 = scmp.lt.s32.totalorder %s13, 3
    %p201 = pnand %p199, %p200
    %p202 = pneg %p201
    // Predicated region
    $region9: #{resnet_block_forward.1} parent=5 // pred_check
      _
    $region10: #{resnet_block_forward.1} parent=5 // pred_check_branch
      %204 = sbr.rel (%p201) target = $region12
    $region11: #{resnet_block_forward.1} parent=5 // pred_region
      %s205 = ssub.s32 %s13, 1
      // Predicated region
      $region13: #{resnet_block_forward.1} parent=11 // pred_check
        %p206 = pneg %p60
      $region14: #{resnet_block_forward.1} parent=11 // pred_check_branch
        %208 = sbr.rel (%p206) target = $region16
      $region15: #{resnet_block_forward.1} parent=11 // pred_region
        _
      $region16: #{resnet_block_forward.1} parent=11 // pred_fallthru
        _
      // Predicated region
      $region17: #{resnet_block_forward.1} parent=11 // pred_check
        %p209 = pneg %p81
      $region18: #{resnet_block_forward.1} parent=11 // pred_check_branch
        %211 = sbr.rel (%p209) target = $region20
      $region19: #{resnet_block_forward.1} parent=11 // pred_region
        _
      $region20: #{resnet_block_forward.1} parent=11 // pred_fallthru
        _
      // Predicated region
      $region21: #{resnet_block_forward.1} parent=11 // pred_check
        %p212 = pneg %p102
      $region22: #{resnet_block_forward.1} parent=11 // pred_check_branch
        %214 = sbr.rel (%p212) target = $region24
      $region23: #{resnet_block_forward.1} parent=11 // pred_region
        _
      $region24: #{resnet_block_forward.1} parent=11 // pred_fallthru
        _
      // Predicated region
      $region25: #{resnet_block_forward.1} parent=11 // pred_check
        %p215 = pneg %p123
      $region26: #{resnet_block_forward.1} parent=11 // pred_check_branch
        %217 = sbr.rel (%p215) target = $region28
      $region27: #{resnet_block_forward.1} parent=11 // pred_region
        _
      $region28: #{resnet_block_forward.1} parent=11 // pred_fallthru
        _
      // Predicated region
      $region29: #{resnet_block_forward.1} parent=11 // pred_check
        %p218 = pneg %p144
      $region30: #{resnet_block_forward.1} parent=11 // pred_check_branch
        %220 = sbr.rel (%p218) target = $region32
      $region31: #{resnet_block_forward.1} parent=11 // pred_region
        _
      $region32: #{resnet_block_forward.1} parent=11 // pred_fallthru
        _
      // Predicated region
      $region33: #{resnet_block_forward.1} parent=11 // pred_check
        %p221 = pneg %p165
      $region34: #{resnet_block_forward.1} parent=11 // pred_check_branch
        %223 = sbr.rel (%p221) target = $region36
      $region35: #{resnet_block_forward.1} parent=11 // pred_region
        _
      $region36: #{resnet_block_forward.1} parent=11 // pred_fallthru
        _
    $region12: #{resnet_block_forward.1} parent=5 // pred_fallthru
      _
    %p224 = scmp.lt.s32.totalorder %s13, 2
    // Predicated region
    $region37: #{resnet_block_forward.1} parent=5 // pred_check
      %p225 = pneg %p224
    $region38: #{resnet_block_forward.1} parent=5 // pred_check_branch
      %227 = sbr.rel (%p225) target = $region40
    $region39: #{resnet_block_forward.1} parent=5 // pred_region
      // Predicated region
      $region41: #{resnet_block_forward.1} parent=39 // pred_check
        %p228 = pneg %p33
      $region42: #{resnet_block_forward.1} parent=39 // pred_check_branch
        %230 = sbr.rel (%p228) target = $region44
      $region43: #{resnet_block_forward.1} parent=39 // pred_region
        %p231 = scmp.lt.s32.totalorder %s13, 1
        %s232 = scalar_select %p231, %s13, 1
        %s233 = smul.addr %s232, 125
        %s234 = smul.addr %s233, 4
        %s235 = scalar_lea.vmem %s0, %s234
      $region44: #{resnet_block_forward.1} parent=39 // pred_fallthru
        _
    $region40: #{resnet_block_forward.1} parent=5 // pred_fallthru
      _
    %p236 = scmp.le.s32.totalorder 1, %s13
    %p237 = scmp.lt.s32.totalorder %s13, 3
    %p238 = pnand %p236, %p237
    %p239 = pneg %p238
    // Predicated region
    $region45: #{resnet_block_forward.1} parent=5 // pred_check
      _
    $region46: #{resnet_block_forward.1} parent=5 // pred_check_branch
      %241 = sbr.rel (%p238) target = $region48
    $region47: #{resnet_block_forward.1} parent=5 // pred_region
      %s242 = ssub.s32 %s13, 1
      %p243 = scmp.lt.s32.totalorder %s18, 1
      %s244 = scalar_select %p243, %s18, 1
      %s245 = smul.addr %s244, 125
      %s246 = smul.addr %s245, 4
      %s247 = scalar_lea.vmem %s0, %s246
      %p248 = pneg %p39
      %p249 = pneg %p36
      %p250 = pneg %p60
      %p251 = pneg %p57
      %p252 = pneg %p81
      %p253 = pneg %p78
      %p254 = pneg %p102
      %p255 = pneg %p99
      %p256 = pneg %p123
      %p257 = pneg %p120
      %p258 = pneg %p144
      %p259 = pneg %p141
      %p260 = pneg %p165
      %p261 = pneg %p162
      %p262 = pneg %p191
      %p263 = pneg %p188
      %p264 = scmp.lt.s32.totalorder %s18, 1
      %s265 = scalar_select %p264, %s18, 1
      %s266 = smul.addr %s265, 5
      %s267 = smul.addr %s266, 8
      %s268 = scalar_lea.vmem %s7, %s267
      %p269 = scmp.lt.s32.totalorder %s18, 1
      %s270 = scalar_select %p269, %s18, 1
      %s271 = smul.addr %s270, 125
      %s272 = smul.addr %s271, 4
      %s273 = scalar_lea.vmem %s0, %s272
      %p274 = scmp.lt.s32.totalorder %s18, 1
      %s275 = scalar_select %p274, %s18, 1
      %s276 = smul.addr %s275, 5
      %s277 = smul.addr %s276, 8
      %s278 = scalar_lea.vmem %s7, %s277
      %v280 = vld [vmem:[%s273] sm:$0xf]
      %v281 = vld [vmem:[%s273 + $0x4] sm:$0xf]
      %v282 = vld [vmem:[%s273 + $0x8] sm:$0xf]
      %v283 = vld [vmem:[%s273 + $0xc] sm:$0xf]
      %v284 = vld [vmem:[%s273 + $0x10] sm:$0x3]
      %s285 = scalar_lea.vmem %s273, 20
      %v286 = vld [vmem:[%s285] sm:$0xf]
      %v287 = vld [vmem:[%s285 + $0x4] sm:$0xf]
      %v288 = vld [vmem:[%s285 + $0x8] sm:$0xf]
      %v289 = vld [vmem:[%s285 + $0xc] sm:$0xf]
      %v290 = vld [vmem:[%s285 + $0x10] sm:$0x3]
      %s291 = scalar_lea.vmem %s273, 40
      %v292 = vld [vmem:[%s291] sm:$0xf]
      %v293 = vld [vmem:[%s291 + $0x4] sm:$0xf]
      %v294 = vld [vmem:[%s291 + $0x8] sm:$0xf]
      %v295 = vld [vmem:[%s291 + $0xc] sm:$0xf]
      %v296 = vld [vmem:[%s291 + $0x10] sm:$0x3]
      %s297 = scalar_lea.vmem %s273, 60
      %v298 = vld [vmem:[%s297] sm:$0xf]
      %v299 = vld [vmem:[%s297 + $0x4] sm:$0xf]
      %v300 = vld [vmem:[%s297 + $0x8] sm:$0xf]
      %v301 = vld [vmem:[%s297 + $0xc] sm:$0xf]
      %v302 = vld [vmem:[%s297 + $0x10] sm:$0x3]
      %s303 = scalar_lea.vmem %s273, 80
      %v304 = vld [vmem:[%s303] sm:$0xf]
      %v305 = vld [vmem:[%s303 + $0x4] sm:$0xf]
      %v306 = vld [vmem:[%s303 + $0x8] sm:$0xf]
      %v307 = vld [vmem:[%s303 + $0xc] sm:$0xf]
      %v308 = vld [vmem:[%s303 + $0x10] sm:$0x3]
      %s309 = scalar_lea.vmem %s273, 100
      %v310 = vld [vmem:[%s309] sm:$0xf]
      %v311 = vld [vmem:[%s309 + $0x4] sm:$0xf]
      %v312 = vld [vmem:[%s309 + $0x8] sm:$0xf]
      %v313 = vld [vmem:[%s309 + $0xc] sm:$0xf]
      %v314 = vld [vmem:[%s309 + $0x10] sm:$0x3]
      %s315 = scalar_lea.vmem %s273, 120
      %v316 = vld [vmem:[%s315] sm:$0xf]
      %v317 = vld [vmem:[%s315 + $0x4] sm:$0xf]
      %v318 = vld [vmem:[%s315 + $0x8] sm:$0xf]
      %v319 = vld [vmem:[%s315 + $0xc] sm:$0xf]
      %v320 = vld [vmem:[%s315 + $0x10] sm:$0x3]
      %s321 = scalar_lea.vmem %s273, 140
      %v322 = vld [vmem:[%s321] sm:$0xf]
      %v323 = vld [vmem:[%s321 + $0x4] sm:$0xf]
      %v324 = vld [vmem:[%s321 + $0x8] sm:$0xf]
      %v325 = vld [vmem:[%s321 + $0xc] sm:$0xf]
      %v326 = vld [vmem:[%s321 + $0x10] sm:$0x3]
      %s327 = scalar_lea.vmem %s273, 160
      %v328 = vld [vmem:[%s327] sm:$0xf]
      %v329 = vld [vmem:[%s327 + $0x4] sm:$0xf]
      %v330 = vld [vmem:[%s327 + $0x8] sm:$0xf]
      %v331 = vld [vmem:[%s327 + $0xc] sm:$0xf]
      %v332 = vld [vmem:[%s327 + $0x10] sm:$0x3]
      %s333 = scalar_lea.vmem %s273, 180
      %v334 = vld [vmem:[%s333] sm:$0xf]
      %v335 = vld [vmem:[%s333 + $0x4] sm:$0xf]
      %v336 = vld [vmem:[%s333 + $0x8] sm:$0xf]
      %v337 = vld [vmem:[%s333 + $0xc] sm:$0xf]
      %v338 = vld [vmem:[%s333 + $0x10] sm:$0x3]
      %s339 = scalar_lea.vmem %s273, 200
      %v340 = vld [vmem:[%s339] sm:$0xf]
      %v341 = vld [vmem:[%s339 + $0x4] sm:$0xf]
      %v342 = vld [vmem:[%s339 + $0x8] sm:$0xf]
      %v343 = vld [vmem:[%s339 + $0xc] sm:$0xf]
      %v344 = vld [vmem:[%s339 + $0x10] sm:$0x3]
      %s345 = scalar_lea.vmem %s273, 220
      %v346 = vld [vmem:[%s345] sm:$0xf]
      %v347 = vld [vmem:[%s345 + $0x4] sm:$0xf]
      %v348 = vld [vmem:[%s345 + $0x8] sm:$0xf]
      %v349 = vld [vmem:[%s345 + $0xc] sm:$0xf]
      %v350 = vld [vmem:[%s345 + $0x10] sm:$0x3]
      %s351 = scalar_lea.vmem %s273, 240
      %v352 = vld [vmem:[%s351] sm:$0xf]
      %v353 = vld [vmem:[%s351 + $0x4] sm:$0xf]
      %v354 = vld [vmem:[%s351 + $0x8] sm:$0xf]
      %v355 = vld [vmem:[%s351 + $0xc] sm:$0xf]
      %v356 = vld [vmem:[%s351 + $0x10] sm:$0x3]
      %s357 = scalar_lea.vmem %s273, 260
      %v358 = vld [vmem:[%s357] sm:$0xf]
      %v359 = vld [vmem:[%s357 + $0x4] sm:$0xf]
      %v360 = vld [vmem:[%s357 + $0x8] sm:$0xf]
      %v361 = vld [vmem:[%s357 + $0xc] sm:$0xf]
      %v362 = vld [vmem:[%s357 + $0x10] sm:$0x3]
      %s363 = scalar_lea.vmem %s273, 280
      %v364 = vld [vmem:[%s363] sm:$0xf]
      %v365 = vld [vmem:[%s363 + $0x4] sm:$0xf]
      %v366 = vld [vmem:[%s363 + $0x8] sm:$0xf]
      %v367 = vld [vmem:[%s363 + $0xc] sm:$0xf]
      %v368 = vld [vmem:[%s363 + $0x10] sm:$0x3]
      %s369 = scalar_lea.vmem %s273, 300
      %v370 = vld [vmem:[%s369] sm:$0xf]
      %v371 = vld [vmem:[%s369 + $0x4] sm:$0xf]
      %v372 = vld [vmem:[%s369 + $0x8] sm:$0xf]
      %v373 = vld [vmem:[%s369 + $0xc] sm:$0xf]
      %v374 = vld [vmem:[%s369 + $0x10] sm:$0x3]
      %s375 = scalar_lea.vmem %s273, 320
      %v376 = vld [vmem:[%s375] sm:$0xf]
      %v377 = vld [vmem:[%s375 + $0x4] sm:$0xf]
      %v378 = vld [vmem:[%s375 + $0x8] sm:$0xf]
      %v379 = vld [vmem:[%s375 + $0xc] sm:$0xf]
      %v380 = vld [vmem:[%s375 + $0x10] sm:$0x3]
      %s381 = scalar_lea.vmem %s273, 340
      %v382 = vld [vmem:[%s381] sm:$0xf]
      %v383 = vld [vmem:[%s381 + $0x4] sm:$0xf]
      %v384 = vld [vmem:[%s381 + $0x8] sm:$0xf]
      %v385 = vld [vmem:[%s381 + $0xc] sm:$0xf]
      %v386 = vld [vmem:[%s381 + $0x10] sm:$0x3]
      %s387 = scalar_lea.vmem %s273, 360
      %v388 = vld [vmem:[%s387] sm:$0xf]
      %v389 = vld [vmem:[%s387 + $0x4] sm:$0xf]
      %v390 = vld [vmem:[%s387 + $0x8] sm:$0xf]
      %v391 = vld [vmem:[%s387 + $0xc] sm:$0xf]
      %v392 = vld [vmem:[%s387 + $0x10] sm:$0x3]
      %s393 = scalar_lea.vmem %s273, 380
      %v394 = vld [vmem:[%s393] sm:$0xf]
      %v395 = vld [vmem:[%s393 + $0x4] sm:$0xf]
      %v396 = vld [vmem:[%s393 + $0x8] sm:$0xf]
      %v397 = vld [vmem:[%s393 + $0xc] sm:$0xf]
      %v398 = vld [vmem:[%s393 + $0x10] sm:$0x3]
      %s399 = scalar_lea.vmem %s273, 400
      %v400 = vld [vmem:[%s399] sm:$0xf]
      %v401 = vld [vmem:[%s399 + $0x4] sm:$0xf]
      %v402 = vld [vmem:[%s399 + $0x8] sm:$0xf]
      %v403 = vld [vmem:[%s399 + $0xc] sm:$0xf]
      %v404 = vld [vmem:[%s399 + $0x10] sm:$0x3]
      %s405 = scalar_lea.vmem %s273, 420
      %v406 = vld [vmem:[%s405] sm:$0xf]
      %v407 = vld [vmem:[%s405 + $0x4] sm:$0xf]
      %v408 = vld [vmem:[%s405 + $0x8] sm:$0xf]
      %v409 = vld [vmem:[%s405 + $0xc] sm:$0xf]
      %v410 = vld [vmem:[%s405 + $0x10] sm:$0x3]
      %s411 = scalar_lea.vmem %s273, 440
      %v412 = vld [vmem:[%s411] sm:$0xf]
      %v413 = vld [vmem:[%s411 + $0x4] sm:$0xf]
      %v414 = vld [vmem:[%s411 + $0x8] sm:$0xf]
      %v415 = vld [vmem:[%s411 + $0xc] sm:$0xf]
      %v416 = vld [vmem:[%s411 + $0x10] sm:$0x3]
      %s417 = scalar_lea.vmem %s273, 460
      %v418 = vld [vmem:[%s417] sm:$0xf]
      %v419 = vld [vmem:[%s417 + $0x4] sm:$0xf]
      %v420 = vld [vmem:[%s417 + $0x8] sm:$0xf]
      %v421 = vld [vmem:[%s417 + $0xc] sm:$0xf]
      %v422 = vld [vmem:[%s417 + $0x10] sm:$0x3]
      %s423 = scalar_lea.vmem %s273, 480
      %v424 = vld [vmem:[%s423] sm:$0xf]
      %v425 = vld [vmem:[%s423 + $0x4] sm:$0xf]
      %v426 = vld [vmem:[%s423 + $0x8] sm:$0xf]
      %v427 = vld [vmem:[%s423 + $0xc] sm:$0xf]
      %v428 = vld [vmem:[%s423 + $0x10] sm:$0x3]
      %v429 = vld [vmem:[%s2] sm:$0x3]
      %s430 = scalar_lea.vmem %s2, 2
      %v431 = vld [vmem:[%s430] sm:$0x3]
      %s432 = scalar_lea.vmem %s2, 4
      %v433 = vld [vmem:[%s432] sm:$0x3]
      %s434 = scalar_lea.vmem %s2, 6
      %v435 = vld [vmem:[%s434] sm:$0x3]
      %s436 = scalar_lea.vmem %s2, 8
      %v437 = vld [vmem:[%s436] sm:$0x3]
      %s438 = scalar_lea.vmem %s2, 10
      %v439 = vld [vmem:[%s438] sm:$0x3]
      %s440 = scalar_lea.vmem %s2, 12
      %v441 = vld [vmem:[%s440] sm:$0x3]
      %s442 = scalar_lea.vmem %s2, 14
      %v443 = vld [vmem:[%s442] sm:$0x3]
      %s444 = scalar_lea.vmem %s2, 16
      %v445 = vld [vmem:[%s444] sm:$0x3]
      %v446 = vld [vmem:[%s5] sm:$0x1]
      %v447 = vld [vmem:[%s6] sm:$0x1]
      %v449 = vlaneseq
      %v450 = vshrl.u32 %v449, 7
      %v451 = vsub.s32 0, %v450
      %v452 = vrot.slane %v447, %v451
      %v454 = vadd.f32 %v452, 0.0
      %v456 = vlaneseq
      %v457 = vshrl.u32 %v456, 7
      %v458 = vsub.s32 0, %v457
      %v459 = vrot.slane %v446, %v458
      %v461 = vadd.f32 %v459, 0.0
      %v467 = vunpack.c.l.b16 %v280
      %v468 = vunpack.c.l.b16 %v281
      %v469 = vunpack.c.l.b16 %v282
      %v470 = vunpack.c.l.b16 %v283
      %v471 = vunpack.c.l.b16 %v284
      %v472 = vpack.c.b16 %v468, %v467
      %v473 = vpack.c.b16 %v470, %v469
      %v474 = vpack.c.b16 %v471, %v471
      %vm475 = vcmask 31744
      %v477 = vsel %vm475, %v472, 0
      %v480 = vsel %vm475, %v473, 0
      %v483 = vsel %vm475, %v474, 0
      %vm485 = vcmask 1041408
      %v487 = vsel %vm485, %v429, 0
      %489 = vmatprep.subr.bf16.mxu0 0
      %490 = vmatpush1.bf16.msra.mxu0 %v487
      %491 = vmatprep.subr.bf16.mxu0 0
      %492 = vmatpush1.bf16.msra.mxu0 0
      %493 = vmatprep.subr.bf16.mxu0 0
      %494 = vmatpush1.bf16.msra.mxu0 0
      %495 = vmatprep.subr.bf16.mxu0 0
      %496 = vmatpush1.bf16.msra.mxu0 0
      %497 = vmatprep.subr.bf16.mxu0 0
      %498 = vmatpush1.bf16.msra.mxu0 0
      %499 = vmatprep.subr.bf16.mxu0 0
      %500 = vmatpush1.bf16.msra.mxu0 0
      %501 = vmatprep.subr.bf16.mxu0 0
      %502 = vmatpush1.bf16.msra.mxu0 0
      %503 = vmatprep.subr.bf16.mxu0 0
      %504 = vmatpush1.bf16.msra.mxu0 0
      %505 = vmatprep.subr.bf16.mxu0 0
      %506 = vmatpush1.bf16.msra.mxu0 0
      %507 = vmatprep.subr.bf16.mxu0 0
      %508 = vmatpush1.bf16.msra.mxu0 0
      %509 = vmatprep.subr.bf16.mxu0 0
      %510 = vmatpush1.bf16.msra.mxu0 0
      %511 = vmatprep.subr.bf16.mxu0 0
      %512 = vmatpush1.bf16.msra.mxu0 0
      %513 = vmatprep.subr.bf16.mxu0 0
      %514 = vmatpush1.bf16.msra.mxu0 0
      %515 = vmatprep.subr.bf16.mxu0 0
      %516 = vmatpush1.bf16.msra.mxu0 0
      %517 = vmatprep.subr.bf16.mxu0 0
      %518 = vmatpush1.bf16.msra.mxu0 0
      %519 = vmatprep.subr.bf16.mxu0 0
      %520 = vmatpush1.bf16.msra.mxu0 0
      %521 = vmatprep.mubr.bf16.mxu0 0
      %522 = vmatmul.mubr.bf16.gmra.mrb[0].mxu0 %v477
      %v523 = vpop.f32.mrb[0].mxu0
      %v524 = vadd.f32 0.0, %v523
      %v525 = vpop.f32.mrb[0].mxu0
      %v526 = vpop.f32.mrb[0].mxu0
      %v527 = vadd.f32 0.0, %v526
      %v528 = vpop.f32.mrb[0].mxu0
      %529 = vmatprep.mubr.bf16.mxu0 0
      %530 = vmatmul.mubr.bf16.gmra.mrb[0].mxu0 %v480
      %v531 = vpop.f32.mrb[0].mxu0
      %v532 = vadd.f32 0.0, %v531
      %v533 = vpop.f32.mrb[0].mxu0
      %v534 = vpop.f32.mrb[0].mxu0
      %v535 = vadd.f32 0.0, %v534
      %v536 = vpop.f32.mrb[0].mxu0
      %537 = vmatprep.mubr.bf16.mxu0 0
      %538 = vmatmul.mubr.bf16.gmra.mrb[0].mxu0 %v483
      %v539 = vpop.f32.mrb[0].mxu0
      %v540 = vadd.f32 0.0, %v539
      %v541 = vpop.f32.mrb[0].mxu0
      %v542 = vpop.f32.mrb[0].mxu0
      %v543 = vpop.f32.mrb[0].mxu0
      %544 = vdwg.mxu0
      %v545 = vadd.f32 %v461, %v524
      %v546 = vadd.f32 %v461, %v527
      %v547 = vadd.f32 %v461, %v532
      %v548 = vadd.f32 %v461, %v535
      %v549 = vadd.f32 %v461, %v540
      %v555 = vunpack.c.l.b16 %v286
      %v556 = vunpack.c.l.b16 %v287
      %v557 = vunpack.c.l.b16 %v288
      %v558 = vunpack.c.l.b16 %v289
      %v559 = vunpack.c.l.b16 %v290
      %v560 = vpack.c.b16 %v556, %v555
      %v561 = vpack.c.b16 %v558, %v557
      %v562 = vpack.c.b16 %v559, %v559
      %v564 = vsel %vm475, %v560, 0
      %v567 = vsel %vm475, %v561, 0
      %v570 = vsel %vm475, %v562, 0
      %v573 = vsel %vm485, %v431, 0
      %575 = vmatprep.subr.bf16.mxu0 0
      %576 = vmatpush1.bf16.msra.mxu0 %v573
      %577 = vmatprep.subr.bf16.mxu0 0
      %578 = vmatpush1.bf16.msra.mxu0 0
      %579 = vmatprep.subr.bf16.mxu0 0
      %580 = vmatpush1.bf16.msra.mxu0 0
      %581 = vmatprep.subr.bf16.mxu0 0
      %582 = vmatpush1.bf16.msra.mxu0 0
      %583 = vmatprep.subr.bf16.mxu0 0
      %584 = vmatpush1.bf16.msra.mxu0 0
      %585 = vmatprep.subr.bf16.mxu0 0
      %586 = vmatpush1.bf16.msra.mxu0 0
      %587 = vmatprep.subr.bf16.mxu0 0
      %588 = vmatpush1.bf16.msra.mxu0 0
      %589 = vmatprep.subr.bf16.mxu0 0
      %590 = vmatpush1.bf16.msra.mxu0 0
      %591 = vmatprep.subr.bf16.mxu0 0
      %592 = vmatpush1.bf16.msra.mxu0 0
      %593 = vmatprep.subr.bf16.mxu0 0
      %594 = vmatpush1.bf16.msra.mxu0 0
      %595 = vmatprep.subr.bf16.mxu0 0
      %596 = vmatpush1.bf16.msra.mxu0 0
      %597 = vmatprep.subr.bf16.mxu0 0
      %598 = vmatpush1.bf16.msra.mxu0 0
      %599 = vmatprep.subr.bf16.mxu0 0
      %600 = vmatpush1.bf16.msra.mxu0 0
      %601 = vmatprep.subr.bf16.mxu0 0
      %602 = vmatpush1.bf16.msra.mxu0 0
      %603 = vmatprep.subr.bf16.mxu0 0
      %604 = vmatpush1.bf16.msra.mxu0 0
      %605 = vmatprep.subr.bf16.mxu0 0
      %606 = vmatpush1.bf16.msra.mxu0 0
      %607 = vmatprep.mubr.bf16.mxu0 0
      %608 = vmatmul.mubr.bf16.gmra.mrb[0].mxu0 %v564
      %v609 = vpop.f32.mrb[0].mxu0
      %v610 = vadd.f32 0.0, %v609
      %v611 = vpop.f32.mrb[0].mxu0
      %v612 = vpop.f32.mrb[0].mxu0
      %v613 = vadd.f32 0.0, %v612
      %v614 = vpop.f32.mrb[0].mxu0
      %615 = vmatprep.mubr.bf16.mxu0 0
      %616 = vmatmul.mubr.bf16.gmra.mrb[0].mxu0 %v567
      %v617 = vpop.f32.mrb[0].mxu0
      %v618 = vadd.f32 0.0, %v617
      %v619 = vpop.f32.mrb[0].mxu0
      %v620 = vpop.f32.mrb[0].mxu0
      %v621 = vadd.f32 0.0, %v620
      %v622 = vpop.f32.mrb[0].mxu0
      %623 = vmatprep.mubr.bf16.mxu0 0
      %624 = vmatmul.mubr.bf16.gmra.mrb[0].mxu0 %v570
      %v625 = vpop.f32.mrb[0].mxu0
      %v626 = vadd.f32 0.0, %v625
      %v627 = vpop.f32.mrb[0].mxu0
      %v628 = vpop.f32.mrb[0].mxu0
      %v629 = vpop.f32.mrb[0].mxu0
      %630 = vdwg.mxu0
      %v631 = vadd.f32 %v545, %v610
      %v632 = vadd.f32 %v546, %v613
      %v633 = vadd.f32 %v547, %v618
      %v634 = vadd.f32 %v548, %v621
      %v635 = vadd.f32 %v549, %v626
      %v641 = vunpack.c.l.b16 %v292
      %v642 = vunpack.c.l.b16 %v293
      %v643 = vunpack.c.l.b16 %v294
      %v644 = vunpack.c.l.b16 %v295
      %v645 = vunpack.c.l.b16 %v296
      %v646 = vpack.c.b16 %v642, %v641
      %v647 = vpack.c.b16 %v644, %v643
      %v648 = vpack.c.b16 %v645, %v645
      %v650 = vsel %vm475, %v646, 0
      %v653 = vsel %vm475, %v647, 0
      %v656 = vsel %vm475, %v648, 0
      %v659 = vsel %vm485, %v433, 0
      %661 = vmatprep.subr.bf16.mxu0 0
      %662 = vmatpush1.bf16.msra.mxu0 %v659
      %663 = vmatprep.subr.bf16.mxu0 0
      %664 = vmatpush1.bf16.msra.mxu0 0
      %665 = vmatprep.subr.bf16.mxu0 0
      %666 = vmatpush1.bf16.msra.mxu0 0
      %667 = vmatprep.subr.bf16.mxu0 0
      %668 = vmatpush1.bf16.msra.mxu0 0
      %669 = vmatprep.subr.bf16.mxu0 0
      %670 = vmatpush1.bf16.msra.mxu0 0
      %671 = vmatprep.subr.bf16.mxu0 0
      %672 = vmatpush1.bf16.msra.mxu0 0
      %673 = vmatprep.subr.bf16.mxu0 0
      %674 = vmatpush1.bf16.msra.mxu0 0
      %675 = vmatprep.subr.bf16.mxu0 0
      %676 = vmatpush1.bf16.msra.mxu0 0
      %677 = vmatprep.subr.bf16.mxu0 0
      %678 = vmatpush1.bf16.msra.mxu0 0
      %679 = vmatprep.subr.bf16.mxu0 0
      %680 = vmatpush1.bf16.msra.mxu0 0
      %681 = vmatprep.subr.bf16.mxu0 0
      %682 = vmatpush1.bf16.msra.mxu0 0
      %683 = vmatprep.subr.bf16.mxu0 0
      %684 = vmatpush1.bf16.msra.mxu0 0
      %685 = vmatprep.subr.bf16.mxu0 0
      %686 = vmatpush1.bf16.msra.mxu0 0
      %687 = vmatprep.subr.bf16.mxu0 0
      %688 = vmatpush1.bf16.msra.mxu0 0
      %689 = vmatprep.subr.bf16.mxu0 0
      %690 = vmatpush1.bf16.msra.mxu0 0
      %691 = vmatprep.subr.bf16.mxu0 0
      %692 = vmatpush1.bf16.msra.mxu0 0
      %693 = vmatprep.mubr.bf16.mxu0 0
      %694 = vmatmul.mubr.bf16.gmra.mrb[0].mxu0 %v650
      %v695 = vpop.f32.mrb[0].mxu0
      %v696 = vadd.f32 0.0, %v695
      %v697 = vpop.f32.mrb[0].mxu0
      %v698 = vpop.f32.mrb[0].mxu0
      %v699 = vadd.f32 0.0, %v698
      %v700 = vpop.f32.mrb[0].mxu0
      %701 = vmatprep.mubr.bf16.mxu0 0
      %702 = vmatmul.mubr.bf16.gmra.mrb[0].mxu0 %v653
      %v703 = vpop.f32.mrb[0].mxu0
      %v704 = vadd.f32 0.0, %v703
      %v705 = vpop.f32.mrb[0].mxu0
      %v706 = vpop.f32.mrb[0].mxu0
      %v707 = vadd.f32 0.0, %v706
      %v708 = vpop.f32.mrb[0].mxu0
      %709 = vmatprep.mubr.bf16.mxu0 0
      %710 = vmatmul.mubr.bf16.gmra.mrb[0].mxu0 %v656
      %v711 = vpop.f32.mrb[0].mxu0
      %v712 = vadd.f32 0.0, %v711
      %v713 = vpop.f32.mrb[0].mxu0
      %v714 = vpop.f32.mrb[0].mxu0
      %v715 = vpop.f32.mrb[0].mxu0
      %716 = vdwg.mxu0
      %v717 = vadd.f32 %v631, %v696
      %v718 = vadd.f32 %v632, %v699
      %v719 = vadd.f32 %v633, %v704
      %v720 = vadd.f32 %v634, %v707
      %v721 = vadd.f32 %v635, %v712
      %v727 = vunpack.c.l.b16 %v310
      %v728 = vunpack.c.l.b16 %v311
      %v729 = vunpack.c.l.b16 %v312
      %v730 = vunpack.c.l.b16 %v313
      %v731 = vunpack.c.l.b16 %v314
      %v732 = vpack.c.b16 %v728, %v727
      %v733 = vpack.c.b16 %v730, %v729
      %v734 = vpack.c.b16 %v731, %v731
      %v736 = vsel %vm475, %v732, 0
      %v739 = vsel %vm475, %v733, 0
      %v742 = vsel %vm475, %v734, 0
      %v745 = vsel %vm485, %v435, 0
      %747 = vmatprep.subr.bf16.mxu0 0
      %748 = vmatpush1.bf16.msra.mxu0 %v745
      %749 = vmatprep.subr.bf16.mxu0 0
      %750 = vmatpush1.bf16.msra.mxu0 0
      %751 = vmatprep.subr.bf16.mxu0 0
      %752 = vmatpush1.bf16.msra.mxu0 0
      %753 = vmatprep.subr.bf16.mxu0 0
      %754 = vmatpush1.bf16.msra.mxu0 0
      %755 = vmatprep.subr.bf16.mxu0 0
      %756 = vmatpush1.bf16.msra.mxu0 0
      %757 = vmatprep.subr.bf16.mxu0 0
      %758 = vmatpush1.bf16.msra.mxu0 0
      %759 = vmatprep.subr.bf16.mxu0 0
      %760 = vmatpush1.bf16.msra.mxu0 0
      %761 = vmatprep.subr.bf16.mxu0 0
      %762 = vmatpush1.bf16.msra.mxu0 0
      %763 = vmatprep.subr.bf16.mxu0 0
      %764 = vmatpush1.bf16.msra.mxu0 0
      %765 = vmatprep.subr.bf16.mxu0 0
      %766 = vmatpush1.bf16.msra.mxu0 0
      %767 = vmatprep.subr.bf16.mxu0 0
      %768 = vmatpush1.bf16.msra.mxu0 0
      %769 = vmatprep.subr.bf16.mxu0 0
      %770 = vmatpush1.bf16.msra.mxu0 0
      %771 = vmatprep.subr.bf16.mxu0 0
      %772 = vmatpush1.bf16.msra.mxu0 0
      %773 = vmatprep.subr.bf16.mxu0 0
      %774 = vmatpush1.bf16.msra.mxu0 0
      %775 = vmatprep.subr.bf16.mxu0 0
      %776 = vmatpush1.bf16.msra.mxu0 0
      %777 = vmatprep.subr.bf16.mxu0 0
      %778 = vmatpush1.bf16.msra.mxu0 0
      %779 = vmatprep.mubr.bf16.mxu0 0
      %780 = vmatmul.mubr.bf16.gmra.mrb[0].mxu0 %v736
      %v781 = vpop.f32.mrb[0].mxu0
      %v782 = vadd.f32 0.0, %v781
      %v783 = vpop.f32.mrb[0].mxu0
      %v784 = vpop.f32.mrb[0].mxu0
      %v785 = vadd.f32 0.0, %v784
      %v786 = vpop.f32.mrb[0].mxu0
      %787 = vmatprep.mubr.bf16.mxu0 0
      %788 = vmatmul.mubr.bf16.gmra.mrb[0].mxu0 %v739
      %v789 = vpop.f32.mrb[0].mxu0
      %v790 = vadd.f32 0.0, %v789
      %v791 = vpop.f32.mrb[0].mxu0
      %v792 = vpop.f32.mrb[0].mxu0
      %v793 = vadd.f32 0.0, %v792
      %v794 = vpop.f32.mrb[0].mxu0
      %795 = vmatprep.mubr.bf16.mxu0 0
      %796 = vmatmul.mubr.bf16.gmra.mrb[0].mxu0 %v742
      %v797 = vpop.f32.mrb[0].mxu0
      %v798 = vadd.f32 0.0, %v797
      %v799 = vpop.f32.mrb[0].mxu0
      %v800 = vpop.f32.mrb[0].mxu0
      %v801 = vpop.f32.mrb[0].mxu0
      %802 = vdwg.mxu0
      %v803 = vadd.f32 %v717, %v782
      %v804 = vadd.f32 %v718, %v785
      %v805 = vadd.f32 %v719, %v790
      %v806 = vadd.f32 %v720, %v793
      %v807 = vadd.f32 %v721, %v798
      %v813 = vunpack.c.l.b16 %v316
      %v814 = vunpack.c.l.b16 %v317
      %v815 = vunpack.c.l.b16 %v318
      %v816 = vunpack.c.l.b16 %v319
      %v817 = vunpack.c.l.b16 %v320
      %v818 = vpack.c.b16 %v814, %v813
      %v819 = vpack.c.b16 %v816, %v815
      %v820 = vpack.c.b16 %v817, %v817
      %v822 = vsel %vm475, %v818, 0
      %v825 = vsel %vm475, %v819, 0
      %v828 = vsel %vm475, %v820, 0
      %v831 = vsel %vm485, %v437, 0
      %833 = vmatprep.subr.bf16.mxu0 0
      %834 = vmatpush1.bf16.msra.mxu0 %v831
      %835 = vmatprep.subr.bf16.mxu0 0
      %836 = vmatpush1.bf16.msra.mxu0 0
      %837 = vmatprep.subr.bf16.mxu0 0
      %838 = vmatpush1.bf16.msra.mxu0 0
      %839 = vmatprep.subr.bf16.mxu0 0
      %840 = vmatpush1.bf16.msra.mxu0 0
      %841 = vmatprep.subr.bf16.mxu0 0
      %842 = vmatpush1.bf16.msra.mxu0 0
      %843 = vmatprep.subr.bf16.mxu0 0
      %844 = vmatpush1.bf16.msra.mxu0 0
      %845 = vmatprep.subr.bf16.mxu0 0
      %846 = vmatpush1.bf16.msra.mxu0 0
      %847 = vmatprep.subr.bf16.mxu0 0
      %848 = vmatpush1.bf16.msra.mxu0 0
      %849 = vmatprep.subr.bf16.mxu0 0
      %850 = vmatpush1.bf16.msra.mxu0 0
      %851 = vmatprep.subr.bf16.mxu0 0
      %852 = vmatpush1.bf16.msra.mxu0 0
      %853 = vmatprep.subr.bf16.mxu0 0
      %854 = vmatpush1.bf16.msra.mxu0 0
      %855 = vmatprep.subr.bf16.mxu0 0
      %856 = vmatpush1.bf16.msra.mxu0 0
      %857 = vmatprep.subr.bf16.mxu0 0
      %858 = vmatpush1.bf16.msra.mxu0 0
      %859 = vmatprep.subr.bf16.mxu0 0
      %860 = vmatpush1.bf16.msra.mxu0 0
      %861 = vmatprep.subr.bf16.mxu0 0
      %862 = vmatpush1.bf16.msra.mxu0 0
      %863 = vmatprep.subr.bf16.mxu0 0
      %864 = vmatpush1.bf16.msra.mxu0 0
      %865 = vmatprep.mubr.bf16.mxu0 0
      %866 = vmatmul.mubr.bf16.gmra.mrb[0].mxu0 %v822
      %v867 = vpop.f32.mrb[0].mxu0
      %v868 = vadd.f32 0.0, %v867
      %v869 = vpop.f32.mrb[0].mxu0
      %v870 = vpop.f32.mrb[0].mxu0
      %v871 = vadd.f32 0.0, %v870
      %v872 = vpop.f32.mrb[0].mxu0
      %873 = vmatprep.mubr.bf16.mxu0 0
      %874 = vmatmul.mubr.bf16.gmra.mrb[0].mxu0 %v825
      %v875 = vpop.f32.mrb[0].mxu0
      %v876 = vadd.f32 0.0, %v875
      %v877 = vpop.f32.mrb[0].mxu0
      %v878 = vpop.f32.mrb[0].mxu0
      %v879 = vadd.f32 0.0, %v878
      %v880 = vpop.f32.mrb[0].mxu0
      %881 = vmatprep.mubr.bf16.mxu0 0
      %882 = vmatmul.mubr.bf16.gmra.mrb[0].mxu0 %v828
      %v883 = vpop.f32.mrb[0].mxu0
      %v884 = vadd.f32 0.0, %v883
      %v885 = vpop.f32.mrb[0].mxu0
      %v886 = vpop.f32.mrb[0].mxu0
      %v887 = vpop.f32.mrb[0].mxu0
      %888 = vdwg.mxu0
      %v889 = vadd.f32 %v803, %v868
      %v890 = vadd.f32 %v804, %v871
      %v891 = vadd.f32 %v805, %v876
      %v892 = vadd.f32 %v806, %v879
      %v893 = vadd.f32 %v807, %v884
      %v899 = vunpack.c.l.b16 %v322
      %v900 = vunpack.c.l.b16 %v323
      %v901 = vunpack.c.l.b16 %v324
      %v902 = vunpack.c.l.b16 %v325
      %v903 = vunpack.c.l.b16 %v326
      %v904 = vpack.c.b16 %v900, %v899
      %v905 = vpack.c.b16 %v902, %v901
      %v906 = vpack.c.b16 %v903, %v903
      %v908 = vsel %vm475, %v904, 0
      %v911 = vsel %vm475, %v905, 0
      %v914 = vsel %vm475, %v906, 0
      %v917 = vsel %vm485, %v439, 0
      %919 = vmatprep.subr.bf16.mxu0 0
      %920 = vmatpush1.bf16.msra.mxu0 %v917
      %921 = vmatprep.subr.bf16.mxu0 0
      %922 = vmatpush1.bf16.msra.mxu0 0
      %923 = vmatprep.subr.bf16.mxu0 0
      %924 = vmatpush1.bf16.msra.mxu0 0
      %925 = vmatprep.subr.bf16.mxu0 0
      %926 = vmatpush1.bf16.msra.mxu0 0
      %927 = vmatprep.subr.bf16.mxu0 0
      %928 = vmatpush1.bf16.msra.mxu0 0
      %929 = vmatprep.subr.bf16.mxu0 0
      %930 = vmatpush1.bf16.msra.mxu0 0
      %931 = vmatprep.subr.bf16.mxu0 0
      %932 = vmatpush1.bf16.msra.mxu0 0
      %933 = vmatprep.subr.bf16.mxu0 0
      %934 = vmatpush1.bf16.msra.mxu0 0
      %935 = vmatprep.subr.bf16.mxu0 0
      %936 = vmatpush1.bf16.msra.mxu0 0
      %937 = vmatprep.subr.bf16.mxu0 0
      %938 = vmatpush1.bf16.msra.mxu0 0
      %939 = vmatprep.subr.bf16.mxu0 0
      %940 = vmatpush1.bf16.msra.mxu0 0
      %941 = vmatprep.subr.bf16.mxu0 0
      %942 = vmatpush1.bf16.msra.mxu0 0
      %943 = vmatprep.subr.bf16.mxu0 0
      %944 = vmatpush1.bf16.msra.mxu0 0
      %945 = vmatprep.subr.bf16.mxu0 0
      %946 = vmatpush1.bf16.msra.mxu0 0
      %947 = vmatprep.subr.bf16.mxu0 0
      %948 = vmatpush1.bf16.msra.mxu0 0
      %949 = vmatprep.subr.bf16.mxu0 0
      %950 = vmatpush1.bf16.msra.mxu0 0
      %951 = vmatprep.mubr.bf16.mxu0 0
      %952 = vmatmul.mubr.bf16.gmra.mrb[0].mxu0 %v908
      %v953 = vpop.f32.mrb[0].mxu0
      %v954 = vadd.f32 0.0, %v953
      %v955 = vpop.f32.mrb[0].mxu0
      %v956 = vpop.f32.mrb[0].mxu0
      %v957 = vadd.f32 0.0, %v956
      %v958 = vpop.f32.mrb[0].mxu0
      %959 = vmatprep.mubr.bf16.mxu0 0
      %960 = vmatmul.mubr.bf16.gmra.mrb[0].mxu0 %v911
      %v961 = vpop.f32.mrb[0].mxu0
      %v962 = vadd.f32 0.0, %v961
      %v963 = vpop.f32.mrb[0].mxu0
      %v964 = vpop.f32.mrb[0].mxu0
      %v965 = vadd.f32 0.0, %v964
      %v966 = vpop.f32.mrb[0].mxu0
      %967 = vmatprep.mubr.bf16.mxu0 0
      %968 = vmatmul.mubr.bf16.gmra.mrb[0].mxu0 %v914
      %v969 = vpop.f32.mrb[0].mxu0
      %v970 = vadd.f32 0.0, %v969
      %v971 = vpop.f32.mrb[0].mxu0
      %v972 = vpop.f32.mrb[0].mxu0
      %v973 = vpop.f32.mrb[0].mxu0
      %974 = vdwg.mxu0
      %v975 = vadd.f32 %v889, %v954
      %v976 = vadd.f32 %v890, %v957
      %v977 = vadd.f32 %v891, %v962
      %v978 = vadd.f32 %v892, %v965
      %v979 = vadd.f32 %v893, %v970
      %v985 = vunpack.c.l.b16 %v340
      %v986 = vunpack.c.l.b16 %v341
      %v987 = vunpack.c.l.b16 %v342
      %v988 = vunpack.c.l.b16 %v343
      %v989 = vunpack.c.l.b16 %v344
      %v990 = vpack.c.b16 %v986, %v985
      %v991 = vpack.c.b16 %v988, %v987
      %v992 = vpack.c.b16 %v989, %v989
      %v994 = vsel %vm475, %v990, 0
      %v997 = vsel %vm475, %v991, 0
      %v1000 = vsel %vm475, %v992, 0
      %v1003 = vsel %vm485, %v441, 0
      %1005 = vmatprep.subr.bf16.mxu0 0
      %1006 = vmatpush1.bf16.msra.mxu0 %v1003
      %1007 = vmatprep.subr.bf16.mxu0 0
      %1008 = vmatpush1.bf16.msra.mxu0 0
      %1009 = vmatprep.subr.bf16.mxu0 0
      %1010 = vmatpush1.bf16.msra.mxu0 0
      %1011 = vmatprep.subr.bf16.mxu0 0
      %1012 = vmatpush1.bf16.msra.mxu0 0
      %1013 = vmatprep.subr.bf16.mxu0 0
      %1014 = vmatpush1.bf16.msra.mxu0 0
      %1015 = vmatprep.subr.bf16.mxu0 0
      %1016 = vmatpush1.bf16.msra.mxu0 0
      %1017 = vmatprep.subr.bf16.mxu0 0
      %1018 = vmatpush1.bf16.msra.mxu0 0
      %1019 = vmatprep.subr.bf16.mxu0 0
      %1020 = vmatpush1.bf16.msra.mxu0 0
      %1021 = vmatprep.subr.bf16.mxu0 0
      %1022 = vmatpush1.bf16.msra.mxu0 0
      %1023 = vmatprep.subr.bf16.mxu0 0
      %1024 = vmatpush1.bf16.msra.mxu0 0
      %1025 = vmatprep.subr.bf16.mxu0 0
      %1026 = vmatpush1.bf16.msra.mxu0 0
      %1027 = vmatprep.subr.bf16.mxu0 0
      %1028 = vmatpush1.bf16.msra.mxu0 0
      %1029 = vmatprep.subr.bf16.mxu0 0
      %1030 = vmatpush1.bf16.msra.mxu0 0
      %1031 = vmatprep.subr.bf16.mxu0 0
      %1032 = vmatpush1.bf16.msra.mxu0 0
      %1033 = vmatprep.subr.bf16.mxu0 0
      %1034 = vmatpush1.bf16.msra.mxu0 0
      %1035 = vmatprep.subr.bf16.mxu0 0
      %1036 = vmatpush1.bf16.msra.mxu0 0
      %1037 = vmatprep.mubr.bf16.mxu0 0
      %1038 = vmatmul.mubr.bf16.gmra.mrb[0].mxu0 %v994
      %v1039 = vpop.f32.mrb[0].mxu0
      %v1040 = vadd.f32 0.0, %v1039
      %v1041 = vpop.f32.mrb[0].mxu0
      %v1042 = vpop.f32.mrb[0].mxu0
      %v1043 = vadd.f32 0.0, %v1042
      %v1044 = vpop.f32.mrb[0].mxu0
      %1045 = vmatprep.mubr.bf16.mxu0 0
      %1046 = vmatmul.mubr.bf16.gmra.mrb[0].mxu0 %v997
      %v1047 = vpop.f32.mrb[0].mxu0
      %v1048 = vadd.f32 0.0, %v1047
      %v1049 = vpop.f32.mrb[0].mxu0
      %v1050 = vpop.f32.mrb[0].mxu0
      %v1051 = vadd.f32 0.0, %v1050
      %v1052 = vpop.f32.mrb[0].mxu0
      %1053 = vmatprep.mubr.bf16.mxu0 0
      %1054 = vmatmul.mubr.bf16.gmra.mrb[0].mxu0 %v1000
      %v1055 = vpop.f32.mrb[0].mxu0
      %v1056 = vadd.f32 0.0, %v1055
      %v1057 = vpop.f32.mrb[0].mxu0
      %v1058 = vpop.f32.mrb[0].mxu0
      %v1059 = vpop.f32.mrb[0].mxu0
      %1060 = vdwg.mxu0
      %v1061 = vadd.f32 %v975, %v1040
      %v1062 = vadd.f32 %v976, %v1043
      %v1063 = vadd.f32 %v977, %v1048
      %v1064 = vadd.f32 %v978, %v1051
      %v1065 = vadd.f32 %v979, %v1056
      %v1071 = vunpack.c.l.b16 %v346
      %v1072 = vunpack.c.l.b16 %v347
      %v1073 = vunpack.c.l.b16 %v348
      %v1074 = vunpack.c.l.b16 %v349
      %v1075 = vunpack.c.l.b16 %v350
      %v1076 = vpack.c.b16 %v1072, %v1071
      %v1077 = vpack.c.b16 %v1074, %v1073
      %v1078 = vpack.c.b16 %v1075, %v1075
      %v1080 = vsel %vm475, %v1076, 0
      %v1083 = vsel %vm475, %v1077, 0
      %v1086 = vsel %vm475, %v1078, 0
      %v1089 = vsel %vm485, %v443, 0
      %1091 = vmatprep.subr.bf16.mxu0 0
      %1092 = vmatpush1.bf16.msra.mxu0 %v1089
      %1093 = vmatprep.subr.bf16.mxu0 0
      %1094 = vmatpush1.bf16.msra.mxu0 0
      %1095 = vmatprep.subr.bf16.mxu0 0
      %1096 = vmatpush1.bf16.msra.mxu0 0
      %1097 = vmatprep.subr.bf16.mxu0 0
      %1098 = vmatpush1.bf16.msra.mxu0 0
      %1099 = vmatprep.subr.bf16.mxu0 0
      %1100 = vmatpush1.bf16.msra.mxu0 0
      %1101 = vmatprep.subr.bf16.mxu0 0
      %1102 = vmatpush1.bf16.msra.mxu0 0
      %1103 = vmatprep.subr.bf16.mxu0 0
      %1104 = vmatpush1.bf16.msra.mxu0 0
      %1105 = vmatprep.subr.bf16.mxu0 0
      %1106 = vmatpush1.bf16.msra.mxu0 0
      %1107 = vmatprep.subr.bf16.mxu0 0
      %1108 = vmatpush1.bf16.msra.mxu0 0
      %1109 = vmatprep.subr.bf16.mxu0 0
      %1110 = vmatpush1.bf16.msra.mxu0 0
      %1111 = vmatprep.subr.bf16.mxu0 0
      %1112 = vmatpush1.bf16.msra.mxu0 0
      %1113 = vmatprep.subr.bf16.mxu0 0
      %1114 = vmatpush1.bf16.msra.mxu0 0
      %1115 = vmatprep.subr.bf16.mxu0 0
      %1116 = vmatpush1.bf16.msra.mxu0 0
      %1117 = vmatprep.subr.bf16.mxu0 0
      %1118 = vmatpush1.bf16.msra.mxu0 0
      %1119 = vmatprep.subr.bf16.mxu0 0
      %1120 = vmatpush1.bf16.msra.mxu0 0
      %1121 = vmatprep.subr.bf16.mxu0 0
      %1122 = vmatpush1.bf16.msra.mxu0 0
      %1123 = vmatprep.mubr.bf16.mxu0 0
      %1124 = vmatmul.mubr.bf16.gmra.mrb[0].mxu0 %v1080
      %v1125 = vpop.f32.mrb[0].mxu0
      %v1126 = vadd.f32 0.0, %v1125
      %v1127 = vpop.f32.mrb[0].mxu0
      %v1128 = vpop.f32.mrb[0].mxu0
      %v1129 = vadd.f32 0.0, %v1128
      %v1130 = vpop.f32.mrb[0].mxu0
      %1131 = vmatprep.mubr.bf16.mxu0 0
      %1132 = vmatmul.mubr.bf16.gmra.mrb[0].mxu0 %v1083
      %v1133 = vpop.f32.mrb[0].mxu0
      %v1134 = vadd.f32 0.0, %v1133
      %v1135 = vpop.f32.mrb[0].mxu0
      %v1136 = vpop.f32.mrb[0].mxu0
      %v1137 = vadd.f32 0.0, %v1136
      %v1138 = vpop.f32.mrb[0].mxu0
      %1139 = vmatprep.mubr.bf16.mxu0 0
      %1140 = vmatmul.mubr.bf16.gmra.mrb[0].mxu0 %v1086
      %v1141 = vpop.f32.mrb[0].mxu0
      %v1142 = vadd.f32 0.0, %v1141
      %v1143 = vpop.f32.mrb[0].mxu0
      %v1144 = vpop.f32.mrb[0].mxu0
      %v1145 = vpop.f32.mrb[0].mxu0
      %1146 = vdwg.mxu0
      %v1147 = vadd.f32 %v1061, %v1126
      %v1148 = vadd.f32 %v1062, %v1129
      %v1149 = vadd.f32 %v1063, %v1134
      %v1150 = vadd.f32 %v1064, %v1137
      %v1151 = vadd.f32 %v1065, %v1142
      %v1157 = vunpack.c.l.b16 %v352
      %v1158 = vunpack.c.l.b16 %v353
      %v1159 = vunpack.c.l.b16 %v354
      %v1160 = vunpack.c.l.b16 %v355
      %v1161 = vunpack.c.l.b16 %v356
      %v1162 = vpack.c.b16 %v1158, %v1157
      %v1163 = vpack.c.b16 %v1160, %v1159
      %v1164 = vpack.c.b16 %v1161, %v1161
      %v1166 = vsel %vm475, %v1162, 0
      %v1169 = vsel %vm475, %v1163, 0
      %v1172 = vsel %vm475, %v1164, 0
      %v1175 = vsel %vm485, %v445, 0
      %1177 = vmatprep.subr.bf16.mxu0 0
      %1178 = vmatpush1.bf16.msra.mxu0 %v1175
      %1179 = vmatprep.subr.bf16.mxu0 0
      %1180 = vmatpush1.bf16.msra.mxu0 0
      %1181 = vmatprep.subr.bf16.mxu0 0
      %1182 = vmatpush1.bf16.msra.mxu0 0
      %1183 = vmatprep.subr.bf16.mxu0 0
      %1184 = vmatpush1.bf16.msra.mxu0 0
      %1185 = vmatprep.subr.bf16.mxu0 0
      %1186 = vmatpush1.bf16.msra.mxu0 0
      %1187 = vmatprep.subr.bf16.mxu0 0
      %1188 = vmatpush1.bf16.msra.mxu0 0
      %1189 = vmatprep.subr.bf16.mxu0 0
      %1190 = vmatpush1.bf16.msra.mxu0 0
      %1191 = vmatprep.subr.bf16.mxu0 0
      %1192 = vmatpush1.bf16.msra.mxu0 0
      %1193 = vmatprep.subr.bf16.mxu0 0
      %1194 = vmatpush1.bf16.msra.mxu0 0
      %1195 = vmatprep.subr.bf16.mxu0 0
      %1196 = vmatpush1.bf16.msra.mxu0 0
      %1197 = vmatprep.subr.bf16.mxu0 0
      %1198 = vmatpush1.bf16.msra.mxu0 0
      %1199 = vmatprep.subr.bf16.mxu0 0
      %1200 = vmatpush1.bf16.msra.mxu0 0
      %1201 = vmatprep.subr.bf16.mxu0 0
      %1202 = vmatpush1.bf16.msra.mxu0 0
      %1203 = vmatprep.subr.bf16.mxu0 0
      %1204 = vmatpush1.bf16.msra.mxu0 0
      %1205 = vmatprep.subr.bf16.mxu0 0
      %1206 = vmatpush1.bf16.msra.mxu0 0
      %1207 = vmatprep.subr.bf16.mxu0 0
      %1208 = vmatpush1.bf16.msra.mxu0 0
      %1209 = vmatprep.mubr.bf16.mxu0 0
      %1210 = vmatmul.mubr.bf16.gmra.mrb[0].mxu0 %v1166
      %v1211 = vpop.f32.mrb[0].mxu0
      %v1212 = vadd.f32 0.0, %v1211
      %v1213 = vpop.f32.mrb[0].mxu0
      %v1214 = vpop.f32.mrb[0].mxu0
      %v1215 = vadd.f32 0.0, %v1214
      %v1216 = vpop.f32.mrb[0].mxu0
      %1217 = vmatprep.mubr.bf16.mxu0 0
      %1218 = vmatmul.mubr.bf16.gmra.mrb[0].mxu0 %v1169
      %v1219 = vpop.f32.mrb[0].mxu0
      %v1220 = vadd.f32 0.0, %v1219
      %v1221 = vpop.f32.mrb[0].mxu0
      %v1222 = vpop.f32.mrb[0].mxu0
      %v1223 = vadd.f32 0.0, %v1222
      %v1224 = vpop.f32.mrb[0].mxu0
      %1225 = vmatprep.mubr.bf16.mxu0 0
      %1226 = vmatmul.mubr.bf16.gmra.mrb[0].mxu0 %v1172
      %v1227 = vpop.f32.mrb[0].mxu0
      %v1228 = vadd.f32 0.0, %v1227
      %v1229 = vpop.f32.mrb[0].mxu0
      %v1230 = vpop.f32.mrb[0].mxu0
      %v1231 = vpop.f32.mrb[0].mxu0
      %1232 = vdwg.mxu0
      %v1233 = vadd.f32 %v1147, %v1212
      %v1234 = vadd.f32 %v1148, %v1215
      %v1235 = vadd.f32 %v1149, %v1220
      %v1236 = vadd.f32 %v1150, %v1223
      %v1237 = vadd.f32 %v1151, %v1228
      %vm1238 = vcmp.ge.f32.partialorder %v1233, 0.0
      %vm1239 = vcmp.ge.f32.partialorder %v1234, 0.0
      %vm1240 = vcmp.ge.f32.partialorder %v1235, 0.0
      %vm1241 = vcmp.ge.f32.partialorder %v1236, 0.0
      %vm1242 = vcmp.ge.f32.partialorder %v1237, 0.0
      %v1243 = vmul.f32 %v1233, 0.01
      %v1244 = vmul.f32 %v1234, 0.01
      %v1245 = vmul.f32 %v1235, 0.01
      %v1246 = vmul.f32 %v1236, 0.01
      %v1247 = vmul.f32 %v1237, 0.01
      %v1248 = vsel %vm1238, %v1233, %v1243
      %v1249 = vsel %vm1239, %v1234, %v1244
      %v1250 = vsel %vm1240, %v1235, %v1245
      %v1251 = vsel %vm1241, %v1236, %v1246
      %v1252 = vsel %vm1242, %v1237, %v1247
      %v1253 = vld [vmem:[%s1] sm:$0xff]
      %v1254 = vld [vmem:[%s1 + $0x8] sm:$0xff]
      %v1255 = vld [vmem:[%s1 + $0x10] sm:$0xff]
      %v1256 = vld [vmem:[%s1 + $0x18] sm:$0xff]
      %v1257 = vld [vmem:[%s1 + $0x20] sm:$0xf]
      %1259 = vset.pattern.permute.xlu0 0
      %1260 = vperm.xlu0 %1259, %v1253
      %v1261 = vpop.permute.xlu0 %1260
      %1264 = vset.pattern.permute.xlu0 0
      %1265 = vperm.xlu0 %1264, %v1254
      %v1266 = vpop.permute.xlu0 %1265
      %1269 = vset.pattern.permute.xlu0 0
      %1270 = vperm.xlu0 %1269, %v1255
      %v1271 = vpop.permute.xlu0 %1270
      %1274 = vset.pattern.permute.xlu0 0
      %1275 = vperm.xlu0 %1274, %v1256
      %v1276 = vpop.permute.xlu0 %1275
      %1279 = vset.pattern.permute.xlu0 0
      %1280 = vperm.xlu0 %1279, %v1257
      %v1281 = vpop.permute.xlu0 %1280
      %v1283 = vmul.f32 %v1248, %v1261
      %v1284 = vmul.f32 %v1249, %v1266
      %v1285 = vmul.f32 %v1250, %v1271
      %v1286 = vmul.f32 %v1251, %v1276
      %v1287 = vmul.f32 %v1252, %v1281
      %v1288 = vpack.c.bf16 %v1284, %v1283
      %v1289 = vpack.c.bf16 %v1286, %v1285
      %v1290 = vpack.c.bf16 %v1287, %v1287
      %v1291 = vld [vmem:[%s4] sm:$0xf]
      %vm1292 = vcmask 64512
      %v1294 = vsel %vm1292, %v1288, 0
      %v1297 = vsel %vm1292, %v1289, 0
      %v1300 = vsel %vm1292, %v1290, 0
      %vm1302 = vcmask 1043456
      %v1304 = vsel %vm1302, %v1291, 0
      %1306 = vmatprep.subr.bf16.mxu0 0
      %1307 = vmatpush1.bf16.msra.mxu0 %v1304
      %1308 = vmatprep.subr.bf16.mxu0 0
      %1309 = vmatpush1.bf16.msra.mxu0 0
      %1310 = vmatprep.subr.bf16.mxu0 0
      %1311 = vmatpush1.bf16.msra.mxu0 0
      %1312 = vmatprep.subr.bf16.mxu0 0
      %1313 = vmatpush1.bf16.msra.mxu0 0
      %1314 = vmatprep.subr.bf16.mxu0 0
      %1315 = vmatpush1.bf16.msra.mxu0 0
      %1316 = vmatprep.subr.bf16.mxu0 0
      %1317 = vmatpush1.bf16.msra.mxu0 0
      %1318 = vmatprep.subr.bf16.mxu0 0
      %1319 = vmatpush1.bf16.msra.mxu0 0
      %1320 = vmatprep.subr.bf16.mxu0 0
      %1321 = vmatpush1.bf16.msra.mxu0 0
      %1322 = vmatprep.subr.bf16.mxu0 0
      %1323 = vmatpush1.bf16.msra.mxu0 0
      %1324 = vmatprep.subr.bf16.mxu0 0
      %1325 = vmatpush1.bf16.msra.mxu0 0
      %1326 = vmatprep.subr.bf16.mxu0 0
      %1327 = vmatpush1.bf16.msra.mxu0 0
      %1328 = vmatprep.subr.bf16.mxu0 0
      %1329 = vmatpush1.bf16.msra.mxu0 0
      %1330 = vmatprep.subr.bf16.mxu0 0
      %1331 = vmatpush1.bf16.msra.mxu0 0
      %1332 = vmatprep.subr.bf16.mxu0 0
      %1333 = vmatpush1.bf16.msra.mxu0 0
      %1334 = vmatprep.subr.bf16.mxu0 0
      %1335 = vmatpush1.bf16.msra.mxu0 0
      %1336 = vmatprep.subr.bf16.mxu0 0
      %1337 = vmatpush1.bf16.msra.mxu0 0
      %1338 = vmatprep.mubr.bf16.mxu0 0
      %1339 = vmatmul.mubr.bf16.gmra.mrb[0].mxu0 %v1294
      %v1340 = vpop.f32.mrb[0].mxu0
      %v1341 = vadd.f32 0.0, %v1340
      %v1342 = vpop.f32.mrb[0].mxu0
      %v1343 = vpop.f32.mrb[0].mxu0
      %v1344 = vadd.f32 0.0, %v1343
      %v1345 = vpop.f32.mrb[0].mxu0
      %1346 = vmatprep.mubr.bf16.mxu0 0
      %1347 = vmatmul.mubr.bf16.gmra.mrb[0].mxu0 %v1297
      %v1348 = vpop.f32.mrb[0].mxu0
      %v1349 = vadd.f32 0.0, %v1348
      %v1350 = vpop.f32.mrb[0].mxu0
      %v1351 = vpop.f32.mrb[0].mxu0
      %v1352 = vadd.f32 0.0, %v1351
      %v1353 = vpop.f32.mrb[0].mxu0
      %1354 = vmatprep.mubr.bf16.mxu0 0
      %1355 = vmatmul.mubr.bf16.gmra.mrb[0].mxu0 %v1300
      %v1356 = vpop.f32.mrb[0].mxu0
      %v1357 = vadd.f32 0.0, %v1356
      %v1358 = vpop.f32.mrb[0].mxu0
      %v1359 = vpop.f32.mrb[0].mxu0
      %v1360 = vpop.f32.mrb[0].mxu0
      %1361 = vdwg.mxu0
      %v1362 = vadd.f32 %v454, %v1341
      %v1363 = vadd.f32 %v454, %v1344
      %v1364 = vadd.f32 %v454, %v1349
      %v1365 = vadd.f32 %v454, %v1352
      %v1366 = vadd.f32 %v454, %v1357
      %1367 = vmatprep.subr.bf16.mxu0 0
      %1368 = vmatpush1.bf16.msra.mxu0 %v487
      %1369 = vmatprep.subr.bf16.mxu0 0
      %1370 = vmatpush1.bf16.msra.mxu0 0
      %1371 = vmatprep.subr.bf16.mxu0 0
      %1372 = vmatpush1.bf16.msra.mxu0 0
      %1373 = vmatprep.subr.bf16.mxu0 0
      %1374 = vmatpush1.bf16.msra.mxu0 0
      %1375 = vmatprep.subr.bf16.mxu0 0
      %1376 = vmatpush1.bf16.msra.mxu0 0
      %1377 = vmatprep.subr.bf16.mxu0 0
      %1378 = vmatpush1.bf16.msra.mxu0 0
      %1379 = vmatprep.subr.bf16.mxu0 0
      %1380 = vmatpush1.bf16.msra.mxu0 0
      %1381 = vmatprep.subr.bf16.mxu0 0
      %1382 = vmatpush1.bf16.msra.mxu0 0
      %1383 = vmatprep.subr.bf16.mxu0 0
      %1384 = vmatpush1.bf16.msra.mxu0 0
      %1385 = vmatprep.subr.bf16.mxu0 0
      %1386 = vmatpush1.bf16.msra.mxu0 0
      %1387 = vmatprep.subr.bf16.mxu0 0
      %1388 = vmatpush1.bf16.msra.mxu0 0
      %1389 = vmatprep.subr.bf16.mxu0 0
      %1390 = vmatpush1.bf16.msra.mxu0 0
      %1391 = vmatprep.subr.bf16.mxu0 0
      %1392 = vmatpush1.bf16.msra.mxu0 0
      %1393 = vmatprep.subr.bf16.mxu0 0
      %1394 = vmatpush1.bf16.msra.mxu0 0
      %1395 = vmatprep.subr.bf16.mxu0 0
      %1396 = vmatpush1.bf16.msra.mxu0 0
      %1397 = vmatprep.subr.bf16.mxu0 0
      %1398 = vmatpush1.bf16.msra.mxu0 0
      %1399 = vmatprep.mubr.bf16.mxu0 0
      %1400 = vmatmul.mubr.bf16.gmra.mrb[0].mxu0 %v564
      %v1401 = vpop.f32.mrb[0].mxu0
      %v1402 = vadd.f32 0.0, %v1401
      %v1403 = vpop.f32.mrb[0].mxu0
      %v1404 = vpop.f32.mrb[0].mxu0
      %v1405 = vadd.f32 0.0, %v1404
      %v1406 = vpop.f32.mrb[0].mxu0
      %1407 = vmatprep.mubr.bf16.mxu0 0
      %1408 = vmatmul.mubr.bf16.gmra.mrb[0].mxu0 %v567
      %v1409 = vpop.f32.mrb[0].mxu0
      %v1410 = vadd.f32 0.0, %v1409
      %v1411 = vpop.f32.mrb[0].mxu0
      %v1412 = vpop.f32.mrb[0].mxu0
      %v1413 = vadd.f32 0.0, %v1412
      %v1414 = vpop.f32.mrb[0].mxu0
      %1415 = vmatprep.mubr.bf16.mxu0 0
      %1416 = vmatmul.mubr.bf16.gmra.mrb[0].mxu0 %v570
      %v1417 = vpop.f32.mrb[0].mxu0
      %v1418 = vadd.f32 0.0, %v1417
      %v1419 = vpop.f32.mrb[0].mxu0
      %v1420 = vpop.f32.mrb[0].mxu0
      %v1421 = vpop.f32.mrb[0].mxu0
      %1422 = vdwg.mxu0
      %v1423 = vadd.f32 %v461, %v1402
      %v1424 = vadd.f32 %v461, %v1405
      %v1425 = vadd.f32 %v461, %v1410
      %v1426 = vadd.f32 %v461, %v1413
      %v1427 = vadd.f32 %v461, %v1418
      %1428 = vmatprep.subr.bf16.mxu0 0
      %1429 = vmatpush1.bf16.msra.mxu0 %v573
      %1430 = vmatprep.subr.bf16.mxu0 0
      %1431 = vmatpush1.bf16.msra.mxu0 0
      %1432 = vmatprep.subr.bf16.mxu0 0
      %1433 = vmatpush1.bf16.msra.mxu0 0
      %1434 = vmatprep.subr.bf16.mxu0 0
      %1435 = vmatpush1.bf16.msra.mxu0 0
      %1436 = vmatprep.subr.bf16.mxu0 0
      %1437 = vmatpush1.bf16.msra.mxu0 0
      %1438 = vmatprep.subr.bf16.mxu0 0
      %1439 = vmatpush1.bf16.msra.mxu0 0
      %1440 = vmatprep.subr.bf16.mxu0 0
      %1441 = vmatpush1.bf16.msra.mxu0 0
      %1442 = vmatprep.subr.bf16.mxu0 0
      %1443 = vmatpush1.bf16.msra.mxu0 0
      %1444 = vmatprep.subr.bf16.mxu0 0
      %1445 = vmatpush1.bf16.msra.mxu0 0
      %1446 = vmatprep.subr.bf16.mxu0 0
      %1447 = vmatpush1.bf16.msra.mxu0 0
      %1448 = vmatprep.subr.bf16.mxu0 0
      %1449 = vmatpush1.bf16.msra.mxu0 0
      %1450 = vmatprep.subr.bf16.mxu0 0
      %1451 = vmatpush1.bf16.msra.mxu0 0
      %1452 = vmatprep.subr.bf16.mxu0 0
      %1453 = vmatpush1.bf16.msra.mxu0 0
      %1454 = vmatprep.subr.bf16.mxu0 0
      %1455 = vmatpush1.bf16.msra.mxu0 0
      %1456 = vmatprep.subr.bf16.mxu0 0
      %1457 = vmatpush1.bf16.msra.mxu0 0
      %1458 = vmatprep.subr.bf16.mxu0 0
      %1459 = vmatpush1.bf16.msra.mxu0 0
      %1460 = vmatprep.mubr.bf16.mxu0 0
      %1461 = vmatmul.mubr.bf16.gmra.mrb[0].mxu0 %v650
      %v1462 = vpop.f32.mrb[0].mxu0
      %v1463 = vadd.f32 0.0, %v1462
      %v1464 = vpop.f32.mrb[0].mxu0
      %v1465 = vpop.f32.mrb[0].mxu0
      %v1466 = vadd.f32 0.0, %v1465
      %v1467 = vpop.f32.mrb[0].mxu0
      %1468 = vmatprep.mubr.bf16.mxu0 0
      %1469 = vmatmul.mubr.bf16.gmra.mrb[0].mxu0 %v653
      %v1470 = vpop.f32.mrb[0].mxu0
      %v1471 = vadd.f32 0.0, %v1470
      %v1472 = vpop.f32.mrb[0].mxu0
      %v1473 = vpop.f32.mrb[0].mxu0
      %v1474 = vadd.f32 0.0, %v1473
      %v1475 = vpop.f32.mrb[0].mxu0
      %1476 = vmatprep.mubr.bf16.mxu0 0
      %1477 = vmatmul.mubr.bf16.gmra.mrb[0].mxu0 %v656
      %v1478 = vpop.f32.mrb[0].mxu0
      %v1479 = vadd.f32 0.0, %v1478
      %v1480 = vpop.f32.mrb[0].mxu0
      %v1481 = vpop.f32.mrb[0].mxu0
      %v1482 = vpop.f32.mrb[0].mxu0
      %1483 = vdwg.mxu0
      %v1484 = vadd.f32 %v1423, %v1463
      %v1485 = vadd.f32 %v1424, %v1466
      %v1486 = vadd.f32 %v1425, %v1471
      %v1487 = vadd.f32 %v1426, %v1474
      %v1488 = vadd.f32 %v1427, %v1479
      %v1494 = vunpack.c.l.b16 %v298
      %v1495 = vunpack.c.l.b16 %v299
      %v1496 = vunpack.c.l.b16 %v300
      %v1497 = vunpack.c.l.b16 %v301
      %v1498 = vunpack.c.l.b16 %v302
      %v1499 = vpack.c.b16 %v1495, %v1494
      %v1500 = vpack.c.b16 %v1497, %v1496
      %v1501 = vpack.c.b16 %v1498, %v1498
      %v1503 = vsel %vm475, %v1499, 0
      %v1506 = vsel %vm475, %v1500, 0
      %v1509 = vsel %vm475, %v1501, 0
      %1511 = vmatprep.subr.bf16.mxu0 0
      %1512 = vmatpush1.bf16.msra.mxu0 %v659
      %1513 = vmatprep.subr.bf16.mxu0 0
      %1514 = vmatpush1.bf16.msra.mxu0 0
      %1515 = vmatprep.subr.bf16.mxu0 0
      %1516 = vmatpush1.bf16.msra.mxu0 0
      %1517 = vmatprep.subr.bf16.mxu0 0
      %1518 = vmatpush1.bf16.msra.mxu0 0
      %1519 = vmatprep.subr.bf16.mxu0 0
      %1520 = vmatpush1.bf16.msra.mxu0 0
      %1521 = vmatprep.subr.bf16.mxu0 0
      %1522 = vmatpush1.bf16.msra.mxu0 0
      %1523 = vmatprep.subr.bf16.mxu0 0
      %1524 = vmatpush1.bf16.msra.mxu0 0
      %1525 = vmatprep.subr.bf16.mxu0 0
      %1526 = vmatpush1.bf16.msra.mxu0 0
      %1527 = vmatprep.subr.bf16.mxu0 0
      %1528 = vmatpush1.bf16.msra.mxu0 0
      %1529 = vmatprep.subr.bf16.mxu0 0
      %1530 = vmatpush1.bf16.msra.mxu0 0
      %1531 = vmatprep.subr.bf16.mxu0 0
      %1532 = vmatpush1.bf16.msra.mxu0 0
      %1533 = vmatprep.subr.bf16.mxu0 0
      %1534 = vmatpush1.bf16.msra.mxu0 0
      %1535 = vmatprep.subr.bf16.mxu0 0
      %1536 = vmatpush1.bf16.msra.mxu0 0
      %1537 = vmatprep.subr.bf16.mxu0 0
      %1538 = vmatpush1.bf16.msra.mxu0 0
      %1539 = vmatprep.subr.bf16.mxu0 0
      %1540 = vmatpush1.bf16.msra.mxu0 0
      %1541 = vmatprep.subr.bf16.mxu0 0
      %1542 = vmatpush1.bf16.msra.mxu0 0
      %1543 = vmatprep.mubr.bf16.mxu0 0
      %1544 = vmatmul.mubr.bf16.gmra.mrb[0].mxu0 %v1503
      %v1545 = vpop.f32.mrb[0].mxu0
      %v1546 = vadd.f32 0.0, %v1545
      %v1547 = vpop.f32.mrb[0].mxu0
      %v1548 = vpop.f32.mrb[0].mxu0
      %v1549 = vadd.f32 0.0, %v1548
      %v1550 = vpop.f32.mrb[0].mxu0
      %1551 = vmatprep.mubr.bf16.mxu0 0
      %1552 = vmatmul.mubr.bf16.gmra.mrb[0].mxu0 %v1506
      %v1553 = vpop.f32.mrb[0].mxu0
      %v1554 = vadd.f32 0.0, %v1553
      %v1555 = vpop.f32.mrb[0].mxu0
      %v1556 = vpop.f32.mrb[0].mxu0
      %v1557 = vadd.f32 0.0, %v1556
      %v1558 = vpop.f32.mrb[0].mxu0
      %1559 = vmatprep.mubr.bf16.mxu0 0
      %1560 = vmatmul.mubr.bf16.gmra.mrb[0].mxu0 %v1509
      %v1561 = vpop.f32.mrb[0].mxu0
      %v1562 = vadd.f32 0.0, %v1561
      %v1563 = vpop.f32.mrb[0].mxu0
      %v1564 = vpop.f32.mrb[0].mxu0
      %v1565 = vpop.f32.mrb[0].mxu0
      %1566 = vdwg.mxu0
      %v1567 = vadd.f32 %v1484, %v1546
      %v1568 = vadd.f32 %v1485, %v1549
      %v1569 = vadd.f32 %v1486, %v1554
      %v1570 = vadd.f32 %v1487, %v1557
      %v1571 = vadd.f32 %v1488, %v1562
      %1572 = vmatprep.subr.bf16.mxu0 0
      %1573 = vmatpush1.bf16.msra.mxu0 %v745
      %1574 = vmatprep.subr.bf16.mxu0 0
      %1575 = vmatpush1.bf16.msra.mxu0 0
      %1576 = vmatprep.subr.bf16.mxu0 0
      %1577 = vmatpush1.bf16.msra.mxu0 0
      %1578 = vmatprep.subr.bf16.mxu0 0
      %1579 = vmatpush1.bf16.msra.mxu0 0
      %1580 = vmatprep.subr.bf16.mxu0 0
      %1581 = vmatpush1.bf16.msra.mxu0 0
      %1582 = vmatprep.subr.bf16.mxu0 0
      %1583 = vmatpush1.bf16.msra.mxu0 0
      %1584 = vmatprep.subr.bf16.mxu0 0
      %1585 = vmatpush1.bf16.msra.mxu0 0
      %1586 = vmatprep.subr.bf16.mxu0 0
      %1587 = vmatpush1.bf16.msra.mxu0 0
      %1588 = vmatprep.subr.bf16.mxu0 0
      %1589 = vmatpush1.bf16.msra.mxu0 0
      %1590 = vmatprep.subr.bf16.mxu0 0
      %1591 = vmatpush1.bf16.msra.mxu0 0
      %1592 = vmatprep.subr.bf16.mxu0 0
      %1593 = vmatpush1.bf16.msra.mxu0 0
      %1594 = vmatprep.subr.bf16.mxu0 0
      %1595 = vmatpush1.bf16.msra.mxu0 0
      %1596 = vmatprep.subr.bf16.mxu0 0
      %1597 = vmatpush1.bf16.msra.mxu0 0
      %1598 = vmatprep.subr.bf16.mxu0 0
      %1599 = vmatpush1.bf16.msra.mxu0 0
      %1600 = vmatprep.subr.bf16.mxu0 0
      %1601 = vmatpush1.bf16.msra.mxu0 0
      %1602 = vmatprep.subr.bf16.mxu0 0
      %1603 = vmatpush1.bf16.msra.mxu0 0
      %1604 = vmatprep.mubr.bf16.mxu0 0
      %1605 = vmatmul.mubr.bf16.gmra.mrb[0].mxu0 %v822
      %v1606 = vpop.f32.mrb[0].mxu0
      %v1607 = vadd.f32 0.0, %v1606
      %v1608 = vpop.f32.mrb[0].mxu0
      %v1609 = vpop.f32.mrb[0].mxu0
      %v1610 = vadd.f32 0.0, %v1609
      %v1611 = vpop.f32.mrb[0].mxu0
      %1612 = vmatprep.mubr.bf16.mxu0 0
      %1613 = vmatmul.mubr.bf16.gmra.mrb[0].mxu0 %v825
      %v1614 = vpop.f32.mrb[0].mxu0
      %v1615 = vadd.f32 0.0, %v1614
      %v1616 = vpop.f32.mrb[0].mxu0
      %v1617 = vpop.f32.mrb[0].mxu0
      %v1618 = vadd.f32 0.0, %v1617
      %v1619 = vpop.f32.mrb[0].mxu0
      %1620 = vmatprep.mubr.bf16.mxu0 0
      %1621 = vmatmul.mubr.bf16.gmra.mrb[0].mxu0 %v828
      %v1622 = vpop.f32.mrb[0].mxu0
      %v1623 = vadd.f32 0.0, %v1622
      %v1624 = vpop.f32.mrb[0].mxu0
      %v1625 = vpop.f32.mrb[0].mxu0
      %v1626 = vpop.f32.mrb[0].mxu0
      %1627 = vdwg.mxu0
      %v1628 = vadd.f32 %v1567, %v1607
      %v1629 = vadd.f32 %v1568, %v1610
      %v1630 = vadd.f32 %v1569, %v1615
      %v1631 = vadd.f32 %v1570, %v1618
      %v1632 = vadd.f32 %v1571, %v1623
      %1633 = vmatprep.subr.bf16.mxu0 0
      %1634 = vmatpush1.bf16.msra.mxu0 %v831
      %1635 = vmatprep.subr.bf16.mxu0 0
      %1636 = vmatpush1.bf16.msra.mxu0 0
      %1637 = vmatprep.subr.bf16.mxu0 0
      %1638 = vmatpush1.bf16.msra.mxu0 0
      %1639 = vmatprep.subr.bf16.mxu0 0
      %1640 = vmatpush1.bf16.msra.mxu0 0
      %1641 = vmatprep.subr.bf16.mxu0 0
      %1642 = vmatpush1.bf16.msra.mxu0 0
      %1643 = vmatprep.subr.bf16.mxu0 0
      %1644 = vmatpush1.bf16.msra.mxu0 0
      %1645 = vmatprep.subr.bf16.mxu0 0
      %1646 = vmatpush1.bf16.msra.mxu0 0
      %1647 = vmatprep.subr.bf16.mxu0 0
      %1648 = vmatpush1.bf16.msra.mxu0 0
      %1649 = vmatprep.subr.bf16.mxu0 0
      %1650 = vmatpush1.bf16.msra.mxu0 0
      %1651 = vmatprep.subr.bf16.mxu0 0
      %1652 = vmatpush1.bf16.msra.mxu0 0
      %1653 = vmatprep.subr.bf16.mxu0 0
      %1654 = vmatpush1.bf16.msra.mxu0 0
      %1655 = vmatprep.subr.bf16.mxu0 0
      %1656 = vmatpush1.bf16.msra.mxu0 0
      %1657 = vmatprep.subr.bf16.mxu0 0
      %1658 = vmatpush1.bf16.msra.mxu0 0
      %1659 = vmatprep.subr.bf16.mxu0 0
      %1660 = vmatpush1.bf16.msra.mxu0 0
      %1661 = vmatprep.subr.bf16.mxu0 0
      %1662 = vmatpush1.bf16.msra.mxu0 0
      %1663 = vmatprep.subr.bf16.mxu0 0
      %1664 = vmatpush1.bf16.msra.mxu0 0
      %1665 = vmatprep.mubr.bf16.mxu0 0
      %1666 = vmatmul.mubr.bf16.gmra.mrb[0].mxu0 %v908
      %v1667 = vpop.f32.mrb[0].mxu0
      %v1668 = vadd.f32 0.0, %v1667
      %v1669 = vpop.f32.mrb[0].mxu0
      %v1670 = vpop.f32.mrb[0].mxu0
      %v1671 = vadd.f32 0.0, %v1670
      %v1672 = vpop.f32.mrb[0].mxu0
      %1673 = vmatprep.mubr.bf16.mxu0 0
      %1674 = vmatmul.mubr.bf16.gmra.mrb[0].mxu0 %v911
      %v1675 = vpop.f32.mrb[0].mxu0
      %v1676 = vadd.f32 0.0, %v1675
      %v1677 = vpop.f32.mrb[0].mxu0
      %v1678 = vpop.f32.mrb[0].mxu0
      %v1679 = vadd.f32 0.0, %v1678
      %v1680 = vpop.f32.mrb[0].mxu0
      %1681 = vmatprep.mubr.bf16.mxu0 0
      %1682 = vmatmul.mubr.bf16.gmra.mrb[0].mxu0 %v914
      %v1683 = vpop.f32.mrb[0].mxu0
      %v1684 = vadd.f32 0.0, %v1683
      %v1685 = vpop.f32.mrb[0].mxu0
      %v1686 = vpop.f32.mrb[0].mxu0
      %v1687 = vpop.f32.mrb[0].mxu0
      %1688 = vdwg.mxu0
      %v1689 = vadd.f32 %v1628, %v1668
      %v1690 = vadd.f32 %v1629, %v1671
      %v1691 = vadd.f32 %v1630, %v1676
      %v1692 = vadd.f32 %v1631, %v1679
      %v1693 = vadd.f32 %v1632, %v1684
      %v1699 = vunpack.c.l.b16 %v328
      %v1700 = vunpack.c.l.b16 %v329
      %v1701 = vunpack.c.l.b16 %v330
      %v1702 = vunpack.c.l.b16 %v331
      %v1703 = vunpack.c.l.b16 %v332
      %v1704 = vpack.c.b16 %v1700, %v1699
      %v1705 = vpack.c.b16 %v1702, %v1701
      %v1706 = vpack.c.b16 %v1703, %v1703
      %v1708 = vsel %vm475, %v1704, 0
      %v1711 = vsel %vm475, %v1705, 0
      %v1714 = vsel %vm475, %v1706, 0
      %1716 = vmatprep.subr.bf16.mxu0 0
      %1717 = vmatpush1.bf16.msra.mxu0 %v917
      %1718 = vmatprep.subr.bf16.mxu0 0
      %1719 = vmatpush1.bf16.msra.mxu0 0
      %1720 = vmatprep.subr.bf16.mxu0 0
      %1721 = vmatpush1.bf16.msra.mxu0 0
      %1722 = vmatprep.subr.bf16.mxu0 0
      %1723 = vmatpush1.bf16.msra.mxu0 0
      %1724 = vmatprep.subr.bf16.mxu0 0
      %1725 = vmatpush1.bf16.msra.mxu0 0
      %1726 = vmatprep.subr.bf16.mxu0 0
      %1727 = vmatpush1.bf16.msra.mxu0 0
      %1728 = vmatprep.subr.bf16.mxu0 0
      %1729 = vmatpush1.bf16.msra.mxu0 0
      %1730 = vmatprep.subr.bf16.mxu0 0
      %1731 = vmatpush1.bf16.msra.mxu0 0
      %1732 = vmatprep.subr.bf16.mxu0 0
      %1733 = vmatpush1.bf16.msra.mxu0 0
      %1734 = vmatprep.subr.bf16.mxu0 0
      %1735 = vmatpush1.bf16.msra.mxu0 0
      %1736 = vmatprep.subr.bf16.mxu0 0
      %1737 = vmatpush1.bf16.msra.mxu0 0
      %1738 = vmatprep.subr.bf16.mxu0 0
      %1739 = vmatpush1.bf16.msra.mxu0 0
      %1740 = vmatprep.subr.bf16.mxu0 0
      %1741 = vmatpush1.bf16.msra.mxu0 0
      %1742 = vmatprep.subr.bf16.mxu0 0
      %1743 = vmatpush1.bf16.msra.mxu0 0
      %1744 = vmatprep.subr.bf16.mxu0 0
      %1745 = vmatpush1.bf16.msra.mxu0 0
      %1746 = vmatprep.subr.bf16.mxu0 0
      %1747 = vmatpush1.bf16.msra.mxu0 0
      %1748 = vmatprep.mubr.bf16.mxu0 0
      %1749 = vmatmul.mubr.bf16.gmra.mrb[0].mxu0 %v1708
      %v1750 = vpop.f32.mrb[0].mxu0
      %v1751 = vadd.f32 0.0, %v1750
      %v1752 = vpop.f32.mrb[0].mxu0
      %v1753 = vpop.f32.mrb[0].mxu0
      %v1754 = vadd.f32 0.0, %v1753
      %v1755 = vpop.f32.mrb[0].mxu0
      %1756 = vmatprep.mubr.bf16.mxu0 0
      %1757 = vmatmul.mubr.bf16.gmra.mrb[0].mxu0 %v1711
      %v1758 = vpop.f32.mrb[0].mxu0
      %v1759 = vadd.f32 0.0, %v1758
      %v1760 = vpop.f32.mrb[0].mxu0
      %v1761 = vpop.f32.mrb[0].mxu0
      %v1762 = vadd.f32 0.0, %v1761
      %v1763 = vpop.f32.mrb[0].mxu0
      %1764 = vmatprep.mubr.bf16.mxu0 0
      %1765 = vmatmul.mubr.bf16.gmra.mrb[0].mxu0 %v1714
      %v1766 = vpop.f32.mrb[0].mxu0
      %v1767 = vadd.f32 0.0, %v1766
      %v1768 = vpop.f32.mrb[0].mxu0
      %v1769 = vpop.f32.mrb[0].mxu0
      %v1770 = vpop.f32.mrb[0].mxu0
      %1771 = vdwg.mxu0
      %v1772 = vadd.f32 %v1689, %v1751
      %v1773 = vadd.f32 %v1690, %v1754
      %v1774 = vadd.f32 %v1691, %v1759
      %v1775 = vadd.f32 %v1692, %v1762
      %v1776 = vadd.f32 %v1693, %v1767
      %1777 = vmatprep.subr.bf16.mxu0 0
      %1778 = vmatpush1.bf16.msra.mxu0 %v1003
      %1779 = vmatprep.subr.bf16.mxu0 0
      %1780 = vmatpush1.bf16.msra.mxu0 0
      %1781 = vmatprep.subr.bf16.mxu0 0
      %1782 = vmatpush1.bf16.msra.mxu0 0
      %1783 = vmatprep.subr.bf16.mxu0 0
      %1784 = vmatpush1.bf16.msra.mxu0 0
      %1785 = vmatprep.subr.bf16.mxu0 0
      %1786 = vmatpush1.bf16.msra.mxu0 0
      %1787 = vmatprep.subr.bf16.mxu0 0
      %1788 = vmatpush1.bf16.msra.mxu0 0
      %1789 = vmatprep.subr.bf16.mxu0 0
      %1790 = vmatpush1.bf16.msra.mxu0 0
      %1791 = vmatprep.subr.bf16.mxu0 0
      %1792 = vmatpush1.bf16.msra.mxu0 0
      %1793 = vmatprep.subr.bf16.mxu0 0
      %1794 = vmatpush1.bf16.msra.mxu0 0
      %1795 = vmatprep.subr.bf16.mxu0 0
      %1796 = vmatpush1.bf16.msra.mxu0 0
      %1797 = vmatprep.subr.bf16.mxu0 0
      %1798 = vmatpush1.bf16.msra.mxu0 0
      %1799 = vmatprep.subr.bf16.mxu0 0
      %1800 = vmatpush1.bf16.msra.mxu0 0
      %1801 = vmatprep.subr.bf16.mxu0 0
      %1802 = vmatpush1.bf16.msra.mxu0 0
      %1803 = vmatprep.subr.bf16.mxu0 0
      %1804 = vmatpush1.bf16.msra.mxu0 0
      %1805 = vmatprep.subr.bf16.mxu0 0
      %1806 = vmatpush1.bf16.msra.mxu0 0
      %1807 = vmatprep.subr.bf16.mxu0 0
      %1808 = vmatpush1.bf16.msra.mxu0 0
      %1809 = vmatprep.mubr.bf16.mxu0 0
      %1810 = vmatmul.mubr.bf16.gmra.mrb[0].mxu0 %v1080
      %v1811 = vpop.f32.mrb[0].mxu0
      %v1812 = vadd.f32 0.0, %v1811
      %v1813 = vpop.f32.mrb[0].mxu0
      %v1814 = vpop.f32.mrb[0].mxu0
      %v1815 = vadd.f32 0.0, %v1814
      %v1816 = vpop.f32.mrb[0].mxu0
      %1817 = vmatprep.mubr.bf16.mxu0 0
      %1818 = vmatmul.mubr.bf16.gmra.mrb[0].mxu0 %v1083
      %v1819 = vpop.f32.mrb[0].mxu0
      %v1820 = vadd.f32 0.0, %v1819
      %v1821 = vpop.f32.mrb[0].mxu0
      %v1822 = vpop.f32.mrb[0].mxu0
      %v1823 = vadd.f32 0.0, %v1822
      %v1824 = vpop.f32.mrb[0].mxu0
      %1825 = vmatprep.mubr.bf16.mxu0 0
      %1826 = vmatmul.mubr.bf16.gmra.mrb[0].mxu0 %v1086
      %v1827 = vpop.f32.mrb[0].mxu0
      %v1828 = vadd.f32 0.0, %v1827
      %v1829 = vpop.f32.mrb[0].mxu0
      %v1830 = vpop.f32.mrb[0].mxu0
      %v1831 = vpop.f32.mrb[0].mxu0
      %1832 = vdwg.mxu0
      %v1833 = vadd.f32 %v1772, %v1812
      %v1834 = vadd.f32 %v1773, %v1815
      %v1835 = vadd.f32 %v1774, %v1820
      %v1836 = vadd.f32 %v1775, %v1823
      %v1837 = vadd.f32 %v1776, %v1828
      %1838 = vmatprep.subr.bf16.mxu0 0
      %1839 = vmatpush1.bf16.msra.mxu0 %v1089
      %1840 = vmatprep.subr.bf16.mxu0 0
      %1841 = vmatpush1.bf16.msra.mxu0 0
      %1842 = vmatprep.subr.bf16.mxu0 0
      %1843 = vmatpush1.bf16.msra.mxu0 0
      %1844 = vmatprep.subr.bf16.mxu0 0
      %1845 = vmatpush1.bf16.msra.mxu0 0
      %1846 = vmatprep.subr.bf16.mxu0 0
      %1847 = vmatpush1.bf16.msra.mxu0 0
      %1848 = vmatprep.subr.bf16.mxu0 0
      %1849 = vmatpush1.bf16.msra.mxu0 0
      %1850 = vmatprep.subr.bf16.mxu0 0
      %1851 = vmatpush1.bf16.msra.mxu0 0
      %1852 = vmatprep.subr.bf16.mxu0 0
      %1853 = vmatpush1.bf16.msra.mxu0 0
      %1854 = vmatprep.subr.bf16.mxu0 0
      %1855 = vmatpush1.bf16.msra.mxu0 0
      %1856 = vmatprep.subr.bf16.mxu0 0
      %1857 = vmatpush1.bf16.msra.mxu0 0
      %1858 = vmatprep.subr.bf16.mxu0 0
      %1859 = vmatpush1.bf16.msra.mxu0 0
      %1860 = vmatprep.subr.bf16.mxu0 0
      %1861 = vmatpush1.bf16.msra.mxu0 0
      %1862 = vmatprep.subr.bf16.mxu0 0
      %1863 = vmatpush1.bf16.msra.mxu0 0
      %1864 = vmatprep.subr.bf16.mxu0 0
      %1865 = vmatpush1.bf16.msra.mxu0 0
      %1866 = vmatprep.subr.bf16.mxu0 0
      %1867 = vmatpush1.bf16.msra.mxu0 0
      %1868 = vmatprep.subr.bf16.mxu0 0
      %1869 = vmatpush1.bf16.msra.mxu0 0
      %1870 = vmatprep.mubr.bf16.mxu0 0
      %1871 = vmatmul.mubr.bf16.gmra.mrb[0].mxu0 %v1166
      %v1872 = vpop.f32.mrb[0].mxu0
      %v1873 = vadd.f32 0.0, %v1872
      %v1874 = vpop.f32.mrb[0].mxu0
      %v1875 = vpop.f32.mrb[0].mxu0
      %v1876 = vadd.f32 0.0, %v1875
      %v1877 = vpop.f32.mrb[0].mxu0
      %1878 = vmatprep.mubr.bf16.mxu0 0
      %1879 = vmatmul.mubr.bf16.gmra.mrb[0].mxu0 %v1169
      %v1880 = vpop.f32.mrb[0].mxu0
      %v1881 = vadd.f32 0.0, %v1880
      %v1882 = vpop.f32.mrb[0].mxu0
      %v1883 = vpop.f32.mrb[0].mxu0
      %v1884 = vadd.f32 0.0, %v1883
      %v1885 = vpop.f32.mrb[0].mxu0
      %1886 = vmatprep.mubr.bf16.mxu0 0
      %1887 = vmatmul.mubr.bf16.gmra.mrb[0].mxu0 %v1172
      %v1888 = vpop.f32.mrb[0].mxu0
      %v1889 = vadd.f32 0.0, %v1888
      %v1890 = vpop.f32.mrb[0].mxu0
      %v1891 = vpop.f32.mrb[0].mxu0
      %v1892 = vpop.f32.mrb[0].mxu0
      %1893 = vdwg.mxu0
      %v1894 = vadd.f32 %v1833, %v1873
      %v1895 = vadd.f32 %v1834, %v1876
      %v1896 = vadd.f32 %v1835, %v1881
      %v1897 = vadd.f32 %v1836, %v1884
      %v1898 = vadd.f32 %v1837, %v1889
      %v1904 = vunpack.c.l.b16 %v358
      %v1905 = vunpack.c.l.b16 %v359
      %v1906 = vunpack.c.l.b16 %v360
      %v1907 = vunpack.c.l.b16 %v361
      %v1908 = vunpack.c.l.b16 %v362
      %v1909 = vpack.c.b16 %v1905, %v1904
      %v1910 = vpack.c.b16 %v1907, %v1906
      %v1911 = vpack.c.b16 %v1908, %v1908
      %v1913 = vsel %vm475, %v1909, 0
      %v1916 = vsel %vm475, %v1910, 0
      %v1919 = vsel %vm475, %v1911, 0
      %1921 = vmatprep.subr.bf16.mxu0 0
      %1922 = vmatpush1.bf16.msra.mxu0 %v1175
      %1923 = vmatprep.subr.bf16.mxu0 0
      %1924 = vmatpush1.bf16.msra.mxu0 0
      %1925 = vmatprep.subr.bf16.mxu0 0
      %1926 = vmatpush1.bf16.msra.mxu0 0
      %1927 = vmatprep.subr.bf16.mxu0 0
      %1928 = vmatpush1.bf16.msra.mxu0 0
      %1929 = vmatprep.subr.bf16.mxu0 0
      %1930 = vmatpush1.bf16.msra.mxu0 0
      %1931 = vmatprep.subr.bf16.mxu0 0
      %1932 = vmatpush1.bf16.msra.mxu0 0
      %1933 = vmatprep.subr.bf16.mxu0 0
      %1934 = vmatpush1.bf16.msra.mxu0 0
      %1935 = vmatprep.subr.bf16.mxu0 0
      %1936 = vmatpush1.bf16.msra.mxu0 0
      %1937 = vmatprep.subr.bf16.mxu0 0
      %1938 = vmatpush1.bf16.msra.mxu0 0
      %1939 = vmatprep.subr.bf16.mxu0 0
      %1940 = vmatpush1.bf16.msra.mxu0 0
      %1941 = vmatprep.subr.bf16.mxu0 0
      %1942 = vmatpush1.bf16.msra.mxu0 0
      %1943 = vmatprep.subr.bf16.mxu0 0
      %1944 = vmatpush1.bf16.msra.mxu0 0
      %1945 = vmatprep.subr.bf16.mxu0 0
      %1946 = vmatpush1.bf16.msra.mxu0 0
      %1947 = vmatprep.subr.bf16.mxu0 0
      %1948 = vmatpush1.bf16.msra.mxu0 0
      %1949 = vmatprep.subr.bf16.mxu0 0
      %1950 = vmatpush1.bf16.msra.mxu0 0
      %1951 = vmatprep.subr.bf16.mxu0 0
      %1952 = vmatpush1.bf16.msra.mxu0 0
      %1953 = vmatprep.mubr.bf16.mxu0 0
      %1954 = vmatmul.mubr.bf16.gmra.mrb[0].mxu0 %v1913
      %v1955 = vpop.f32.mrb[0].mxu0
      %v1956 = vadd.f32 0.0, %v1955
      %v1957 = vpop.f32.mrb[0].mxu0
      %v1958 = vpop.f32.mrb[0].mxu0
      %v1959 = vadd.f32 0.0, %v1958
      %v1960 = vpop.f32.mrb[0].mxu0
      %1961 = vmatprep.mubr.bf16.mxu0 0
      %1962 = vmatmul.mubr.bf16.gmra.mrb[0].mxu0 %v1916
      %v1963 = vpop.f32.mrb[0].mxu0
      %v1964 = vadd.f32 0.0, %v1963
      %v1965 = vpop.f32.mrb[0].mxu0
      %v1966 = vpop.f32.mrb[0].mxu0
      %v1967 = vadd.f32 0.0, %v1966
      %v1968 = vpop.f32.mrb[0].mxu0
      %1969 = vmatprep.mubr.bf16.mxu0 0
      %1970 = vmatmul.mubr.bf16.gmra.mrb[0].mxu0 %v1919
      %v1971 = vpop.f32.mrb[0].mxu0
      %v1972 = vadd.f32 0.0, %v1971
      %v1973 = vpop.f32.mrb[0].mxu0
      %v1974 = vpop.f32.mrb[0].mxu0
      %v1975 = vpop.f32.mrb[0].mxu0
      %1976 = vdwg.mxu0
      %v1977 = vadd.f32 %v1894, %v1956
      %v1978 = vadd.f32 %v1895, %v1959
      %v1979 = vadd.f32 %v1896, %v1964
      %v1980 = vadd.f32 %v1897, %v1967
      %v1981 = vadd.f32 %v1898, %v1972
      %vm1982 = vcmp.ge.f32.partialorder %v1977, 0.0
      %vm1983 = vcmp.ge.f32.partialorder %v1978, 0.0
      %vm1984 = vcmp.ge.f32.partialorder %v1979, 0.0
      %vm1985 = vcmp.ge.f32.partialorder %v1980, 0.0
      %vm1986 = vcmp.ge.f32.partialorder %v1981, 0.0
      %v1987 = vmul.f32 %v1977, 0.01
      %v1988 = vmul.f32 %v1978, 0.01
      %v1989 = vmul.f32 %v1979, 0.01
      %v1990 = vmul.f32 %v1980, 0.01
      %v1991 = vmul.f32 %v1981, 0.01
      %v1992 = vsel %vm1982, %v1977, %v1987
      %v1993 = vsel %vm1983, %v1978, %v1988
      %v1994 = vsel %vm1984, %v1979, %v1989
      %v1995 = vsel %vm1985, %v1980, %v1990
      %v1996 = vsel %vm1986, %v1981, %v1991
      %s1997 = scalar_lea.vmem %s1, 40
      %v1998 = vld [vmem:[%s1997] sm:$0xff]
      %v1999 = vld [vmem:[%s1997 + $0x8] sm:$0xff]
      %v2000 = vld [vmem:[%s1997 + $0x10] sm:$0xff]
      %v2001 = vld [vmem:[%s1997 + $0x18] sm:$0xff]
      %v2002 = vld [vmem:[%s1997 + $0x20] sm:$0xf]
      %2004 = vset.pattern.permute.xlu0 0
      %2005 = vperm.xlu0 %2004, %v1998
      %v2006 = vpop.permute.xlu0 %2005
      %2009 = vset.pattern.permute.xlu0 0
      %2010 = vperm.xlu0 %2009, %v1999
      %v2011 = vpop.permute.xlu0 %2010
      %2014 = vset.pattern.permute.xlu0 0
      %2015 = vperm.xlu0 %2014, %v2000
      %v2016 = vpop.permute.xlu0 %2015
      %2019 = vset.pattern.permute.xlu0 0
      %2020 = vperm.xlu0 %2019, %v2001
      %v2021 = vpop.permute.xlu0 %2020
      %2024 = vset.pattern.permute.xlu0 0
      %2025 = vperm.xlu0 %2024, %v2002
      %v2026 = vpop.permute.xlu0 %2025
      %v2028 = vmul.f32 %v1992, %v2006
      %v2029 = vmul.f32 %v1993, %v2011
      %v2030 = vmul.f32 %v1994, %v2016
      %v2031 = vmul.f32 %v1995, %v2021
      %v2032 = vmul.f32 %v1996, %v2026
      %v2033 = vpack.c.bf16 %v2029, %v2028
      %v2034 = vpack.c.bf16 %v2031, %v2030
      %v2035 = vpack.c.bf16 %v2032, %v2032
      %s2036 = scalar_lea.vmem %s4, 4
      %v2037 = vld [vmem:[%s2036] sm:$0xf]
      %v2039 = vsel %vm1292, %v2033, 0
      %v2042 = vsel %vm1292, %v2034, 0
      %v2045 = vsel %vm1292, %v2035, 0
      %v2048 = vsel %vm1302, %v2037, 0
      %2050 = vmatprep.subr.bf16.mxu0 0
      %2051 = vmatpush1.bf16.msra.mxu0 %v2048
      %2052 = vmatprep.subr.bf16.mxu0 0
      %2053 = vmatpush1.bf16.msra.mxu0 0
      %2054 = vmatprep.subr.bf16.mxu0 0
      %2055 = vmatpush1.bf16.msra.mxu0 0
      %2056 = vmatprep.subr.bf16.mxu0 0
      %2057 = vmatpush1.bf16.msra.mxu0 0
      %2058 = vmatprep.subr.bf16.mxu0 0
      %2059 = vmatpush1.bf16.msra.mxu0 0
      %2060 = vmatprep.subr.bf16.mxu0 0
      %2061 = vmatpush1.bf16.msra.mxu0 0
      %2062 = vmatprep.subr.bf16.mxu0 0
      %2063 = vmatpush1.bf16.msra.mxu0 0
      %2064 = vmatprep.subr.bf16.mxu0 0
      %2065 = vmatpush1.bf16.msra.mxu0 0
      %2066 = vmatprep.subr.bf16.mxu0 0
      %2067 = vmatpush1.bf16.msra.mxu0 0
      %2068 = vmatprep.subr.bf16.mxu0 0
      %2069 = vmatpush1.bf16.msra.mxu0 0
      %2070 = vmatprep.subr.bf16.mxu0 0
      %2071 = vmatpush1.bf16.msra.mxu0 0
      %2072 = vmatprep.subr.bf16.mxu0 0
      %2073 = vmatpush1.bf16.msra.mxu0 0
      %2074 = vmatprep.subr.bf16.mxu0 0
      %2075 = vmatpush1.bf16.msra.mxu0 0
      %2076 = vmatprep.subr.bf16.mxu0 0
      %2077 = vmatpush1.bf16.msra.mxu0 0
      %2078 = vmatprep.subr.bf16.mxu0 0
      %2079 = vmatpush1.bf16.msra.mxu0 0
      %2080 = vmatprep.subr.bf16.mxu0 0
      %2081 = vmatpush1.bf16.msra.mxu0 0
      %2082 = vmatprep.mubr.bf16.mxu0 0
      %2083 = vmatmul.mubr.bf16.gmra.mrb[0].mxu0 %v2039
      %v2084 = vpop.f32.mrb[0].mxu0
      %v2085 = vadd.f32 0.0, %v2084
      %v2086 = vpop.f32.mrb[0].mxu0
      %v2087 = vpop.f32.mrb[0].mxu0
      %v2088 = vadd.f32 0.0, %v2087
      %v2089 = vpop.f32.mrb[0].mxu0
      %2090 = vmatprep.mubr.bf16.mxu0 0
      %2091 = vmatmul.mubr.bf16.gmra.mrb[0].mxu0 %v2042
      %v2092 = vpop.f32.mrb[0].mxu0
      %v2093 = vadd.f32 0.0, %v2092
      %v2094 = vpop.f32.mrb[0].mxu0
      %v2095 = vpop.f32.mrb[0].mxu0
      %v2096 = vadd.f32 0.0, %v2095
      %v2097 = vpop.f32.mrb[0].mxu0
      %2098 = vmatprep.mubr.bf16.mxu0 0
      %2099 = vmatmul.mubr.bf16.gmra.mrb[0].mxu0 %v2045
      %v2100 = vpop.f32.mrb[0].mxu0
      %v2101 = vadd.f32 0.0, %v2100
      %v2102 = vpop.f32.mrb[0].mxu0
      %v2103 = vpop.f32.mrb[0].mxu0
      %v2104 = vpop.f32.mrb[0].mxu0
      %2105 = vdwg.mxu0
      %v2106 = vadd.f32 %v1362, %v2085
      %v2107 = vadd.f32 %v1363, %v2088
      %v2108 = vadd.f32 %v1364, %v2093
      %v2109 = vadd.f32 %v1365, %v2096
      %v2110 = vadd.f32 %v1366, %v2101
      %2111 = vmatprep.subr.bf16.mxu0 0
      %2112 = vmatpush1.bf16.msra.mxu0 %v487
      %2113 = vmatprep.subr.bf16.mxu0 0
      %2114 = vmatpush1.bf16.msra.mxu0 0
      %2115 = vmatprep.subr.bf16.mxu0 0
      %2116 = vmatpush1.bf16.msra.mxu0 0
      %2117 = vmatprep.subr.bf16.mxu0 0
      %2118 = vmatpush1.bf16.msra.mxu0 0
      %2119 = vmatprep.subr.bf16.mxu0 0
      %2120 = vmatpush1.bf16.msra.mxu0 0
      %2121 = vmatprep.subr.bf16.mxu0 0
      %2122 = vmatpush1.bf16.msra.mxu0 0
      %2123 = vmatprep.subr.bf16.mxu0 0
      %2124 = vmatpush1.bf16.msra.mxu0 0
      %2125 = vmatprep.subr.bf16.mxu0 0
      %2126 = vmatpush1.bf16.msra.mxu0 0
      %2127 = vmatprep.subr.bf16.mxu0 0
      %2128 = vmatpush1.bf16.msra.mxu0 0
      %2129 = vmatprep.subr.bf16.mxu0 0
      %2130 = vmatpush1.bf16.msra.mxu0 0
      %2131 = vmatprep.subr.bf16.mxu0 0
      %2132 = vmatpush1.bf16.msra.mxu0 0
      %2133 = vmatprep.subr.bf16.mxu0 0
      %2134 = vmatpush1.bf16.msra.mxu0 0
      %2135 = vmatprep.subr.bf16.mxu0 0
      %2136 = vmatpush1.bf16.msra.mxu0 0
      %2137 = vmatprep.subr.bf16.mxu0 0
      %2138 = vmatpush1.bf16.msra.mxu0 0
      %2139 = vmatprep.subr.bf16.mxu0 0
      %2140 = vmatpush1.bf16.msra.mxu0 0
      %2141 = vmatprep.subr.bf16.mxu0 0
      %2142 = vmatpush1.bf16.msra.mxu0 0
      %2143 = vmatprep.mubr.bf16.mxu0 0
      %2144 = vmatmul.mubr.bf16.gmra.mrb[0].mxu0 %v650
      %v2145 = vpop.f32.mrb[0].mxu0
      %v2146 = vadd.f32 0.0, %v2145
      %v2147 = vpop.f32.mrb[0].mxu0
      %v2148 = vpop.f32.mrb[0].mxu0
      %v2149 = vadd.f32 0.0, %v2148
      %v2150 = vpop.f32.mrb[0].mxu0
      %2151 = vmatprep.mubr.bf16.mxu0 0
      %2152 = vmatmul.mubr.bf16.gmra.mrb[0].mxu0 %v653
      %v2153 = vpop.f32.mrb[0].mxu0
      %v2154 = vadd.f32 0.0, %v2153
      %v2155 = vpop.f32.mrb[0].mxu0
      %v2156 = vpop.f32.mrb[0].mxu0
      %v2157 = vadd.f32 0.0, %v2156
      %v2158 = vpop.f32.mrb[0].mxu0
      %2159 = vmatprep.mubr.bf16.mxu0 0
      %2160 = vmatmul.mubr.bf16.gmra.mrb[0].mxu0 %v656
      %v2161 = vpop.f32.mrb[0].mxu0
      %v2162 = vadd.f32 0.0, %v2161
      %v2163 = vpop.f32.mrb[0].mxu0
      %v2164 = vpop.f32.mrb[0].mxu0
      %v2165 = vpop.f32.mrb[0].mxu0
      %2166 = vdwg.mxu0
      %v2167 = vadd.f32 %v461, %v2146
      %v2168 = vadd.f32 %v461, %v2149
      %v2169 = vadd.f32 %v461, %v2154
      %v2170 = vadd.f32 %v461, %v2157
      %v2171 = vadd.f32 %v461, %v2162
      %2172 = vmatprep.subr.bf16.mxu0 0
      %2173 = vmatpush1.bf16.msra.mxu0 %v573
      %2174 = vmatprep.subr.bf16.mxu0 0
      %2175 = vmatpush1.bf16.msra.mxu0 0
      %2176 = vmatprep.subr.bf16.mxu0 0
      %2177 = vmatpush1.bf16.msra.mxu0 0
      %2178 = vmatprep.subr.bf16.mxu0 0
      %2179 = vmatpush1.bf16.msra.mxu0 0
      %2180 = vmatprep.subr.bf16.mxu0 0
      %2181 = vmatpush1.bf16.msra.mxu0 0
      %2182 = vmatprep.subr.bf16.mxu0 0
      %2183 = vmatpush1.bf16.msra.mxu0 0
      %2184 = vmatprep.subr.bf16.mxu0 0
      %2185 = vmatpush1.bf16.msra.mxu0 0
      %2186 = vmatprep.subr.bf16.mxu0 0
      %2187 = vmatpush1.bf16.msra.mxu0 0
      %2188 = vmatprep.subr.bf16.mxu0 0
      %2189 = vmatpush1.bf16.msra.mxu0 0
      %2190 = vmatprep.subr.bf16.mxu0 0
      %2191 = vmatpush1.bf16.msra.mxu0 0
      %2192 = vmatprep.subr.bf16.mxu0 0
      %2193 = vmatpush1.bf16.msra.mxu0 0
      %2194 = vmatprep.subr.bf16.mxu0 0
      %2195 = vmatpush1.bf16.msra.mxu0 0
      %2196 = vmatprep.subr.bf16.mxu0 0
      %2197 = vmatpush1.bf16.msra.mxu0 0
      %2198 = vmatprep.subr.bf16.mxu0 0
      %2199 = vmatpush1.bf16.msra.mxu0 0
      %2200 = vmatprep.subr.bf16.mxu0 0
      %2201 = vmatpush1.bf16.msra.mxu0 0
      %2202 = vmatprep.subr.bf16.mxu0 0
      %2203 = vmatpush1.bf16.msra.mxu0 0
      %2204 = vmatprep.mubr.bf16.mxu0 0
      %2205 = vmatmul.mubr.bf16.gmra.mrb[0].mxu0 %v1503
      %v2206 = vpop.f32.mrb[0].mxu0
      %v2207 = vadd.f32 0.0, %v2206
      %v2208 = vpop.f32.mrb[0].mxu0
      %v2209 = vpop.f32.mrb[0].mxu0
      %v2210 = vadd.f32 0.0, %v2209
      %v2211 = vpop.f32.mrb[0].mxu0
      %2212 = vmatprep.mubr.bf16.mxu0 0
      %2213 = vmatmul.mubr.bf16.gmra.mrb[0].mxu0 %v1506
      %v2214 = vpop.f32.mrb[0].mxu0
      %v2215 = vadd.f32 0.0, %v2214
      %v2216 = vpop.f32.mrb[0].mxu0
      %v2217 = vpop.f32.mrb[0].mxu0
      %v2218 = vadd.f32 0.0, %v2217
      %v2219 = vpop.f32.mrb[0].mxu0
      %2220 = vmatprep.mubr.bf16.mxu0 0
      %2221 = vmatmul.mubr.bf16.gmra.mrb[0].mxu0 %v1509
      %v2222 = vpop.f32.mrb[0].mxu0
      %v2223 = vadd.f32 0.0, %v2222
      %v2224 = vpop.f32.mrb[0].mxu0
      %v2225 = vpop.f32.mrb[0].mxu0
      %v2226 = vpop.f32.mrb[0].mxu0
      %2227 = vdwg.mxu0
      %v2228 = vadd.f32 %v2167, %v2207
      %v2229 = vadd.f32 %v2168, %v2210
      %v2230 = vadd.f32 %v2169, %v2215
      %v2231 = vadd.f32 %v2170, %v2218
      %v2232 = vadd.f32 %v2171, %v2223
      %v2238 = vunpack.c.l.b16 %v304
      %v2239 = vunpack.c.l.b16 %v305
      %v2240 = vunpack.c.l.b16 %v306
      %v2241 = vunpack.c.l.b16 %v307
      %v2242 = vunpack.c.l.b16 %v308
      %v2243 = vpack.c.b16 %v2239, %v2238
      %v2244 = vpack.c.b16 %v2241, %v2240
      %v2245 = vpack.c.b16 %v2242, %v2242
      %v2247 = vsel %vm475, %v2243, 0
      %v2250 = vsel %vm475, %v2244, 0
      %v2253 = vsel %vm475, %v2245, 0
      %2255 = vmatprep.subr.bf16.mxu0 0
      %2256 = vmatpush1.bf16.msra.mxu0 %v659
      %2257 = vmatprep.subr.bf16.mxu0 0
      %2258 = vmatpush1.bf16.msra.mxu0 0
      %2259 = vmatprep.subr.bf16.mxu0 0
      %2260 = vmatpush1.bf16.msra.mxu0 0
      %2261 = vmatprep.subr.bf16.mxu0 0
      %2262 = vmatpush1.bf16.msra.mxu0 0
      %2263 = vmatprep.subr.bf16.mxu0 0
      %2264 = vmatpush1.bf16.msra.mxu0 0
      %2265 = vmatprep.subr.bf16.mxu0 0
      %2266 = vmatpush1.bf16.msra.mxu0 0
      %2267 = vmatprep.subr.bf16.mxu0 0
      %2268 = vmatpush1.bf16.msra.mxu0 0
      %2269 = vmatprep.subr.bf16.mxu0 0
      %2270 = vmatpush1.bf16.msra.mxu0 0
      %2271 = vmatprep.subr.bf16.mxu0 0
      %2272 = vmatpush1.bf16.msra.mxu0 0
      %2273 = vmatprep.subr.bf16.mxu0 0
      %2274 = vmatpush1.bf16.msra.mxu0 0
      %2275 = vmatprep.subr.bf16.mxu0 0
      %2276 = vmatpush1.bf16.msra.mxu0 0
      %2277 = vmatprep.subr.bf16.mxu0 0
      %2278 = vmatpush1.bf16.msra.mxu0 0
      %2279 = vmatprep.subr.bf16.mxu0 0
      %2280 = vmatpush1.bf16.msra.mxu0 0
      %2281 = vmatprep.subr.bf16.mxu0 0
      %2282 = vmatpush1.bf16.msra.mxu0 0
      %2283 = vmatprep.subr.bf16.mxu0 0
      %2284 = vmatpush1.bf16.msra.mxu0 0
      %2285 = vmatprep.subr.bf16.mxu0 0
      %2286 = vmatpush1.bf16.msra.mxu0 0
      %2287 = vmatprep.mubr.bf16.mxu0 0
      %2288 = vmatmul.mubr.bf16.gmra.mrb[0].mxu0 %v2247
      %v2289 = vpop.f32.mrb[0].mxu0
      %v2290 = vadd.f32 0.0, %v2289
      %v2291 = vpop.f32.mrb[0].mxu0
      %v2292 = vpop.f32.mrb[0].mxu0
      %v2293 = vadd.f32 0.0, %v2292
      %v2294 = vpop.f32.mrb[0].mxu0
      %2295 = vmatprep.mubr.bf16.mxu0 0
      %2296 = vmatmul.mubr.bf16.gmra.mrb[0].mxu0 %v2250
      %v2297 = vpop.f32.mrb[0].mxu0
      %v2298 = vadd.f32 0.0, %v2297
      %v2299 = vpop.f32.mrb[0].mxu0
      %v2300 = vpop.f32.mrb[0].mxu0
      %v2301 = vadd.f32 0.0, %v2300
      %v2302 = vpop.f32.mrb[0].mxu0
      %2303 = vmatprep.mubr.bf16.mxu0 0
      %2304 = vmatmul.mubr.bf16.gmra.mrb[0].mxu0 %v2253
      %v2305 = vpop.f32.mrb[0].mxu0
      %v2306 = vadd.f32 0.0, %v2305
      %v2307 = vpop.f32.mrb[0].mxu0
      %v2308 = vpop.f32.mrb[0].mxu0
      %v2309 = vpop.f32.mrb[0].mxu0
      %2310 = vdwg.mxu0
      %v2311 = vadd.f32 %v2228, %v2290
      %v2312 = vadd.f32 %v2229, %v2293
      %v2313 = vadd.f32 %v2230, %v2298
      %v2314 = vadd.f32 %v2231, %v2301
      %v2315 = vadd.f32 %v2232, %v2306
      %2316 = vmatprep.subr.bf16.mxu0 0
      %2317 = vmatpush1.bf16.msra.mxu0 %v745
      %2318 = vmatprep.subr.bf16.mxu0 0
      %2319 = vmatpush1.bf16.msra.mxu0 0
      %2320 = vmatprep.subr.bf16.mxu0 0
      %2321 = vmatpush1.bf16.msra.mxu0 0
      %2322 = vmatprep.subr.bf16.mxu0 0
      %2323 = vmatpush1.bf16.msra.mxu0 0
      %2324 = vmatprep.subr.bf16.mxu0 0
      %2325 = vmatpush1.bf16.msra.mxu0 0
      %2326 = vmatprep.subr.bf16.mxu0 0
      %2327 = vmatpush1.bf16.msra.mxu0 0
      %2328 = vmatprep.subr.bf16.mxu0 0
      %2329 = vmatpush1.bf16.msra.mxu0 0
      %2330 = vmatprep.subr.bf16.mxu0 0
      %2331 = vmatpush1.bf16.msra.mxu0 0
      %2332 = vmatprep.subr.bf16.mxu0 0
      %2333 = vmatpush1.bf16.msra.mxu0 0
      %2334 = vmatprep.subr.bf16.mxu0 0
      %2335 = vmatpush1.bf16.msra.mxu0 0
      %2336 = vmatprep.subr.bf16.mxu0 0
      %2337 = vmatpush1.bf16.msra.mxu0 0
      %2338 = vmatprep.subr.bf16.mxu0 0
      %2339 = vmatpush1.bf16.msra.mxu0 0
      %2340 = vmatprep.subr.bf16.mxu0 0
      %2341 = vmatpush1.bf16.msra.mxu0 0
      %2342 = vmatprep.subr.bf16.mxu0 0
      %2343 = vmatpush1.bf16.msra.mxu0 0
      %2344 = vmatprep.subr.bf16.mxu0 0
      %2345 = vmatpush1.bf16.msra.mxu0 0
      %2346 = vmatprep.subr.bf16.mxu0 0
      %2347 = vmatpush1.bf16.msra.mxu0 0
      %2348 = vmatprep.mubr.bf16.mxu0 0
      %2349 = vmatmul.mubr.bf16.gmra.mrb[0].mxu0 %v908
      %v2350 = vpop.f32.mrb[0].mxu0
      %v2351 = vadd.f32 0.0, %v2350
      %v2352 = vpop.f32.mrb[0].mxu0
      %v2353 = vpop.f32.mrb[0].mxu0
      %v2354 = vadd.f32 0.0, %v2353
      %v2355 = vpop.f32.mrb[0].mxu0
      %2356 = vmatprep.mubr.bf16.mxu0 0
      %2357 = vmatmul.mubr.bf16.gmra.mrb[0].mxu0 %v911
      %v2358 = vpop.f32.mrb[0].mxu0
      %v2359 = vadd.f32 0.0, %v2358
      %v2360 = vpop.f32.mrb[0].mxu0
      %v2361 = vpop.f32.mrb[0].mxu0
      %v2362 = vadd.f32 0.0, %v2361
      %v2363 = vpop.f32.mrb[0].mxu0
      %2364 = vmatprep.mubr.bf16.mxu0 0
      %2365 = vmatmul.mubr.bf16.gmra.mrb[0].mxu0 %v914
      %v2366 = vpop.f32.mrb[0].mxu0
      %v2367 = vadd.f32 0.0, %v2366
      %v2368 = vpop.f32.mrb[0].mxu0
      %v2369 = vpop.f32.mrb[0].mxu0
      %v2370 = vpop.f32.mrb[0].mxu0
      %2371 = vdwg.mxu0
      %v2372 = vadd.f32 %v2311, %v2351
      %v2373 = vadd.f32 %v2312, %v2354
      %v2374 = vadd.f32 %v2313, %v2359
      %v2375 = vadd.f32 %v2314, %v2362
      %v2376 = vadd.f32 %v2315, %v2367
      %2377 = vmatprep.subr.bf16.mxu0 0
      %2378 = vmatpush1.bf16.msra.mxu0 %v831
      %2379 = vmatprep.subr.bf16.mxu0 0
      %2380 = vmatpush1.bf16.msra.mxu0 0
      %2381 = vmatprep.subr.bf16.mxu0 0
      %2382 = vmatpush1.bf16.msra.mxu0 0
      %2383 = vmatprep.subr.bf16.mxu0 0
      %2384 = vmatpush1.bf16.msra.mxu0 0
      %2385 = vmatprep.subr.bf16.mxu0 0
      %2386 = vmatpush1.bf16.msra.mxu0 0
      %2387 = vmatprep.subr.bf16.mxu0 0
      %2388 = vmatpush1.bf16.msra.mxu0 0
      %2389 = vmatprep.subr.bf16.mxu0 0
      %2390 = vmatpush1.bf16.msra.mxu0 0
      %2391 = vmatprep.subr.bf16.mxu0 0
      %2392 = vmatpush1.bf16.msra.mxu0 0
      %2393 = vmatprep.subr.bf16.mxu0 0
      %2394 = vmatpush1.bf16.msra.mxu0 0
      %2395 = vmatprep.subr.bf16.mxu0 0
      %2396 = vmatpush1.bf16.msra.mxu0 0
      %2397 = vmatprep.subr.bf16.mxu0 0
      %2398 = vmatpush1.bf16.msra.mxu0 0
      %2399 = vmatprep.subr.bf16.mxu0 0
      %2400 = vmatpush1.bf16.msra.mxu0 0
      %2401 = vmatprep.subr.bf16.mxu0 0
      %2402 = vmatpush1.bf16.msra.mxu0 0
      %2403 = vmatprep.subr.bf16.mxu0 0
      %2404 = vmatpush1.bf16.msra.mxu0 0
      %2405 = vmatprep.subr.bf16.mxu0 0
      %2406 = vmatpush1.bf16.msra.mxu0 0
      %2407 = vmatprep.subr.bf16.mxu0 0
      %2408 = vmatpush1.bf16.msra.mxu0 0
      %2409 = vmatprep.mubr.bf16.mxu0 0
      %2410 = vmatmul.mubr.bf16.gmra.mrb[0].mxu0 %v1708
      %v2411 = vpop.f32.mrb[0].mxu0
      %v2412 = vadd.f32 0.0, %v2411
      %v2413 = vpop.f32.mrb[0].mxu0
      %v2414 = vpop.f32.mrb[0].mxu0
      %v2415 = vadd.f32 0.0, %v2414
      %v2416 = vpop.f32.mrb[0].mxu0
      %2417 = vmatprep.mubr.bf16.mxu0 0
      %2418 = vmatmul.mubr.bf16.gmra.mrb[0].mxu0 %v1711
      %v2419 = vpop.f32.mrb[0].mxu0
      %v2420 = vadd.f32 0.0, %v2419
      %v2421 = vpop.f32.mrb[0].mxu0
      %v2422 = vpop.f32.mrb[0].mxu0
      %v2423 = vadd.f32 0.0, %v2422
      %v2424 = vpop.f32.mrb[0].mxu0
      %2425 = vmatprep.mubr.bf16.mxu0 0
      %2426 = vmatmul.mubr.bf16.gmra.mrb[0].mxu0 %v1714
      %v2427 = vpop.f32.mrb[0].mxu0
      %v2428 = vadd.f32 0.0, %v2427
      %v2429 = vpop.f32.mrb[0].mxu0
      %v2430 = vpop.f32.mrb[0].mxu0
      %v2431 = vpop.f32.mrb[0].mxu0
      %2432 = vdwg.mxu0
      %v2433 = vadd.f32 %v2372, %v2412
      %v2434 = vadd.f32 %v2373, %v2415
      %v2435 = vadd.f32 %v2374, %v2420
      %v2436 = vadd.f32 %v2375, %v2423
      %v2437 = vadd.f32 %v2376, %v2428
      %v2443 = vunpack.c.l.b16 %v334
      %v2444 = vunpack.c.l.b16 %v335
      %v2445 = vunpack.c.l.b16 %v336
      %v2446 = vunpack.c.l.b16 %v337
      %v2447 = vunpack.c.l.b16 %v338
      %v2448 = vpack.c.b16 %v2444, %v2443
      %v2449 = vpack.c.b16 %v2446, %v2445
      %v2450 = vpack.c.b16 %v2447, %v2447
      %v2452 = vsel %vm475, %v2448, 0
      %v2455 = vsel %vm475, %v2449, 0
      %v2458 = vsel %vm475, %v2450, 0
      %2460 = vmatprep.subr.bf16.mxu0 0
      %2461 = vmatpush1.bf16.msra.mxu0 %v917
      %2462 = vmatprep.subr.bf16.mxu0 0
      %2463 = vmatpush1.bf16.msra.mxu0 0
      %2464 = vmatprep.subr.bf16.mxu0 0
      %2465 = vmatpush1.bf16.msra.mxu0 0
      %2466 = vmatprep.subr.bf16.mxu0 0
      %2467 = vmatpush1.bf16.msra.mxu0 0
      %2468 = vmatprep.subr.bf16.mxu0 0
      %2469 = vmatpush1.bf16.msra.mxu0 0
      %2470 = vmatprep.subr.bf16.mxu0 0
      %2471 = vmatpush1.bf16.msra.mxu0 0
      %2472 = vmatprep.subr.bf16.mxu0 0
      %2473 = vmatpush1.bf16.msra.mxu0 0
      %2474 = vmatprep.subr.bf16.mxu0 0
      %2475 = vmatpush1.bf16.msra.mxu0 0
      %2476 = vmatprep.subr.bf16.mxu0 0
      %2477 = vmatpush1.bf16.msra.mxu0 0
      %2478 = vmatprep.subr.bf16.mxu0 0
      %2479 = vmatpush1.bf16.msra.mxu0 0
      %2480 = vmatprep.subr.bf16.mxu0 0
      %2481 = vmatpush1.bf16.msra.mxu0 0
      %2482 = vmatprep.subr.bf16.mxu0 0
      %2483 = vmatpush1.bf16.msra.mxu0 0
      %2484 = vmatprep.subr.bf16.mxu0 0
      %2485 = vmatpush1.bf16.msra.mxu0 0
      %2486 = vmatprep.subr.bf16.mxu0 0
      %2487 = vmatpush1.bf16.msra.mxu0 0
      %2488 = vmatprep.subr.bf16.mxu0 0
      %2489 = vmatpush1.bf16.msra.mxu0 0
      %2490 = vmatprep.subr.bf16.mxu0 0
      %2491 = vmatpush1.bf16.msra.mxu0 0
      %2492 = vmatprep.mubr.bf16.mxu0 0
      %2493 = vmatmul.mubr.bf16.gmra.mrb[0].mxu0 %v2452
      %v2494 = vpop.f32.mrb[0].mxu0
      %v2495 = vadd.f32 0.0, %v2494
      %v2496 = vpop.f32.mrb[0].mxu0
      %v2497 = vpop.f32.mrb[0].mxu0
      %v2498 = vadd.f32 0.0, %v2497
      %v2499 = vpop.f32.mrb[0].mxu0
      %2500 = vmatprep.mubr.bf16.mxu0 0
      %2501 = vmatmul.mubr.bf16.gmra.mrb[0].mxu0 %v2455
      %v2502 = vpop.f32.mrb[0].mxu0
      %v2503 = vadd.f32 0.0, %v2502
      %v2504 = vpop.f32.mrb[0].mxu0
      %v2505 = vpop.f32.mrb[0].mxu0
      %v2506 = vadd.f32 0.0, %v2505
      %v2507 = vpop.f32.mrb[0].mxu0
      %2508 = vmatprep.mubr.bf16.mxu0 0
      %2509 = vmatmul.mubr.bf16.gmra.mrb[0].mxu0 %v2458
      %v2510 = vpop.f32.mrb[0].mxu0
      %v2511 = vadd.f32 0.0, %v2510
      %v2512 = vpop.f32.mrb[0].mxu0
      %v2513 = vpop.f32.mrb[0].mxu0
      %v2514 = vpop.f32.mrb[0].mxu0
      %2515 = vdwg.mxu0
      %v2516 = vadd.f32 %v2433, %v2495
      %v2517 = vadd.f32 %v2434, %v2498
      %v2518 = vadd.f32 %v2435, %v2503
      %v2519 = vadd.f32 %v2436, %v2506
      %v2520 = vadd.f32 %v2437, %v2511
      %2521 = vmatprep.subr.bf16.mxu0 0
      %2522 = vmatpush1.bf16.msra.mxu0 %v1003
      %2523 = vmatprep.subr.bf16.mxu0 0
      %2524 = vmatpush1.bf16.msra.mxu0 0
      %2525 = vmatprep.subr.bf16.mxu0 0
      %2526 = vmatpush1.bf16.msra.mxu0 0
      %2527 = vmatprep.subr.bf16.mxu0 0
      %2528 = vmatpush1.bf16.msra.mxu0 0
      %2529 = vmatprep.subr.bf16.mxu0 0
      %2530 = vmatpush1.bf16.msra.mxu0 0
      %2531 = vmatprep.subr.bf16.mxu0 0
      %2532 = vmatpush1.bf16.msra.mxu0 0
      %2533 = vmatprep.subr.bf16.mxu0 0
      %2534 = vmatpush1.bf16.msra.mxu0 0
      %2535 = vmatprep.subr.bf16.mxu0 0
      %2536 = vmatpush1.bf16.msra.mxu0 0
      %2537 = vmatprep.subr.bf16.mxu0 0
      %2538 = vmatpush1.bf16.msra.mxu0 0
      %2539 = vmatprep.subr.bf16.mxu0 0
      %2540 = vmatpush1.bf16.msra.mxu0 0
      %2541 = vmatprep.subr.bf16.mxu0 0
      %2542 = vmatpush1.bf16.msra.mxu0 0
      %2543 = vmatprep.subr.bf16.mxu0 0
      %2544 = vmatpush1.bf16.msra.mxu0 0
      %2545 = vmatprep.subr.bf16.mxu0 0
      %2546 = vmatpush1.bf16.msra.mxu0 0
      %2547 = vmatprep.subr.bf16.mxu0 0
      %2548 = vmatpush1.bf16.msra.mxu0 0
      %2549 = vmatprep.subr.bf16.mxu0 0
      %2550 = vmatpush1.bf16.msra.mxu0 0
      %2551 = vmatprep.subr.bf16.mxu0 0
      %2552 = vmatpush1.bf16.msra.mxu0 0
      %2553 = vmatprep.mubr.bf16.mxu0 0
      %2554 = vmatmul.mubr.bf16.gmra.mrb[0].mxu0 %v1166
      %v2555 = vpop.f32.mrb[0].mxu0
      %v2556 = vadd.f32 0.0, %v2555
      %v2557 = vpop.f32.mrb[0].mxu0
      %v2558 = vpop.f32.mrb[0].mxu0
      %v2559 = vadd.f32 0.0, %v2558
      %v2560 = vpop.f32.mrb[0].mxu0
      %2561 = vmatprep.mubr.bf16.mxu0 0
      %2562 = vmatmul.mubr.bf16.gmra.mrb[0].mxu0 %v1169
      %v2563 = vpop.f32.mrb[0].mxu0
      %v2564 = vadd.f32 0.0, %v2563
      %v2565 = vpop.f32.mrb[0].mxu0
      %v2566 = vpop.f32.mrb[0].mxu0
      %v2567 = vadd.f32 0.0, %v2566
      %v2568 = vpop.f32.mrb[0].mxu0
      %2569 = vmatprep.mubr.bf16.mxu0 0
      %2570 = vmatmul.mubr.bf16.gmra.mrb[0].mxu0 %v1172
      %v2571 = vpop.f32.mrb[0].mxu0
      %v2572 = vadd.f32 0.0, %v2571
      %v2573 = vpop.f32.mrb[0].mxu0
      %v2574 = vpop.f32.mrb[0].mxu0
      %v2575 = vpop.f32.mrb[0].mxu0
      %2576 = vdwg.mxu0
      %v2577 = vadd.f32 %v2516, %v2556
      %v2578 = vadd.f32 %v2517, %v2559
      %v2579 = vadd.f32 %v2518, %v2564
      %v2580 = vadd.f32 %v2519, %v2567
      %v2581 = vadd.f32 %v2520, %v2572
      %2582 = vmatprep.subr.bf16.mxu0 0
      %2583 = vmatpush1.bf16.msra.mxu0 %v1089
      %2584 = vmatprep.subr.bf16.mxu0 0
      %2585 = vmatpush1.bf16.msra.mxu0 0
      %2586 = vmatprep.subr.bf16.mxu0 0
      %2587 = vmatpush1.bf16.msra.mxu0 0
      %2588 = vmatprep.subr.bf16.mxu0 0
      %2589 = vmatpush1.bf16.msra.mxu0 0
      %2590 = vmatprep.subr.bf16.mxu0 0
      %2591 = vmatpush1.bf16.msra.mxu0 0
      %2592 = vmatprep.subr.bf16.mxu0 0
      %2593 = vmatpush1.bf16.msra.mxu0 0
      %2594 = vmatprep.subr.bf16.mxu0 0
      %2595 = vmatpush1.bf16.msra.mxu0 0
      %2596 = vmatprep.subr.bf16.mxu0 0
      %2597 = vmatpush1.bf16.msra.mxu0 0
      %2598 = vmatprep.subr.bf16.mxu0 0
      %2599 = vmatpush1.bf16.msra.mxu0 0
      %2600 = vmatprep.subr.bf16.mxu0 0
      %2601 = vmatpush1.bf16.msra.mxu0 0
      %2602 = vmatprep.subr.bf16.mxu0 0
      %2603 = vmatpush1.bf16.msra.mxu0 0
      %2604 = vmatprep.subr.bf16.mxu0 0
      %2605 = vmatpush1.bf16.msra.mxu0 0
      %2606 = vmatprep.subr.bf16.mxu0 0
      %2607 = vmatpush1.bf16.msra.mxu0 0
      %2608 = vmatprep.subr.bf16.mxu0 0
      %2609 = vmatpush1.bf16.msra.mxu0 0
      %2610 = vmatprep.subr.bf16.mxu0 0
      %2611 = vmatpush1.bf16.msra.mxu0 0
      %2612 = vmatprep.subr.bf16.mxu0 0
      %2613 = vmatpush1.bf16.msra.mxu0 0
      %2614 = vmatprep.mubr.bf16.mxu0 0
      %2615 = vmatmul.mubr.bf16.gmra.mrb[0].mxu0 %v1913
      %v2616 = vpop.f32.mrb[0].mxu0
      %v2617 = vadd.f32 0.0, %v2616
      %v2618 = vpop.f32.mrb[0].mxu0
      %v2619 = vpop.f32.mrb[0].mxu0
      %v2620 = vadd.f32 0.0, %v2619
      %v2621 = vpop.f32.mrb[0].mxu0
      %2622 = vmatprep.mubr.bf16.mxu0 0
      %2623 = vmatmul.mubr.bf16.gmra.mrb[0].mxu0 %v1916
      %v2624 = vpop.f32.mrb[0].mxu0
      %v2625 = vadd.f32 0.0, %v2624
      %v2626 = vpop.f32.mrb[0].mxu0
      %v2627 = vpop.f32.mrb[0].mxu0
      %v2628 = vadd.f32 0.0, %v2627
      %v2629 = vpop.f32.mrb[0].mxu0
      %2630 = vmatprep.mubr.bf16.mxu0 0
      %2631 = vmatmul.mubr.bf16.gmra.mrb[0].mxu0 %v1919
      %v2632 = vpop.f32.mrb[0].mxu0
      %v2633 = vadd.f32 0.0, %v2632
      %v2634 = vpop.f32.mrb[0].mxu0
      %v2635 = vpop.f32.mrb[0].mxu0
      %v2636 = vpop.f32.mrb[0].mxu0
      %2637 = vdwg.mxu0
      %v2638 = vadd.f32 %v2577, %v2617
      %v2639 = vadd.f32 %v2578, %v2620
      %v2640 = vadd.f32 %v2579, %v2625
      %v2641 = vadd.f32 %v2580, %v2628
      %v2642 = vadd.f32 %v2581, %v2633
      %v2648 = vunpack.c.l.b16 %v364
      %v2649 = vunpack.c.l.b16 %v365
      %v2650 = vunpack.c.l.b16 %v366
      %v2651 = vunpack.c.l.b16 %v367
      %v2652 = vunpack.c.l.b16 %v368
      %v2653 = vpack.c.b16 %v2649, %v2648
      %v2654 = vpack.c.b16 %v2651, %v2650
      %v2655 = vpack.c.b16 %v2652, %v2652
      %v2657 = vsel %vm475, %v2653, 0
      %v2660 = vsel %vm475, %v2654, 0
      %v2663 = vsel %vm475, %v2655, 0
      %2665 = vmatprep.subr.bf16.mxu0 0
      %2666 = vmatpush1.bf16.msra.mxu0 %v1175
      %2667 = vmatprep.subr.bf16.mxu0 0
      %2668 = vmatpush1.bf16.msra.mxu0 0
      %2669 = vmatprep.subr.bf16.mxu0 0
      %2670 = vmatpush1.bf16.msra.mxu0 0
      %2671 = vmatprep.subr.bf16.mxu0 0
      %2672 = vmatpush1.bf16.msra.mxu0 0
      %2673 = vmatprep.subr.bf16.mxu0 0
      %2674 = vmatpush1.bf16.msra.mxu0 0
      %2675 = vmatprep.subr.bf16.mxu0 0
      %2676 = vmatpush1.bf16.msra.mxu0 0
      %2677 = vmatprep.subr.bf16.mxu0 0
      %2678 = vmatpush1.bf16.msra.mxu0 0
      %2679 = vmatprep.subr.bf16.mxu0 0
      %2680 = vmatpush1.bf16.msra.mxu0 0
      %2681 = vmatprep.subr.bf16.mxu0 0
      %2682 = vmatpush1.bf16.msra.mxu0 0
      %2683 = vmatprep.subr.bf16.mxu0 0
      %2684 = vmatpush1.bf16.msra.mxu0 0
      %2685 = vmatprep.subr.bf16.mxu0 0
      %2686 = vmatpush1.bf16.msra.mxu0 0
      %2687 = vmatprep.subr.bf16.mxu0 0
      %2688 = vmatpush1.bf16.msra.mxu0 0
      %2689 = vmatprep.subr.bf16.mxu0 0
      %2690 = vmatpush1.bf16.msra.mxu0 0
      %2691 = vmatprep.subr.bf16.mxu0 0
      %2692 = vmatpush1.bf16.msra.mxu0 0
      %2693 = vmatprep.subr.bf16.mxu0 0
      %2694 = vmatpush1.bf16.msra.mxu0 0
      %2695 = vmatprep.subr.bf16.mxu0 0
      %2696 = vmatpush1.bf16.msra.mxu0 0
      %2697 = vmatprep.mubr.bf16.mxu0 0
      %2698 = vmatmul.mubr.bf16.gmra.mrb[0].mxu0 %v2657
      %v2699 = vpop.f32.mrb[0].mxu0
      %v2700 = vadd.f32 0.0, %v2699
      %v2701 = vpop.f32.mrb[0].mxu0
      %v2702 = vpop.f32.mrb[0].mxu0
      %v2703 = vadd.f32 0.0, %v2702
      %v2704 = vpop.f32.mrb[0].mxu0
      %2705 = vmatprep.mubr.bf16.mxu0 0
      %2706 = vmatmul.mubr.bf16.gmra.mrb[0].mxu0 %v2660
      %v2707 = vpop.f32.mrb[0].mxu0
      %v2708 = vadd.f32 0.0, %v2707
      %v2709 = vpop.f32.mrb[0].mxu0
      %v2710 = vpop.f32.mrb[0].mxu0
      %v2711 = vadd.f32 0.0, %v2710
      %v2712 = vpop.f32.mrb[0].mxu0
      %2713 = vmatprep.mubr.bf16.mxu0 0
      %2714 = vmatmul.mubr.bf16.gmra.mrb[0].mxu0 %v2663
      %v2715 = vpop.f32.mrb[0].mxu0
      %v2716 = vadd.f32 0.0, %v2715
      %v2717 = vpop.f32.mrb[0].mxu0
      %v2718 = vpop.f32.mrb[0].mxu0
      %v2719 = vpop.f32.mrb[0].mxu0
      %2720 = vdwg.mxu0
      %v2721 = vadd.f32 %v2638, %v2700
      %v2722 = vadd.f32 %v2639, %v2703
      %v2723 = vadd.f32 %v2640, %v2708
      %v2724 = vadd.f32 %v2641, %v2711
      %v2725 = vadd.f32 %v2642, %v2716
      %vm2726 = vcmp.ge.f32.partialorder %v2721, 0.0
      %vm2727 = vcmp.ge.f32.partialorder %v2722, 0.0
      %vm2728 = vcmp.ge.f32.partialorder %v2723, 0.0
      %vm2729 = vcmp.ge.f32.partialorder %v2724, 0.0
      %vm2730 = vcmp.ge.f32.partialorder %v2725, 0.0
      %v2731 = vmul.f32 %v2721, 0.01
      %v2732 = vmul.f32 %v2722, 0.01
      %v2733 = vmul.f32 %v2723, 0.01
      %v2734 = vmul.f32 %v2724, 0.01
      %v2735 = vmul.f32 %v2725, 0.01
      %v2736 = vsel %vm2726, %v2721, %v2731
      %v2737 = vsel %vm2727, %v2722, %v2732
      %v2738 = vsel %vm2728, %v2723, %v2733
      %v2739 = vsel %vm2729, %v2724, %v2734
      %v2740 = vsel %vm2730, %v2725, %v2735
      %s2741 = scalar_lea.vmem %s1, 80
      %v2742 = vld [vmem:[%s2741] sm:$0xff]
      %v2743 = vld [vmem:[%s2741 + $0x8] sm:$0xff]
      %v2744 = vld [vmem:[%s2741 + $0x10] sm:$0xff]
      %v2745 = vld [vmem:[%s2741 + $0x18] sm:$0xff]
      %v2746 = vld [vmem:[%s2741 + $0x20] sm:$0xf]
      %2748 = vset.pattern.permute.xlu0 0
      %2749 = vperm.xlu0 %2748, %v2742
      %v2750 = vpop.permute.xlu0 %2749
      %2753 = vset.pattern.permute.xlu0 0
      %2754 = vperm.xlu0 %2753, %v2743
      %v2755 = vpop.permute.xlu0 %2754
      %2758 = vset.pattern.permute.xlu0 0
      %2759 = vperm.xlu0 %2758, %v2744
      %v2760 = vpop.permute.xlu0 %2759
      %2763 = vset.pattern.permute.xlu0 0
      %2764 = vperm.xlu0 %2763, %v2745
      %v2765 = vpop.permute.xlu0 %2764
      %2768 = vset.pattern.permute.xlu0 0
      %2769 = vperm.xlu0 %2768, %v2746
      %v2770 = vpop.permute.xlu0 %2769
      %v2772 = vmul.f32 %v2736, %v2750
      %v2773 = vmul.f32 %v2737, %v2755
      %v2774 = vmul.f32 %v2738, %v2760
      %v2775 = vmul.f32 %v2739, %v2765
      %v2776 = vmul.f32 %v2740, %v2770
      %v2777 = vpack.c.bf16 %v2773, %v2772
      %v2778 = vpack.c.bf16 %v2775, %v2774
      %v2779 = vpack.c.bf16 %v2776, %v2776
      %s2780 = scalar_lea.vmem %s4, 8
      %v2781 = vld [vmem:[%s2780] sm:$0xf]
      %v2783 = vsel %vm1292, %v2777, 0
      %v2786 = vsel %vm1292, %v2778, 0
      %v2789 = vsel %vm1292, %v2779, 0
      %v2792 = vsel %vm1302, %v2781, 0
      %2794 = vmatprep.subr.bf16.mxu0 0
      %2795 = vmatpush1.bf16.msra.mxu0 %v2792
      %2796 = vmatprep.subr.bf16.mxu0 0
      %2797 = vmatpush1.bf16.msra.mxu0 0
      %2798 = vmatprep.subr.bf16.mxu0 0
      %2799 = vmatpush1.bf16.msra.mxu0 0
      %2800 = vmatprep.subr.bf16.mxu0 0
      %2801 = vmatpush1.bf16.msra.mxu0 0
      %2802 = vmatprep.subr.bf16.mxu0 0
      %2803 = vmatpush1.bf16.msra.mxu0 0
      %2804 = vmatprep.subr.bf16.mxu0 0
      %2805 = vmatpush1.bf16.msra.mxu0 0
      %2806 = vmatprep.subr.bf16.mxu0 0
      %2807 = vmatpush1.bf16.msra.mxu0 0
      %2808 = vmatprep.subr.bf16.mxu0 0
      %2809 = vmatpush1.bf16.msra.mxu0 0
      %2810 = vmatprep.subr.bf16.mxu0 0
      %2811 = vmatpush1.bf16.msra.mxu0 0
      %2812 = vmatprep.subr.bf16.mxu0 0
      %2813 = vmatpush1.bf16.msra.mxu0 0
      %2814 = vmatprep.subr.bf16.mxu0 0
      %2815 = vmatpush1.bf16.msra.mxu0 0
      %2816 = vmatprep.subr.bf16.mxu0 0
      %2817 = vmatpush1.bf16.msra.mxu0 0
      %2818 = vmatprep.subr.bf16.mxu0 0
      %2819 = vmatpush1.bf16.msra.mxu0 0
      %2820 = vmatprep.subr.bf16.mxu0 0
      %2821 = vmatpush1.bf16.msra.mxu0 0
      %2822 = vmatprep.subr.bf16.mxu0 0
      %2823 = vmatpush1.bf16.msra.mxu0 0
      %2824 = vmatprep.subr.bf16.mxu0 0
      %2825 = vmatpush1.bf16.msra.mxu0 0
      %2826 = vmatprep.mubr.bf16.mxu0 0
      %2827 = vmatmul.mubr.bf16.gmra.mrb[0].mxu0 %v2783
      %v2828 = vpop.f32.mrb[0].mxu0
      %v2829 = vadd.f32 0.0, %v2828
      %v2830 = vpop.f32.mrb[0].mxu0
      %v2831 = vpop.f32.mrb[0].mxu0
      %v2832 = vadd.f32 0.0, %v2831
      %v2833 = vpop.f32.mrb[0].mxu0
      %2834 = vmatprep.mubr.bf16.mxu0 0
      %2835 = vmatmul.mubr.bf16.gmra.mrb[0].mxu0 %v2786
      %v2836 = vpop.f32.mrb[0].mxu0
      %v2837 = vadd.f32 0.0, %v2836
      %v2838 = vpop.f32.mrb[0].mxu0
      %v2839 = vpop.f32.mrb[0].mxu0
      %v2840 = vadd.f32 0.0, %v2839
      %v2841 = vpop.f32.mrb[0].mxu0
      %2842 = vmatprep.mubr.bf16.mxu0 0
      %2843 = vmatmul.mubr.bf16.gmra.mrb[0].mxu0 %v2789
      %v2844 = vpop.f32.mrb[0].mxu0
      %v2845 = vadd.f32 0.0, %v2844
      %v2846 = vpop.f32.mrb[0].mxu0
      %v2847 = vpop.f32.mrb[0].mxu0
      %v2848 = vpop.f32.mrb[0].mxu0
      %2849 = vdwg.mxu0
      %v2850 = vadd.f32 %v2106, %v2829
      %v2851 = vadd.f32 %v2107, %v2832
      %v2852 = vadd.f32 %v2108, %v2837
      %v2853 = vadd.f32 %v2109, %v2840
      %v2854 = vadd.f32 %v2110, %v2845
      %2855 = vmatprep.subr.bf16.mxu0 0
      %2856 = vmatpush1.bf16.msra.mxu0 %v487
      %2857 = vmatprep.subr.bf16.mxu0 0
      %2858 = vmatpush1.bf16.msra.mxu0 0
      %2859 = vmatprep.subr.bf16.mxu0 0
      %2860 = vmatpush1.bf16.msra.mxu0 0
      %2861 = vmatprep.subr.bf16.mxu0 0
      %2862 = vmatpush1.bf16.msra.mxu0 0
      %2863 = vmatprep.subr.bf16.mxu0 0
      %2864 = vmatpush1.bf16.msra.mxu0 0
      %2865 = vmatprep.subr.bf16.mxu0 0
      %2866 = vmatpush1.bf16.msra.mxu0 0
      %2867 = vmatprep.subr.bf16.mxu0 0
      %2868 = vmatpush1.bf16.msra.mxu0 0
      %2869 = vmatprep.subr.bf16.mxu0 0
      %2870 = vmatpush1.bf16.msra.mxu0 0
      %2871 = vmatprep.subr.bf16.mxu0 0
      %2872 = vmatpush1.bf16.msra.mxu0 0
      %2873 = vmatprep.subr.bf16.mxu0 0
      %2874 = vmatpush1.bf16.msra.mxu0 0
      %2875 = vmatprep.subr.bf16.mxu0 0
      %2876 = vmatpush1.bf16.msra.mxu0 0
      %2877 = vmatprep.subr.bf16.mxu0 0
      %2878 = vmatpush1.bf16.msra.mxu0 0
      %2879 = vmatprep.subr.bf16.mxu0 0
      %2880 = vmatpush1.bf16.msra.mxu0 0
      %2881 = vmatprep.subr.bf16.mxu0 0
      %2882 = vmatpush1.bf16.msra.mxu0 0
      %2883 = vmatprep.subr.bf16.mxu0 0
      %2884 = vmatpush1.bf16.msra.mxu0 0
      %2885 = vmatprep.subr.bf16.mxu0 0
      %2886 = vmatpush1.bf16.msra.mxu0 0
      %2887 = vmatprep.mubr.bf16.mxu0 0
      %2888 = vmatmul.mubr.bf16.gmra.mrb[0].mxu0 %v736
      %v2889 = vpop.f32.mrb[0].mxu0
      %v2890 = vadd.f32 0.0, %v2889
      %v2891 = vpop.f32.mrb[0].mxu0
      %v2892 = vpop.f32.mrb[0].mxu0
      %v2893 = vadd.f32 0.0, %v2892
      %v2894 = vpop.f32.mrb[0].mxu0
      %2895 = vmatprep.mubr.bf16.mxu0 0
      %2896 = vmatmul.mubr.bf16.gmra.mrb[0].mxu0 %v739
      %v2897 = vpop.f32.mrb[0].mxu0
      %v2898 = vadd.f32 0.0, %v2897
      %v2899 = vpop.f32.mrb[0].mxu0
      %v2900 = vpop.f32.mrb[0].mxu0
      %v2901 = vadd.f32 0.0, %v2900
      %v2902 = vpop.f32.mrb[0].mxu0
      %2903 = vmatprep.mubr.bf16.mxu0 0
      %2904 = vmatmul.mubr.bf16.gmra.mrb[0].mxu0 %v742
      %v2905 = vpop.f32.mrb[0].mxu0
      %v2906 = vadd.f32 0.0, %v2905
      %v2907 = vpop.f32.mrb[0].mxu0
      %v2908 = vpop.f32.mrb[0].mxu0
      %v2909 = vpop.f32.mrb[0].mxu0
      %2910 = vdwg.mxu0
      %v2911 = vadd.f32 %v461, %v2890
      %v2912 = vadd.f32 %v461, %v2893
      %v2913 = vadd.f32 %v461, %v2898
      %v2914 = vadd.f32 %v461, %v2901
      %v2915 = vadd.f32 %v461, %v2906
      %2916 = vmatprep.subr.bf16.mxu0 0
      %2917 = vmatpush1.bf16.msra.mxu0 %v573
      %2918 = vmatprep.subr.bf16.mxu0 0
      %2919 = vmatpush1.bf16.msra.mxu0 0
      %2920 = vmatprep.subr.bf16.mxu0 0
      %2921 = vmatpush1.bf16.msra.mxu0 0
      %2922 = vmatprep.subr.bf16.mxu0 0
      %2923 = vmatpush1.bf16.msra.mxu0 0
      %2924 = vmatprep.subr.bf16.mxu0 0
      %2925 = vmatpush1.bf16.msra.mxu0 0
      %2926 = vmatprep.subr.bf16.mxu0 0
      %2927 = vmatpush1.bf16.msra.mxu0 0
      %2928 = vmatprep.subr.bf16.mxu0 0
      %2929 = vmatpush1.bf16.msra.mxu0 0
      %2930 = vmatprep.subr.bf16.mxu0 0
      %2931 = vmatpush1.bf16.msra.mxu0 0
      %2932 = vmatprep.subr.bf16.mxu0 0
      %2933 = vmatpush1.bf16.msra.mxu0 0
      %2934 = vmatprep.subr.bf16.mxu0 0
      %2935 = vmatpush1.bf16.msra.mxu0 0
      %2936 = vmatprep.subr.bf16.mxu0 0
      %2937 = vmatpush1.bf16.msra.mxu0 0
      %2938 = vmatprep.subr.bf16.mxu0 0
      %2939 = vmatpush1.bf16.msra.mxu0 0
      %2940 = vmatprep.subr.bf16.mxu0 0
      %2941 = vmatpush1.bf16.msra.mxu0 0
      %2942 = vmatprep.subr.bf16.mxu0 0
      %2943 = vmatpush1.bf16.msra.mxu0 0
      %2944 = vmatprep.subr.bf16.mxu0 0
      %2945 = vmatpush1.bf16.msra.mxu0 0
      %2946 = vmatprep.subr.bf16.mxu0 0
      %2947 = vmatpush1.bf16.msra.mxu0 0
      %2948 = vmatprep.mubr.bf16.mxu0 0
      %2949 = vmatmul.mubr.bf16.gmra.mrb[0].mxu0 %v822
      %v2950 = vpop.f32.mrb[0].mxu0
      %v2951 = vadd.f32 0.0, %v2950
      %v2952 = vpop.f32.mrb[0].mxu0
      %v2953 = vpop.f32.mrb[0].mxu0
      %v2954 = vadd.f32 0.0, %v2953
      %v2955 = vpop.f32.mrb[0].mxu0
      %2956 = vmatprep.mubr.bf16.mxu0 0
      %2957 = vmatmul.mubr.bf16.gmra.mrb[0].mxu0 %v825
      %v2958 = vpop.f32.mrb[0].mxu0
      %v2959 = vadd.f32 0.0, %v2958
      %v2960 = vpop.f32.mrb[0].mxu0
      %v2961 = vpop.f32.mrb[0].mxu0
      %v2962 = vadd.f32 0.0, %v2961
      %v2963 = vpop.f32.mrb[0].mxu0
      %2964 = vmatprep.mubr.bf16.mxu0 0
      %2965 = vmatmul.mubr.bf16.gmra.mrb[0].mxu0 %v828
      %v2966 = vpop.f32.mrb[0].mxu0
      %v2967 = vadd.f32 0.0, %v2966
      %v2968 = vpop.f32.mrb[0].mxu0
      %v2969 = vpop.f32.mrb[0].mxu0
      %v2970 = vpop.f32.mrb[0].mxu0
      %2971 = vdwg.mxu0
      %v2972 = vadd.f32 %v2911, %v2951
      %v2973 = vadd.f32 %v2912, %v2954
      %v2974 = vadd.f32 %v2913, %v2959
      %v2975 = vadd.f32 %v2914, %v2962
      %v2976 = vadd.f32 %v2915, %v2967
      %2977 = vmatprep.subr.bf16.mxu0 0
      %2978 = vmatpush1.bf16.msra.mxu0 %v659
      %2979 = vmatprep.subr.bf16.mxu0 0
      %2980 = vmatpush1.bf16.msra.mxu0 0
      %2981 = vmatprep.subr.bf16.mxu0 0
      %2982 = vmatpush1.bf16.msra.mxu0 0
      %2983 = vmatprep.subr.bf16.mxu0 0
      %2984 = vmatpush1.bf16.msra.mxu0 0
      %2985 = vmatprep.subr.bf16.mxu0 0
      %2986 = vmatpush1.bf16.msra.mxu0 0
      %2987 = vmatprep.subr.bf16.mxu0 0
      %2988 = vmatpush1.bf16.msra.mxu0 0
      %2989 = vmatprep.subr.bf16.mxu0 0
      %2990 = vmatpush1.bf16.msra.mxu0 0
      %2991 = vmatprep.subr.bf16.mxu0 0
      %2992 = vmatpush1.bf16.msra.mxu0 0
      %2993 = vmatprep.subr.bf16.mxu0 0
      %2994 = vmatpush1.bf16.msra.mxu0 0
      %2995 = vmatprep.subr.bf16.mxu0 0
      %2996 = vmatpush1.bf16.msra.mxu0 0
      %2997 = vmatprep.subr.bf16.mxu0 0
      %2998 = vmatpush1.bf16.msra.mxu0 0
      %2999 = vmatprep.subr.bf16.mxu0 0
      %3000 = vmatpush1.bf16.msra.mxu0 0
      %3001 = vmatprep.subr.bf16.mxu0 0
      %3002 = vmatpush1.bf16.msra.mxu0 0
      %3003 = vmatprep.subr.bf16.mxu0 0
      %3004 = vmatpush1.bf16.msra.mxu0 0
      %3005 = vmatprep.subr.bf16.mxu0 0
      %3006 = vmatpush1.bf16.msra.mxu0 0
      %3007 = vmatprep.subr.bf16.mxu0 0
      %3008 = vmatpush1.bf16.msra.mxu0 0
      %3009 = vmatprep.mubr.bf16.mxu0 0
      %3010 = vmatmul.mubr.bf16.gmra.mrb[0].mxu0 %v908
      %v3011 = vpop.f32.mrb[0].mxu0
      %v3012 = vadd.f32 0.0, %v3011
      %v3013 = vpop.f32.mrb[0].mxu0
      %v3014 = vpop.f32.mrb[0].mxu0
      %v3015 = vadd.f32 0.0, %v3014
      %v3016 = vpop.f32.mrb[0].mxu0
      %3017 = vmatprep.mubr.bf16.mxu0 0
      %3018 = vmatmul.mubr.bf16.gmra.mrb[0].mxu0 %v911
      %v3019 = vpop.f32.mrb[0].mxu0
      %v3020 = vadd.f32 0.0, %v3019
      %v3021 = vpop.f32.mrb[0].mxu0
      %v3022 = vpop.f32.mrb[0].mxu0
      %v3023 = vadd.f32 0.0, %v3022
      %v3024 = vpop.f32.mrb[0].mxu0
      %3025 = vmatprep.mubr.bf16.mxu0 0
      %3026 = vmatmul.mubr.bf16.gmra.mrb[0].mxu0 %v914
      %v3027 = vpop.f32.mrb[0].mxu0
      %v3028 = vadd.f32 0.0, %v3027
      %v3029 = vpop.f32.mrb[0].mxu0
      %v3030 = vpop.f32.mrb[0].mxu0
      %v3031 = vpop.f32.mrb[0].mxu0
      %3032 = vdwg.mxu0
      %v3033 = vadd.f32 %v2972, %v3012
      %v3034 = vadd.f32 %v2973, %v3015
      %v3035 = vadd.f32 %v2974, %v3020
      %v3036 = vadd.f32 %v2975, %v3023
      %v3037 = vadd.f32 %v2976, %v3028
      %3038 = vmatprep.subr.bf16.mxu0 0
      %3039 = vmatpush1.bf16.msra.mxu0 %v745
      %3040 = vmatprep.subr.bf16.mxu0 0
      %3041 = vmatpush1.bf16.msra.mxu0 0
      %3042 = vmatprep.subr.bf16.mxu0 0
      %3043 = vmatpush1.bf16.msra.mxu0 0
      %3044 = vmatprep.subr.bf16.mxu0 0
      %3045 = vmatpush1.bf16.msra.mxu0 0
      %3046 = vmatprep.subr.bf16.mxu0 0
      %3047 = vmatpush1.bf16.msra.mxu0 0
      %3048 = vmatprep.subr.bf16.mxu0 0
      %3049 = vmatpush1.bf16.msra.mxu0 0
      %3050 = vmatprep.subr.bf16.mxu0 0
      %3051 = vmatpush1.bf16.msra.mxu0 0
      %3052 = vmatprep.subr.bf16.mxu0 0
      %3053 = vmatpush1.bf16.msra.mxu0 0
      %3054 = vmatprep.subr.bf16.mxu0 0
      %3055 = vmatpush1.bf16.msra.mxu0 0
      %3056 = vmatprep.subr.bf16.mxu0 0
      %3057 = vmatpush1.bf16.msra.mxu0 0
      %3058 = vmatprep.subr.bf16.mxu0 0
      %3059 = vmatpush1.bf16.msra.mxu0 0
      %3060 = vmatprep.subr.bf16.mxu0 0
      %3061 = vmatpush1.bf16.msra.mxu0 0
      %3062 = vmatprep.subr.bf16.mxu0 0
      %3063 = vmatpush1.bf16.msra.mxu0 0
      %3064 = vmatprep.subr.bf16.mxu0 0
      %3065 = vmatpush1.bf16.msra.mxu0 0
      %3066 = vmatprep.subr.bf16.mxu0 0
      %3067 = vmatpush1.bf16.msra.mxu0 0
      %3068 = vmatprep.subr.bf16.mxu0 0
      %3069 = vmatpush1.bf16.msra.mxu0 0
      %3070 = vmatprep.mubr.bf16.mxu0 0
      %3071 = vmatmul.mubr.bf16.gmra.mrb[0].mxu0 %v994
      %v3072 = vpop.f32.mrb[0].mxu0
      %v3073 = vadd.f32 0.0, %v3072
      %v3074 = vpop.f32.mrb[0].mxu0
      %v3075 = vpop.f32.mrb[0].mxu0
      %v3076 = vadd.f32 0.0, %v3075
      %v3077 = vpop.f32.mrb[0].mxu0
      %3078 = vmatprep.mubr.bf16.mxu0 0
      %3079 = vmatmul.mubr.bf16.gmra.mrb[0].mxu0 %v997
      %v3080 = vpop.f32.mrb[0].mxu0
      %v3081 = vadd.f32 0.0, %v3080
      %v3082 = vpop.f32.mrb[0].mxu0
      %v3083 = vpop.f32.mrb[0].mxu0
      %v3084 = vadd.f32 0.0, %v3083
      %v3085 = vpop.f32.mrb[0].mxu0
      %3086 = vmatprep.mubr.bf16.mxu0 0
      %3087 = vmatmul.mubr.bf16.gmra.mrb[0].mxu0 %v1000
      %v3088 = vpop.f32.mrb[0].mxu0
      %v3089 = vadd.f32 0.0, %v3088
      %v3090 = vpop.f32.mrb[0].mxu0
      %v3091 = vpop.f32.mrb[0].mxu0
      %v3092 = vpop.f32.mrb[0].mxu0
      %3093 = vdwg.mxu0
      %v3094 = vadd.f32 %v3033, %v3073
      %v3095 = vadd.f32 %v3034, %v3076
      %v3096 = vadd.f32 %v3035, %v3081
      %v3097 = vadd.f32 %v3036, %v3084
      %v3098 = vadd.f32 %v3037, %v3089
      %3099 = vmatprep.subr.bf16.mxu0 0
      %3100 = vmatpush1.bf16.msra.mxu0 %v831
      %3101 = vmatprep.subr.bf16.mxu0 0
      %3102 = vmatpush1.bf16.msra.mxu0 0
      %3103 = vmatprep.subr.bf16.mxu0 0
      %3104 = vmatpush1.bf16.msra.mxu0 0
      %3105 = vmatprep.subr.bf16.mxu0 0
      %3106 = vmatpush1.bf16.msra.mxu0 0
      %3107 = vmatprep.subr.bf16.mxu0 0
      %3108 = vmatpush1.bf16.msra.mxu0 0
      %3109 = vmatprep.subr.bf16.mxu0 0
      %3110 = vmatpush1.bf16.msra.mxu0 0
      %3111 = vmatprep.subr.bf16.mxu0 0
      %3112 = vmatpush1.bf16.msra.mxu0 0
      %3113 = vmatprep.subr.bf16.mxu0 0
      %3114 = vmatpush1.bf16.msra.mxu0 0
      %3115 = vmatprep.subr.bf16.mxu0 0
      %3116 = vmatpush1.bf16.msra.mxu0 0
      %3117 = vmatprep.subr.bf16.mxu0 0
      %3118 = vmatpush1.bf16.msra.mxu0 0
      %3119 = vmatprep.subr.bf16.mxu0 0
      %3120 = vmatpush1.bf16.msra.mxu0 0
      %3121 = vmatprep.subr.bf16.mxu0 0
      %3122 = vmatpush1.bf16.msra.mxu0 0
      %3123 = vmatprep.subr.bf16.mxu0 0
      %3124 = vmatpush1.bf16.msra.mxu0 0
      %3125 = vmatprep.subr.bf16.mxu0 0
      %3126 = vmatpush1.bf16.msra.mxu0 0
      %3127 = vmatprep.subr.bf16.mxu0 0
      %3128 = vmatpush1.bf16.msra.mxu0 0
      %3129 = vmatprep.subr.bf16.mxu0 0
      %3130 = vmatpush1.bf16.msra.mxu0 0
      %3131 = vmatprep.mubr.bf16.mxu0 0
      %3132 = vmatmul.mubr.bf16.gmra.mrb[0].mxu0 %v1080
      %v3133 = vpop.f32.mrb[0].mxu0
      %v3134 = vadd.f32 0.0, %v3133
      %v3135 = vpop.f32.mrb[0].mxu0
      %v3136 = vpop.f32.mrb[0].mxu0
      %v3137 = vadd.f32 0.0, %v3136
      %v3138 = vpop.f32.mrb[0].mxu0
      %3139 = vmatprep.mubr.bf16.mxu0 0
      %3140 = vmatmul.mubr.bf16.gmra.mrb[0].mxu0 %v1083
      %v3141 = vpop.f32.mrb[0].mxu0
      %v3142 = vadd.f32 0.0, %v3141
      %v3143 = vpop.f32.mrb[0].mxu0
      %v3144 = vpop.f32.mrb[0].mxu0
      %v3145 = vadd.f32 0.0, %v3144
      %v3146 = vpop.f32.mrb[0].mxu0
      %3147 = vmatprep.mubr.bf16.mxu0 0
      %3148 = vmatmul.mubr.bf16.gmra.mrb[0].mxu0 %v1086
      %v3149 = vpop.f32.mrb[0].mxu0
      %v3150 = vadd.f32 0.0, %v3149
      %v3151 = vpop.f32.mrb[0].mxu0
      %v3152 = vpop.f32.mrb[0].mxu0
      %v3153 = vpop.f32.mrb[0].mxu0
      %3154 = vdwg.mxu0
      %v3155 = vadd.f32 %v3094, %v3134
      %v3156 = vadd.f32 %v3095, %v3137
      %v3157 = vadd.f32 %v3096, %v3142
      %v3158 = vadd.f32 %v3097, %v3145
      %v3159 = vadd.f32 %v3098, %v3150
      %3160 = vmatprep.subr.bf16.mxu0 0
      %3161 = vmatpush1.bf16.msra.mxu0 %v917
      %3162 = vmatprep.subr.bf16.mxu0 0
      %3163 = vmatpush1.bf16.msra.mxu0 0
      %3164 = vmatprep.subr.bf16.mxu0 0
      %3165 = vmatpush1.bf16.msra.mxu0 0
      %3166 = vmatprep.subr.bf16.mxu0 0
      %3167 = vmatpush1.bf16.msra.mxu0 0
      %3168 = vmatprep.subr.bf16.mxu0 0
      %3169 = vmatpush1.bf16.msra.mxu0 0
      %3170 = vmatprep.subr.bf16.mxu0 0
      %3171 = vmatpush1.bf16.msra.mxu0 0
      %3172 = vmatprep.subr.bf16.mxu0 0
      %3173 = vmatpush1.bf16.msra.mxu0 0
      %3174 = vmatprep.subr.bf16.mxu0 0
      %3175 = vmatpush1.bf16.msra.mxu0 0
      %3176 = vmatprep.subr.bf16.mxu0 0
      %3177 = vmatpush1.bf16.msra.mxu0 0
      %3178 = vmatprep.subr.bf16.mxu0 0
      %3179 = vmatpush1.bf16.msra.mxu0 0
      %3180 = vmatprep.subr.bf16.mxu0 0
      %3181 = vmatpush1.bf16.msra.mxu0 0
      %3182 = vmatprep.subr.bf16.mxu0 0
      %3183 = vmatpush1.bf16.msra.mxu0 0
      %3184 = vmatprep.subr.bf16.mxu0 0
      %3185 = vmatpush1.bf16.msra.mxu0 0
      %3186 = vmatprep.subr.bf16.mxu0 0
      %3187 = vmatpush1.bf16.msra.mxu0 0
      %3188 = vmatprep.subr.bf16.mxu0 0
      %3189 = vmatpush1.bf16.msra.mxu0 0
      %3190 = vmatprep.subr.bf16.mxu0 0
      %3191 = vmatpush1.bf16.msra.mxu0 0
      %3192 = vmatprep.mubr.bf16.mxu0 0
      %3193 = vmatmul.mubr.bf16.gmra.mrb[0].mxu0 %v1166
      %v3194 = vpop.f32.mrb[0].mxu0
      %v3195 = vadd.f32 0.0, %v3194
      %v3196 = vpop.f32.mrb[0].mxu0
      %v3197 = vpop.f32.mrb[0].mxu0
      %v3198 = vadd.f32 0.0, %v3197
      %v3199 = vpop.f32.mrb[0].mxu0
      %3200 = vmatprep.mubr.bf16.mxu0 0
      %3201 = vmatmul.mubr.bf16.gmra.mrb[0].mxu0 %v1169
      %v3202 = vpop.f32.mrb[0].mxu0
      %v3203 = vadd.f32 0.0, %v3202
      %v3204 = vpop.f32.mrb[0].mxu0
      %v3205 = vpop.f32.mrb[0].mxu0
      %v3206 = vadd.f32 0.0, %v3205
      %v3207 = vpop.f32.mrb[0].mxu0
      %3208 = vmatprep.mubr.bf16.mxu0 0
      %3209 = vmatmul.mubr.bf16.gmra.mrb[0].mxu0 %v1172
      %v3210 = vpop.f32.mrb[0].mxu0
      %v3211 = vadd.f32 0.0, %v3210
      %v3212 = vpop.f32.mrb[0].mxu0
      %v3213 = vpop.f32.mrb[0].mxu0
      %v3214 = vpop.f32.mrb[0].mxu0
      %3215 = vdwg.mxu0
      %v3216 = vadd.f32 %v3155, %v3195
      %v3217 = vadd.f32 %v3156, %v3198
      %v3218 = vadd.f32 %v3157, %v3203
      %v3219 = vadd.f32 %v3158, %v3206
      %v3220 = vadd.f32 %v3159, %v3211
      %v3226 = vunpack.c.l.b16 %v370
      %v3227 = vunpack.c.l.b16 %v371
      %v3228 = vunpack.c.l.b16 %v372
      %v3229 = vunpack.c.l.b16 %v373
      %v3230 = vunpack.c.l.b16 %v374
      %v3231 = vpack.c.b16 %v3227, %v3226
      %v3232 = vpack.c.b16 %v3229, %v3228
      %v3233 = vpack.c.b16 %v3230, %v3230
      %v3235 = vsel %vm475, %v3231, 0
      %v3238 = vsel %vm475, %v3232, 0
      %v3241 = vsel %vm475, %v3233, 0
      %3243 = vmatprep.subr.bf16.mxu0 0
      %3244 = vmatpush1.bf16.msra.mxu0 %v1003
      %3245 = vmatprep.subr.bf16.mxu0 0
      %3246 = vmatpush1.bf16.msra.mxu0 0
      %3247 = vmatprep.subr.bf16.mxu0 0
      %3248 = vmatpush1.bf16.msra.mxu0 0
      %3249 = vmatprep.subr.bf16.mxu0 0
      %3250 = vmatpush1.bf16.msra.mxu0 0
      %3251 = vmatprep.subr.bf16.mxu0 0
      %3252 = vmatpush1.bf16.msra.mxu0 0
      %3253 = vmatprep.subr.bf16.mxu0 0
      %3254 = vmatpush1.bf16.msra.mxu0 0
      %3255 = vmatprep.subr.bf16.mxu0 0
      %3256 = vmatpush1.bf16.msra.mxu0 0
      %3257 = vmatprep.subr.bf16.mxu0 0
      %3258 = vmatpush1.bf16.msra.mxu0 0
      %3259 = vmatprep.subr.bf16.mxu0 0
      %3260 = vmatpush1.bf16.msra.mxu0 0
      %3261 = vmatprep.subr.bf16.mxu0 0
      %3262 = vmatpush1.bf16.msra.mxu0 0
      %3263 = vmatprep.subr.bf16.mxu0 0
      %3264 = vmatpush1.bf16.msra.mxu0 0
      %3265 = vmatprep.subr.bf16.mxu0 0
      %3266 = vmatpush1.bf16.msra.mxu0 0
      %3267 = vmatprep.subr.bf16.mxu0 0
      %3268 = vmatpush1.bf16.msra.mxu0 0
      %3269 = vmatprep.subr.bf16.mxu0 0
      %3270 = vmatpush1.bf16.msra.mxu0 0
      %3271 = vmatprep.subr.bf16.mxu0 0
      %3272 = vmatpush1.bf16.msra.mxu0 0
      %3273 = vmatprep.subr.bf16.mxu0 0
      %3274 = vmatpush1.bf16.msra.mxu0 0
      %3275 = vmatprep.mubr.bf16.mxu0 0
      %3276 = vmatmul.mubr.bf16.gmra.mrb[0].mxu0 %v3235
      %v3277 = vpop.f32.mrb[0].mxu0
      %v3278 = vadd.f32 0.0, %v3277
      %v3279 = vpop.f32.mrb[0].mxu0
      %v3280 = vpop.f32.mrb[0].mxu0
      %v3281 = vadd.f32 0.0, %v3280
      %v3282 = vpop.f32.mrb[0].mxu0
      %3283 = vmatprep.mubr.bf16.mxu0 0
      %3284 = vmatmul.mubr.bf16.gmra.mrb[0].mxu0 %v3238
      %v3285 = vpop.f32.mrb[0].mxu0
      %v3286 = vadd.f32 0.0, %v3285
      %v3287 = vpop.f32.mrb[0].mxu0
      %v3288 = vpop.f32.mrb[0].mxu0
      %v3289 = vadd.f32 0.0, %v3288
      %v3290 = vpop.f32.mrb[0].mxu0
      %3291 = vmatprep.mubr.bf16.mxu0 0
      %3292 = vmatmul.mubr.bf16.gmra.mrb[0].mxu0 %v3241
      %v3293 = vpop.f32.mrb[0].mxu0
      %v3294 = vadd.f32 0.0, %v3293
      %v3295 = vpop.f32.mrb[0].mxu0
      %v3296 = vpop.f32.mrb[0].mxu0
      %v3297 = vpop.f32.mrb[0].mxu0
      %3298 = vdwg.mxu0
      %v3299 = vadd.f32 %v3216, %v3278
      %v3300 = vadd.f32 %v3217, %v3281
      %v3301 = vadd.f32 %v3218, %v3286
      %v3302 = vadd.f32 %v3219, %v3289
      %v3303 = vadd.f32 %v3220, %v3294
      %v3309 = vunpack.c.l.b16 %v376
      %v3310 = vunpack.c.l.b16 %v377
      %v3311 = vunpack.c.l.b16 %v378
      %v3312 = vunpack.c.l.b16 %v379
      %v3313 = vunpack.c.l.b16 %v380
      %v3314 = vpack.c.b16 %v3310, %v3309
      %v3315 = vpack.c.b16 %v3312, %v3311
      %v3316 = vpack.c.b16 %v3313, %v3313
      %v3318 = vsel %vm475, %v3314, 0
      %v3321 = vsel %vm475, %v3315, 0
      %v3324 = vsel %vm475, %v3316, 0
      %3326 = vmatprep.subr.bf16.mxu0 0
      %3327 = vmatpush1.bf16.msra.mxu0 %v1089
      %3328 = vmatprep.subr.bf16.mxu0 0
      %3329 = vmatpush1.bf16.msra.mxu0 0
      %3330 = vmatprep.subr.bf16.mxu0 0
      %3331 = vmatpush1.bf16.msra.mxu0 0
      %3332 = vmatprep.subr.bf16.mxu0 0
      %3333 = vmatpush1.bf16.msra.mxu0 0
      %3334 = vmatprep.subr.bf16.mxu0 0
      %3335 = vmatpush1.bf16.msra.mxu0 0
      %3336 = vmatprep.subr.bf16.mxu0 0
      %3337 = vmatpush1.bf16.msra.mxu0 0
      %3338 = vmatprep.subr.bf16.mxu0 0
      %3339 = vmatpush1.bf16.msra.mxu0 0
      %3340 = vmatprep.subr.bf16.mxu0 0
      %3341 = vmatpush1.bf16.msra.mxu0 0
      %3342 = vmatprep.subr.bf16.mxu0 0
      %3343 = vmatpush1.bf16.msra.mxu0 0
      %3344 = vmatprep.subr.bf16.mxu0 0
      %3345 = vmatpush1.bf16.msra.mxu0 0
      %3346 = vmatprep.subr.bf16.mxu0 0
      %3347 = vmatpush1.bf16.msra.mxu0 0
      %3348 = vmatprep.subr.bf16.mxu0 0
      %3349 = vmatpush1.bf16.msra.mxu0 0
      %3350 = vmatprep.subr.bf16.mxu0 0
      %3351 = vmatpush1.bf16.msra.mxu0 0
      %3352 = vmatprep.subr.bf16.mxu0 0
      %3353 = vmatpush1.bf16.msra.mxu0 0
      %3354 = vmatprep.subr.bf16.mxu0 0
      %3355 = vmatpush1.bf16.msra.mxu0 0
      %3356 = vmatprep.subr.bf16.mxu0 0
      %3357 = vmatpush1.bf16.msra.mxu0 0
      %3358 = vmatprep.mubr.bf16.mxu0 0
      %3359 = vmatmul.mubr.bf16.gmra.mrb[0].mxu0 %v3318
      %v3360 = vpop.f32.mrb[0].mxu0
      %v3361 = vadd.f32 0.0, %v3360
      %v3362 = vpop.f32.mrb[0].mxu0
      %v3363 = vpop.f32.mrb[0].mxu0
      %v3364 = vadd.f32 0.0, %v3363
      %v3365 = vpop.f32.mrb[0].mxu0
      %3366 = vmatprep.mubr.bf16.mxu0 0
      %3367 = vmatmul.mubr.bf16.gmra.mrb[0].mxu0 %v3321
      %v3368 = vpop.f32.mrb[0].mxu0
      %v3369 = vadd.f32 0.0, %v3368
      %v3370 = vpop.f32.mrb[0].mxu0
      %v3371 = vpop.f32.mrb[0].mxu0
      %v3372 = vadd.f32 0.0, %v3371
      %v3373 = vpop.f32.mrb[0].mxu0
      %3374 = vmatprep.mubr.bf16.mxu0 0
      %3375 = vmatmul.mubr.bf16.gmra.mrb[0].mxu0 %v3324
      %v3376 = vpop.f32.mrb[0].mxu0
      %v3377 = vadd.f32 0.0, %v3376
      %v3378 = vpop.f32.mrb[0].mxu0
      %v3379 = vpop.f32.mrb[0].mxu0
      %v3380 = vpop.f32.mrb[0].mxu0
      %3381 = vdwg.mxu0
      %v3382 = vadd.f32 %v3299, %v3361
      %v3383 = vadd.f32 %v3300, %v3364
      %v3384 = vadd.f32 %v3301, %v3369
      %v3385 = vadd.f32 %v3302, %v3372
      %v3386 = vadd.f32 %v3303, %v3377
      %v3392 = vunpack.c.l.b16 %v382
      %v3393 = vunpack.c.l.b16 %v383
      %v3394 = vunpack.c.l.b16 %v384
      %v3395 = vunpack.c.l.b16 %v385
      %v3396 = vunpack.c.l.b16 %v386
      %v3397 = vpack.c.b16 %v3393, %v3392
      %v3398 = vpack.c.b16 %v3395, %v3394
      %v3399 = vpack.c.b16 %v3396, %v3396
      %v3401 = vsel %vm475, %v3397, 0
      %v3404 = vsel %vm475, %v3398, 0
      %v3407 = vsel %vm475, %v3399, 0
      %3409 = vmatprep.subr.bf16.mxu0 0
      %3410 = vmatpush1.bf16.msra.mxu0 %v1175
      %3411 = vmatprep.subr.bf16.mxu0 0
      %3412 = vmatpush1.bf16.msra.mxu0 0
      %3413 = vmatprep.subr.bf16.mxu0 0
      %3414 = vmatpush1.bf16.msra.mxu0 0
      %3415 = vmatprep.subr.bf16.mxu0 0
      %3416 = vmatpush1.bf16.msra.mxu0 0
      %3417 = vmatprep.subr.bf16.mxu0 0
      %3418 = vmatpush1.bf16.msra.mxu0 0
      %3419 = vmatprep.subr.bf16.mxu0 0
      %3420 = vmatpush1.bf16.msra.mxu0 0
      %3421 = vmatprep.subr.bf16.mxu0 0
      %3422 = vmatpush1.bf16.msra.mxu0 0
      %3423 = vmatprep.subr.bf16.mxu0 0
      %3424 = vmatpush1.bf16.msra.mxu0 0
      %3425 = vmatprep.subr.bf16.mxu0 0
      %3426 = vmatpush1.bf16.msra.mxu0 0
      %3427 = vmatprep.subr.bf16.mxu0 0
      %3428 = vmatpush1.bf16.msra.mxu0 0
      %3429 = vmatprep.subr.bf16.mxu0 0
      %3430 = vmatpush1.bf16.msra.mxu0 0
      %3431 = vmatprep.subr.bf16.mxu0 0
      %3432 = vmatpush1.bf16.msra.mxu0 0
      %3433 = vmatprep.subr.bf16.mxu0 0
      %3434 = vmatpush1.bf16.msra.mxu0 0
      %3435 = vmatprep.subr.bf16.mxu0 0
      %3436 = vmatpush1.bf16.msra.mxu0 0
      %3437 = vmatprep.subr.bf16.mxu0 0
      %3438 = vmatpush1.bf16.msra.mxu0 0
      %3439 = vmatprep.subr.bf16.mxu0 0
      %3440 = vmatpush1.bf16.msra.mxu0 0
      %3441 = vmatprep.mubr.bf16.mxu0 0
      %3442 = vmatmul.mubr.bf16.gmra.mrb[0].mxu0 %v3401
      %v3443 = vpop.f32.mrb[0].mxu0
      %v3444 = vadd.f32 0.0, %v3443
      %v3445 = vpop.f32.mrb[0].mxu0
      %v3446 = vpop.f32.mrb[0].mxu0
      %v3447 = vadd.f32 0.0, %v3446
      %v3448 = vpop.f32.mrb[0].mxu0
      %3449 = vmatprep.mubr.bf16.mxu0 0
      %3450 = vmatmul.mubr.bf16.gmra.mrb[0].mxu0 %v3404
      %v3451 = vpop.f32.mrb[0].mxu0
      %v3452 = vadd.f32 0.0, %v3451
      %v3453 = vpop.f32.mrb[0].mxu0
      %v3454 = vpop.f32.mrb[0].mxu0
      %v3455 = vadd.f32 0.0, %v3454
      %v3456 = vpop.f32.mrb[0].mxu0
      %3457 = vmatprep.mubr.bf16.mxu0 0
      %3458 = vmatmul.mubr.bf16.gmra.mrb[0].mxu0 %v3407
      %v3459 = vpop.f32.mrb[0].mxu0
      %v3460 = vadd.f32 0.0, %v3459
      %v3461 = vpop.f32.mrb[0].mxu0
      %v3462 = vpop.f32.mrb[0].mxu0
      %v3463 = vpop.f32.mrb[0].mxu0
      %3464 = vdwg.mxu0
      %v3465 = vadd.f32 %v3382, %v3444
      %v3466 = vadd.f32 %v3383, %v3447
      %v3467 = vadd.f32 %v3384, %v3452
      %v3468 = vadd.f32 %v3385, %v3455
      %v3469 = vadd.f32 %v3386, %v3460
      %vm3470 = vcmp.ge.f32.partialorder %v3465, 0.0
      %vm3471 = vcmp.ge.f32.partialorder %v3466, 0.0
      %vm3472 = vcmp.ge.f32.partialorder %v3467, 0.0
      %vm3473 = vcmp.ge.f32.partialorder %v3468, 0.0
      %vm3474 = vcmp.ge.f32.partialorder %v3469, 0.0
      %v3475 = vmul.f32 %v3465, 0.01
      %v3476 = vmul.f32 %v3466, 0.01
      %v3477 = vmul.f32 %v3467, 0.01
      %v3478 = vmul.f32 %v3468, 0.01
      %v3479 = vmul.f32 %v3469, 0.01
      %v3480 = vsel %vm3470, %v3465, %v3475
      %v3481 = vsel %vm3471, %v3466, %v3476
      %v3482 = vsel %vm3472, %v3467, %v3477
      %v3483 = vsel %vm3473, %v3468, %v3478
      %v3484 = vsel %vm3474, %v3469, %v3479
      %s3485 = scalar_lea.vmem %s1, 120
      %v3486 = vld [vmem:[%s3485] sm:$0xff]
      %v3487 = vld [vmem:[%s3485 + $0x8] sm:$0xff]
      %v3488 = vld [vmem:[%s3485 + $0x10] sm:$0xff]
      %v3489 = vld [vmem:[%s3485 + $0x18] sm:$0xff]
      %v3490 = vld [vmem:[%s3485 + $0x20] sm:$0xf]
      %3492 = vset.pattern.permute.xlu0 0
      %3493 = vperm.xlu0 %3492, %v3486
      %v3494 = vpop.permute.xlu0 %3493
      %3497 = vset.pattern.permute.xlu0 0
      %3498 = vperm.xlu0 %3497, %v3487
      %v3499 = vpop.permute.xlu0 %3498
      %3502 = vset.pattern.permute.xlu0 0
      %3503 = vperm.xlu0 %3502, %v3488
      %v3504 = vpop.permute.xlu0 %3503
      %3507 = vset.pattern.permute.xlu0 0
      %3508 = vperm.xlu0 %3507, %v3489
      %v3509 = vpop.permute.xlu0 %3508
      %3512 = vset.pattern.permute.xlu0 0
      %3513 = vperm.xlu0 %3512, %v3490
      %v3514 = vpop.permute.xlu0 %3513
      %v3516 = vmul.f32 %v3480, %v3494
      %v3517 = vmul.f32 %v3481, %v3499
      %v3518 = vmul.f32 %v3482, %v3504
      %v3519 = vmul.f32 %v3483, %v3509
      %v3520 = vmul.f32 %v3484, %v3514
      %v3521 = vpack.c.bf16 %v3517, %v3516
      %v3522 = vpack.c.bf16 %v3519, %v3518
      %v3523 = vpack.c.bf16 %v3520, %v3520
      %s3524 = scalar_lea.vmem %s4, 12
      %v3525 = vld [vmem:[%s3524] sm:$0xf]
      %v3527 = vsel %vm1292, %v3521, 0
      %v3530 = vsel %vm1292, %v3522, 0
      %v3533 = vsel %vm1292, %v3523, 0
      %v3536 = vsel %vm1302, %v3525, 0
      %3538 = vmatprep.subr.bf16.mxu0 0
      %3539 = vmatpush1.bf16.msra.mxu0 %v3536
      %3540 = vmatprep.subr.bf16.mxu0 0
      %3541 = vmatpush1.bf16.msra.mxu0 0
      %3542 = vmatprep.subr.bf16.mxu0 0
      %3543 = vmatpush1.bf16.msra.mxu0 0
      %3544 = vmatprep.subr.bf16.mxu0 0
      %3545 = vmatpush1.bf16.msra.mxu0 0
      %3546 = vmatprep.subr.bf16.mxu0 0
      %3547 = vmatpush1.bf16.msra.mxu0 0
      %3548 = vmatprep.subr.bf16.mxu0 0
      %3549 = vmatpush1.bf16.msra.mxu0 0
      %3550 = vmatprep.subr.bf16.mxu0 0
      %3551 = vmatpush1.bf16.msra.mxu0 0
      %3552 = vmatprep.subr.bf16.mxu0 0
      %3553 = vmatpush1.bf16.msra.mxu0 0
      %3554 = vmatprep.subr.bf16.mxu0 0
      %3555 = vmatpush1.bf16.msra.mxu0 0
      %3556 = vmatprep.subr.bf16.mxu0 0
      %3557 = vmatpush1.bf16.msra.mxu0 0
      %3558 = vmatprep.subr.bf16.mxu0 0
      %3559 = vmatpush1.bf16.msra.mxu0 0
      %3560 = vmatprep.subr.bf16.mxu0 0
      %3561 = vmatpush1.bf16.msra.mxu0 0
      %3562 = vmatprep.subr.bf16.mxu0 0
      %3563 = vmatpush1.bf16.msra.mxu0 0
      %3564 = vmatprep.subr.bf16.mxu0 0
      %3565 = vmatpush1.bf16.msra.mxu0 0
      %3566 = vmatprep.subr.bf16.mxu0 0
      %3567 = vmatpush1.bf16.msra.mxu0 0
      %3568 = vmatprep.subr.bf16.mxu0 0
      %3569 = vmatpush1.bf16.msra.mxu0 0
      %3570 = vmatprep.mubr.bf16.mxu0 0
      %3571 = vmatmul.mubr.bf16.gmra.mrb[0].mxu0 %v3527
      %v3572 = vpop.f32.mrb[0].mxu0
      %v3573 = vadd.f32 0.0, %v3572
      %v3574 = vpop.f32.mrb[0].mxu0
      %v3575 = vpop.f32.mrb[0].mxu0
      %v3576 = vadd.f32 0.0, %v3575
      %v3577 = vpop.f32.mrb[0].mxu0
      %3578 = vmatprep.mubr.bf16.mxu0 0
      %3579 = vmatmul.mubr.bf16.gmra.mrb[0].mxu0 %v3530
      %v3580 = vpop.f32.mrb[0].mxu0
      %v3581 = vadd.f32 0.0, %v3580
      %v3582 = vpop.f32.mrb[0].mxu0
      %v3583 = vpop.f32.mrb[0].mxu0
      %v3584 = vadd.f32 0.0, %v3583
      %v3585 = vpop.f32.mrb[0].mxu0
      %3586 = vmatprep.mubr.bf16.mxu0 0
      %3587 = vmatmul.mubr.bf16.gmra.mrb[0].mxu0 %v3533
      %v3588 = vpop.f32.mrb[0].mxu0
      %v3589 = vadd.f32 0.0, %v3588
      %v3590 = vpop.f32.mrb[0].mxu0
      %v3591 = vpop.f32.mrb[0].mxu0
      %v3592 = vpop.f32.mrb[0].mxu0
      %3593 = vdwg.mxu0
      %v3594 = vadd.f32 %v2850, %v3573
      %v3595 = vadd.f32 %v2851, %v3576
      %v3596 = vadd.f32 %v2852, %v3581
      %v3597 = vadd.f32 %v2853, %v3584
      %v3598 = vadd.f32 %v2854, %v3589
      %3599 = vmatprep.subr.bf16.mxu0 0
      %3600 = vmatpush1.bf16.msra.mxu0 %v487
      %3601 = vmatprep.subr.bf16.mxu0 0
      %3602 = vmatpush1.bf16.msra.mxu0 0
      %3603 = vmatprep.subr.bf16.mxu0 0
      %3604 = vmatpush1.bf16.msra.mxu0 0
      %3605 = vmatprep.subr.bf16.mxu0 0
      %3606 = vmatpush1.bf16.msra.mxu0 0
      %3607 = vmatprep.subr.bf16.mxu0 0
      %3608 = vmatpush1.bf16.msra.mxu0 0
      %3609 = vmatprep.subr.bf16.mxu0 0
      %3610 = vmatpush1.bf16.msra.mxu0 0
      %3611 = vmatprep.subr.bf16.mxu0 0
      %3612 = vmatpush1.bf16.msra.mxu0 0
      %3613 = vmatprep.subr.bf16.mxu0 0
      %3614 = vmatpush1.bf16.msra.mxu0 0
      %3615 = vmatprep.subr.bf16.mxu0 0
      %3616 = vmatpush1.bf16.msra.mxu0 0
      %3617 = vmatprep.subr.bf16.mxu0 0
      %3618 = vmatpush1.bf16.msra.mxu0 0
      %3619 = vmatprep.subr.bf16.mxu0 0
      %3620 = vmatpush1.bf16.msra.mxu0 0
      %3621 = vmatprep.subr.bf16.mxu0 0
      %3622 = vmatpush1.bf16.msra.mxu0 0
      %3623 = vmatprep.subr.bf16.mxu0 0
      %3624 = vmatpush1.bf16.msra.mxu0 0
      %3625 = vmatprep.subr.bf16.mxu0 0
      %3626 = vmatpush1.bf16.msra.mxu0 0
      %3627 = vmatprep.subr.bf16.mxu0 0
      %3628 = vmatpush1.bf16.msra.mxu0 0
      %3629 = vmatprep.subr.bf16.mxu0 0
      %3630 = vmatpush1.bf16.msra.mxu0 0
      %3631 = vmatprep.mubr.bf16.mxu0 0
      %3632 = vmatmul.mubr.bf16.gmra.mrb[0].mxu0 %v822
      %v3633 = vpop.f32.mrb[0].mxu0
      %v3634 = vadd.f32 0.0, %v3633
      %v3635 = vpop.f32.mrb[0].mxu0
      %v3636 = vpop.f32.mrb[0].mxu0
      %v3637 = vadd.f32 0.0, %v3636
      %v3638 = vpop.f32.mrb[0].mxu0
      %3639 = vmatprep.mubr.bf16.mxu0 0
      %3640 = vmatmul.mubr.bf16.gmra.mrb[0].mxu0 %v825
      %v3641 = vpop.f32.mrb[0].mxu0
      %v3642 = vadd.f32 0.0, %v3641
      %v3643 = vpop.f32.mrb[0].mxu0
      %v3644 = vpop.f32.mrb[0].mxu0
      %v3645 = vadd.f32 0.0, %v3644
      %v3646 = vpop.f32.mrb[0].mxu0
      %3647 = vmatprep.mubr.bf16.mxu0 0
      %3648 = vmatmul.mubr.bf16.gmra.mrb[0].mxu0 %v828
      %v3649 = vpop.f32.mrb[0].mxu0
      %v3650 = vadd.f32 0.0, %v3649
      %v3651 = vpop.f32.mrb[0].mxu0
      %v3652 = vpop.f32.mrb[0].mxu0
      %v3653 = vpop.f32.mrb[0].mxu0
      %3654 = vdwg.mxu0
      %v3655 = vadd.f32 %v461, %v3634
      %v3656 = vadd.f32 %v461, %v3637
      %v3657 = vadd.f32 %v461, %v3642
      %v3658 = vadd.f32 %v461, %v3645
      %v3659 = vadd.f32 %v461, %v3650
      %3660 = vmatprep.subr.bf16.mxu0 0
      %3661 = vmatpush1.bf16.msra.mxu0 %v573
      %3662 = vmatprep.subr.bf16.mxu0 0
      %3663 = vmatpush1.bf16.msra.mxu0 0
      %3664 = vmatprep.subr.bf16.mxu0 0
      %3665 = vmatpush1.bf16.msra.mxu0 0
      %3666 = vmatprep.subr.bf16.mxu0 0
      %3667 = vmatpush1.bf16.msra.mxu0 0
      %3668 = vmatprep.subr.bf16.mxu0 0
      %3669 = vmatpush1.bf16.msra.mxu0 0
      %3670 = vmatprep.subr.bf16.mxu0 0
      %3671 = vmatpush1.bf16.msra.mxu0 0
      %3672 = vmatprep.subr.bf16.mxu0 0
      %3673 = vmatpush1.bf16.msra.mxu0 0
      %3674 = vmatprep.subr.bf16.mxu0 0
      %3675 = vmatpush1.bf16.msra.mxu0 0
      %3676 = vmatprep.subr.bf16.mxu0 0
      %3677 = vmatpush1.bf16.msra.mxu0 0
      %3678 = vmatprep.subr.bf16.mxu0 0
      %3679 = vmatpush1.bf16.msra.mxu0 0
      %3680 = vmatprep.subr.bf16.mxu0 0
      %3681 = vmatpush1.bf16.msra.mxu0 0
      %3682 = vmatprep.subr.bf16.mxu0 0
      %3683 = vmatpush1.bf16.msra.mxu0 0
      %3684 = vmatprep.subr.bf16.mxu0 0
      %3685 = vmatpush1.bf16.msra.mxu0 0
      %3686 = vmatprep.subr.bf16.mxu0 0
      %3687 = vmatpush1.bf16.msra.mxu0 0
      %3688 = vmatprep.subr.bf16.mxu0 0
      %3689 = vmatpush1.bf16.msra.mxu0 0
      %3690 = vmatprep.subr.bf16.mxu0 0
      %3691 = vmatpush1.bf16.msra.mxu0 0
      %3692 = vmatprep.mubr.bf16.mxu0 0
      %3693 = vmatmul.mubr.bf16.gmra.mrb[0].mxu0 %v908
      %v3694 = vpop.f32.mrb[0].mxu0
      %v3695 = vadd.f32 0.0, %v3694
      %v3696 = vpop.f32.mrb[0].mxu0
      %v3697 = vpop.f32.mrb[0].mxu0
      %v3698 = vadd.f32 0.0, %v3697
      %v3699 = vpop.f32.mrb[0].mxu0
      %3700 = vmatprep.mubr.bf16.mxu0 0
      %3701 = vmatmul.mubr.bf16.gmra.mrb[0].mxu0 %v911
      %v3702 = vpop.f32.mrb[0].mxu0
      %v3703 = vadd.f32 0.0, %v3702
      %v3704 = vpop.f32.mrb[0].mxu0
      %v3705 = vpop.f32.mrb[0].mxu0
      %v3706 = vadd.f32 0.0, %v3705
      %v3707 = vpop.f32.mrb[0].mxu0
      %3708 = vmatprep.mubr.bf16.mxu0 0
      %3709 = vmatmul.mubr.bf16.gmra.mrb[0].mxu0 %v914
      %v3710 = vpop.f32.mrb[0].mxu0
      %v3711 = vadd.f32 0.0, %v3710
      %v3712 = vpop.f32.mrb[0].mxu0
      %v3713 = vpop.f32.mrb[0].mxu0
      %v3714 = vpop.f32.mrb[0].mxu0
      %3715 = vdwg.mxu0
      %v3716 = vadd.f32 %v3655, %v3695
      %v3717 = vadd.f32 %v3656, %v3698
      %v3718 = vadd.f32 %v3657, %v3703
      %v3719 = vadd.f32 %v3658, %v3706
      %v3720 = vadd.f32 %v3659, %v3711
      %3721 = vmatprep.subr.bf16.mxu0 0
      %3722 = vmatpush1.bf16.msra.mxu0 %v659
      %3723 = vmatprep.subr.bf16.mxu0 0
      %3724 = vmatpush1.bf16.msra.mxu0 0
      %3725 = vmatprep.subr.bf16.mxu0 0
      %3726 = vmatpush1.bf16.msra.mxu0 0
      %3727 = vmatprep.subr.bf16.mxu0 0
      %3728 = vmatpush1.bf16.msra.mxu0 0
      %3729 = vmatprep.subr.bf16.mxu0 0
      %3730 = vmatpush1.bf16.msra.mxu0 0
      %3731 = vmatprep.subr.bf16.mxu0 0
      %3732 = vmatpush1.bf16.msra.mxu0 0
      %3733 = vmatprep.subr.bf16.mxu0 0
      %3734 = vmatpush1.bf16.msra.mxu0 0
      %3735 = vmatprep.subr.bf16.mxu0 0
      %3736 = vmatpush1.bf16.msra.mxu0 0
      %3737 = vmatprep.subr.bf16.mxu0 0
      %3738 = vmatpush1.bf16.msra.mxu0 0
      %3739 = vmatprep.subr.bf16.mxu0 0
      %3740 = vmatpush1.bf16.msra.mxu0 0
      %3741 = vmatprep.subr.bf16.mxu0 0
      %3742 = vmatpush1.bf16.msra.mxu0 0
      %3743 = vmatprep.subr.bf16.mxu0 0
      %3744 = vmatpush1.bf16.msra.mxu0 0
      %3745 = vmatprep.subr.bf16.mxu0 0
      %3746 = vmatpush1.bf16.msra.mxu0 0
      %3747 = vmatprep.subr.bf16.mxu0 0
      %3748 = vmatpush1.bf16.msra.mxu0 0
      %3749 = vmatprep.subr.bf16.mxu0 0
      %3750 = vmatpush1.bf16.msra.mxu0 0
      %3751 = vmatprep.subr.bf16.mxu0 0
      %3752 = vmatpush1.bf16.msra.mxu0 0
      %3753 = vmatprep.mubr.bf16.mxu0 0
      %3754 = vmatmul.mubr.bf16.gmra.mrb[0].mxu0 %v1708
      %v3755 = vpop.f32.mrb[0].mxu0
      %v3756 = vadd.f32 0.0, %v3755
      %v3757 = vpop.f32.mrb[0].mxu0
      %v3758 = vpop.f32.mrb[0].mxu0
      %v3759 = vadd.f32 0.0, %v3758
      %v3760 = vpop.f32.mrb[0].mxu0
      %3761 = vmatprep.mubr.bf16.mxu0 0
      %3762 = vmatmul.mubr.bf16.gmra.mrb[0].mxu0 %v1711
      %v3763 = vpop.f32.mrb[0].mxu0
      %v3764 = vadd.f32 0.0, %v3763
      %v3765 = vpop.f32.mrb[0].mxu0
      %v3766 = vpop.f32.mrb[0].mxu0
      %v3767 = vadd.f32 0.0, %v3766
      %v3768 = vpop.f32.mrb[0].mxu0
      %3769 = vmatprep.mubr.bf16.mxu0 0
      %3770 = vmatmul.mubr.bf16.gmra.mrb[0].mxu0 %v1714
      %v3771 = vpop.f32.mrb[0].mxu0
      %v3772 = vadd.f32 0.0, %v3771
      %v3773 = vpop.f32.mrb[0].mxu0
      %v3774 = vpop.f32.mrb[0].mxu0
      %v3775 = vpop.f32.mrb[0].mxu0
      %3776 = vdwg.mxu0
      %v3777 = vadd.f32 %v3716, %v3756
      %v3778 = vadd.f32 %v3717, %v3759
      %v3779 = vadd.f32 %v3718, %v3764
      %v3780 = vadd.f32 %v3719, %v3767
      %v3781 = vadd.f32 %v3720, %v3772
      %3782 = vmatprep.subr.bf16.mxu0 0
      %3783 = vmatpush1.bf16.msra.mxu0 %v745
      %3784 = vmatprep.subr.bf16.mxu0 0
      %3785 = vmatpush1.bf16.msra.mxu0 0
      %3786 = vmatprep.subr.bf16.mxu0 0
      %3787 = vmatpush1.bf16.msra.mxu0 0
      %3788 = vmatprep.subr.bf16.mxu0 0
      %3789 = vmatpush1.bf16.msra.mxu0 0
      %3790 = vmatprep.subr.bf16.mxu0 0
      %3791 = vmatpush1.bf16.msra.mxu0 0
      %3792 = vmatprep.subr.bf16.mxu0 0
      %3793 = vmatpush1.bf16.msra.mxu0 0
      %3794 = vmatprep.subr.bf16.mxu0 0
      %3795 = vmatpush1.bf16.msra.mxu0 0
      %3796 = vmatprep.subr.bf16.mxu0 0
      %3797 = vmatpush1.bf16.msra.mxu0 0
      %3798 = vmatprep.subr.bf16.mxu0 0
      %3799 = vmatpush1.bf16.msra.mxu0 0
      %3800 = vmatprep.subr.bf16.mxu0 0
      %3801 = vmatpush1.bf16.msra.mxu0 0
      %3802 = vmatprep.subr.bf16.mxu0 0
      %3803 = vmatpush1.bf16.msra.mxu0 0
      %3804 = vmatprep.subr.bf16.mxu0 0
      %3805 = vmatpush1.bf16.msra.mxu0 0
      %3806 = vmatprep.subr.bf16.mxu0 0
      %3807 = vmatpush1.bf16.msra.mxu0 0
      %3808 = vmatprep.subr.bf16.mxu0 0
      %3809 = vmatpush1.bf16.msra.mxu0 0
      %3810 = vmatprep.subr.bf16.mxu0 0
      %3811 = vmatpush1.bf16.msra.mxu0 0
      %3812 = vmatprep.subr.bf16.mxu0 0
      %3813 = vmatpush1.bf16.msra.mxu0 0
      %3814 = vmatprep.mubr.bf16.mxu0 0
      %3815 = vmatmul.mubr.bf16.gmra.mrb[0].mxu0 %v1080
      %v3816 = vpop.f32.mrb[0].mxu0
      %v3817 = vadd.f32 0.0, %v3816
      %v3818 = vpop.f32.mrb[0].mxu0
      %v3819 = vpop.f32.mrb[0].mxu0
      %v3820 = vadd.f32 0.0, %v3819
      %v3821 = vpop.f32.mrb[0].mxu0
      %3822 = vmatprep.mubr.bf16.mxu0 0
      %3823 = vmatmul.mubr.bf16.gmra.mrb[0].mxu0 %v1083
      %v3824 = vpop.f32.mrb[0].mxu0
      %v3825 = vadd.f32 0.0, %v3824
      %v3826 = vpop.f32.mrb[0].mxu0
      %v3827 = vpop.f32.mrb[0].mxu0
      %v3828 = vadd.f32 0.0, %v3827
      %v3829 = vpop.f32.mrb[0].mxu0
      %3830 = vmatprep.mubr.bf16.mxu0 0
      %3831 = vmatmul.mubr.bf16.gmra.mrb[0].mxu0 %v1086
      %v3832 = vpop.f32.mrb[0].mxu0
      %v3833 = vadd.f32 0.0, %v3832
      %v3834 = vpop.f32.mrb[0].mxu0
      %v3835 = vpop.f32.mrb[0].mxu0
      %v3836 = vpop.f32.mrb[0].mxu0
      %3837 = vdwg.mxu0
      %v3838 = vadd.f32 %v3777, %v3817
      %v3839 = vadd.f32 %v3778, %v3820
      %v3840 = vadd.f32 %v3779, %v3825
      %v3841 = vadd.f32 %v3780, %v3828
      %v3842 = vadd.f32 %v3781, %v3833
      %3843 = vmatprep.subr.bf16.mxu0 0
      %3844 = vmatpush1.bf16.msra.mxu0 %v831
      %3845 = vmatprep.subr.bf16.mxu0 0
      %3846 = vmatpush1.bf16.msra.mxu0 0
      %3847 = vmatprep.subr.bf16.mxu0 0
      %3848 = vmatpush1.bf16.msra.mxu0 0
      %3849 = vmatprep.subr.bf16.mxu0 0
      %3850 = vmatpush1.bf16.msra.mxu0 0
      %3851 = vmatprep.subr.bf16.mxu0 0
      %3852 = vmatpush1.bf16.msra.mxu0 0
      %3853 = vmatprep.subr.bf16.mxu0 0
      %3854 = vmatpush1.bf16.msra.mxu0 0
      %3855 = vmatprep.subr.bf16.mxu0 0
      %3856 = vmatpush1.bf16.msra.mxu0 0
      %3857 = vmatprep.subr.bf16.mxu0 0
      %3858 = vmatpush1.bf16.msra.mxu0 0
      %3859 = vmatprep.subr.bf16.mxu0 0
      %3860 = vmatpush1.bf16.msra.mxu0 0
      %3861 = vmatprep.subr.bf16.mxu0 0
      %3862 = vmatpush1.bf16.msra.mxu0 0
      %3863 = vmatprep.subr.bf16.mxu0 0
      %3864 = vmatpush1.bf16.msra.mxu0 0
      %3865 = vmatprep.subr.bf16.mxu0 0
      %3866 = vmatpush1.bf16.msra.mxu0 0
      %3867 = vmatprep.subr.bf16.mxu0 0
      %3868 = vmatpush1.bf16.msra.mxu0 0
      %3869 = vmatprep.subr.bf16.mxu0 0
      %3870 = vmatpush1.bf16.msra.mxu0 0
      %3871 = vmatprep.subr.bf16.mxu0 0
      %3872 = vmatpush1.bf16.msra.mxu0 0
      %3873 = vmatprep.subr.bf16.mxu0 0
      %3874 = vmatpush1.bf16.msra.mxu0 0
      %3875 = vmatprep.mubr.bf16.mxu0 0
      %3876 = vmatmul.mubr.bf16.gmra.mrb[0].mxu0 %v1166
      %v3877 = vpop.f32.mrb[0].mxu0
      %v3878 = vadd.f32 0.0, %v3877
      %v3879 = vpop.f32.mrb[0].mxu0
      %v3880 = vpop.f32.mrb[0].mxu0
      %v3881 = vadd.f32 0.0, %v3880
      %v3882 = vpop.f32.mrb[0].mxu0
      %3883 = vmatprep.mubr.bf16.mxu0 0
      %3884 = vmatmul.mubr.bf16.gmra.mrb[0].mxu0 %v1169
      %v3885 = vpop.f32.mrb[0].mxu0
      %v3886 = vadd.f32 0.0, %v3885
      %v3887 = vpop.f32.mrb[0].mxu0
      %v3888 = vpop.f32.mrb[0].mxu0
      %v3889 = vadd.f32 0.0, %v3888
      %v3890 = vpop.f32.mrb[0].mxu0
      %3891 = vmatprep.mubr.bf16.mxu0 0
      %3892 = vmatmul.mubr.bf16.gmra.mrb[0].mxu0 %v1172
      %v3893 = vpop.f32.mrb[0].mxu0
      %v3894 = vadd.f32 0.0, %v3893
      %v3895 = vpop.f32.mrb[0].mxu0
      %v3896 = vpop.f32.mrb[0].mxu0
      %v3897 = vpop.f32.mrb[0].mxu0
      %3898 = vdwg.mxu0
      %v3899 = vadd.f32 %v3838, %v3878
      %v3900 = vadd.f32 %v3839, %v3881
      %v3901 = vadd.f32 %v3840, %v3886
      %v3902 = vadd.f32 %v3841, %v3889
      %v3903 = vadd.f32 %v3842, %v3894
      %3904 = vmatprep.subr.bf16.mxu0 0
      %3905 = vmatpush1.bf16.msra.mxu0 %v917
      %3906 = vmatprep.subr.bf16.mxu0 0
      %3907 = vmatpush1.bf16.msra.mxu0 0
      %3908 = vmatprep.subr.bf16.mxu0 0
      %3909 = vmatpush1.bf16.msra.mxu0 0
      %3910 = vmatprep.subr.bf16.mxu0 0
      %3911 = vmatpush1.bf16.msra.mxu0 0
      %3912 = vmatprep.subr.bf16.mxu0 0
      %3913 = vmatpush1.bf16.msra.mxu0 0
      %3914 = vmatprep.subr.bf16.mxu0 0
      %3915 = vmatpush1.bf16.msra.mxu0 0
      %3916 = vmatprep.subr.bf16.mxu0 0
      %3917 = vmatpush1.bf16.msra.mxu0 0
      %3918 = vmatprep.subr.bf16.mxu0 0
      %3919 = vmatpush1.bf16.msra.mxu0 0
      %3920 = vmatprep.subr.bf16.mxu0 0
      %3921 = vmatpush1.bf16.msra.mxu0 0
      %3922 = vmatprep.subr.bf16.mxu0 0
      %3923 = vmatpush1.bf16.msra.mxu0 0
      %3924 = vmatprep.subr.bf16.mxu0 0
      %3925 = vmatpush1.bf16.msra.mxu0 0
      %3926 = vmatprep.subr.bf16.mxu0 0
      %3927 = vmatpush1.bf16.msra.mxu0 0
      %3928 = vmatprep.subr.bf16.mxu0 0
      %3929 = vmatpush1.bf16.msra.mxu0 0
      %3930 = vmatprep.subr.bf16.mxu0 0
      %3931 = vmatpush1.bf16.msra.mxu0 0
      %3932 = vmatprep.subr.bf16.mxu0 0
      %3933 = vmatpush1.bf16.msra.mxu0 0
      %3934 = vmatprep.subr.bf16.mxu0 0
      %3935 = vmatpush1.bf16.msra.mxu0 0
      %3936 = vmatprep.mubr.bf16.mxu0 0
      %3937 = vmatmul.mubr.bf16.gmra.mrb[0].mxu0 %v1913
      %v3938 = vpop.f32.mrb[0].mxu0
      %v3939 = vadd.f32 0.0, %v3938
      %v3940 = vpop.f32.mrb[0].mxu0
      %v3941 = vpop.f32.mrb[0].mxu0
      %v3942 = vadd.f32 0.0, %v3941
      %v3943 = vpop.f32.mrb[0].mxu0
      %3944 = vmatprep.mubr.bf16.mxu0 0
      %3945 = vmatmul.mubr.bf16.gmra.mrb[0].mxu0 %v1916
      %v3946 = vpop.f32.mrb[0].mxu0
      %v3947 = vadd.f32 0.0, %v3946
      %v3948 = vpop.f32.mrb[0].mxu0
      %v3949 = vpop.f32.mrb[0].mxu0
      %v3950 = vadd.f32 0.0, %v3949
      %v3951 = vpop.f32.mrb[0].mxu0
      %3952 = vmatprep.mubr.bf16.mxu0 0
      %3953 = vmatmul.mubr.bf16.gmra.mrb[0].mxu0 %v1919
      %v3954 = vpop.f32.mrb[0].mxu0
      %v3955 = vadd.f32 0.0, %v3954
      %v3956 = vpop.f32.mrb[0].mxu0
      %v3957 = vpop.f32.mrb[0].mxu0
      %v3958 = vpop.f32.mrb[0].mxu0
      %3959 = vdwg.mxu0
      %v3960 = vadd.f32 %v3899, %v3939
      %v3961 = vadd.f32 %v3900, %v3942
      %v3962 = vadd.f32 %v3901, %v3947
      %v3963 = vadd.f32 %v3902, %v3950
      %v3964 = vadd.f32 %v3903, %v3955
      %3965 = vmatprep.subr.bf16.mxu0 0
      %3966 = vmatpush1.bf16.msra.mxu0 %v1003
      %3967 = vmatprep.subr.bf16.mxu0 0
      %3968 = vmatpush1.bf16.msra.mxu0 0
      %3969 = vmatprep.subr.bf16.mxu0 0
      %3970 = vmatpush1.bf16.msra.mxu0 0
      %3971 = vmatprep.subr.bf16.mxu0 0
      %3972 = vmatpush1.bf16.msra.mxu0 0
      %3973 = vmatprep.subr.bf16.mxu0 0
      %3974 = vmatpush1.bf16.msra.mxu0 0
      %3975 = vmatprep.subr.bf16.mxu0 0
      %3976 = vmatpush1.bf16.msra.mxu0 0
      %3977 = vmatprep.subr.bf16.mxu0 0
      %3978 = vmatpush1.bf16.msra.mxu0 0
      %3979 = vmatprep.subr.bf16.mxu0 0
      %3980 = vmatpush1.bf16.msra.mxu0 0
      %3981 = vmatprep.subr.bf16.mxu0 0
      %3982 = vmatpush1.bf16.msra.mxu0 0
      %3983 = vmatprep.subr.bf16.mxu0 0
      %3984 = vmatpush1.bf16.msra.mxu0 0
      %3985 = vmatprep.subr.bf16.mxu0 0
      %3986 = vmatpush1.bf16.msra.mxu0 0
      %3987 = vmatprep.subr.bf16.mxu0 0
      %3988 = vmatpush1.bf16.msra.mxu0 0
      %3989 = vmatprep.subr.bf16.mxu0 0
      %3990 = vmatpush1.bf16.msra.mxu0 0
      %3991 = vmatprep.subr.bf16.mxu0 0
      %3992 = vmatpush1.bf16.msra.mxu0 0
      %3993 = vmatprep.subr.bf16.mxu0 0
      %3994 = vmatpush1.bf16.msra.mxu0 0
      %3995 = vmatprep.subr.bf16.mxu0 0
      %3996 = vmatpush1.bf16.msra.mxu0 0
      %3997 = vmatprep.mubr.bf16.mxu0 0
      %3998 = vmatmul.mubr.bf16.gmra.mrb[0].mxu0 %v3318
      %v3999 = vpop.f32.mrb[0].mxu0
      %v4000 = vadd.f32 0.0, %v3999
      %v4001 = vpop.f32.mrb[0].mxu0
      %v4002 = vpop.f32.mrb[0].mxu0
      %v4003 = vadd.f32 0.0, %v4002
      %v4004 = vpop.f32.mrb[0].mxu0
      %4005 = vmatprep.mubr.bf16.mxu0 0
      %4006 = vmatmul.mubr.bf16.gmra.mrb[0].mxu0 %v3321
      %v4007 = vpop.f32.mrb[0].mxu0
      %v4008 = vadd.f32 0.0, %v4007
      %v4009 = vpop.f32.mrb[0].mxu0
      %v4010 = vpop.f32.mrb[0].mxu0
      %v4011 = vadd.f32 0.0, %v4010
      %v4012 = vpop.f32.mrb[0].mxu0
      %4013 = vmatprep.mubr.bf16.mxu0 0
      %4014 = vmatmul.mubr.bf16.gmra.mrb[0].mxu0 %v3324
      %v4015 = vpop.f32.mrb[0].mxu0
      %v4016 = vadd.f32 0.0, %v4015
      %v4017 = vpop.f32.mrb[0].mxu0
      %v4018 = vpop.f32.mrb[0].mxu0
      %v4019 = vpop.f32.mrb[0].mxu0
      %4020 = vdwg.mxu0
      %v4021 = vadd.f32 %v3960, %v4000
      %v4022 = vadd.f32 %v3961, %v4003
      %v4023 = vadd.f32 %v3962, %v4008
      %v4024 = vadd.f32 %v3963, %v4011
      %v4025 = vadd.f32 %v3964, %v4016
      %4026 = vmatprep.subr.bf16.mxu0 0
      %4027 = vmatpush1.bf16.msra.mxu0 %v1089
      %4028 = vmatprep.subr.bf16.mxu0 0
      %4029 = vmatpush1.bf16.msra.mxu0 0
      %4030 = vmatprep.subr.bf16.mxu0 0
      %4031 = vmatpush1.bf16.msra.mxu0 0
      %4032 = vmatprep.subr.bf16.mxu0 0
      %4033 = vmatpush1.bf16.msra.mxu0 0
      %4034 = vmatprep.subr.bf16.mxu0 0
      %4035 = vmatpush1.bf16.msra.mxu0 0
      %4036 = vmatprep.subr.bf16.mxu0 0
      %4037 = vmatpush1.bf16.msra.mxu0 0
      %4038 = vmatprep.subr.bf16.mxu0 0
      %4039 = vmatpush1.bf16.msra.mxu0 0
      %4040 = vmatprep.subr.bf16.mxu0 0
      %4041 = vmatpush1.bf16.msra.mxu0 0
      %4042 = vmatprep.subr.bf16.mxu0 0
      %4043 = vmatpush1.bf16.msra.mxu0 0
      %4044 = vmatprep.subr.bf16.mxu0 0
      %4045 = vmatpush1.bf16.msra.mxu0 0
      %4046 = vmatprep.subr.bf16.mxu0 0
      %4047 = vmatpush1.bf16.msra.mxu0 0
      %4048 = vmatprep.subr.bf16.mxu0 0
      %4049 = vmatpush1.bf16.msra.mxu0 0
      %4050 = vmatprep.subr.bf16.mxu0 0
      %4051 = vmatpush1.bf16.msra.mxu0 0
      %4052 = vmatprep.subr.bf16.mxu0 0
      %4053 = vmatpush1.bf16.msra.mxu0 0
      %4054 = vmatprep.subr.bf16.mxu0 0
      %4055 = vmatpush1.bf16.msra.mxu0 0
      %4056 = vmatprep.subr.bf16.mxu0 0
      %4057 = vmatpush1.bf16.msra.mxu0 0
      %4058 = vmatprep.mubr.bf16.mxu0 0
      %4059 = vmatmul.mubr.bf16.gmra.mrb[0].mxu0 %v3401
      %v4060 = vpop.f32.mrb[0].mxu0
      %v4061 = vadd.f32 0.0, %v4060
      %v4062 = vpop.f32.mrb[0].mxu0
      %v4063 = vpop.f32.mrb[0].mxu0
      %v4064 = vadd.f32 0.0, %v4063
      %v4065 = vpop.f32.mrb[0].mxu0
      %4066 = vmatprep.mubr.bf16.mxu0 0
      %4067 = vmatmul.mubr.bf16.gmra.mrb[0].mxu0 %v3404
      %v4068 = vpop.f32.mrb[0].mxu0
      %v4069 = vadd.f32 0.0, %v4068
      %v4070 = vpop.f32.mrb[0].mxu0
      %v4071 = vpop.f32.mrb[0].mxu0
      %v4072 = vadd.f32 0.0, %v4071
      %v4073 = vpop.f32.mrb[0].mxu0
      %4074 = vmatprep.mubr.bf16.mxu0 0
      %4075 = vmatmul.mubr.bf16.gmra.mrb[0].mxu0 %v3407
      %v4076 = vpop.f32.mrb[0].mxu0
      %v4077 = vadd.f32 0.0, %v4076
      %v4078 = vpop.f32.mrb[0].mxu0
      %v4079 = vpop.f32.mrb[0].mxu0
      %v4080 = vpop.f32.mrb[0].mxu0
      %4081 = vdwg.mxu0
      %v4082 = vadd.f32 %v4021, %v4061
      %v4083 = vadd.f32 %v4022, %v4064
      %v4084 = vadd.f32 %v4023, %v4069
      %v4085 = vadd.f32 %v4024, %v4072
      %v4086 = vadd.f32 %v4025, %v4077
      %v4092 = vunpack.c.l.b16 %v388
      %v4093 = vunpack.c.l.b16 %v389
      %v4094 = vunpack.c.l.b16 %v390
      %v4095 = vunpack.c.l.b16 %v391
      %v4096 = vunpack.c.l.b16 %v392
      %v4097 = vpack.c.b16 %v4093, %v4092
      %v4098 = vpack.c.b16 %v4095, %v4094
      %v4099 = vpack.c.b16 %v4096, %v4096
      %v4101 = vsel %vm475, %v4097, 0
      %v4104 = vsel %vm475, %v4098, 0
      %v4107 = vsel %vm475, %v4099, 0
      %4109 = vmatprep.subr.bf16.mxu0 0
      %4110 = vmatpush1.bf16.msra.mxu0 %v1175
      %4111 = vmatprep.subr.bf16.mxu0 0
      %4112 = vmatpush1.bf16.msra.mxu0 0
      %4113 = vmatprep.subr.bf16.mxu0 0
      %4114 = vmatpush1.bf16.msra.mxu0 0
      %4115 = vmatprep.subr.bf16.mxu0 0
      %4116 = vmatpush1.bf16.msra.mxu0 0
      %4117 = vmatprep.subr.bf16.mxu0 0
      %4118 = vmatpush1.bf16.msra.mxu0 0
      %4119 = vmatprep.subr.bf16.mxu0 0
      %4120 = vmatpush1.bf16.msra.mxu0 0
      %4121 = vmatprep.subr.bf16.mxu0 0
      %4122 = vmatpush1.bf16.msra.mxu0 0
      %4123 = vmatprep.subr.bf16.mxu0 0
      %4124 = vmatpush1.bf16.msra.mxu0 0
      %4125 = vmatprep.subr.bf16.mxu0 0
      %4126 = vmatpush1.bf16.msra.mxu0 0
      %4127 = vmatprep.subr.bf16.mxu0 0
      %4128 = vmatpush1.bf16.msra.mxu0 0
      %4129 = vmatprep.subr.bf16.mxu0 0
      %4130 = vmatpush1.bf16.msra.mxu0 0
      %4131 = vmatprep.subr.bf16.mxu0 0
      %4132 = vmatpush1.bf16.msra.mxu0 0
      %4133 = vmatprep.subr.bf16.mxu0 0
      %4134 = vmatpush1.bf16.msra.mxu0 0
      %4135 = vmatprep.subr.bf16.mxu0 0
      %4136 = vmatpush1.bf16.msra.mxu0 0
      %4137 = vmatprep.subr.bf16.mxu0 0
      %4138 = vmatpush1.bf16.msra.mxu0 0
      %4139 = vmatprep.subr.bf16.mxu0 0
      %4140 = vmatpush1.bf16.msra.mxu0 0
      %4141 = vmatprep.mubr.bf16.mxu0 0
      %4142 = vmatmul.mubr.bf16.gmra.mrb[0].mxu0 %v4101
      %v4143 = vpop.f32.mrb[0].mxu0
      %v4144 = vadd.f32 0.0, %v4143
      %v4145 = vpop.f32.mrb[0].mxu0
      %v4146 = vpop.f32.mrb[0].mxu0
      %v4147 = vadd.f32 0.0, %v4146
      %v4148 = vpop.f32.mrb[0].mxu0
      %4149 = vmatprep.mubr.bf16.mxu0 0
      %4150 = vmatmul.mubr.bf16.gmra.mrb[0].mxu0 %v4104
      %v4151 = vpop.f32.mrb[0].mxu0
      %v4152 = vadd.f32 0.0, %v4151
      %v4153 = vpop.f32.mrb[0].mxu0
      %v4154 = vpop.f32.mrb[0].mxu0
      %v4155 = vadd.f32 0.0, %v4154
      %v4156 = vpop.f32.mrb[0].mxu0
      %4157 = vmatprep.mubr.bf16.mxu0 0
      %4158 = vmatmul.mubr.bf16.gmra.mrb[0].mxu0 %v4107
      %v4159 = vpop.f32.mrb[0].mxu0
      %v4160 = vadd.f32 0.0, %v4159
      %v4161 = vpop.f32.mrb[0].mxu0
      %v4162 = vpop.f32.mrb[0].mxu0
      %v4163 = vpop.f32.mrb[0].mxu0
      %4164 = vdwg.mxu0
      %v4165 = vadd.f32 %v4082, %v4144
      %v4166 = vadd.f32 %v4083, %v4147
      %v4167 = vadd.f32 %v4084, %v4152
      %v4168 = vadd.f32 %v4085, %v4155
      %v4169 = vadd.f32 %v4086, %v4160
      %vm4170 = vcmp.ge.f32.partialorder %v4165, 0.0
      %vm4171 = vcmp.ge.f32.partialorder %v4166, 0.0
      %vm4172 = vcmp.ge.f32.partialorder %v4167, 0.0
      %vm4173 = vcmp.ge.f32.partialorder %v4168, 0.0
      %vm4174 = vcmp.ge.f32.partialorder %v4169, 0.0
      %v4175 = vmul.f32 %v4165, 0.01
      %v4176 = vmul.f32 %v4166, 0.01
      %v4177 = vmul.f32 %v4167, 0.01
      %v4178 = vmul.f32 %v4168, 0.01
      %v4179 = vmul.f32 %v4169, 0.01
      %v4180 = vsel %vm4170, %v4165, %v4175
      %v4181 = vsel %vm4171, %v4166, %v4176
      %v4182 = vsel %vm4172, %v4167, %v4177
      %v4183 = vsel %vm4173, %v4168, %v4178
      %v4184 = vsel %vm4174, %v4169, %v4179
      %s4185 = scalar_lea.vmem %s1, 160
      %v4186 = vld [vmem:[%s4185] sm:$0xff]
      %v4187 = vld [vmem:[%s4185 + $0x8] sm:$0xff]
      %v4188 = vld [vmem:[%s4185 + $0x10] sm:$0xff]
      %v4189 = vld [vmem:[%s4185 + $0x18] sm:$0xff]
      %v4190 = vld [vmem:[%s4185 + $0x20] sm:$0xf]
      %4192 = vset.pattern.permute.xlu0 0
      %4193 = vperm.xlu0 %4192, %v4186
      %v4194 = vpop.permute.xlu0 %4193
      %4197 = vset.pattern.permute.xlu0 0
      %4198 = vperm.xlu0 %4197, %v4187
      %v4199 = vpop.permute.xlu0 %4198
      %4202 = vset.pattern.permute.xlu0 0
      %4203 = vperm.xlu0 %4202, %v4188
      %v4204 = vpop.permute.xlu0 %4203
      %4207 = vset.pattern.permute.xlu0 0
      %4208 = vperm.xlu0 %4207, %v4189
      %v4209 = vpop.permute.xlu0 %4208
      %4212 = vset.pattern.permute.xlu0 0
      %4213 = vperm.xlu0 %4212, %v4190
      %v4214 = vpop.permute.xlu0 %4213
      %v4216 = vmul.f32 %v4180, %v4194
      %v4217 = vmul.f32 %v4181, %v4199
      %v4218 = vmul.f32 %v4182, %v4204
      %v4219 = vmul.f32 %v4183, %v4209
      %v4220 = vmul.f32 %v4184, %v4214
      %v4221 = vpack.c.bf16 %v4217, %v4216
      %v4222 = vpack.c.bf16 %v4219, %v4218
      %v4223 = vpack.c.bf16 %v4220, %v4220
      %s4224 = scalar_lea.vmem %s4, 16
      %v4225 = vld [vmem:[%s4224] sm:$0xf]
      %v4227 = vsel %vm1292, %v4221, 0
      %v4230 = vsel %vm1292, %v4222, 0
      %v4233 = vsel %vm1292, %v4223, 0
      %v4236 = vsel %vm1302, %v4225, 0
      %4238 = vmatprep.subr.bf16.mxu0 0
      %4239 = vmatpush1.bf16.msra.mxu0 %v4236
      %4240 = vmatprep.subr.bf16.mxu0 0
      %4241 = vmatpush1.bf16.msra.mxu0 0
      %4242 = vmatprep.subr.bf16.mxu0 0
      %4243 = vmatpush1.bf16.msra.mxu0 0
      %4244 = vmatprep.subr.bf16.mxu0 0
      %4245 = vmatpush1.bf16.msra.mxu0 0
      %4246 = vmatprep.subr.bf16.mxu0 0
      %4247 = vmatpush1.bf16.msra.mxu0 0
      %4248 = vmatprep.subr.bf16.mxu0 0
      %4249 = vmatpush1.bf16.msra.mxu0 0
      %4250 = vmatprep.subr.bf16.mxu0 0
      %4251 = vmatpush1.bf16.msra.mxu0 0
      %4252 = vmatprep.subr.bf16.mxu0 0
      %4253 = vmatpush1.bf16.msra.mxu0 0
      %4254 = vmatprep.subr.bf16.mxu0 0
      %4255 = vmatpush1.bf16.msra.mxu0 0
      %4256 = vmatprep.subr.bf16.mxu0 0
      %4257 = vmatpush1.bf16.msra.mxu0 0
      %4258 = vmatprep.subr.bf16.mxu0 0
      %4259 = vmatpush1.bf16.msra.mxu0 0
      %4260 = vmatprep.subr.bf16.mxu0 0
      %4261 = vmatpush1.bf16.msra.mxu0 0
      %4262 = vmatprep.subr.bf16.mxu0 0
      %4263 = vmatpush1.bf16.msra.mxu0 0
      %4264 = vmatprep.subr.bf16.mxu0 0
      %4265 = vmatpush1.bf16.msra.mxu0 0
      %4266 = vmatprep.subr.bf16.mxu0 0
      %4267 = vmatpush1.bf16.msra.mxu0 0
      %4268 = vmatprep.subr.bf16.mxu0 0
      %4269 = vmatpush1.bf16.msra.mxu0 0
      %4270 = vmatprep.mubr.bf16.mxu0 0
      %4271 = vmatmul.mubr.bf16.gmra.mrb[0].mxu0 %v4227
      %v4272 = vpop.f32.mrb[0].mxu0
      %v4273 = vadd.f32 0.0, %v4272
      %v4274 = vpop.f32.mrb[0].mxu0
      %v4275 = vpop.f32.mrb[0].mxu0
      %v4276 = vadd.f32 0.0, %v4275
      %v4277 = vpop.f32.mrb[0].mxu0
      %4278 = vmatprep.mubr.bf16.mxu0 0
      %4279 = vmatmul.mubr.bf16.gmra.mrb[0].mxu0 %v4230
      %v4280 = vpop.f32.mrb[0].mxu0
      %v4281 = vadd.f32 0.0, %v4280
      %v4282 = vpop.f32.mrb[0].mxu0
      %v4283 = vpop.f32.mrb[0].mxu0
      %v4284 = vadd.f32 0.0, %v4283
      %v4285 = vpop.f32.mrb[0].mxu0
      %4286 = vmatprep.mubr.bf16.mxu0 0
      %4287 = vmatmul.mubr.bf16.gmra.mrb[0].mxu0 %v4233
      %v4288 = vpop.f32.mrb[0].mxu0
      %v4289 = vadd.f32 0.0, %v4288
      %v4290 = vpop.f32.mrb[0].mxu0
      %v4291 = vpop.f32.mrb[0].mxu0
      %v4292 = vpop.f32.mrb[0].mxu0
      %4293 = vdwg.mxu0
      %v4294 = vadd.f32 %v3594, %v4273
      %v4295 = vadd.f32 %v3595, %v4276
      %v4296 = vadd.f32 %v3596, %v4281
      %v4297 = vadd.f32 %v3597, %v4284
      %v4298 = vadd.f32 %v3598, %v4289
      %4299 = vmatprep.subr.bf16.mxu0 0
      %4300 = vmatpush1.bf16.msra.mxu0 %v487
      %4301 = vmatprep.subr.bf16.mxu0 0
      %4302 = vmatpush1.bf16.msra.mxu0 0
      %4303 = vmatprep.subr.bf16.mxu0 0
      %4304 = vmatpush1.bf16.msra.mxu0 0
      %4305 = vmatprep.subr.bf16.mxu0 0
      %4306 = vmatpush1.bf16.msra.mxu0 0
      %4307 = vmatprep.subr.bf16.mxu0 0
      %4308 = vmatpush1.bf16.msra.mxu0 0
      %4309 = vmatprep.subr.bf16.mxu0 0
      %4310 = vmatpush1.bf16.msra.mxu0 0
      %4311 = vmatprep.subr.bf16.mxu0 0
      %4312 = vmatpush1.bf16.msra.mxu0 0
      %4313 = vmatprep.subr.bf16.mxu0 0
      %4314 = vmatpush1.bf16.msra.mxu0 0
      %4315 = vmatprep.subr.bf16.mxu0 0
      %4316 = vmatpush1.bf16.msra.mxu0 0
      %4317 = vmatprep.subr.bf16.mxu0 0
      %4318 = vmatpush1.bf16.msra.mxu0 0
      %4319 = vmatprep.subr.bf16.mxu0 0
      %4320 = vmatpush1.bf16.msra.mxu0 0
      %4321 = vmatprep.subr.bf16.mxu0 0
      %4322 = vmatpush1.bf16.msra.mxu0 0
      %4323 = vmatprep.subr.bf16.mxu0 0
      %4324 = vmatpush1.bf16.msra.mxu0 0
      %4325 = vmatprep.subr.bf16.mxu0 0
      %4326 = vmatpush1.bf16.msra.mxu0 0
      %4327 = vmatprep.subr.bf16.mxu0 0
      %4328 = vmatpush1.bf16.msra.mxu0 0
      %4329 = vmatprep.subr.bf16.mxu0 0
      %4330 = vmatpush1.bf16.msra.mxu0 0
      %4331 = vmatprep.mubr.bf16.mxu0 0
      %4332 = vmatmul.mubr.bf16.gmra.mrb[0].mxu0 %v908
      %v4333 = vpop.f32.mrb[0].mxu0
      %v4334 = vadd.f32 0.0, %v4333
      %v4335 = vpop.f32.mrb[0].mxu0
      %v4336 = vpop.f32.mrb[0].mxu0
      %v4337 = vadd.f32 0.0, %v4336
      %v4338 = vpop.f32.mrb[0].mxu0
      %4339 = vmatprep.mubr.bf16.mxu0 0
      %4340 = vmatmul.mubr.bf16.gmra.mrb[0].mxu0 %v911
      %v4341 = vpop.f32.mrb[0].mxu0
      %v4342 = vadd.f32 0.0, %v4341
      %v4343 = vpop.f32.mrb[0].mxu0
      %v4344 = vpop.f32.mrb[0].mxu0
      %v4345 = vadd.f32 0.0, %v4344
      %v4346 = vpop.f32.mrb[0].mxu0
      %4347 = vmatprep.mubr.bf16.mxu0 0
      %4348 = vmatmul.mubr.bf16.gmra.mrb[0].mxu0 %v914
      %v4349 = vpop.f32.mrb[0].mxu0
      %v4350 = vadd.f32 0.0, %v4349
      %v4351 = vpop.f32.mrb[0].mxu0
      %v4352 = vpop.f32.mrb[0].mxu0
      %v4353 = vpop.f32.mrb[0].mxu0
      %4354 = vdwg.mxu0
      %v4355 = vadd.f32 %v461, %v4334
      %v4356 = vadd.f32 %v461, %v4337
      %v4357 = vadd.f32 %v461, %v4342
      %v4358 = vadd.f32 %v461, %v4345
      %v4359 = vadd.f32 %v461, %v4350
      %4360 = vmatprep.subr.bf16.mxu0 0
      %4361 = vmatpush1.bf16.msra.mxu0 %v573
      %4362 = vmatprep.subr.bf16.mxu0 0
      %4363 = vmatpush1.bf16.msra.mxu0 0
      %4364 = vmatprep.subr.bf16.mxu0 0
      %4365 = vmatpush1.bf16.msra.mxu0 0
      %4366 = vmatprep.subr.bf16.mxu0 0
      %4367 = vmatpush1.bf16.msra.mxu0 0
      %4368 = vmatprep.subr.bf16.mxu0 0
      %4369 = vmatpush1.bf16.msra.mxu0 0
      %4370 = vmatprep.subr.bf16.mxu0 0
      %4371 = vmatpush1.bf16.msra.mxu0 0
      %4372 = vmatprep.subr.bf16.mxu0 0
      %4373 = vmatpush1.bf16.msra.mxu0 0
      %4374 = vmatprep.subr.bf16.mxu0 0
      %4375 = vmatpush1.bf16.msra.mxu0 0
      %4376 = vmatprep.subr.bf16.mxu0 0
      %4377 = vmatpush1.bf16.msra.mxu0 0
      %4378 = vmatprep.subr.bf16.mxu0 0
      %4379 = vmatpush1.bf16.msra.mxu0 0
      %4380 = vmatprep.subr.bf16.mxu0 0
      %4381 = vmatpush1.bf16.msra.mxu0 0
      %4382 = vmatprep.subr.bf16.mxu0 0
      %4383 = vmatpush1.bf16.msra.mxu0 0
      %4384 = vmatprep.subr.bf16.mxu0 0
      %4385 = vmatpush1.bf16.msra.mxu0 0
      %4386 = vmatprep.subr.bf16.mxu0 0
      %4387 = vmatpush1.bf16.msra.mxu0 0
      %4388 = vmatprep.subr.bf16.mxu0 0
      %4389 = vmatpush1.bf16.msra.mxu0 0
      %4390 = vmatprep.subr.bf16.mxu0 0
      %4391 = vmatpush1.bf16.msra.mxu0 0
      %4392 = vmatprep.mubr.bf16.mxu0 0
      %4393 = vmatmul.mubr.bf16.gmra.mrb[0].mxu0 %v1708
      %v4394 = vpop.f32.mrb[0].mxu0
      %v4395 = vadd.f32 0.0, %v4394
      %v4396 = vpop.f32.mrb[0].mxu0
      %v4397 = vpop.f32.mrb[0].mxu0
      %v4398 = vadd.f32 0.0, %v4397
      %v4399 = vpop.f32.mrb[0].mxu0
      %4400 = vmatprep.mubr.bf16.mxu0 0
      %4401 = vmatmul.mubr.bf16.gmra.mrb[0].mxu0 %v1711
      %v4402 = vpop.f32.mrb[0].mxu0
      %v4403 = vadd.f32 0.0, %v4402
      %v4404 = vpop.f32.mrb[0].mxu0
      %v4405 = vpop.f32.mrb[0].mxu0
      %v4406 = vadd.f32 0.0, %v4405
      %v4407 = vpop.f32.mrb[0].mxu0
      %4408 = vmatprep.mubr.bf16.mxu0 0
      %4409 = vmatmul.mubr.bf16.gmra.mrb[0].mxu0 %v1714
      %v4410 = vpop.f32.mrb[0].mxu0
      %v4411 = vadd.f32 0.0, %v4410
      %v4412 = vpop.f32.mrb[0].mxu0
      %v4413 = vpop.f32.mrb[0].mxu0
      %v4414 = vpop.f32.mrb[0].mxu0
      %4415 = vdwg.mxu0
      %v4416 = vadd.f32 %v4355, %v4395
      %v4417 = vadd.f32 %v4356, %v4398
      %v4418 = vadd.f32 %v4357, %v4403
      %v4419 = vadd.f32 %v4358, %v4406
      %v4420 = vadd.f32 %v4359, %v4411
      %4421 = vmatprep.subr.bf16.mxu0 0
      %4422 = vmatpush1.bf16.msra.mxu0 %v659
      %4423 = vmatprep.subr.bf16.mxu0 0
      %4424 = vmatpush1.bf16.msra.mxu0 0
      %4425 = vmatprep.subr.bf16.mxu0 0
      %4426 = vmatpush1.bf16.msra.mxu0 0
      %4427 = vmatprep.subr.bf16.mxu0 0
      %4428 = vmatpush1.bf16.msra.mxu0 0
      %4429 = vmatprep.subr.bf16.mxu0 0
      %4430 = vmatpush1.bf16.msra.mxu0 0
      %4431 = vmatprep.subr.bf16.mxu0 0
      %4432 = vmatpush1.bf16.msra.mxu0 0
      %4433 = vmatprep.subr.bf16.mxu0 0
      %4434 = vmatpush1.bf16.msra.mxu0 0
      %4435 = vmatprep.subr.bf16.mxu0 0
      %4436 = vmatpush1.bf16.msra.mxu0 0
      %4437 = vmatprep.subr.bf16.mxu0 0
      %4438 = vmatpush1.bf16.msra.mxu0 0
      %4439 = vmatprep.subr.bf16.mxu0 0
      %4440 = vmatpush1.bf16.msra.mxu0 0
      %4441 = vmatprep.subr.bf16.mxu0 0
      %4442 = vmatpush1.bf16.msra.mxu0 0
      %4443 = vmatprep.subr.bf16.mxu0 0
      %4444 = vmatpush1.bf16.msra.mxu0 0
      %4445 = vmatprep.subr.bf16.mxu0 0
      %4446 = vmatpush1.bf16.msra.mxu0 0
      %4447 = vmatprep.subr.bf16.mxu0 0
      %4448 = vmatpush1.bf16.msra.mxu0 0
      %4449 = vmatprep.subr.bf16.mxu0 0
      %4450 = vmatpush1.bf16.msra.mxu0 0
      %4451 = vmatprep.subr.bf16.mxu0 0
      %4452 = vmatpush1.bf16.msra.mxu0 0
      %4453 = vmatprep.mubr.bf16.mxu0 0
      %4454 = vmatmul.mubr.bf16.gmra.mrb[0].mxu0 %v2452
      %v4455 = vpop.f32.mrb[0].mxu0
      %v4456 = vadd.f32 0.0, %v4455
      %v4457 = vpop.f32.mrb[0].mxu0
      %v4458 = vpop.f32.mrb[0].mxu0
      %v4459 = vadd.f32 0.0, %v4458
      %v4460 = vpop.f32.mrb[0].mxu0
      %4461 = vmatprep.mubr.bf16.mxu0 0
      %4462 = vmatmul.mubr.bf16.gmra.mrb[0].mxu0 %v2455
      %v4463 = vpop.f32.mrb[0].mxu0
      %v4464 = vadd.f32 0.0, %v4463
      %v4465 = vpop.f32.mrb[0].mxu0
      %v4466 = vpop.f32.mrb[0].mxu0
      %v4467 = vadd.f32 0.0, %v4466
      %v4468 = vpop.f32.mrb[0].mxu0
      %4469 = vmatprep.mubr.bf16.mxu0 0
      %4470 = vmatmul.mubr.bf16.gmra.mrb[0].mxu0 %v2458
      %v4471 = vpop.f32.mrb[0].mxu0
      %v4472 = vadd.f32 0.0, %v4471
      %v4473 = vpop.f32.mrb[0].mxu0
      %v4474 = vpop.f32.mrb[0].mxu0
      %v4475 = vpop.f32.mrb[0].mxu0
      %4476 = vdwg.mxu0
      %v4477 = vadd.f32 %v4416, %v4456
      %v4478 = vadd.f32 %v4417, %v4459
      %v4479 = vadd.f32 %v4418, %v4464
      %v4480 = vadd.f32 %v4419, %v4467
      %v4481 = vadd.f32 %v4420, %v4472
      %4482 = vmatprep.subr.bf16.mxu0 0
      %4483 = vmatpush1.bf16.msra.mxu0 %v745
      %4484 = vmatprep.subr.bf16.mxu0 0
      %4485 = vmatpush1.bf16.msra.mxu0 0
      %4486 = vmatprep.subr.bf16.mxu0 0
      %4487 = vmatpush1.bf16.msra.mxu0 0
      %4488 = vmatprep.subr.bf16.mxu0 0
      %4489 = vmatpush1.bf16.msra.mxu0 0
      %4490 = vmatprep.subr.bf16.mxu0 0
      %4491 = vmatpush1.bf16.msra.mxu0 0
      %4492 = vmatprep.subr.bf16.mxu0 0
      %4493 = vmatpush1.bf16.msra.mxu0 0
      %4494 = vmatprep.subr.bf16.mxu0 0
      %4495 = vmatpush1.bf16.msra.mxu0 0
      %4496 = vmatprep.subr.bf16.mxu0 0
      %4497 = vmatpush1.bf16.msra.mxu0 0
      %4498 = vmatprep.subr.bf16.mxu0 0
      %4499 = vmatpush1.bf16.msra.mxu0 0
      %4500 = vmatprep.subr.bf16.mxu0 0
      %4501 = vmatpush1.bf16.msra.mxu0 0
      %4502 = vmatprep.subr.bf16.mxu0 0
      %4503 = vmatpush1.bf16.msra.mxu0 0
      %4504 = vmatprep.subr.bf16.mxu0 0
      %4505 = vmatpush1.bf16.msra.mxu0 0
      %4506 = vmatprep.subr.bf16.mxu0 0
      %4507 = vmatpush1.bf16.msra.mxu0 0
      %4508 = vmatprep.subr.bf16.mxu0 0
      %4509 = vmatpush1.bf16.msra.mxu0 0
      %4510 = vmatprep.subr.bf16.mxu0 0
      %4511 = vmatpush1.bf16.msra.mxu0 0
      %4512 = vmatprep.subr.bf16.mxu0 0
      %4513 = vmatpush1.bf16.msra.mxu0 0
      %4514 = vmatprep.mubr.bf16.mxu0 0
      %4515 = vmatmul.mubr.bf16.gmra.mrb[0].mxu0 %v1166
      %v4516 = vpop.f32.mrb[0].mxu0
      %v4517 = vadd.f32 0.0, %v4516
      %v4518 = vpop.f32.mrb[0].mxu0
      %v4519 = vpop.f32.mrb[0].mxu0
      %v4520 = vadd.f32 0.0, %v4519
      %v4521 = vpop.f32.mrb[0].mxu0
      %4522 = vmatprep.mubr.bf16.mxu0 0
      %4523 = vmatmul.mubr.bf16.gmra.mrb[0].mxu0 %v1169
      %v4524 = vpop.f32.mrb[0].mxu0
      %v4525 = vadd.f32 0.0, %v4524
      %v4526 = vpop.f32.mrb[0].mxu0
      %v4527 = vpop.f32.mrb[0].mxu0
      %v4528 = vadd.f32 0.0, %v4527
      %v4529 = vpop.f32.mrb[0].mxu0
      %4530 = vmatprep.mubr.bf16.mxu0 0
      %4531 = vmatmul.mubr.bf16.gmra.mrb[0].mxu0 %v1172
      %v4532 = vpop.f32.mrb[0].mxu0
      %v4533 = vadd.f32 0.0, %v4532
      %v4534 = vpop.f32.mrb[0].mxu0
      %v4535 = vpop.f32.mrb[0].mxu0
      %v4536 = vpop.f32.mrb[0].mxu0
      %4537 = vdwg.mxu0
      %v4538 = vadd.f32 %v4477, %v4517
      %v4539 = vadd.f32 %v4478, %v4520
      %v4540 = vadd.f32 %v4479, %v4525
      %v4541 = vadd.f32 %v4480, %v4528
      %v4542 = vadd.f32 %v4481, %v4533
      %4543 = vmatprep.subr.bf16.mxu0 0
      %4544 = vmatpush1.bf16.msra.mxu0 %v831
      %4545 = vmatprep.subr.bf16.mxu0 0
      %4546 = vmatpush1.bf16.msra.mxu0 0
      %4547 = vmatprep.subr.bf16.mxu0 0
      %4548 = vmatpush1.bf16.msra.mxu0 0
      %4549 = vmatprep.subr.bf16.mxu0 0
      %4550 = vmatpush1.bf16.msra.mxu0 0
      %4551 = vmatprep.subr.bf16.mxu0 0
      %4552 = vmatpush1.bf16.msra.mxu0 0
      %4553 = vmatprep.subr.bf16.mxu0 0
      %4554 = vmatpush1.bf16.msra.mxu0 0
      %4555 = vmatprep.subr.bf16.mxu0 0
      %4556 = vmatpush1.bf16.msra.mxu0 0
      %4557 = vmatprep.subr.bf16.mxu0 0
      %4558 = vmatpush1.bf16.msra.mxu0 0
      %4559 = vmatprep.subr.bf16.mxu0 0
      %4560 = vmatpush1.bf16.msra.mxu0 0
      %4561 = vmatprep.subr.bf16.mxu0 0
      %4562 = vmatpush1.bf16.msra.mxu0 0
      %4563 = vmatprep.subr.bf16.mxu0 0
      %4564 = vmatpush1.bf16.msra.mxu0 0
      %4565 = vmatprep.subr.bf16.mxu0 0
      %4566 = vmatpush1.bf16.msra.mxu0 0
      %4567 = vmatprep.subr.bf16.mxu0 0
      %4568 = vmatpush1.bf16.msra.mxu0 0
      %4569 = vmatprep.subr.bf16.mxu0 0
      %4570 = vmatpush1.bf16.msra.mxu0 0
      %4571 = vmatprep.subr.bf16.mxu0 0
      %4572 = vmatpush1.bf16.msra.mxu0 0
      %4573 = vmatprep.subr.bf16.mxu0 0
      %4574 = vmatpush1.bf16.msra.mxu0 0
      %4575 = vmatprep.mubr.bf16.mxu0 0
      %4576 = vmatmul.mubr.bf16.gmra.mrb[0].mxu0 %v1913
      %v4577 = vpop.f32.mrb[0].mxu0
      %v4578 = vadd.f32 0.0, %v4577
      %v4579 = vpop.f32.mrb[0].mxu0
      %v4580 = vpop.f32.mrb[0].mxu0
      %v4581 = vadd.f32 0.0, %v4580
      %v4582 = vpop.f32.mrb[0].mxu0
      %4583 = vmatprep.mubr.bf16.mxu0 0
      %4584 = vmatmul.mubr.bf16.gmra.mrb[0].mxu0 %v1916
      %v4585 = vpop.f32.mrb[0].mxu0
      %v4586 = vadd.f32 0.0, %v4585
      %v4587 = vpop.f32.mrb[0].mxu0
      %v4588 = vpop.f32.mrb[0].mxu0
      %v4589 = vadd.f32 0.0, %v4588
      %v4590 = vpop.f32.mrb[0].mxu0
      %4591 = vmatprep.mubr.bf16.mxu0 0
      %4592 = vmatmul.mubr.bf16.gmra.mrb[0].mxu0 %v1919
      %v4593 = vpop.f32.mrb[0].mxu0
      %v4594 = vadd.f32 0.0, %v4593
      %v4595 = vpop.f32.mrb[0].mxu0
      %v4596 = vpop.f32.mrb[0].mxu0
      %v4597 = vpop.f32.mrb[0].mxu0
      %4598 = vdwg.mxu0
      %v4599 = vadd.f32 %v4538, %v4578
      %v4600 = vadd.f32 %v4539, %v4581
      %v4601 = vadd.f32 %v4540, %v4586
      %v4602 = vadd.f32 %v4541, %v4589
      %v4603 = vadd.f32 %v4542, %v4594
      %4604 = vmatprep.subr.bf16.mxu0 0
      %4605 = vmatpush1.bf16.msra.mxu0 %v917
      %4606 = vmatprep.subr.bf16.mxu0 0
      %4607 = vmatpush1.bf16.msra.mxu0 0
      %4608 = vmatprep.subr.bf16.mxu0 0
      %4609 = vmatpush1.bf16.msra.mxu0 0
      %4610 = vmatprep.subr.bf16.mxu0 0
      %4611 = vmatpush1.bf16.msra.mxu0 0
      %4612 = vmatprep.subr.bf16.mxu0 0
      %4613 = vmatpush1.bf16.msra.mxu0 0
      %4614 = vmatprep.subr.bf16.mxu0 0
      %4615 = vmatpush1.bf16.msra.mxu0 0
      %4616 = vmatprep.subr.bf16.mxu0 0
      %4617 = vmatpush1.bf16.msra.mxu0 0
      %4618 = vmatprep.subr.bf16.mxu0 0
      %4619 = vmatpush1.bf16.msra.mxu0 0
      %4620 = vmatprep.subr.bf16.mxu0 0
      %4621 = vmatpush1.bf16.msra.mxu0 0
      %4622 = vmatprep.subr.bf16.mxu0 0
      %4623 = vmatpush1.bf16.msra.mxu0 0
      %4624 = vmatprep.subr.bf16.mxu0 0
      %4625 = vmatpush1.bf16.msra.mxu0 0
      %4626 = vmatprep.subr.bf16.mxu0 0
      %4627 = vmatpush1.bf16.msra.mxu0 0
      %4628 = vmatprep.subr.bf16.mxu0 0
      %4629 = vmatpush1.bf16.msra.mxu0 0
      %4630 = vmatprep.subr.bf16.mxu0 0
      %4631 = vmatpush1.bf16.msra.mxu0 0
      %4632 = vmatprep.subr.bf16.mxu0 0
      %4633 = vmatpush1.bf16.msra.mxu0 0
      %4634 = vmatprep.subr.bf16.mxu0 0
      %4635 = vmatpush1.bf16.msra.mxu0 0
      %4636 = vmatprep.mubr.bf16.mxu0 0
      %4637 = vmatmul.mubr.bf16.gmra.mrb[0].mxu0 %v2657
      %v4638 = vpop.f32.mrb[0].mxu0
      %v4639 = vadd.f32 0.0, %v4638
      %v4640 = vpop.f32.mrb[0].mxu0
      %v4641 = vpop.f32.mrb[0].mxu0
      %v4642 = vadd.f32 0.0, %v4641
      %v4643 = vpop.f32.mrb[0].mxu0
      %4644 = vmatprep.mubr.bf16.mxu0 0
      %4645 = vmatmul.mubr.bf16.gmra.mrb[0].mxu0 %v2660
      %v4646 = vpop.f32.mrb[0].mxu0
      %v4647 = vadd.f32 0.0, %v4646
      %v4648 = vpop.f32.mrb[0].mxu0
      %v4649 = vpop.f32.mrb[0].mxu0
      %v4650 = vadd.f32 0.0, %v4649
      %v4651 = vpop.f32.mrb[0].mxu0
      %4652 = vmatprep.mubr.bf16.mxu0 0
      %4653 = vmatmul.mubr.bf16.gmra.mrb[0].mxu0 %v2663
      %v4654 = vpop.f32.mrb[0].mxu0
      %v4655 = vadd.f32 0.0, %v4654
      %v4656 = vpop.f32.mrb[0].mxu0
      %v4657 = vpop.f32.mrb[0].mxu0
      %v4658 = vpop.f32.mrb[0].mxu0
      %4659 = vdwg.mxu0
      %v4660 = vadd.f32 %v4599, %v4639
      %v4661 = vadd.f32 %v4600, %v4642
      %v4662 = vadd.f32 %v4601, %v4647
      %v4663 = vadd.f32 %v4602, %v4650
      %v4664 = vadd.f32 %v4603, %v4655
      %4665 = vmatprep.subr.bf16.mxu0 0
      %4666 = vmatpush1.bf16.msra.mxu0 %v1003
      %4667 = vmatprep.subr.bf16.mxu0 0
      %4668 = vmatpush1.bf16.msra.mxu0 0
      %4669 = vmatprep.subr.bf16.mxu0 0
      %4670 = vmatpush1.bf16.msra.mxu0 0
      %4671 = vmatprep.subr.bf16.mxu0 0
      %4672 = vmatpush1.bf16.msra.mxu0 0
      %4673 = vmatprep.subr.bf16.mxu0 0
      %4674 = vmatpush1.bf16.msra.mxu0 0
      %4675 = vmatprep.subr.bf16.mxu0 0
      %4676 = vmatpush1.bf16.msra.mxu0 0
      %4677 = vmatprep.subr.bf16.mxu0 0
      %4678 = vmatpush1.bf16.msra.mxu0 0
      %4679 = vmatprep.subr.bf16.mxu0 0
      %4680 = vmatpush1.bf16.msra.mxu0 0
      %4681 = vmatprep.subr.bf16.mxu0 0
      %4682 = vmatpush1.bf16.msra.mxu0 0
      %4683 = vmatprep.subr.bf16.mxu0 0
      %4684 = vmatpush1.bf16.msra.mxu0 0
      %4685 = vmatprep.subr.bf16.mxu0 0
      %4686 = vmatpush1.bf16.msra.mxu0 0
      %4687 = vmatprep.subr.bf16.mxu0 0
      %4688 = vmatpush1.bf16.msra.mxu0 0
      %4689 = vmatprep.subr.bf16.mxu0 0
      %4690 = vmatpush1.bf16.msra.mxu0 0
      %4691 = vmatprep.subr.bf16.mxu0 0
      %4692 = vmatpush1.bf16.msra.mxu0 0
      %4693 = vmatprep.subr.bf16.mxu0 0
      %4694 = vmatpush1.bf16.msra.mxu0 0
      %4695 = vmatprep.subr.bf16.mxu0 0
      %4696 = vmatpush1.bf16.msra.mxu0 0
      %4697 = vmatprep.mubr.bf16.mxu0 0
      %4698 = vmatmul.mubr.bf16.gmra.mrb[0].mxu0 %v3401
      %v4699 = vpop.f32.mrb[0].mxu0
      %v4700 = vadd.f32 0.0, %v4699
      %v4701 = vpop.f32.mrb[0].mxu0
      %v4702 = vpop.f32.mrb[0].mxu0
      %v4703 = vadd.f32 0.0, %v4702
      %v4704 = vpop.f32.mrb[0].mxu0
      %4705 = vmatprep.mubr.bf16.mxu0 0
      %4706 = vmatmul.mubr.bf16.gmra.mrb[0].mxu0 %v3404
      %v4707 = vpop.f32.mrb[0].mxu0
      %v4708 = vadd.f32 0.0, %v4707
      %v4709 = vpop.f32.mrb[0].mxu0
      %v4710 = vpop.f32.mrb[0].mxu0
      %v4711 = vadd.f32 0.0, %v4710
      %v4712 = vpop.f32.mrb[0].mxu0
      %4713 = vmatprep.mubr.bf16.mxu0 0
      %4714 = vmatmul.mubr.bf16.gmra.mrb[0].mxu0 %v3407
      %v4715 = vpop.f32.mrb[0].mxu0
      %v4716 = vadd.f32 0.0, %v4715
      %v4717 = vpop.f32.mrb[0].mxu0
      %v4718 = vpop.f32.mrb[0].mxu0
      %v4719 = vpop.f32.mrb[0].mxu0
      %4720 = vdwg.mxu0
      %v4721 = vadd.f32 %v4660, %v4700
      %v4722 = vadd.f32 %v4661, %v4703
      %v4723 = vadd.f32 %v4662, %v4708
      %v4724 = vadd.f32 %v4663, %v4711
      %v4725 = vadd.f32 %v4664, %v4716
      %4726 = vmatprep.subr.bf16.mxu0 0
      %4727 = vmatpush1.bf16.msra.mxu0 %v1089
      %4728 = vmatprep.subr.bf16.mxu0 0
      %4729 = vmatpush1.bf16.msra.mxu0 0
      %4730 = vmatprep.subr.bf16.mxu0 0
      %4731 = vmatpush1.bf16.msra.mxu0 0
      %4732 = vmatprep.subr.bf16.mxu0 0
      %4733 = vmatpush1.bf16.msra.mxu0 0
      %4734 = vmatprep.subr.bf16.mxu0 0
      %4735 = vmatpush1.bf16.msra.mxu0 0
      %4736 = vmatprep.subr.bf16.mxu0 0
      %4737 = vmatpush1.bf16.msra.mxu0 0
      %4738 = vmatprep.subr.bf16.mxu0 0
      %4739 = vmatpush1.bf16.msra.mxu0 0
      %4740 = vmatprep.subr.bf16.mxu0 0
      %4741 = vmatpush1.bf16.msra.mxu0 0
      %4742 = vmatprep.subr.bf16.mxu0 0
      %4743 = vmatpush1.bf16.msra.mxu0 0
      %4744 = vmatprep.subr.bf16.mxu0 0
      %4745 = vmatpush1.bf16.msra.mxu0 0
      %4746 = vmatprep.subr.bf16.mxu0 0
      %4747 = vmatpush1.bf16.msra.mxu0 0
      %4748 = vmatprep.subr.bf16.mxu0 0
      %4749 = vmatpush1.bf16.msra.mxu0 0
      %4750 = vmatprep.subr.bf16.mxu0 0
      %4751 = vmatpush1.bf16.msra.mxu0 0
      %4752 = vmatprep.subr.bf16.mxu0 0
      %4753 = vmatpush1.bf16.msra.mxu0 0
      %4754 = vmatprep.subr.bf16.mxu0 0
      %4755 = vmatpush1.bf16.msra.mxu0 0
      %4756 = vmatprep.subr.bf16.mxu0 0
      %4757 = vmatpush1.bf16.msra.mxu0 0
      %4758 = vmatprep.mubr.bf16.mxu0 0
      %4759 = vmatmul.mubr.bf16.gmra.mrb[0].mxu0 %v4101
      %v4760 = vpop.f32.mrb[0].mxu0
      %v4761 = vadd.f32 0.0, %v4760
      %v4762 = vpop.f32.mrb[0].mxu0
      %v4763 = vpop.f32.mrb[0].mxu0
      %v4764 = vadd.f32 0.0, %v4763
      %v4765 = vpop.f32.mrb[0].mxu0
      %4766 = vmatprep.mubr.bf16.mxu0 0
      %4767 = vmatmul.mubr.bf16.gmra.mrb[0].mxu0 %v4104
      %v4768 = vpop.f32.mrb[0].mxu0
      %v4769 = vadd.f32 0.0, %v4768
      %v4770 = vpop.f32.mrb[0].mxu0
      %v4771 = vpop.f32.mrb[0].mxu0
      %v4772 = vadd.f32 0.0, %v4771
      %v4773 = vpop.f32.mrb[0].mxu0
      %4774 = vmatprep.mubr.bf16.mxu0 0
      %4775 = vmatmul.mubr.bf16.gmra.mrb[0].mxu0 %v4107
      %v4776 = vpop.f32.mrb[0].mxu0
      %v4777 = vadd.f32 0.0, %v4776
      %v4778 = vpop.f32.mrb[0].mxu0
      %v4779 = vpop.f32.mrb[0].mxu0
      %v4780 = vpop.f32.mrb[0].mxu0
      %4781 = vdwg.mxu0
      %v4782 = vadd.f32 %v4721, %v4761
      %v4783 = vadd.f32 %v4722, %v4764
      %v4784 = vadd.f32 %v4723, %v4769
      %v4785 = vadd.f32 %v4724, %v4772
      %v4786 = vadd.f32 %v4725, %v4777
      %v4792 = vunpack.c.l.b16 %v394
      %v4793 = vunpack.c.l.b16 %v395
      %v4794 = vunpack.c.l.b16 %v396
      %v4795 = vunpack.c.l.b16 %v397
      %v4796 = vunpack.c.l.b16 %v398
      %v4797 = vpack.c.b16 %v4793, %v4792
      %v4798 = vpack.c.b16 %v4795, %v4794
      %v4799 = vpack.c.b16 %v4796, %v4796
      %v4801 = vsel %vm475, %v4797, 0
      %v4804 = vsel %vm475, %v4798, 0
      %v4807 = vsel %vm475, %v4799, 0
      %4809 = vmatprep.subr.bf16.mxu0 0
      %4810 = vmatpush1.bf16.msra.mxu0 %v1175
      %4811 = vmatprep.subr.bf16.mxu0 0
      %4812 = vmatpush1.bf16.msra.mxu0 0
      %4813 = vmatprep.subr.bf16.mxu0 0
      %4814 = vmatpush1.bf16.msra.mxu0 0
      %4815 = vmatprep.subr.bf16.mxu0 0
      %4816 = vmatpush1.bf16.msra.mxu0 0
      %4817 = vmatprep.subr.bf16.mxu0 0
      %4818 = vmatpush1.bf16.msra.mxu0 0
      %4819 = vmatprep.subr.bf16.mxu0 0
      %4820 = vmatpush1.bf16.msra.mxu0 0
      %4821 = vmatprep.subr.bf16.mxu0 0
      %4822 = vmatpush1.bf16.msra.mxu0 0
      %4823 = vmatprep.subr.bf16.mxu0 0
      %4824 = vmatpush1.bf16.msra.mxu0 0
      %4825 = vmatprep.subr.bf16.mxu0 0
      %4826 = vmatpush1.bf16.msra.mxu0 0
      %4827 = vmatprep.subr.bf16.mxu0 0
      %4828 = vmatpush1.bf16.msra.mxu0 0
      %4829 = vmatprep.subr.bf16.mxu0 0
      %4830 = vmatpush1.bf16.msra.mxu0 0
      %4831 = vmatprep.subr.bf16.mxu0 0
      %4832 = vmatpush1.bf16.msra.mxu0 0
      %4833 = vmatprep.subr.bf16.mxu0 0
      %4834 = vmatpush1.bf16.msra.mxu0 0
      %4835 = vmatprep.subr.bf16.mxu0 0
      %4836 = vmatpush1.bf16.msra.mxu0 0
      %4837 = vmatprep.subr.bf16.mxu0 0
      %4838 = vmatpush1.bf16.msra.mxu0 0
      %4839 = vmatprep.subr.bf16.mxu0 0
      %4840 = vmatpush1.bf16.msra.mxu0 0
      %4841 = vmatprep.mubr.bf16.mxu0 0
      %4842 = vmatmul.mubr.bf16.gmra.mrb[0].mxu0 %v4801
      %v4843 = vpop.f32.mrb[0].mxu0
      %v4844 = vadd.f32 0.0, %v4843
      %v4845 = vpop.f32.mrb[0].mxu0
      %v4846 = vpop.f32.mrb[0].mxu0
      %v4847 = vadd.f32 0.0, %v4846
      %v4848 = vpop.f32.mrb[0].mxu0
      %4849 = vmatprep.mubr.bf16.mxu0 0
      %4850 = vmatmul.mubr.bf16.gmra.mrb[0].mxu0 %v4804
      %v4851 = vpop.f32.mrb[0].mxu0
      %v4852 = vadd.f32 0.0, %v4851
      %v4853 = vpop.f32.mrb[0].mxu0
      %v4854 = vpop.f32.mrb[0].mxu0
      %v4855 = vadd.f32 0.0, %v4854
      %v4856 = vpop.f32.mrb[0].mxu0
      %4857 = vmatprep.mubr.bf16.mxu0 0
      %4858 = vmatmul.mubr.bf16.gmra.mrb[0].mxu0 %v4807
      %v4859 = vpop.f32.mrb[0].mxu0
      %v4860 = vadd.f32 0.0, %v4859
      %v4861 = vpop.f32.mrb[0].mxu0
      %v4862 = vpop.f32.mrb[0].mxu0
      %v4863 = vpop.f32.mrb[0].mxu0
      %4864 = vdwg.mxu0
      %v4865 = vadd.f32 %v4782, %v4844
      %v4866 = vadd.f32 %v4783, %v4847
      %v4867 = vadd.f32 %v4784, %v4852
      %v4868 = vadd.f32 %v4785, %v4855
      %v4869 = vadd.f32 %v4786, %v4860
      %vm4870 = vcmp.ge.f32.partialorder %v4865, 0.0
      %vm4871 = vcmp.ge.f32.partialorder %v4866, 0.0
      %vm4872 = vcmp.ge.f32.partialorder %v4867, 0.0
      %vm4873 = vcmp.ge.f32.partialorder %v4868, 0.0
      %vm4874 = vcmp.ge.f32.partialorder %v4869, 0.0
      %v4875 = vmul.f32 %v4865, 0.01
      %v4876 = vmul.f32 %v4866, 0.01
      %v4877 = vmul.f32 %v4867, 0.01
      %v4878 = vmul.f32 %v4868, 0.01
      %v4879 = vmul.f32 %v4869, 0.01
      %v4880 = vsel %vm4870, %v4865, %v4875
      %v4881 = vsel %vm4871, %v4866, %v4876
      %v4882 = vsel %vm4872, %v4867, %v4877
      %v4883 = vsel %vm4873, %v4868, %v4878
      %v4884 = vsel %vm4874, %v4869, %v4879
      %s4885 = scalar_lea.vmem %s1, 200
      %v4886 = vld [vmem:[%s4885] sm:$0xff]
      %v4887 = vld [vmem:[%s4885 + $0x8] sm:$0xff]
      %v4888 = vld [vmem:[%s4885 + $0x10] sm:$0xff]
      %v4889 = vld [vmem:[%s4885 + $0x18] sm:$0xff]
      %v4890 = vld [vmem:[%s4885 + $0x20] sm:$0xf]
      %4892 = vset.pattern.permute.xlu0 0
      %4893 = vperm.xlu0 %4892, %v4886
      %v4894 = vpop.permute.xlu0 %4893
      %4897 = vset.pattern.permute.xlu0 0
      %4898 = vperm.xlu0 %4897, %v4887
      %v4899 = vpop.permute.xlu0 %4898
      %4902 = vset.pattern.permute.xlu0 0
      %4903 = vperm.xlu0 %4902, %v4888
      %v4904 = vpop.permute.xlu0 %4903
      %4907 = vset.pattern.permute.xlu0 0
      %4908 = vperm.xlu0 %4907, %v4889
      %v4909 = vpop.permute.xlu0 %4908
      %4912 = vset.pattern.permute.xlu0 0
      %4913 = vperm.xlu0 %4912, %v4890
      %v4914 = vpop.permute.xlu0 %4913
      %v4916 = vmul.f32 %v4880, %v4894
      %v4917 = vmul.f32 %v4881, %v4899
      %v4918 = vmul.f32 %v4882, %v4904
      %v4919 = vmul.f32 %v4883, %v4909
      %v4920 = vmul.f32 %v4884, %v4914
      %v4921 = vpack.c.bf16 %v4917, %v4916
      %v4922 = vpack.c.bf16 %v4919, %v4918
      %v4923 = vpack.c.bf16 %v4920, %v4920
      %s4924 = scalar_lea.vmem %s4, 20
      %v4925 = vld [vmem:[%s4924] sm:$0xf]
      %v4927 = vsel %vm1292, %v4921, 0
      %v4930 = vsel %vm1292, %v4922, 0
      %v4933 = vsel %vm1292, %v4923, 0
      %v4936 = vsel %vm1302, %v4925, 0
      %4938 = vmatprep.subr.bf16.mxu0 0
      %4939 = vmatpush1.bf16.msra.mxu0 %v4936
      %4940 = vmatprep.subr.bf16.mxu0 0
      %4941 = vmatpush1.bf16.msra.mxu0 0
      %4942 = vmatprep.subr.bf16.mxu0 0
      %4943 = vmatpush1.bf16.msra.mxu0 0
      %4944 = vmatprep.subr.bf16.mxu0 0
      %4945 = vmatpush1.bf16.msra.mxu0 0
      %4946 = vmatprep.subr.bf16.mxu0 0
      %4947 = vmatpush1.bf16.msra.mxu0 0
      %4948 = vmatprep.subr.bf16.mxu0 0
      %4949 = vmatpush1.bf16.msra.mxu0 0
      %4950 = vmatprep.subr.bf16.mxu0 0
      %4951 = vmatpush1.bf16.msra.mxu0 0
      %4952 = vmatprep.subr.bf16.mxu0 0
      %4953 = vmatpush1.bf16.msra.mxu0 0
      %4954 = vmatprep.subr.bf16.mxu0 0
      %4955 = vmatpush1.bf16.msra.mxu0 0
      %4956 = vmatprep.subr.bf16.mxu0 0
      %4957 = vmatpush1.bf16.msra.mxu0 0
      %4958 = vmatprep.subr.bf16.mxu0 0
      %4959 = vmatpush1.bf16.msra.mxu0 0
      %4960 = vmatprep.subr.bf16.mxu0 0
      %4961 = vmatpush1.bf16.msra.mxu0 0
      %4962 = vmatprep.subr.bf16.mxu0 0
      %4963 = vmatpush1.bf16.msra.mxu0 0
      %4964 = vmatprep.subr.bf16.mxu0 0
      %4965 = vmatpush1.bf16.msra.mxu0 0
      %4966 = vmatprep.subr.bf16.mxu0 0
      %4967 = vmatpush1.bf16.msra.mxu0 0
      %4968 = vmatprep.subr.bf16.mxu0 0
      %4969 = vmatpush1.bf16.msra.mxu0 0
      %4970 = vmatprep.mubr.bf16.mxu0 0
      %4971 = vmatmul.mubr.bf16.gmra.mrb[0].mxu0 %v4927
      %v4972 = vpop.f32.mrb[0].mxu0
      %v4973 = vadd.f32 0.0, %v4972
      %v4974 = vpop.f32.mrb[0].mxu0
      %v4975 = vpop.f32.mrb[0].mxu0
      %v4976 = vadd.f32 0.0, %v4975
      %v4977 = vpop.f32.mrb[0].mxu0
      %4978 = vmatprep.mubr.bf16.mxu0 0
      %4979 = vmatmul.mubr.bf16.gmra.mrb[0].mxu0 %v4930
      %v4980 = vpop.f32.mrb[0].mxu0
      %v4981 = vadd.f32 0.0, %v4980
      %v4982 = vpop.f32.mrb[0].mxu0
      %v4983 = vpop.f32.mrb[0].mxu0
      %v4984 = vadd.f32 0.0, %v4983
      %v4985 = vpop.f32.mrb[0].mxu0
      %4986 = vmatprep.mubr.bf16.mxu0 0
      %4987 = vmatmul.mubr.bf16.gmra.mrb[0].mxu0 %v4933
      %v4988 = vpop.f32.mrb[0].mxu0
      %v4989 = vadd.f32 0.0, %v4988
      %v4990 = vpop.f32.mrb[0].mxu0
      %v4991 = vpop.f32.mrb[0].mxu0
      %v4992 = vpop.f32.mrb[0].mxu0
      %4993 = vdwg.mxu0
      %v4994 = vadd.f32 %v4294, %v4973
      %v4995 = vadd.f32 %v4295, %v4976
      %v4996 = vadd.f32 %v4296, %v4981
      %v4997 = vadd.f32 %v4297, %v4984
      %v4998 = vadd.f32 %v4298, %v4989
      %4999 = vmatprep.subr.bf16.mxu0 0
      %5000 = vmatpush1.bf16.msra.mxu0 %v487
      %5001 = vmatprep.subr.bf16.mxu0 0
      %5002 = vmatpush1.bf16.msra.mxu0 0
      %5003 = vmatprep.subr.bf16.mxu0 0
      %5004 = vmatpush1.bf16.msra.mxu0 0
      %5005 = vmatprep.subr.bf16.mxu0 0
      %5006 = vmatpush1.bf16.msra.mxu0 0
      %5007 = vmatprep.subr.bf16.mxu0 0
      %5008 = vmatpush1.bf16.msra.mxu0 0
      %5009 = vmatprep.subr.bf16.mxu0 0
      %5010 = vmatpush1.bf16.msra.mxu0 0
      %5011 = vmatprep.subr.bf16.mxu0 0
      %5012 = vmatpush1.bf16.msra.mxu0 0
      %5013 = vmatprep.subr.bf16.mxu0 0
      %5014 = vmatpush1.bf16.msra.mxu0 0
      %5015 = vmatprep.subr.bf16.mxu0 0
      %5016 = vmatpush1.bf16.msra.mxu0 0
      %5017 = vmatprep.subr.bf16.mxu0 0
      %5018 = vmatpush1.bf16.msra.mxu0 0
      %5019 = vmatprep.subr.bf16.mxu0 0
      %5020 = vmatpush1.bf16.msra.mxu0 0
      %5021 = vmatprep.subr.bf16.mxu0 0
      %5022 = vmatpush1.bf16.msra.mxu0 0
      %5023 = vmatprep.subr.bf16.mxu0 0
      %5024 = vmatpush1.bf16.msra.mxu0 0
      %5025 = vmatprep.subr.bf16.mxu0 0
      %5026 = vmatpush1.bf16.msra.mxu0 0
      %5027 = vmatprep.subr.bf16.mxu0 0
      %5028 = vmatpush1.bf16.msra.mxu0 0
      %5029 = vmatprep.subr.bf16.mxu0 0
      %5030 = vmatpush1.bf16.msra.mxu0 0
      %5031 = vmatprep.mubr.bf16.mxu0 0
      %5032 = vmatmul.mubr.bf16.gmra.mrb[0].mxu0 %v994
      %v5033 = vpop.f32.mrb[0].mxu0
      %v5034 = vadd.f32 0.0, %v5033
      %v5035 = vpop.f32.mrb[0].mxu0
      %v5036 = vpop.f32.mrb[0].mxu0
      %v5037 = vadd.f32 0.0, %v5036
      %v5038 = vpop.f32.mrb[0].mxu0
      %5039 = vmatprep.mubr.bf16.mxu0 0
      %5040 = vmatmul.mubr.bf16.gmra.mrb[0].mxu0 %v997
      %v5041 = vpop.f32.mrb[0].mxu0
      %v5042 = vadd.f32 0.0, %v5041
      %v5043 = vpop.f32.mrb[0].mxu0
      %v5044 = vpop.f32.mrb[0].mxu0
      %v5045 = vadd.f32 0.0, %v5044
      %v5046 = vpop.f32.mrb[0].mxu0
      %5047 = vmatprep.mubr.bf16.mxu0 0
      %5048 = vmatmul.mubr.bf16.gmra.mrb[0].mxu0 %v1000
      %v5049 = vpop.f32.mrb[0].mxu0
      %v5050 = vadd.f32 0.0, %v5049
      %v5051 = vpop.f32.mrb[0].mxu0
      %v5052 = vpop.f32.mrb[0].mxu0
      %v5053 = vpop.f32.mrb[0].mxu0
      %5054 = vdwg.mxu0
      %v5055 = vadd.f32 %v461, %v5034
      %v5056 = vadd.f32 %v461, %v5037
      %v5057 = vadd.f32 %v461, %v5042
      %v5058 = vadd.f32 %v461, %v5045
      %v5059 = vadd.f32 %v461, %v5050
      %5060 = vmatprep.subr.bf16.mxu0 0
      %5061 = vmatpush1.bf16.msra.mxu0 %v573
      %5062 = vmatprep.subr.bf16.mxu0 0
      %5063 = vmatpush1.bf16.msra.mxu0 0
      %5064 = vmatprep.subr.bf16.mxu0 0
      %5065 = vmatpush1.bf16.msra.mxu0 0
      %5066 = vmatprep.subr.bf16.mxu0 0
      %5067 = vmatpush1.bf16.msra.mxu0 0
      %5068 = vmatprep.subr.bf16.mxu0 0
      %5069 = vmatpush1.bf16.msra.mxu0 0
      %5070 = vmatprep.subr.bf16.mxu0 0
      %5071 = vmatpush1.bf16.msra.mxu0 0
      %5072 = vmatprep.subr.bf16.mxu0 0
      %5073 = vmatpush1.bf16.msra.mxu0 0
      %5074 = vmatprep.subr.bf16.mxu0 0
      %5075 = vmatpush1.bf16.msra.mxu0 0
      %5076 = vmatprep.subr.bf16.mxu0 0
      %5077 = vmatpush1.bf16.msra.mxu0 0
      %5078 = vmatprep.subr.bf16.mxu0 0
      %5079 = vmatpush1.bf16.msra.mxu0 0
      %5080 = vmatprep.subr.bf16.mxu0 0
      %5081 = vmatpush1.bf16.msra.mxu0 0
      %5082 = vmatprep.subr.bf16.mxu0 0
      %5083 = vmatpush1.bf16.msra.mxu0 0
      %5084 = vmatprep.subr.bf16.mxu0 0
      %5085 = vmatpush1.bf16.msra.mxu0 0
      %5086 = vmatprep.subr.bf16.mxu0 0
      %5087 = vmatpush1.bf16.msra.mxu0 0
      %5088 = vmatprep.subr.bf16.mxu0 0
      %5089 = vmatpush1.bf16.msra.mxu0 0
      %5090 = vmatprep.subr.bf16.mxu0 0
      %5091 = vmatpush1.bf16.msra.mxu0 0
      %5092 = vmatprep.mubr.bf16.mxu0 0
      %5093 = vmatmul.mubr.bf16.gmra.mrb[0].mxu0 %v1080
      %v5094 = vpop.f32.mrb[0].mxu0
      %v5095 = vadd.f32 0.0, %v5094
      %v5096 = vpop.f32.mrb[0].mxu0
      %v5097 = vpop.f32.mrb[0].mxu0
      %v5098 = vadd.f32 0.0, %v5097
      %v5099 = vpop.f32.mrb[0].mxu0
      %5100 = vmatprep.mubr.bf16.mxu0 0
      %5101 = vmatmul.mubr.bf16.gmra.mrb[0].mxu0 %v1083
      %v5102 = vpop.f32.mrb[0].mxu0
      %v5103 = vadd.f32 0.0, %v5102
      %v5104 = vpop.f32.mrb[0].mxu0
      %v5105 = vpop.f32.mrb[0].mxu0
      %v5106 = vadd.f32 0.0, %v5105
      %v5107 = vpop.f32.mrb[0].mxu0
      %5108 = vmatprep.mubr.bf16.mxu0 0
      %5109 = vmatmul.mubr.bf16.gmra.mrb[0].mxu0 %v1086
      %v5110 = vpop.f32.mrb[0].mxu0
      %v5111 = vadd.f32 0.0, %v5110
      %v5112 = vpop.f32.mrb[0].mxu0
      %v5113 = vpop.f32.mrb[0].mxu0
      %v5114 = vpop.f32.mrb[0].mxu0
      %5115 = vdwg.mxu0
      %v5116 = vadd.f32 %v5055, %v5095
      %v5117 = vadd.f32 %v5056, %v5098
      %v5118 = vadd.f32 %v5057, %v5103
      %v5119 = vadd.f32 %v5058, %v5106
      %v5120 = vadd.f32 %v5059, %v5111
      %5121 = vmatprep.subr.bf16.mxu0 0
      %5122 = vmatpush1.bf16.msra.mxu0 %v659
      %5123 = vmatprep.subr.bf16.mxu0 0
      %5124 = vmatpush1.bf16.msra.mxu0 0
      %5125 = vmatprep.subr.bf16.mxu0 0
      %5126 = vmatpush1.bf16.msra.mxu0 0
      %5127 = vmatprep.subr.bf16.mxu0 0
      %5128 = vmatpush1.bf16.msra.mxu0 0
      %5129 = vmatprep.subr.bf16.mxu0 0
      %5130 = vmatpush1.bf16.msra.mxu0 0
      %5131 = vmatprep.subr.bf16.mxu0 0
      %5132 = vmatpush1.bf16.msra.mxu0 0
      %5133 = vmatprep.subr.bf16.mxu0 0
      %5134 = vmatpush1.bf16.msra.mxu0 0
      %5135 = vmatprep.subr.bf16.mxu0 0
      %5136 = vmatpush1.bf16.msra.mxu0 0
      %5137 = vmatprep.subr.bf16.mxu0 0
      %5138 = vmatpush1.bf16.msra.mxu0 0
      %5139 = vmatprep.subr.bf16.mxu0 0
      %5140 = vmatpush1.bf16.msra.mxu0 0
      %5141 = vmatprep.subr.bf16.mxu0 0
      %5142 = vmatpush1.bf16.msra.mxu0 0
      %5143 = vmatprep.subr.bf16.mxu0 0
      %5144 = vmatpush1.bf16.msra.mxu0 0
      %5145 = vmatprep.subr.bf16.mxu0 0
      %5146 = vmatpush1.bf16.msra.mxu0 0
      %5147 = vmatprep.subr.bf16.mxu0 0
      %5148 = vmatpush1.bf16.msra.mxu0 0
      %5149 = vmatprep.subr.bf16.mxu0 0
      %5150 = vmatpush1.bf16.msra.mxu0 0
      %5151 = vmatprep.subr.bf16.mxu0 0
      %5152 = vmatpush1.bf16.msra.mxu0 0
      %5153 = vmatprep.mubr.bf16.mxu0 0
      %5154 = vmatmul.mubr.bf16.gmra.mrb[0].mxu0 %v1166
      %v5155 = vpop.f32.mrb[0].mxu0
      %v5156 = vadd.f32 0.0, %v5155
      %v5157 = vpop.f32.mrb[0].mxu0
      %v5158 = vpop.f32.mrb[0].mxu0
      %v5159 = vadd.f32 0.0, %v5158
      %v5160 = vpop.f32.mrb[0].mxu0
      %5161 = vmatprep.mubr.bf16.mxu0 0
      %5162 = vmatmul.mubr.bf16.gmra.mrb[0].mxu0 %v1169
      %v5163 = vpop.f32.mrb[0].mxu0
      %v5164 = vadd.f32 0.0, %v5163
      %v5165 = vpop.f32.mrb[0].mxu0
      %v5166 = vpop.f32.mrb[0].mxu0
      %v5167 = vadd.f32 0.0, %v5166
      %v5168 = vpop.f32.mrb[0].mxu0
      %5169 = vmatprep.mubr.bf16.mxu0 0
      %5170 = vmatmul.mubr.bf16.gmra.mrb[0].mxu0 %v1172
      %v5171 = vpop.f32.mrb[0].mxu0
      %v5172 = vadd.f32 0.0, %v5171
      %v5173 = vpop.f32.mrb[0].mxu0
      %v5174 = vpop.f32.mrb[0].mxu0
      %v5175 = vpop.f32.mrb[0].mxu0
      %5176 = vdwg.mxu0
      %v5177 = vadd.f32 %v5116, %v5156
      %v5178 = vadd.f32 %v5117, %v5159
      %v5179 = vadd.f32 %v5118, %v5164
      %v5180 = vadd.f32 %v5119, %v5167
      %v5181 = vadd.f32 %v5120, %v5172
      %5182 = vmatprep.subr.bf16.mxu0 0
      %5183 = vmatpush1.bf16.msra.mxu0 %v745
      %5184 = vmatprep.subr.bf16.mxu0 0
      %5185 = vmatpush1.bf16.msra.mxu0 0
      %5186 = vmatprep.subr.bf16.mxu0 0
      %5187 = vmatpush1.bf16.msra.mxu0 0
      %5188 = vmatprep.subr.bf16.mxu0 0
      %5189 = vmatpush1.bf16.msra.mxu0 0
      %5190 = vmatprep.subr.bf16.mxu0 0
      %5191 = vmatpush1.bf16.msra.mxu0 0
      %5192 = vmatprep.subr.bf16.mxu0 0
      %5193 = vmatpush1.bf16.msra.mxu0 0
      %5194 = vmatprep.subr.bf16.mxu0 0
      %5195 = vmatpush1.bf16.msra.mxu0 0
      %5196 = vmatprep.subr.bf16.mxu0 0
      %5197 = vmatpush1.bf16.msra.mxu0 0
      %5198 = vmatprep.subr.bf16.mxu0 0
      %5199 = vmatpush1.bf16.msra.mxu0 0
      %5200 = vmatprep.subr.bf16.mxu0 0
      %5201 = vmatpush1.bf16.msra.mxu0 0
      %5202 = vmatprep.subr.bf16.mxu0 0
      %5203 = vmatpush1.bf16.msra.mxu0 0
      %5204 = vmatprep.subr.bf16.mxu0 0
      %5205 = vmatpush1.bf16.msra.mxu0 0
      %5206 = vmatprep.subr.bf16.mxu0 0
      %5207 = vmatpush1.bf16.msra.mxu0 0
      %5208 = vmatprep.subr.bf16.mxu0 0
      %5209 = vmatpush1.bf16.msra.mxu0 0
      %5210 = vmatprep.subr.bf16.mxu0 0
      %5211 = vmatpush1.bf16.msra.mxu0 0
      %5212 = vmatprep.subr.bf16.mxu0 0
      %5213 = vmatpush1.bf16.msra.mxu0 0
      %5214 = vmatprep.mubr.bf16.mxu0 0
      %5215 = vmatmul.mubr.bf16.gmra.mrb[0].mxu0 %v3235
      %v5216 = vpop.f32.mrb[0].mxu0
      %v5217 = vadd.f32 0.0, %v5216
      %v5218 = vpop.f32.mrb[0].mxu0
      %v5219 = vpop.f32.mrb[0].mxu0
      %v5220 = vadd.f32 0.0, %v5219
      %v5221 = vpop.f32.mrb[0].mxu0
      %5222 = vmatprep.mubr.bf16.mxu0 0
      %5223 = vmatmul.mubr.bf16.gmra.mrb[0].mxu0 %v3238
      %v5224 = vpop.f32.mrb[0].mxu0
      %v5225 = vadd.f32 0.0, %v5224
      %v5226 = vpop.f32.mrb[0].mxu0
      %v5227 = vpop.f32.mrb[0].mxu0
      %v5228 = vadd.f32 0.0, %v5227
      %v5229 = vpop.f32.mrb[0].mxu0
      %5230 = vmatprep.mubr.bf16.mxu0 0
      %5231 = vmatmul.mubr.bf16.gmra.mrb[0].mxu0 %v3241
      %v5232 = vpop.f32.mrb[0].mxu0
      %v5233 = vadd.f32 0.0, %v5232
      %v5234 = vpop.f32.mrb[0].mxu0
      %v5235 = vpop.f32.mrb[0].mxu0
      %v5236 = vpop.f32.mrb[0].mxu0
      %5237 = vdwg.mxu0
      %v5238 = vadd.f32 %v5177, %v5217
      %v5239 = vadd.f32 %v5178, %v5220
      %v5240 = vadd.f32 %v5179, %v5225
      %v5241 = vadd.f32 %v5180, %v5228
      %v5242 = vadd.f32 %v5181, %v5233
      %5243 = vmatprep.subr.bf16.mxu0 0
      %5244 = vmatpush1.bf16.msra.mxu0 %v831
      %5245 = vmatprep.subr.bf16.mxu0 0
      %5246 = vmatpush1.bf16.msra.mxu0 0
      %5247 = vmatprep.subr.bf16.mxu0 0
      %5248 = vmatpush1.bf16.msra.mxu0 0
      %5249 = vmatprep.subr.bf16.mxu0 0
      %5250 = vmatpush1.bf16.msra.mxu0 0
      %5251 = vmatprep.subr.bf16.mxu0 0
      %5252 = vmatpush1.bf16.msra.mxu0 0
      %5253 = vmatprep.subr.bf16.mxu0 0
      %5254 = vmatpush1.bf16.msra.mxu0 0
      %5255 = vmatprep.subr.bf16.mxu0 0
      %5256 = vmatpush1.bf16.msra.mxu0 0
      %5257 = vmatprep.subr.bf16.mxu0 0
      %5258 = vmatpush1.bf16.msra.mxu0 0
      %5259 = vmatprep.subr.bf16.mxu0 0
      %5260 = vmatpush1.bf16.msra.mxu0 0
      %5261 = vmatprep.subr.bf16.mxu0 0
      %5262 = vmatpush1.bf16.msra.mxu0 0
      %5263 = vmatprep.subr.bf16.mxu0 0
      %5264 = vmatpush1.bf16.msra.mxu0 0
      %5265 = vmatprep.subr.bf16.mxu0 0
      %5266 = vmatpush1.bf16.msra.mxu0 0
      %5267 = vmatprep.subr.bf16.mxu0 0
      %5268 = vmatpush1.bf16.msra.mxu0 0
      %5269 = vmatprep.subr.bf16.mxu0 0
      %5270 = vmatpush1.bf16.msra.mxu0 0
      %5271 = vmatprep.subr.bf16.mxu0 0
      %5272 = vmatpush1.bf16.msra.mxu0 0
      %5273 = vmatprep.subr.bf16.mxu0 0
      %5274 = vmatpush1.bf16.msra.mxu0 0
      %5275 = vmatprep.mubr.bf16.mxu0 0
      %5276 = vmatmul.mubr.bf16.gmra.mrb[0].mxu0 %v3318
      %v5277 = vpop.f32.mrb[0].mxu0
      %v5278 = vadd.f32 0.0, %v5277
      %v5279 = vpop.f32.mrb[0].mxu0
      %v5280 = vpop.f32.mrb[0].mxu0
      %v5281 = vadd.f32 0.0, %v5280
      %v5282 = vpop.f32.mrb[0].mxu0
      %5283 = vmatprep.mubr.bf16.mxu0 0
      %5284 = vmatmul.mubr.bf16.gmra.mrb[0].mxu0 %v3321
      %v5285 = vpop.f32.mrb[0].mxu0
      %v5286 = vadd.f32 0.0, %v5285
      %v5287 = vpop.f32.mrb[0].mxu0
      %v5288 = vpop.f32.mrb[0].mxu0
      %v5289 = vadd.f32 0.0, %v5288
      %v5290 = vpop.f32.mrb[0].mxu0
      %5291 = vmatprep.mubr.bf16.mxu0 0
      %5292 = vmatmul.mubr.bf16.gmra.mrb[0].mxu0 %v3324
      %v5293 = vpop.f32.mrb[0].mxu0
      %v5294 = vadd.f32 0.0, %v5293
      %v5295 = vpop.f32.mrb[0].mxu0
      %v5296 = vpop.f32.mrb[0].mxu0
      %v5297 = vpop.f32.mrb[0].mxu0
      %5298 = vdwg.mxu0
      %v5299 = vadd.f32 %v5238, %v5278
      %v5300 = vadd.f32 %v5239, %v5281
      %v5301 = vadd.f32 %v5240, %v5286
      %v5302 = vadd.f32 %v5241, %v5289
      %v5303 = vadd.f32 %v5242, %v5294
      %5304 = vmatprep.subr.bf16.mxu0 0
      %5305 = vmatpush1.bf16.msra.mxu0 %v917
      %5306 = vmatprep.subr.bf16.mxu0 0
      %5307 = vmatpush1.bf16.msra.mxu0 0
      %5308 = vmatprep.subr.bf16.mxu0 0
      %5309 = vmatpush1.bf16.msra.mxu0 0
      %5310 = vmatprep.subr.bf16.mxu0 0
      %5311 = vmatpush1.bf16.msra.mxu0 0
      %5312 = vmatprep.subr.bf16.mxu0 0
      %5313 = vmatpush1.bf16.msra.mxu0 0
      %5314 = vmatprep.subr.bf16.mxu0 0
      %5315 = vmatpush1.bf16.msra.mxu0 0
      %5316 = vmatprep.subr.bf16.mxu0 0
      %5317 = vmatpush1.bf16.msra.mxu0 0
      %5318 = vmatprep.subr.bf16.mxu0 0
      %5319 = vmatpush1.bf16.msra.mxu0 0
      %5320 = vmatprep.subr.bf16.mxu0 0
      %5321 = vmatpush1.bf16.msra.mxu0 0
      %5322 = vmatprep.subr.bf16.mxu0 0
      %5323 = vmatpush1.bf16.msra.mxu0 0
      %5324 = vmatprep.subr.bf16.mxu0 0
      %5325 = vmatpush1.bf16.msra.mxu0 0
      %5326 = vmatprep.subr.bf16.mxu0 0
      %5327 = vmatpush1.bf16.msra.mxu0 0
      %5328 = vmatprep.subr.bf16.mxu0 0
      %5329 = vmatpush1.bf16.msra.mxu0 0
      %5330 = vmatprep.subr.bf16.mxu0 0
      %5331 = vmatpush1.bf16.msra.mxu0 0
      %5332 = vmatprep.subr.bf16.mxu0 0
      %5333 = vmatpush1.bf16.msra.mxu0 0
      %5334 = vmatprep.subr.bf16.mxu0 0
      %5335 = vmatpush1.bf16.msra.mxu0 0
      %5336 = vmatprep.mubr.bf16.mxu0 0
      %5337 = vmatmul.mubr.bf16.gmra.mrb[0].mxu0 %v3401
      %v5338 = vpop.f32.mrb[0].mxu0
      %v5339 = vadd.f32 0.0, %v5338
      %v5340 = vpop.f32.mrb[0].mxu0
      %v5341 = vpop.f32.mrb[0].mxu0
      %v5342 = vadd.f32 0.0, %v5341
      %v5343 = vpop.f32.mrb[0].mxu0
      %5344 = vmatprep.mubr.bf16.mxu0 0
      %5345 = vmatmul.mubr.bf16.gmra.mrb[0].mxu0 %v3404
      %v5346 = vpop.f32.mrb[0].mxu0
      %v5347 = vadd.f32 0.0, %v5346
      %v5348 = vpop.f32.mrb[0].mxu0
      %v5349 = vpop.f32.mrb[0].mxu0
      %v5350 = vadd.f32 0.0, %v5349
      %v5351 = vpop.f32.mrb[0].mxu0
      %5352 = vmatprep.mubr.bf16.mxu0 0
      %5353 = vmatmul.mubr.bf16.gmra.mrb[0].mxu0 %v3407
      %v5354 = vpop.f32.mrb[0].mxu0
      %v5355 = vadd.f32 0.0, %v5354
      %v5356 = vpop.f32.mrb[0].mxu0
      %v5357 = vpop.f32.mrb[0].mxu0
      %v5358 = vpop.f32.mrb[0].mxu0
      %5359 = vdwg.mxu0
      %v5360 = vadd.f32 %v5299, %v5339
      %v5361 = vadd.f32 %v5300, %v5342
      %v5362 = vadd.f32 %v5301, %v5347
      %v5363 = vadd.f32 %v5302, %v5350
      %v5364 = vadd.f32 %v5303, %v5355
      %v5370 = vunpack.c.l.b16 %v400
      %v5371 = vunpack.c.l.b16 %v401
      %v5372 = vunpack.c.l.b16 %v402
      %v5373 = vunpack.c.l.b16 %v403
      %v5374 = vunpack.c.l.b16 %v404
      %v5375 = vpack.c.b16 %v5371, %v5370
      %v5376 = vpack.c.b16 %v5373, %v5372
      %v5377 = vpack.c.b16 %v5374, %v5374
      %v5379 = vsel %vm475, %v5375, 0
      %v5382 = vsel %vm475, %v5376, 0
      %v5385 = vsel %vm475, %v5377, 0
      %5387 = vmatprep.subr.bf16.mxu0 0
      %5388 = vmatpush1.bf16.msra.mxu0 %v1003
      %5389 = vmatprep.subr.bf16.mxu0 0
      %5390 = vmatpush1.bf16.msra.mxu0 0
      %5391 = vmatprep.subr.bf16.mxu0 0
      %5392 = vmatpush1.bf16.msra.mxu0 0
      %5393 = vmatprep.subr.bf16.mxu0 0
      %5394 = vmatpush1.bf16.msra.mxu0 0
      %5395 = vmatprep.subr.bf16.mxu0 0
      %5396 = vmatpush1.bf16.msra.mxu0 0
      %5397 = vmatprep.subr.bf16.mxu0 0
      %5398 = vmatpush1.bf16.msra.mxu0 0
      %5399 = vmatprep.subr.bf16.mxu0 0
      %5400 = vmatpush1.bf16.msra.mxu0 0
      %5401 = vmatprep.subr.bf16.mxu0 0
      %5402 = vmatpush1.bf16.msra.mxu0 0
      %5403 = vmatprep.subr.bf16.mxu0 0
      %5404 = vmatpush1.bf16.msra.mxu0 0
      %5405 = vmatprep.subr.bf16.mxu0 0
      %5406 = vmatpush1.bf16.msra.mxu0 0
      %5407 = vmatprep.subr.bf16.mxu0 0
      %5408 = vmatpush1.bf16.msra.mxu0 0
      %5409 = vmatprep.subr.bf16.mxu0 0
      %5410 = vmatpush1.bf16.msra.mxu0 0
      %5411 = vmatprep.subr.bf16.mxu0 0
      %5412 = vmatpush1.bf16.msra.mxu0 0
      %5413 = vmatprep.subr.bf16.mxu0 0
      %5414 = vmatpush1.bf16.msra.mxu0 0
      %5415 = vmatprep.subr.bf16.mxu0 0
      %5416 = vmatpush1.bf16.msra.mxu0 0
      %5417 = vmatprep.subr.bf16.mxu0 0
      %5418 = vmatpush1.bf16.msra.mxu0 0
      %5419 = vmatprep.mubr.bf16.mxu0 0
      %5420 = vmatmul.mubr.bf16.gmra.mrb[0].mxu0 %v5379
      %v5421 = vpop.f32.mrb[0].mxu0
      %v5422 = vadd.f32 0.0, %v5421
      %v5423 = vpop.f32.mrb[0].mxu0
      %v5424 = vpop.f32.mrb[0].mxu0
      %v5425 = vadd.f32 0.0, %v5424
      %v5426 = vpop.f32.mrb[0].mxu0
      %5427 = vmatprep.mubr.bf16.mxu0 0
      %5428 = vmatmul.mubr.bf16.gmra.mrb[0].mxu0 %v5382
      %v5429 = vpop.f32.mrb[0].mxu0
      %v5430 = vadd.f32 0.0, %v5429
      %v5431 = vpop.f32.mrb[0].mxu0
      %v5432 = vpop.f32.mrb[0].mxu0
      %v5433 = vadd.f32 0.0, %v5432
      %v5434 = vpop.f32.mrb[0].mxu0
      %5435 = vmatprep.mubr.bf16.mxu0 0
      %5436 = vmatmul.mubr.bf16.gmra.mrb[0].mxu0 %v5385
      %v5437 = vpop.f32.mrb[0].mxu0
      %v5438 = vadd.f32 0.0, %v5437
      %v5439 = vpop.f32.mrb[0].mxu0
      %v5440 = vpop.f32.mrb[0].mxu0
      %v5441 = vpop.f32.mrb[0].mxu0
      %5442 = vdwg.mxu0
      %v5443 = vadd.f32 %v5360, %v5422
      %v5444 = vadd.f32 %v5361, %v5425
      %v5445 = vadd.f32 %v5362, %v5430
      %v5446 = vadd.f32 %v5363, %v5433
      %v5447 = vadd.f32 %v5364, %v5438
      %v5453 = vunpack.c.l.b16 %v406
      %v5454 = vunpack.c.l.b16 %v407
      %v5455 = vunpack.c.l.b16 %v408
      %v5456 = vunpack.c.l.b16 %v409
      %v5457 = vunpack.c.l.b16 %v410
      %v5458 = vpack.c.b16 %v5454, %v5453
      %v5459 = vpack.c.b16 %v5456, %v5455
      %v5460 = vpack.c.b16 %v5457, %v5457
      %v5462 = vsel %vm475, %v5458, 0
      %v5465 = vsel %vm475, %v5459, 0
      %v5468 = vsel %vm475, %v5460, 0
      %5470 = vmatprep.subr.bf16.mxu0 0
      %5471 = vmatpush1.bf16.msra.mxu0 %v1089
      %5472 = vmatprep.subr.bf16.mxu0 0
      %5473 = vmatpush1.bf16.msra.mxu0 0
      %5474 = vmatprep.subr.bf16.mxu0 0
      %5475 = vmatpush1.bf16.msra.mxu0 0
      %5476 = vmatprep.subr.bf16.mxu0 0
      %5477 = vmatpush1.bf16.msra.mxu0 0
      %5478 = vmatprep.subr.bf16.mxu0 0
      %5479 = vmatpush1.bf16.msra.mxu0 0
      %5480 = vmatprep.subr.bf16.mxu0 0
      %5481 = vmatpush1.bf16.msra.mxu0 0
      %5482 = vmatprep.subr.bf16.mxu0 0
      %5483 = vmatpush1.bf16.msra.mxu0 0
      %5484 = vmatprep.subr.bf16.mxu0 0
      %5485 = vmatpush1.bf16.msra.mxu0 0
      %5486 = vmatprep.subr.bf16.mxu0 0
      %5487 = vmatpush1.bf16.msra.mxu0 0
      %5488 = vmatprep.subr.bf16.mxu0 0
      %5489 = vmatpush1.bf16.msra.mxu0 0
      %5490 = vmatprep.subr.bf16.mxu0 0
      %5491 = vmatpush1.bf16.msra.mxu0 0
      %5492 = vmatprep.subr.bf16.mxu0 0
      %5493 = vmatpush1.bf16.msra.mxu0 0
      %5494 = vmatprep.subr.bf16.mxu0 0
      %5495 = vmatpush1.bf16.msra.mxu0 0
      %5496 = vmatprep.subr.bf16.mxu0 0
      %5497 = vmatpush1.bf16.msra.mxu0 0
      %5498 = vmatprep.subr.bf16.mxu0 0
      %5499 = vmatpush1.bf16.msra.mxu0 0
      %5500 = vmatprep.subr.bf16.mxu0 0
      %5501 = vmatpush1.bf16.msra.mxu0 0
      %5502 = vmatprep.mubr.bf16.mxu0 0
      %5503 = vmatmul.mubr.bf16.gmra.mrb[0].mxu0 %v5462
      %v5504 = vpop.f32.mrb[0].mxu0
      %v5505 = vadd.f32 0.0, %v5504
      %v5506 = vpop.f32.mrb[0].mxu0
      %v5507 = vpop.f32.mrb[0].mxu0
      %v5508 = vadd.f32 0.0, %v5507
      %v5509 = vpop.f32.mrb[0].mxu0
      %5510 = vmatprep.mubr.bf16.mxu0 0
      %5511 = vmatmul.mubr.bf16.gmra.mrb[0].mxu0 %v5465
      %v5512 = vpop.f32.mrb[0].mxu0
      %v5513 = vadd.f32 0.0, %v5512
      %v5514 = vpop.f32.mrb[0].mxu0
      %v5515 = vpop.f32.mrb[0].mxu0
      %v5516 = vadd.f32 0.0, %v5515
      %v5517 = vpop.f32.mrb[0].mxu0
      %5518 = vmatprep.mubr.bf16.mxu0 0
      %5519 = vmatmul.mubr.bf16.gmra.mrb[0].mxu0 %v5468
      %v5520 = vpop.f32.mrb[0].mxu0
      %v5521 = vadd.f32 0.0, %v5520
      %v5522 = vpop.f32.mrb[0].mxu0
      %v5523 = vpop.f32.mrb[0].mxu0
      %v5524 = vpop.f32.mrb[0].mxu0
      %5525 = vdwg.mxu0
      %v5526 = vadd.f32 %v5443, %v5505
      %v5527 = vadd.f32 %v5444, %v5508
      %v5528 = vadd.f32 %v5445, %v5513
      %v5529 = vadd.f32 %v5446, %v5516
      %v5530 = vadd.f32 %v5447, %v5521
      %v5536 = vunpack.c.l.b16 %v412
      %v5537 = vunpack.c.l.b16 %v413
      %v5538 = vunpack.c.l.b16 %v414
      %v5539 = vunpack.c.l.b16 %v415
      %v5540 = vunpack.c.l.b16 %v416
      %v5541 = vpack.c.b16 %v5537, %v5536
      %v5542 = vpack.c.b16 %v5539, %v5538
      %v5543 = vpack.c.b16 %v5540, %v5540
      %v5545 = vsel %vm475, %v5541, 0
      %v5548 = vsel %vm475, %v5542, 0
      %v5551 = vsel %vm475, %v5543, 0
      %5553 = vmatprep.subr.bf16.mxu0 0
      %5554 = vmatpush1.bf16.msra.mxu0 %v1175
      %5555 = vmatprep.subr.bf16.mxu0 0
      %5556 = vmatpush1.bf16.msra.mxu0 0
      %5557 = vmatprep.subr.bf16.mxu0 0
      %5558 = vmatpush1.bf16.msra.mxu0 0
      %5559 = vmatprep.subr.bf16.mxu0 0
      %5560 = vmatpush1.bf16.msra.mxu0 0
      %5561 = vmatprep.subr.bf16.mxu0 0
      %5562 = vmatpush1.bf16.msra.mxu0 0
      %5563 = vmatprep.subr.bf16.mxu0 0
      %5564 = vmatpush1.bf16.msra.mxu0 0
      %5565 = vmatprep.subr.bf16.mxu0 0
      %5566 = vmatpush1.bf16.msra.mxu0 0
      %5567 = vmatprep.subr.bf16.mxu0 0
      %5568 = vmatpush1.bf16.msra.mxu0 0
      %5569 = vmatprep.subr.bf16.mxu0 0
      %5570 = vmatpush1.bf16.msra.mxu0 0
      %5571 = vmatprep.subr.bf16.mxu0 0
      %5572 = vmatpush1.bf16.msra.mxu0 0
      %5573 = vmatprep.subr.bf16.mxu0 0
      %5574 = vmatpush1.bf16.msra.mxu0 0
      %5575 = vmatprep.subr.bf16.mxu0 0
      %5576 = vmatpush1.bf16.msra.mxu0 0
      %5577 = vmatprep.subr.bf16.mxu0 0
      %5578 = vmatpush1.bf16.msra.mxu0 0
      %5579 = vmatprep.subr.bf16.mxu0 0
      %5580 = vmatpush1.bf16.msra.mxu0 0
      %5581 = vmatprep.subr.bf16.mxu0 0
      %5582 = vmatpush1.bf16.msra.mxu0 0
      %5583 = vmatprep.subr.bf16.mxu0 0
      %5584 = vmatpush1.bf16.msra.mxu0 0
      %5585 = vmatprep.mubr.bf16.mxu0 0
      %5586 = vmatmul.mubr.bf16.gmra.mrb[0].mxu0 %v5545
      %v5587 = vpop.f32.mrb[0].mxu0
      %v5588 = vadd.f32 0.0, %v5587
      %v5589 = vpop.f32.mrb[0].mxu0
      %v5590 = vpop.f32.mrb[0].mxu0
      %v5591 = vadd.f32 0.0, %v5590
      %v5592 = vpop.f32.mrb[0].mxu0
      %5593 = vmatprep.mubr.bf16.mxu0 0
      %5594 = vmatmul.mubr.bf16.gmra.mrb[0].mxu0 %v5548
      %v5595 = vpop.f32.mrb[0].mxu0
      %v5596 = vadd.f32 0.0, %v5595
      %v5597 = vpop.f32.mrb[0].mxu0
      %v5598 = vpop.f32.mrb[0].mxu0
      %v5599 = vadd.f32 0.0, %v5598
      %v5600 = vpop.f32.mrb[0].mxu0
      %5601 = vmatprep.mubr.bf16.mxu0 0
      %5602 = vmatmul.mubr.bf16.gmra.mrb[0].mxu0 %v5551
      %v5603 = vpop.f32.mrb[0].mxu0
      %v5604 = vadd.f32 0.0, %v5603
      %v5605 = vpop.f32.mrb[0].mxu0
      %v5606 = vpop.f32.mrb[0].mxu0
      %v5607 = vpop.f32.mrb[0].mxu0
      %5608 = vdwg.mxu0
      %v5609 = vadd.f32 %v5526, %v5588
      %v5610 = vadd.f32 %v5527, %v5591
      %v5611 = vadd.f32 %v5528, %v5596
      %v5612 = vadd.f32 %v5529, %v5599
      %v5613 = vadd.f32 %v5530, %v5604
      %vm5614 = vcmp.ge.f32.partialorder %v5609, 0.0
      %vm5615 = vcmp.ge.f32.partialorder %v5610, 0.0
      %vm5616 = vcmp.ge.f32.partialorder %v5611, 0.0
      %vm5617 = vcmp.ge.f32.partialorder %v5612, 0.0
      %vm5618 = vcmp.ge.f32.partialorder %v5613, 0.0
      %v5619 = vmul.f32 %v5609, 0.01
      %v5620 = vmul.f32 %v5610, 0.01
      %v5621 = vmul.f32 %v5611, 0.01
      %v5622 = vmul.f32 %v5612, 0.01
      %v5623 = vmul.f32 %v5613, 0.01
      %v5624 = vsel %vm5614, %v5609, %v5619
      %v5625 = vsel %vm5615, %v5610, %v5620
      %v5626 = vsel %vm5616, %v5611, %v5621
      %v5627 = vsel %vm5617, %v5612, %v5622
      %v5628 = vsel %vm5618, %v5613, %v5623
      %s5629 = scalar_lea.vmem %s1, 240
      %v5630 = vld [vmem:[%s5629] sm:$0xff]
      %v5631 = vld [vmem:[%s5629 + $0x8] sm:$0xff]
      %v5632 = vld [vmem:[%s5629 + $0x10] sm:$0xff]
      %v5633 = vld [vmem:[%s5629 + $0x18] sm:$0xff]
      %v5634 = vld [vmem:[%s5629 + $0x20] sm:$0xf]
      %5636 = vset.pattern.permute.xlu0 0
      %5637 = vperm.xlu0 %5636, %v5630
      %v5638 = vpop.permute.xlu0 %5637
      %5641 = vset.pattern.permute.xlu0 0
      %5642 = vperm.xlu0 %5641, %v5631
      %v5643 = vpop.permute.xlu0 %5642
      %5646 = vset.pattern.permute.xlu0 0
      %5647 = vperm.xlu0 %5646, %v5632
      %v5648 = vpop.permute.xlu0 %5647
      %5651 = vset.pattern.permute.xlu0 0
      %5652 = vperm.xlu0 %5651, %v5633
      %v5653 = vpop.permute.xlu0 %5652
      %5656 = vset.pattern.permute.xlu0 0
      %5657 = vperm.xlu0 %5656, %v5634
      %v5658 = vpop.permute.xlu0 %5657
      %v5660 = vmul.f32 %v5624, %v5638
      %v5661 = vmul.f32 %v5625, %v5643
      %v5662 = vmul.f32 %v5626, %v5648
      %v5663 = vmul.f32 %v5627, %v5653
      %v5664 = vmul.f32 %v5628, %v5658
      %v5665 = vpack.c.bf16 %v5661, %v5660
      %v5666 = vpack.c.bf16 %v5663, %v5662
      %v5667 = vpack.c.bf16 %v5664, %v5664
      %s5668 = scalar_lea.vmem %s4, 24
      %v5669 = vld [vmem:[%s5668] sm:$0xf]
      %v5671 = vsel %vm1292, %v5665, 0
      %v5674 = vsel %vm1292, %v5666, 0
      %v5677 = vsel %vm1292, %v5667, 0
      %v5680 = vsel %vm1302, %v5669, 0
      %5682 = vmatprep.subr.bf16.mxu0 0
      %5683 = vmatpush1.bf16.msra.mxu0 %v5680
      %5684 = vmatprep.subr.bf16.mxu0 0
      %5685 = vmatpush1.bf16.msra.mxu0 0
      %5686 = vmatprep.subr.bf16.mxu0 0
      %5687 = vmatpush1.bf16.msra.mxu0 0
      %5688 = vmatprep.subr.bf16.mxu0 0
      %5689 = vmatpush1.bf16.msra.mxu0 0
      %5690 = vmatprep.subr.bf16.mxu0 0
      %5691 = vmatpush1.bf16.msra.mxu0 0
      %5692 = vmatprep.subr.bf16.mxu0 0
      %5693 = vmatpush1.bf16.msra.mxu0 0
      %5694 = vmatprep.subr.bf16.mxu0 0
      %5695 = vmatpush1.bf16.msra.mxu0 0
      %5696 = vmatprep.subr.bf16.mxu0 0
      %5697 = vmatpush1.bf16.msra.mxu0 0
      %5698 = vmatprep.subr.bf16.mxu0 0
      %5699 = vmatpush1.bf16.msra.mxu0 0
      %5700 = vmatprep.subr.bf16.mxu0 0
      %5701 = vmatpush1.bf16.msra.mxu0 0
      %5702 = vmatprep.subr.bf16.mxu0 0
      %5703 = vmatpush1.bf16.msra.mxu0 0
      %5704 = vmatprep.subr.bf16.mxu0 0
      %5705 = vmatpush1.bf16.msra.mxu0 0
      %5706 = vmatprep.subr.bf16.mxu0 0
      %5707 = vmatpush1.bf16.msra.mxu0 0
      %5708 = vmatprep.subr.bf16.mxu0 0
      %5709 = vmatpush1.bf16.msra.mxu0 0
      %5710 = vmatprep.subr.bf16.mxu0 0
      %5711 = vmatpush1.bf16.msra.mxu0 0
      %5712 = vmatprep.subr.bf16.mxu0 0
      %5713 = vmatpush1.bf16.msra.mxu0 0
      %5714 = vmatprep.mubr.bf16.mxu0 0
      %5715 = vmatmul.mubr.bf16.gmra.mrb[0].mxu0 %v5671
      %v5716 = vpop.f32.mrb[0].mxu0
      %v5717 = vadd.f32 0.0, %v5716
      %v5718 = vpop.f32.mrb[0].mxu0
      %v5719 = vpop.f32.mrb[0].mxu0
      %v5720 = vadd.f32 0.0, %v5719
      %v5721 = vpop.f32.mrb[0].mxu0
      %5722 = vmatprep.mubr.bf16.mxu0 0
      %5723 = vmatmul.mubr.bf16.gmra.mrb[0].mxu0 %v5674
      %v5724 = vpop.f32.mrb[0].mxu0
      %v5725 = vadd.f32 0.0, %v5724
      %v5726 = vpop.f32.mrb[0].mxu0
      %v5727 = vpop.f32.mrb[0].mxu0
      %v5728 = vadd.f32 0.0, %v5727
      %v5729 = vpop.f32.mrb[0].mxu0
      %5730 = vmatprep.mubr.bf16.mxu0 0
      %5731 = vmatmul.mubr.bf16.gmra.mrb[0].mxu0 %v5677
      %v5732 = vpop.f32.mrb[0].mxu0
      %v5733 = vadd.f32 0.0, %v5732
      %v5734 = vpop.f32.mrb[0].mxu0
      %v5735 = vpop.f32.mrb[0].mxu0
      %v5736 = vpop.f32.mrb[0].mxu0
      %5737 = vdwg.mxu0
      %v5738 = vadd.f32 %v4994, %v5717
      %v5739 = vadd.f32 %v4995, %v5720
      %v5740 = vadd.f32 %v4996, %v5725
      %v5741 = vadd.f32 %v4997, %v5728
      %v5742 = vadd.f32 %v4998, %v5733
      %5743 = vmatprep.subr.bf16.mxu0 0
      %5744 = vmatpush1.bf16.msra.mxu0 %v487
      %5745 = vmatprep.subr.bf16.mxu0 0
      %5746 = vmatpush1.bf16.msra.mxu0 0
      %5747 = vmatprep.subr.bf16.mxu0 0
      %5748 = vmatpush1.bf16.msra.mxu0 0
      %5749 = vmatprep.subr.bf16.mxu0 0
      %5750 = vmatpush1.bf16.msra.mxu0 0
      %5751 = vmatprep.subr.bf16.mxu0 0
      %5752 = vmatpush1.bf16.msra.mxu0 0
      %5753 = vmatprep.subr.bf16.mxu0 0
      %5754 = vmatpush1.bf16.msra.mxu0 0
      %5755 = vmatprep.subr.bf16.mxu0 0
      %5756 = vmatpush1.bf16.msra.mxu0 0
      %5757 = vmatprep.subr.bf16.mxu0 0
      %5758 = vmatpush1.bf16.msra.mxu0 0
      %5759 = vmatprep.subr.bf16.mxu0 0
      %5760 = vmatpush1.bf16.msra.mxu0 0
      %5761 = vmatprep.subr.bf16.mxu0 0
      %5762 = vmatpush1.bf16.msra.mxu0 0
      %5763 = vmatprep.subr.bf16.mxu0 0
      %5764 = vmatpush1.bf16.msra.mxu0 0
      %5765 = vmatprep.subr.bf16.mxu0 0
      %5766 = vmatpush1.bf16.msra.mxu0 0
      %5767 = vmatprep.subr.bf16.mxu0 0
      %5768 = vmatpush1.bf16.msra.mxu0 0
      %5769 = vmatprep.subr.bf16.mxu0 0
      %5770 = vmatpush1.bf16.msra.mxu0 0
      %5771 = vmatprep.subr.bf16.mxu0 0
      %5772 = vmatpush1.bf16.msra.mxu0 0
      %5773 = vmatprep.subr.bf16.mxu0 0
      %5774 = vmatpush1.bf16.msra.mxu0 0
      %5775 = vmatprep.mubr.bf16.mxu0 0
      %5776 = vmatmul.mubr.bf16.gmra.mrb[0].mxu0 %v1080
      %v5777 = vpop.f32.mrb[0].mxu0
      %v5778 = vadd.f32 0.0, %v5777
      %v5779 = vpop.f32.mrb[0].mxu0
      %v5780 = vpop.f32.mrb[0].mxu0
      %v5781 = vadd.f32 0.0, %v5780
      %v5782 = vpop.f32.mrb[0].mxu0
      %5783 = vmatprep.mubr.bf16.mxu0 0
      %5784 = vmatmul.mubr.bf16.gmra.mrb[0].mxu0 %v1083
      %v5785 = vpop.f32.mrb[0].mxu0
      %v5786 = vadd.f32 0.0, %v5785
      %v5787 = vpop.f32.mrb[0].mxu0
      %v5788 = vpop.f32.mrb[0].mxu0
      %v5789 = vadd.f32 0.0, %v5788
      %v5790 = vpop.f32.mrb[0].mxu0
      %5791 = vmatprep.mubr.bf16.mxu0 0
      %5792 = vmatmul.mubr.bf16.gmra.mrb[0].mxu0 %v1086
      %v5793 = vpop.f32.mrb[0].mxu0
      %v5794 = vadd.f32 0.0, %v5793
      %v5795 = vpop.f32.mrb[0].mxu0
      %v5796 = vpop.f32.mrb[0].mxu0
      %v5797 = vpop.f32.mrb[0].mxu0
      %5798 = vdwg.mxu0
      %v5799 = vadd.f32 %v461, %v5778
      %v5800 = vadd.f32 %v461, %v5781
      %v5801 = vadd.f32 %v461, %v5786
      %v5802 = vadd.f32 %v461, %v5789
      %v5803 = vadd.f32 %v461, %v5794
      %5804 = vmatprep.subr.bf16.mxu0 0
      %5805 = vmatpush1.bf16.msra.mxu0 %v573
      %5806 = vmatprep.subr.bf16.mxu0 0
      %5807 = vmatpush1.bf16.msra.mxu0 0
      %5808 = vmatprep.subr.bf16.mxu0 0
      %5809 = vmatpush1.bf16.msra.mxu0 0
      %5810 = vmatprep.subr.bf16.mxu0 0
      %5811 = vmatpush1.bf16.msra.mxu0 0
      %5812 = vmatprep.subr.bf16.mxu0 0
      %5813 = vmatpush1.bf16.msra.mxu0 0
      %5814 = vmatprep.subr.bf16.mxu0 0
      %5815 = vmatpush1.bf16.msra.mxu0 0
      %5816 = vmatprep.subr.bf16.mxu0 0
      %5817 = vmatpush1.bf16.msra.mxu0 0
      %5818 = vmatprep.subr.bf16.mxu0 0
      %5819 = vmatpush1.bf16.msra.mxu0 0
      %5820 = vmatprep.subr.bf16.mxu0 0
      %5821 = vmatpush1.bf16.msra.mxu0 0
      %5822 = vmatprep.subr.bf16.mxu0 0
      %5823 = vmatpush1.bf16.msra.mxu0 0
      %5824 = vmatprep.subr.bf16.mxu0 0
      %5825 = vmatpush1.bf16.msra.mxu0 0
      %5826 = vmatprep.subr.bf16.mxu0 0
      %5827 = vmatpush1.bf16.msra.mxu0 0
      %5828 = vmatprep.subr.bf16.mxu0 0
      %5829 = vmatpush1.bf16.msra.mxu0 0
      %5830 = vmatprep.subr.bf16.mxu0 0
      %5831 = vmatpush1.bf16.msra.mxu0 0
      %5832 = vmatprep.subr.bf16.mxu0 0
      %5833 = vmatpush1.bf16.msra.mxu0 0
      %5834 = vmatprep.subr.bf16.mxu0 0
      %5835 = vmatpush1.bf16.msra.mxu0 0
      %5836 = vmatprep.mubr.bf16.mxu0 0
      %5837 = vmatmul.mubr.bf16.gmra.mrb[0].mxu0 %v1166
      %v5838 = vpop.f32.mrb[0].mxu0
      %v5839 = vadd.f32 0.0, %v5838
      %v5840 = vpop.f32.mrb[0].mxu0
      %v5841 = vpop.f32.mrb[0].mxu0
      %v5842 = vadd.f32 0.0, %v5841
      %v5843 = vpop.f32.mrb[0].mxu0
      %5844 = vmatprep.mubr.bf16.mxu0 0
      %5845 = vmatmul.mubr.bf16.gmra.mrb[0].mxu0 %v1169
      %v5846 = vpop.f32.mrb[0].mxu0
      %v5847 = vadd.f32 0.0, %v5846
      %v5848 = vpop.f32.mrb[0].mxu0
      %v5849 = vpop.f32.mrb[0].mxu0
      %v5850 = vadd.f32 0.0, %v5849
      %v5851 = vpop.f32.mrb[0].mxu0
      %5852 = vmatprep.mubr.bf16.mxu0 0
      %5853 = vmatmul.mubr.bf16.gmra.mrb[0].mxu0 %v1172
      %v5854 = vpop.f32.mrb[0].mxu0
      %v5855 = vadd.f32 0.0, %v5854
      %v5856 = vpop.f32.mrb[0].mxu0
      %v5857 = vpop.f32.mrb[0].mxu0
      %v5858 = vpop.f32.mrb[0].mxu0
      %5859 = vdwg.mxu0
      %v5860 = vadd.f32 %v5799, %v5839
      %v5861 = vadd.f32 %v5800, %v5842
      %v5862 = vadd.f32 %v5801, %v5847
      %v5863 = vadd.f32 %v5802, %v5850
      %v5864 = vadd.f32 %v5803, %v5855
      %5865 = vmatprep.subr.bf16.mxu0 0
      %5866 = vmatpush1.bf16.msra.mxu0 %v659
      %5867 = vmatprep.subr.bf16.mxu0 0
      %5868 = vmatpush1.bf16.msra.mxu0 0
      %5869 = vmatprep.subr.bf16.mxu0 0
      %5870 = vmatpush1.bf16.msra.mxu0 0
      %5871 = vmatprep.subr.bf16.mxu0 0
      %5872 = vmatpush1.bf16.msra.mxu0 0
      %5873 = vmatprep.subr.bf16.mxu0 0
      %5874 = vmatpush1.bf16.msra.mxu0 0
      %5875 = vmatprep.subr.bf16.mxu0 0
      %5876 = vmatpush1.bf16.msra.mxu0 0
      %5877 = vmatprep.subr.bf16.mxu0 0
      %5878 = vmatpush1.bf16.msra.mxu0 0
      %5879 = vmatprep.subr.bf16.mxu0 0
      %5880 = vmatpush1.bf16.msra.mxu0 0
      %5881 = vmatprep.subr.bf16.mxu0 0
      %5882 = vmatpush1.bf16.msra.mxu0 0
      %5883 = vmatprep.subr.bf16.mxu0 0
      %5884 = vmatpush1.bf16.msra.mxu0 0
      %5885 = vmatprep.subr.bf16.mxu0 0
      %5886 = vmatpush1.bf16.msra.mxu0 0
      %5887 = vmatprep.subr.bf16.mxu0 0
      %5888 = vmatpush1.bf16.msra.mxu0 0
      %5889 = vmatprep.subr.bf16.mxu0 0
      %5890 = vmatpush1.bf16.msra.mxu0 0
      %5891 = vmatprep.subr.bf16.mxu0 0
      %5892 = vmatpush1.bf16.msra.mxu0 0
      %5893 = vmatprep.subr.bf16.mxu0 0
      %5894 = vmatpush1.bf16.msra.mxu0 0
      %5895 = vmatprep.subr.bf16.mxu0 0
      %5896 = vmatpush1.bf16.msra.mxu0 0
      %5897 = vmatprep.mubr.bf16.mxu0 0
      %5898 = vmatmul.mubr.bf16.gmra.mrb[0].mxu0 %v1913
      %v5899 = vpop.f32.mrb[0].mxu0
      %v5900 = vadd.f32 0.0, %v5899
      %v5901 = vpop.f32.mrb[0].mxu0
      %v5902 = vpop.f32.mrb[0].mxu0
      %v5903 = vadd.f32 0.0, %v5902
      %v5904 = vpop.f32.mrb[0].mxu0
      %5905 = vmatprep.mubr.bf16.mxu0 0
      %5906 = vmatmul.mubr.bf16.gmra.mrb[0].mxu0 %v1916
      %v5907 = vpop.f32.mrb[0].mxu0
      %v5908 = vadd.f32 0.0, %v5907
      %v5909 = vpop.f32.mrb[0].mxu0
      %v5910 = vpop.f32.mrb[0].mxu0
      %v5911 = vadd.f32 0.0, %v5910
      %v5912 = vpop.f32.mrb[0].mxu0
      %5913 = vmatprep.mubr.bf16.mxu0 0
      %5914 = vmatmul.mubr.bf16.gmra.mrb[0].mxu0 %v1919
      %v5915 = vpop.f32.mrb[0].mxu0
      %v5916 = vadd.f32 0.0, %v5915
      %v5917 = vpop.f32.mrb[0].mxu0
      %v5918 = vpop.f32.mrb[0].mxu0
      %v5919 = vpop.f32.mrb[0].mxu0
      %5920 = vdwg.mxu0
      %v5921 = vadd.f32 %v5860, %v5900
      %v5922 = vadd.f32 %v5861, %v5903
      %v5923 = vadd.f32 %v5862, %v5908
      %v5924 = vadd.f32 %v5863, %v5911
      %v5925 = vadd.f32 %v5864, %v5916
      %5926 = vmatprep.subr.bf16.mxu0 0
      %5927 = vmatpush1.bf16.msra.mxu0 %v745
      %5928 = vmatprep.subr.bf16.mxu0 0
      %5929 = vmatpush1.bf16.msra.mxu0 0
      %5930 = vmatprep.subr.bf16.mxu0 0
      %5931 = vmatpush1.bf16.msra.mxu0 0
      %5932 = vmatprep.subr.bf16.mxu0 0
      %5933 = vmatpush1.bf16.msra.mxu0 0
      %5934 = vmatprep.subr.bf16.mxu0 0
      %5935 = vmatpush1.bf16.msra.mxu0 0
      %5936 = vmatprep.subr.bf16.mxu0 0
      %5937 = vmatpush1.bf16.msra.mxu0 0
      %5938 = vmatprep.subr.bf16.mxu0 0
      %5939 = vmatpush1.bf16.msra.mxu0 0
      %5940 = vmatprep.subr.bf16.mxu0 0
      %5941 = vmatpush1.bf16.msra.mxu0 0
      %5942 = vmatprep.subr.bf16.mxu0 0
      %5943 = vmatpush1.bf16.msra.mxu0 0
      %5944 = vmatprep.subr.bf16.mxu0 0
      %5945 = vmatpush1.bf16.msra.mxu0 0
      %5946 = vmatprep.subr.bf16.mxu0 0
      %5947 = vmatpush1.bf16.msra.mxu0 0
      %5948 = vmatprep.subr.bf16.mxu0 0
      %5949 = vmatpush1.bf16.msra.mxu0 0
      %5950 = vmatprep.subr.bf16.mxu0 0
      %5951 = vmatpush1.bf16.msra.mxu0 0
      %5952 = vmatprep.subr.bf16.mxu0 0
      %5953 = vmatpush1.bf16.msra.mxu0 0
      %5954 = vmatprep.subr.bf16.mxu0 0
      %5955 = vmatpush1.bf16.msra.mxu0 0
      %5956 = vmatprep.subr.bf16.mxu0 0
      %5957 = vmatpush1.bf16.msra.mxu0 0
      %5958 = vmatprep.mubr.bf16.mxu0 0
      %5959 = vmatmul.mubr.bf16.gmra.mrb[0].mxu0 %v3318
      %v5960 = vpop.f32.mrb[0].mxu0
      %v5961 = vadd.f32 0.0, %v5960
      %v5962 = vpop.f32.mrb[0].mxu0
      %v5963 = vpop.f32.mrb[0].mxu0
      %v5964 = vadd.f32 0.0, %v5963
      %v5965 = vpop.f32.mrb[0].mxu0
      %5966 = vmatprep.mubr.bf16.mxu0 0
      %5967 = vmatmul.mubr.bf16.gmra.mrb[0].mxu0 %v3321
      %v5968 = vpop.f32.mrb[0].mxu0
      %v5969 = vadd.f32 0.0, %v5968
      %v5970 = vpop.f32.mrb[0].mxu0
      %v5971 = vpop.f32.mrb[0].mxu0
      %v5972 = vadd.f32 0.0, %v5971
      %v5973 = vpop.f32.mrb[0].mxu0
      %5974 = vmatprep.mubr.bf16.mxu0 0
      %5975 = vmatmul.mubr.bf16.gmra.mrb[0].mxu0 %v3324
      %v5976 = vpop.f32.mrb[0].mxu0
      %v5977 = vadd.f32 0.0, %v5976
      %v5978 = vpop.f32.mrb[0].mxu0
      %v5979 = vpop.f32.mrb[0].mxu0
      %v5980 = vpop.f32.mrb[0].mxu0
      %5981 = vdwg.mxu0
      %v5982 = vadd.f32 %v5921, %v5961
      %v5983 = vadd.f32 %v5922, %v5964
      %v5984 = vadd.f32 %v5923, %v5969
      %v5985 = vadd.f32 %v5924, %v5972
      %v5986 = vadd.f32 %v5925, %v5977
      %5987 = vmatprep.subr.bf16.mxu0 0
      %5988 = vmatpush1.bf16.msra.mxu0 %v831
      %5989 = vmatprep.subr.bf16.mxu0 0
      %5990 = vmatpush1.bf16.msra.mxu0 0
      %5991 = vmatprep.subr.bf16.mxu0 0
      %5992 = vmatpush1.bf16.msra.mxu0 0
      %5993 = vmatprep.subr.bf16.mxu0 0
      %5994 = vmatpush1.bf16.msra.mxu0 0
      %5995 = vmatprep.subr.bf16.mxu0 0
      %5996 = vmatpush1.bf16.msra.mxu0 0
      %5997 = vmatprep.subr.bf16.mxu0 0
      %5998 = vmatpush1.bf16.msra.mxu0 0
      %5999 = vmatprep.subr.bf16.mxu0 0
      %6000 = vmatpush1.bf16.msra.mxu0 0
      %6001 = vmatprep.subr.bf16.mxu0 0
      %6002 = vmatpush1.bf16.msra.mxu0 0
      %6003 = vmatprep.subr.bf16.mxu0 0
      %6004 = vmatpush1.bf16.msra.mxu0 0
      %6005 = vmatprep.subr.bf16.mxu0 0
      %6006 = vmatpush1.bf16.msra.mxu0 0
      %6007 = vmatprep.subr.bf16.mxu0 0
      %6008 = vmatpush1.bf16.msra.mxu0 0
      %6009 = vmatprep.subr.bf16.mxu0 0
      %6010 = vmatpush1.bf16.msra.mxu0 0
      %6011 = vmatprep.subr.bf16.mxu0 0
      %6012 = vmatpush1.bf16.msra.mxu0 0
      %6013 = vmatprep.subr.bf16.mxu0 0
      %6014 = vmatpush1.bf16.msra.mxu0 0
      %6015 = vmatprep.subr.bf16.mxu0 0
      %6016 = vmatpush1.bf16.msra.mxu0 0
      %6017 = vmatprep.subr.bf16.mxu0 0
      %6018 = vmatpush1.bf16.msra.mxu0 0
      %6019 = vmatprep.mubr.bf16.mxu0 0
      %6020 = vmatmul.mubr.bf16.gmra.mrb[0].mxu0 %v3401
      %v6021 = vpop.f32.mrb[0].mxu0
      %v6022 = vadd.f32 0.0, %v6021
      %v6023 = vpop.f32.mrb[0].mxu0
      %v6024 = vpop.f32.mrb[0].mxu0
      %v6025 = vadd.f32 0.0, %v6024
      %v6026 = vpop.f32.mrb[0].mxu0
      %6027 = vmatprep.mubr.bf16.mxu0 0
      %6028 = vmatmul.mubr.bf16.gmra.mrb[0].mxu0 %v3404
      %v6029 = vpop.f32.mrb[0].mxu0
      %v6030 = vadd.f32 0.0, %v6029
      %v6031 = vpop.f32.mrb[0].mxu0
      %v6032 = vpop.f32.mrb[0].mxu0
      %v6033 = vadd.f32 0.0, %v6032
      %v6034 = vpop.f32.mrb[0].mxu0
      %6035 = vmatprep.mubr.bf16.mxu0 0
      %6036 = vmatmul.mubr.bf16.gmra.mrb[0].mxu0 %v3407
      %v6037 = vpop.f32.mrb[0].mxu0
      %v6038 = vadd.f32 0.0, %v6037
      %v6039 = vpop.f32.mrb[0].mxu0
      %v6040 = vpop.f32.mrb[0].mxu0
      %v6041 = vpop.f32.mrb[0].mxu0
      %6042 = vdwg.mxu0
      %v6043 = vadd.f32 %v5982, %v6022
      %v6044 = vadd.f32 %v5983, %v6025
      %v6045 = vadd.f32 %v5984, %v6030
      %v6046 = vadd.f32 %v5985, %v6033
      %v6047 = vadd.f32 %v5986, %v6038
      %6048 = vmatprep.subr.bf16.mxu0 0
      %6049 = vmatpush1.bf16.msra.mxu0 %v917
      %6050 = vmatprep.subr.bf16.mxu0 0
      %6051 = vmatpush1.bf16.msra.mxu0 0
      %6052 = vmatprep.subr.bf16.mxu0 0
      %6053 = vmatpush1.bf16.msra.mxu0 0
      %6054 = vmatprep.subr.bf16.mxu0 0
      %6055 = vmatpush1.bf16.msra.mxu0 0
      %6056 = vmatprep.subr.bf16.mxu0 0
      %6057 = vmatpush1.bf16.msra.mxu0 0
      %6058 = vmatprep.subr.bf16.mxu0 0
      %6059 = vmatpush1.bf16.msra.mxu0 0
      %6060 = vmatprep.subr.bf16.mxu0 0
      %6061 = vmatpush1.bf16.msra.mxu0 0
      %6062 = vmatprep.subr.bf16.mxu0 0
      %6063 = vmatpush1.bf16.msra.mxu0 0
      %6064 = vmatprep.subr.bf16.mxu0 0
      %6065 = vmatpush1.bf16.msra.mxu0 0
      %6066 = vmatprep.subr.bf16.mxu0 0
      %6067 = vmatpush1.bf16.msra.mxu0 0
      %6068 = vmatprep.subr.bf16.mxu0 0
      %6069 = vmatpush1.bf16.msra.mxu0 0
      %6070 = vmatprep.subr.bf16.mxu0 0
      %6071 = vmatpush1.bf16.msra.mxu0 0
      %6072 = vmatprep.subr.bf16.mxu0 0
      %6073 = vmatpush1.bf16.msra.mxu0 0
      %6074 = vmatprep.subr.bf16.mxu0 0
      %6075 = vmatpush1.bf16.msra.mxu0 0
      %6076 = vmatprep.subr.bf16.mxu0 0
      %6077 = vmatpush1.bf16.msra.mxu0 0
      %6078 = vmatprep.subr.bf16.mxu0 0
      %6079 = vmatpush1.bf16.msra.mxu0 0
      %6080 = vmatprep.mubr.bf16.mxu0 0
      %6081 = vmatmul.mubr.bf16.gmra.mrb[0].mxu0 %v4101
      %v6082 = vpop.f32.mrb[0].mxu0
      %v6083 = vadd.f32 0.0, %v6082
      %v6084 = vpop.f32.mrb[0].mxu0
      %v6085 = vpop.f32.mrb[0].mxu0
      %v6086 = vadd.f32 0.0, %v6085
      %v6087 = vpop.f32.mrb[0].mxu0
      %6088 = vmatprep.mubr.bf16.mxu0 0
      %6089 = vmatmul.mubr.bf16.gmra.mrb[0].mxu0 %v4104
      %v6090 = vpop.f32.mrb[0].mxu0
      %v6091 = vadd.f32 0.0, %v6090
      %v6092 = vpop.f32.mrb[0].mxu0
      %v6093 = vpop.f32.mrb[0].mxu0
      %v6094 = vadd.f32 0.0, %v6093
      %v6095 = vpop.f32.mrb[0].mxu0
      %6096 = vmatprep.mubr.bf16.mxu0 0
      %6097 = vmatmul.mubr.bf16.gmra.mrb[0].mxu0 %v4107
      %v6098 = vpop.f32.mrb[0].mxu0
      %v6099 = vadd.f32 0.0, %v6098
      %v6100 = vpop.f32.mrb[0].mxu0
      %v6101 = vpop.f32.mrb[0].mxu0
      %v6102 = vpop.f32.mrb[0].mxu0
      %6103 = vdwg.mxu0
      %v6104 = vadd.f32 %v6043, %v6083
      %v6105 = vadd.f32 %v6044, %v6086
      %v6106 = vadd.f32 %v6045, %v6091
      %v6107 = vadd.f32 %v6046, %v6094
      %v6108 = vadd.f32 %v6047, %v6099
      %6109 = vmatprep.subr.bf16.mxu0 0
      %6110 = vmatpush1.bf16.msra.mxu0 %v1003
      %6111 = vmatprep.subr.bf16.mxu0 0
      %6112 = vmatpush1.bf16.msra.mxu0 0
      %6113 = vmatprep.subr.bf16.mxu0 0
      %6114 = vmatpush1.bf16.msra.mxu0 0
      %6115 = vmatprep.subr.bf16.mxu0 0
      %6116 = vmatpush1.bf16.msra.mxu0 0
      %6117 = vmatprep.subr.bf16.mxu0 0
      %6118 = vmatpush1.bf16.msra.mxu0 0
      %6119 = vmatprep.subr.bf16.mxu0 0
      %6120 = vmatpush1.bf16.msra.mxu0 0
      %6121 = vmatprep.subr.bf16.mxu0 0
      %6122 = vmatpush1.bf16.msra.mxu0 0
      %6123 = vmatprep.subr.bf16.mxu0 0
      %6124 = vmatpush1.bf16.msra.mxu0 0
      %6125 = vmatprep.subr.bf16.mxu0 0
      %6126 = vmatpush1.bf16.msra.mxu0 0
      %6127 = vmatprep.subr.bf16.mxu0 0
      %6128 = vmatpush1.bf16.msra.mxu0 0
      %6129 = vmatprep.subr.bf16.mxu0 0
      %6130 = vmatpush1.bf16.msra.mxu0 0
      %6131 = vmatprep.subr.bf16.mxu0 0
      %6132 = vmatpush1.bf16.msra.mxu0 0
      %6133 = vmatprep.subr.bf16.mxu0 0
      %6134 = vmatpush1.bf16.msra.mxu0 0
      %6135 = vmatprep.subr.bf16.mxu0 0
      %6136 = vmatpush1.bf16.msra.mxu0 0
      %6137 = vmatprep.subr.bf16.mxu0 0
      %6138 = vmatpush1.bf16.msra.mxu0 0
      %6139 = vmatprep.subr.bf16.mxu0 0
      %6140 = vmatpush1.bf16.msra.mxu0 0
      %6141 = vmatprep.mubr.bf16.mxu0 0
      %6142 = vmatmul.mubr.bf16.gmra.mrb[0].mxu0 %v5462
      %v6143 = vpop.f32.mrb[0].mxu0
      %v6144 = vadd.f32 0.0, %v6143
      %v6145 = vpop.f32.mrb[0].mxu0
      %v6146 = vpop.f32.mrb[0].mxu0
      %v6147 = vadd.f32 0.0, %v6146
      %v6148 = vpop.f32.mrb[0].mxu0
      %6149 = vmatprep.mubr.bf16.mxu0 0
      %6150 = vmatmul.mubr.bf16.gmra.mrb[0].mxu0 %v5465
      %v6151 = vpop.f32.mrb[0].mxu0
      %v6152 = vadd.f32 0.0, %v6151
      %v6153 = vpop.f32.mrb[0].mxu0
      %v6154 = vpop.f32.mrb[0].mxu0
      %v6155 = vadd.f32 0.0, %v6154
      %v6156 = vpop.f32.mrb[0].mxu0
      %6157 = vmatprep.mubr.bf16.mxu0 0
      %6158 = vmatmul.mubr.bf16.gmra.mrb[0].mxu0 %v5468
      %v6159 = vpop.f32.mrb[0].mxu0
      %v6160 = vadd.f32 0.0, %v6159
      %v6161 = vpop.f32.mrb[0].mxu0
      %v6162 = vpop.f32.mrb[0].mxu0
      %v6163 = vpop.f32.mrb[0].mxu0
      %6164 = vdwg.mxu0
      %v6165 = vadd.f32 %v6104, %v6144
      %v6166 = vadd.f32 %v6105, %v6147
      %v6167 = vadd.f32 %v6106, %v6152
      %v6168 = vadd.f32 %v6107, %v6155
      %v6169 = vadd.f32 %v6108, %v6160
      %6170 = vmatprep.subr.bf16.mxu0 0
      %6171 = vmatpush1.bf16.msra.mxu0 %v1089
      %6172 = vmatprep.subr.bf16.mxu0 0
      %6173 = vmatpush1.bf16.msra.mxu0 0
      %6174 = vmatprep.subr.bf16.mxu0 0
      %6175 = vmatpush1.bf16.msra.mxu0 0
      %6176 = vmatprep.subr.bf16.mxu0 0
      %6177 = vmatpush1.bf16.msra.mxu0 0
      %6178 = vmatprep.subr.bf16.mxu0 0
      %6179 = vmatpush1.bf16.msra.mxu0 0
      %6180 = vmatprep.subr.bf16.mxu0 0
      %6181 = vmatpush1.bf16.msra.mxu0 0
      %6182 = vmatprep.subr.bf16.mxu0 0
      %6183 = vmatpush1.bf16.msra.mxu0 0
      %6184 = vmatprep.subr.bf16.mxu0 0
      %6185 = vmatpush1.bf16.msra.mxu0 0
      %6186 = vmatprep.subr.bf16.mxu0 0
      %6187 = vmatpush1.bf16.msra.mxu0 0
      %6188 = vmatprep.subr.bf16.mxu0 0
      %6189 = vmatpush1.bf16.msra.mxu0 0
      %6190 = vmatprep.subr.bf16.mxu0 0
      %6191 = vmatpush1.bf16.msra.mxu0 0
      %6192 = vmatprep.subr.bf16.mxu0 0
      %6193 = vmatpush1.bf16.msra.mxu0 0
      %6194 = vmatprep.subr.bf16.mxu0 0
      %6195 = vmatpush1.bf16.msra.mxu0 0
      %6196 = vmatprep.subr.bf16.mxu0 0
      %6197 = vmatpush1.bf16.msra.mxu0 0
      %6198 = vmatprep.subr.bf16.mxu0 0
      %6199 = vmatpush1.bf16.msra.mxu0 0
      %6200 = vmatprep.subr.bf16.mxu0 0
      %6201 = vmatpush1.bf16.msra.mxu0 0
      %6202 = vmatprep.mubr.bf16.mxu0 0
      %6203 = vmatmul.mubr.bf16.gmra.mrb[0].mxu0 %v5545
      %v6204 = vpop.f32.mrb[0].mxu0
      %v6205 = vadd.f32 0.0, %v6204
      %v6206 = vpop.f32.mrb[0].mxu0
      %v6207 = vpop.f32.mrb[0].mxu0
      %v6208 = vadd.f32 0.0, %v6207
      %v6209 = vpop.f32.mrb[0].mxu0
      %6210 = vmatprep.mubr.bf16.mxu0 0
      %6211 = vmatmul.mubr.bf16.gmra.mrb[0].mxu0 %v5548
      %v6212 = vpop.f32.mrb[0].mxu0
      %v6213 = vadd.f32 0.0, %v6212
      %v6214 = vpop.f32.mrb[0].mxu0
      %v6215 = vpop.f32.mrb[0].mxu0
      %v6216 = vadd.f32 0.0, %v6215
      %v6217 = vpop.f32.mrb[0].mxu0
      %6218 = vmatprep.mubr.bf16.mxu0 0
      %6219 = vmatmul.mubr.bf16.gmra.mrb[0].mxu0 %v5551
      %v6220 = vpop.f32.mrb[0].mxu0
      %v6221 = vadd.f32 0.0, %v6220
      %v6222 = vpop.f32.mrb[0].mxu0
      %v6223 = vpop.f32.mrb[0].mxu0
      %v6224 = vpop.f32.mrb[0].mxu0
      %6225 = vdwg.mxu0
      %v6226 = vadd.f32 %v6165, %v6205
      %v6227 = vadd.f32 %v6166, %v6208
      %v6228 = vadd.f32 %v6167, %v6213
      %v6229 = vadd.f32 %v6168, %v6216
      %v6230 = vadd.f32 %v6169, %v6221
      %v6236 = vunpack.c.l.b16 %v418
      %v6237 = vunpack.c.l.b16 %v419
      %v6238 = vunpack.c.l.b16 %v420
      %v6239 = vunpack.c.l.b16 %v421
      %v6240 = vunpack.c.l.b16 %v422
      %v6241 = vpack.c.b16 %v6237, %v6236
      %v6242 = vpack.c.b16 %v6239, %v6238
      %v6243 = vpack.c.b16 %v6240, %v6240
      %v6245 = vsel %vm475, %v6241, 0
      %v6248 = vsel %vm475, %v6242, 0
      %v6251 = vsel %vm475, %v6243, 0
      %6253 = vmatprep.subr.bf16.mxu0 0
      %6254 = vmatpush1.bf16.msra.mxu0 %v1175
      %6255 = vmatprep.subr.bf16.mxu0 0
      %6256 = vmatpush1.bf16.msra.mxu0 0
      %6257 = vmatprep.subr.bf16.mxu0 0
      %6258 = vmatpush1.bf16.msra.mxu0 0
      %6259 = vmatprep.subr.bf16.mxu0 0
      %6260 = vmatpush1.bf16.msra.mxu0 0
      %6261 = vmatprep.subr.bf16.mxu0 0
      %6262 = vmatpush1.bf16.msra.mxu0 0
      %6263 = vmatprep.subr.bf16.mxu0 0
      %6264 = vmatpush1.bf16.msra.mxu0 0
      %6265 = vmatprep.subr.bf16.mxu0 0
      %6266 = vmatpush1.bf16.msra.mxu0 0
      %6267 = vmatprep.subr.bf16.mxu0 0
      %6268 = vmatpush1.bf16.msra.mxu0 0
      %6269 = vmatprep.subr.bf16.mxu0 0
      %6270 = vmatpush1.bf16.msra.mxu0 0
      %6271 = vmatprep.subr.bf16.mxu0 0
      %6272 = vmatpush1.bf16.msra.mxu0 0
      %6273 = vmatprep.subr.bf16.mxu0 0
      %6274 = vmatpush1.bf16.msra.mxu0 0
      %6275 = vmatprep.subr.bf16.mxu0 0
      %6276 = vmatpush1.bf16.msra.mxu0 0
      %6277 = vmatprep.subr.bf16.mxu0 0
      %6278 = vmatpush1.bf16.msra.mxu0 0
      %6279 = vmatprep.subr.bf16.mxu0 0
      %6280 = vmatpush1.bf16.msra.mxu0 0
      %6281 = vmatprep.subr.bf16.mxu0 0
      %6282 = vmatpush1.bf16.msra.mxu0 0
      %6283 = vmatprep.subr.bf16.mxu0 0
      %6284 = vmatpush1.bf16.msra.mxu0 0
      %6285 = vmatprep.mubr.bf16.mxu0 0
      %6286 = vmatmul.mubr.bf16.gmra.mrb[0].mxu0 %v6245
      %v6287 = vpop.f32.mrb[0].mxu0
      %v6288 = vadd.f32 0.0, %v6287
      %v6289 = vpop.f32.mrb[0].mxu0
      %v6290 = vpop.f32.mrb[0].mxu0
      %v6291 = vadd.f32 0.0, %v6290
      %v6292 = vpop.f32.mrb[0].mxu0
      %6293 = vmatprep.mubr.bf16.mxu0 0
      %6294 = vmatmul.mubr.bf16.gmra.mrb[0].mxu0 %v6248
      %v6295 = vpop.f32.mrb[0].mxu0
      %v6296 = vadd.f32 0.0, %v6295
      %v6297 = vpop.f32.mrb[0].mxu0
      %v6298 = vpop.f32.mrb[0].mxu0
      %v6299 = vadd.f32 0.0, %v6298
      %v6300 = vpop.f32.mrb[0].mxu0
      %6301 = vmatprep.mubr.bf16.mxu0 0
      %6302 = vmatmul.mubr.bf16.gmra.mrb[0].mxu0 %v6251
      %v6303 = vpop.f32.mrb[0].mxu0
      %v6304 = vadd.f32 0.0, %v6303
      %v6305 = vpop.f32.mrb[0].mxu0
      %v6306 = vpop.f32.mrb[0].mxu0
      %v6307 = vpop.f32.mrb[0].mxu0
      %6308 = vdwg.mxu0
      %v6309 = vadd.f32 %v6226, %v6288
      %v6310 = vadd.f32 %v6227, %v6291
      %v6311 = vadd.f32 %v6228, %v6296
      %v6312 = vadd.f32 %v6229, %v6299
      %v6313 = vadd.f32 %v6230, %v6304
      %vm6314 = vcmp.ge.f32.partialorder %v6309, 0.0
      %vm6315 = vcmp.ge.f32.partialorder %v6310, 0.0
      %vm6316 = vcmp.ge.f32.partialorder %v6311, 0.0
      %vm6317 = vcmp.ge.f32.partialorder %v6312, 0.0
      %vm6318 = vcmp.ge.f32.partialorder %v6313, 0.0
      %v6319 = vmul.f32 %v6309, 0.01
      %v6320 = vmul.f32 %v6310, 0.01
      %v6321 = vmul.f32 %v6311, 0.01
      %v6322 = vmul.f32 %v6312, 0.01
      %v6323 = vmul.f32 %v6313, 0.01
      %v6324 = vsel %vm6314, %v6309, %v6319
      %v6325 = vsel %vm6315, %v6310, %v6320
      %v6326 = vsel %vm6316, %v6311, %v6321
      %v6327 = vsel %vm6317, %v6312, %v6322
      %v6328 = vsel %vm6318, %v6313, %v6323
      %s6329 = scalar_lea.vmem %s1, 280
      %v6330 = vld [vmem:[%s6329] sm:$0xff]
      %v6331 = vld [vmem:[%s6329 + $0x8] sm:$0xff]
      %v6332 = vld [vmem:[%s6329 + $0x10] sm:$0xff]
      %v6333 = vld [vmem:[%s6329 + $0x18] sm:$0xff]
      %v6334 = vld [vmem:[%s6329 + $0x20] sm:$0xf]
      %6336 = vset.pattern.permute.xlu0 0
      %6337 = vperm.xlu0 %6336, %v6330
      %v6338 = vpop.permute.xlu0 %6337
      %6341 = vset.pattern.permute.xlu0 0
      %6342 = vperm.xlu0 %6341, %v6331
      %v6343 = vpop.permute.xlu0 %6342
      %6346 = vset.pattern.permute.xlu0 0
      %6347 = vperm.xlu0 %6346, %v6332
      %v6348 = vpop.permute.xlu0 %6347
      %6351 = vset.pattern.permute.xlu0 0
      %6352 = vperm.xlu0 %6351, %v6333
      %v6353 = vpop.permute.xlu0 %6352
      %6356 = vset.pattern.permute.xlu0 0
      %6357 = vperm.xlu0 %6356, %v6334
      %v6358 = vpop.permute.xlu0 %6357
      %v6360 = vmul.f32 %v6324, %v6338
      %v6361 = vmul.f32 %v6325, %v6343
      %v6362 = vmul.f32 %v6326, %v6348
      %v6363 = vmul.f32 %v6327, %v6353
      %v6364 = vmul.f32 %v6328, %v6358
      %v6365 = vpack.c.bf16 %v6361, %v6360
      %v6366 = vpack.c.bf16 %v6363, %v6362
      %v6367 = vpack.c.bf16 %v6364, %v6364
      %s6368 = scalar_lea.vmem %s4, 28
      %v6369 = vld [vmem:[%s6368] sm:$0xf]
      %v6371 = vsel %vm1292, %v6365, 0
      %v6374 = vsel %vm1292, %v6366, 0
      %v6377 = vsel %vm1292, %v6367, 0
      %v6380 = vsel %vm1302, %v6369, 0
      %6382 = vmatprep.subr.bf16.mxu0 0
      %6383 = vmatpush1.bf16.msra.mxu0 %v6380
      %6384 = vmatprep.subr.bf16.mxu0 0
      %6385 = vmatpush1.bf16.msra.mxu0 0
      %6386 = vmatprep.subr.bf16.mxu0 0
      %6387 = vmatpush1.bf16.msra.mxu0 0
      %6388 = vmatprep.subr.bf16.mxu0 0
      %6389 = vmatpush1.bf16.msra.mxu0 0
      %6390 = vmatprep.subr.bf16.mxu0 0
      %6391 = vmatpush1.bf16.msra.mxu0 0
      %6392 = vmatprep.subr.bf16.mxu0 0
      %6393 = vmatpush1.bf16.msra.mxu0 0
      %6394 = vmatprep.subr.bf16.mxu0 0
      %6395 = vmatpush1.bf16.msra.mxu0 0
      %6396 = vmatprep.subr.bf16.mxu0 0
      %6397 = vmatpush1.bf16.msra.mxu0 0
      %6398 = vmatprep.subr.bf16.mxu0 0
      %6399 = vmatpush1.bf16.msra.mxu0 0
      %6400 = vmatprep.subr.bf16.mxu0 0
      %6401 = vmatpush1.bf16.msra.mxu0 0
      %6402 = vmatprep.subr.bf16.mxu0 0
      %6403 = vmatpush1.bf16.msra.mxu0 0
      %6404 = vmatprep.subr.bf16.mxu0 0
      %6405 = vmatpush1.bf16.msra.mxu0 0
      %6406 = vmatprep.subr.bf16.mxu0 0
      %6407 = vmatpush1.bf16.msra.mxu0 0
      %6408 = vmatprep.subr.bf16.mxu0 0
      %6409 = vmatpush1.bf16.msra.mxu0 0
      %6410 = vmatprep.subr.bf16.mxu0 0
      %6411 = vmatpush1.bf16.msra.mxu0 0
      %6412 = vmatprep.subr.bf16.mxu0 0
      %6413 = vmatpush1.bf16.msra.mxu0 0
      %6414 = vmatprep.mubr.bf16.mxu0 0
      %6415 = vmatmul.mubr.bf16.gmra.mrb[0].mxu0 %v6371
      %v6416 = vpop.f32.mrb[0].mxu0
      %v6417 = vadd.f32 0.0, %v6416
      %v6418 = vpop.f32.mrb[0].mxu0
      %v6419 = vpop.f32.mrb[0].mxu0
      %v6420 = vadd.f32 0.0, %v6419
      %v6421 = vpop.f32.mrb[0].mxu0
      %6422 = vmatprep.mubr.bf16.mxu0 0
      %6423 = vmatmul.mubr.bf16.gmra.mrb[0].mxu0 %v6374
      %v6424 = vpop.f32.mrb[0].mxu0
      %v6425 = vadd.f32 0.0, %v6424
      %v6426 = vpop.f32.mrb[0].mxu0
      %v6427 = vpop.f32.mrb[0].mxu0
      %v6428 = vadd.f32 0.0, %v6427
      %v6429 = vpop.f32.mrb[0].mxu0
      %6430 = vmatprep.mubr.bf16.mxu0 0
      %6431 = vmatmul.mubr.bf16.gmra.mrb[0].mxu0 %v6377
      %v6432 = vpop.f32.mrb[0].mxu0
      %v6433 = vadd.f32 0.0, %v6432
      %v6434 = vpop.f32.mrb[0].mxu0
      %v6435 = vpop.f32.mrb[0].mxu0
      %v6436 = vpop.f32.mrb[0].mxu0
      %6437 = vdwg.mxu0
      %v6438 = vadd.f32 %v5738, %v6417
      %v6439 = vadd.f32 %v5739, %v6420
      %v6440 = vadd.f32 %v5740, %v6425
      %v6441 = vadd.f32 %v5741, %v6428
      %v6442 = vadd.f32 %v5742, %v6433
      %6443 = vmatprep.subr.bf16.mxu0 0
      %6444 = vmatpush1.bf16.msra.mxu0 %v487
      %6445 = vmatprep.subr.bf16.mxu0 0
      %6446 = vmatpush1.bf16.msra.mxu0 0
      %6447 = vmatprep.subr.bf16.mxu0 0
      %6448 = vmatpush1.bf16.msra.mxu0 0
      %6449 = vmatprep.subr.bf16.mxu0 0
      %6450 = vmatpush1.bf16.msra.mxu0 0
      %6451 = vmatprep.subr.bf16.mxu0 0
      %6452 = vmatpush1.bf16.msra.mxu0 0
      %6453 = vmatprep.subr.bf16.mxu0 0
      %6454 = vmatpush1.bf16.msra.mxu0 0
      %6455 = vmatprep.subr.bf16.mxu0 0
      %6456 = vmatpush1.bf16.msra.mxu0 0
      %6457 = vmatprep.subr.bf16.mxu0 0
      %6458 = vmatpush1.bf16.msra.mxu0 0
      %6459 = vmatprep.subr.bf16.mxu0 0
      %6460 = vmatpush1.bf16.msra.mxu0 0
      %6461 = vmatprep.subr.bf16.mxu0 0
      %6462 = vmatpush1.bf16.msra.mxu0 0
      %6463 = vmatprep.subr.bf16.mxu0 0
      %6464 = vmatpush1.bf16.msra.mxu0 0
      %6465 = vmatprep.subr.bf16.mxu0 0
      %6466 = vmatpush1.bf16.msra.mxu0 0
      %6467 = vmatprep.subr.bf16.mxu0 0
      %6468 = vmatpush1.bf16.msra.mxu0 0
      %6469 = vmatprep.subr.bf16.mxu0 0
      %6470 = vmatpush1.bf16.msra.mxu0 0
      %6471 = vmatprep.subr.bf16.mxu0 0
      %6472 = vmatpush1.bf16.msra.mxu0 0
      %6473 = vmatprep.subr.bf16.mxu0 0
      %6474 = vmatpush1.bf16.msra.mxu0 0
      %6475 = vmatprep.mubr.bf16.mxu0 0
      %6476 = vmatmul.mubr.bf16.gmra.mrb[0].mxu0 %v1166
      %v6477 = vpop.f32.mrb[0].mxu0
      %v6478 = vadd.f32 0.0, %v6477
      %v6479 = vpop.f32.mrb[0].mxu0
      %v6480 = vpop.f32.mrb[0].mxu0
      %v6481 = vadd.f32 0.0, %v6480
      %v6482 = vpop.f32.mrb[0].mxu0
      %6483 = vmatprep.mubr.bf16.mxu0 0
      %6484 = vmatmul.mubr.bf16.gmra.mrb[0].mxu0 %v1169
      %v6485 = vpop.f32.mrb[0].mxu0
      %v6486 = vadd.f32 0.0, %v6485
      %v6487 = vpop.f32.mrb[0].mxu0
      %v6488 = vpop.f32.mrb[0].mxu0
      %v6489 = vadd.f32 0.0, %v6488
      %v6490 = vpop.f32.mrb[0].mxu0
      %6491 = vmatprep.mubr.bf16.mxu0 0
      %6492 = vmatmul.mubr.bf16.gmra.mrb[0].mxu0 %v1172
      %v6493 = vpop.f32.mrb[0].mxu0
      %v6494 = vadd.f32 0.0, %v6493
      %v6495 = vpop.f32.mrb[0].mxu0
      %v6496 = vpop.f32.mrb[0].mxu0
      %v6497 = vpop.f32.mrb[0].mxu0
      %6498 = vdwg.mxu0
      %v6499 = vadd.f32 %v461, %v6478
      %v6500 = vadd.f32 %v461, %v6481
      %v6501 = vadd.f32 %v461, %v6486
      %v6502 = vadd.f32 %v461, %v6489
      %v6503 = vadd.f32 %v461, %v6494
      %6504 = vmatprep.subr.bf16.mxu0 0
      %6505 = vmatpush1.bf16.msra.mxu0 %v573
      %6506 = vmatprep.subr.bf16.mxu0 0
      %6507 = vmatpush1.bf16.msra.mxu0 0
      %6508 = vmatprep.subr.bf16.mxu0 0
      %6509 = vmatpush1.bf16.msra.mxu0 0
      %6510 = vmatprep.subr.bf16.mxu0 0
      %6511 = vmatpush1.bf16.msra.mxu0 0
      %6512 = vmatprep.subr.bf16.mxu0 0
      %6513 = vmatpush1.bf16.msra.mxu0 0
      %6514 = vmatprep.subr.bf16.mxu0 0
      %6515 = vmatpush1.bf16.msra.mxu0 0
      %6516 = vmatprep.subr.bf16.mxu0 0
      %6517 = vmatpush1.bf16.msra.mxu0 0
      %6518 = vmatprep.subr.bf16.mxu0 0
      %6519 = vmatpush1.bf16.msra.mxu0 0
      %6520 = vmatprep.subr.bf16.mxu0 0
      %6521 = vmatpush1.bf16.msra.mxu0 0
      %6522 = vmatprep.subr.bf16.mxu0 0
      %6523 = vmatpush1.bf16.msra.mxu0 0
      %6524 = vmatprep.subr.bf16.mxu0 0
      %6525 = vmatpush1.bf16.msra.mxu0 0
      %6526 = vmatprep.subr.bf16.mxu0 0
      %6527 = vmatpush1.bf16.msra.mxu0 0
      %6528 = vmatprep.subr.bf16.mxu0 0
      %6529 = vmatpush1.bf16.msra.mxu0 0
      %6530 = vmatprep.subr.bf16.mxu0 0
      %6531 = vmatpush1.bf16.msra.mxu0 0
      %6532 = vmatprep.subr.bf16.mxu0 0
      %6533 = vmatpush1.bf16.msra.mxu0 0
      %6534 = vmatprep.subr.bf16.mxu0 0
      %6535 = vmatpush1.bf16.msra.mxu0 0
      %6536 = vmatprep.mubr.bf16.mxu0 0
      %6537 = vmatmul.mubr.bf16.gmra.mrb[0].mxu0 %v1913
      %v6538 = vpop.f32.mrb[0].mxu0
      %v6539 = vadd.f32 0.0, %v6538
      %v6540 = vpop.f32.mrb[0].mxu0
      %v6541 = vpop.f32.mrb[0].mxu0
      %v6542 = vadd.f32 0.0, %v6541
      %v6543 = vpop.f32.mrb[0].mxu0
      %6544 = vmatprep.mubr.bf16.mxu0 0
      %6545 = vmatmul.mubr.bf16.gmra.mrb[0].mxu0 %v1916
      %v6546 = vpop.f32.mrb[0].mxu0
      %v6547 = vadd.f32 0.0, %v6546
      %v6548 = vpop.f32.mrb[0].mxu0
      %v6549 = vpop.f32.mrb[0].mxu0
      %v6550 = vadd.f32 0.0, %v6549
      %v6551 = vpop.f32.mrb[0].mxu0
      %6552 = vmatprep.mubr.bf16.mxu0 0
      %6553 = vmatmul.mubr.bf16.gmra.mrb[0].mxu0 %v1919
      %v6554 = vpop.f32.mrb[0].mxu0
      %v6555 = vadd.f32 0.0, %v6554
      %v6556 = vpop.f32.mrb[0].mxu0
      %v6557 = vpop.f32.mrb[0].mxu0
      %v6558 = vpop.f32.mrb[0].mxu0
      %6559 = vdwg.mxu0
      %v6560 = vadd.f32 %v6499, %v6539
      %v6561 = vadd.f32 %v6500, %v6542
      %v6562 = vadd.f32 %v6501, %v6547
      %v6563 = vadd.f32 %v6502, %v6550
      %v6564 = vadd.f32 %v6503, %v6555
      %6565 = vmatprep.subr.bf16.mxu0 0
      %6566 = vmatpush1.bf16.msra.mxu0 %v659
      %6567 = vmatprep.subr.bf16.mxu0 0
      %6568 = vmatpush1.bf16.msra.mxu0 0
      %6569 = vmatprep.subr.bf16.mxu0 0
      %6570 = vmatpush1.bf16.msra.mxu0 0
      %6571 = vmatprep.subr.bf16.mxu0 0
      %6572 = vmatpush1.bf16.msra.mxu0 0
      %6573 = vmatprep.subr.bf16.mxu0 0
      %6574 = vmatpush1.bf16.msra.mxu0 0
      %6575 = vmatprep.subr.bf16.mxu0 0
      %6576 = vmatpush1.bf16.msra.mxu0 0
      %6577 = vmatprep.subr.bf16.mxu0 0
      %6578 = vmatpush1.bf16.msra.mxu0 0
      %6579 = vmatprep.subr.bf16.mxu0 0
      %6580 = vmatpush1.bf16.msra.mxu0 0
      %6581 = vmatprep.subr.bf16.mxu0 0
      %6582 = vmatpush1.bf16.msra.mxu0 0
      %6583 = vmatprep.subr.bf16.mxu0 0
      %6584 = vmatpush1.bf16.msra.mxu0 0
      %6585 = vmatprep.subr.bf16.mxu0 0
      %6586 = vmatpush1.bf16.msra.mxu0 0
      %6587 = vmatprep.subr.bf16.mxu0 0
      %6588 = vmatpush1.bf16.msra.mxu0 0
      %6589 = vmatprep.subr.bf16.mxu0 0
      %6590 = vmatpush1.bf16.msra.mxu0 0
      %6591 = vmatprep.subr.bf16.mxu0 0
      %6592 = vmatpush1.bf16.msra.mxu0 0
      %6593 = vmatprep.subr.bf16.mxu0 0
      %6594 = vmatpush1.bf16.msra.mxu0 0
      %6595 = vmatprep.subr.bf16.mxu0 0
      %6596 = vmatpush1.bf16.msra.mxu0 0
      %6597 = vmatprep.mubr.bf16.mxu0 0
      %6598 = vmatmul.mubr.bf16.gmra.mrb[0].mxu0 %v2657
      %v6599 = vpop.f32.mrb[0].mxu0
      %v6600 = vadd.f32 0.0, %v6599
      %v6601 = vpop.f32.mrb[0].mxu0
      %v6602 = vpop.f32.mrb[0].mxu0
      %v6603 = vadd.f32 0.0, %v6602
      %v6604 = vpop.f32.mrb[0].mxu0
      %6605 = vmatprep.mubr.bf16.mxu0 0
      %6606 = vmatmul.mubr.bf16.gmra.mrb[0].mxu0 %v2660
      %v6607 = vpop.f32.mrb[0].mxu0
      %v6608 = vadd.f32 0.0, %v6607
      %v6609 = vpop.f32.mrb[0].mxu0
      %v6610 = vpop.f32.mrb[0].mxu0
      %v6611 = vadd.f32 0.0, %v6610
      %v6612 = vpop.f32.mrb[0].mxu0
      %6613 = vmatprep.mubr.bf16.mxu0 0
      %6614 = vmatmul.mubr.bf16.gmra.mrb[0].mxu0 %v2663
      %v6615 = vpop.f32.mrb[0].mxu0
      %v6616 = vadd.f32 0.0, %v6615
      %v6617 = vpop.f32.mrb[0].mxu0
      %v6618 = vpop.f32.mrb[0].mxu0
      %v6619 = vpop.f32.mrb[0].mxu0
      %6620 = vdwg.mxu0
      %v6621 = vadd.f32 %v6560, %v6600
      %v6622 = vadd.f32 %v6561, %v6603
      %v6623 = vadd.f32 %v6562, %v6608
      %v6624 = vadd.f32 %v6563, %v6611
      %v6625 = vadd.f32 %v6564, %v6616
      %6626 = vmatprep.subr.bf16.mxu0 0
      %6627 = vmatpush1.bf16.msra.mxu0 %v745
      %6628 = vmatprep.subr.bf16.mxu0 0
      %6629 = vmatpush1.bf16.msra.mxu0 0
      %6630 = vmatprep.subr.bf16.mxu0 0
      %6631 = vmatpush1.bf16.msra.mxu0 0
      %6632 = vmatprep.subr.bf16.mxu0 0
      %6633 = vmatpush1.bf16.msra.mxu0 0
      %6634 = vmatprep.subr.bf16.mxu0 0
      %6635 = vmatpush1.bf16.msra.mxu0 0
      %6636 = vmatprep.subr.bf16.mxu0 0
      %6637 = vmatpush1.bf16.msra.mxu0 0
      %6638 = vmatprep.subr.bf16.mxu0 0
      %6639 = vmatpush1.bf16.msra.mxu0 0
      %6640 = vmatprep.subr.bf16.mxu0 0
      %6641 = vmatpush1.bf16.msra.mxu0 0
      %6642 = vmatprep.subr.bf16.mxu0 0
      %6643 = vmatpush1.bf16.msra.mxu0 0
      %6644 = vmatprep.subr.bf16.mxu0 0
      %6645 = vmatpush1.bf16.msra.mxu0 0
      %6646 = vmatprep.subr.bf16.mxu0 0
      %6647 = vmatpush1.bf16.msra.mxu0 0
      %6648 = vmatprep.subr.bf16.mxu0 0
      %6649 = vmatpush1.bf16.msra.mxu0 0
      %6650 = vmatprep.subr.bf16.mxu0 0
      %6651 = vmatpush1.bf16.msra.mxu0 0
      %6652 = vmatprep.subr.bf16.mxu0 0
      %6653 = vmatpush1.bf16.msra.mxu0 0
      %6654 = vmatprep.subr.bf16.mxu0 0
      %6655 = vmatpush1.bf16.msra.mxu0 0
      %6656 = vmatprep.subr.bf16.mxu0 0
      %6657 = vmatpush1.bf16.msra.mxu0 0
      %6658 = vmatprep.mubr.bf16.mxu0 0
      %6659 = vmatmul.mubr.bf16.gmra.mrb[0].mxu0 %v3401
      %v6660 = vpop.f32.mrb[0].mxu0
      %v6661 = vadd.f32 0.0, %v6660
      %v6662 = vpop.f32.mrb[0].mxu0
      %v6663 = vpop.f32.mrb[0].mxu0
      %v6664 = vadd.f32 0.0, %v6663
      %v6665 = vpop.f32.mrb[0].mxu0
      %6666 = vmatprep.mubr.bf16.mxu0 0
      %6667 = vmatmul.mubr.bf16.gmra.mrb[0].mxu0 %v3404
      %v6668 = vpop.f32.mrb[0].mxu0
      %v6669 = vadd.f32 0.0, %v6668
      %v6670 = vpop.f32.mrb[0].mxu0
      %v6671 = vpop.f32.mrb[0].mxu0
      %v6672 = vadd.f32 0.0, %v6671
      %v6673 = vpop.f32.mrb[0].mxu0
      %6674 = vmatprep.mubr.bf16.mxu0 0
      %6675 = vmatmul.mubr.bf16.gmra.mrb[0].mxu0 %v3407
      %v6676 = vpop.f32.mrb[0].mxu0
      %v6677 = vadd.f32 0.0, %v6676
      %v6678 = vpop.f32.mrb[0].mxu0
      %v6679 = vpop.f32.mrb[0].mxu0
      %v6680 = vpop.f32.mrb[0].mxu0
      %6681 = vdwg.mxu0
      %v6682 = vadd.f32 %v6621, %v6661
      %v6683 = vadd.f32 %v6622, %v6664
      %v6684 = vadd.f32 %v6623, %v6669
      %v6685 = vadd.f32 %v6624, %v6672
      %v6686 = vadd.f32 %v6625, %v6677
      %6687 = vmatprep.subr.bf16.mxu0 0
      %6688 = vmatpush1.bf16.msra.mxu0 %v831
      %6689 = vmatprep.subr.bf16.mxu0 0
      %6690 = vmatpush1.bf16.msra.mxu0 0
      %6691 = vmatprep.subr.bf16.mxu0 0
      %6692 = vmatpush1.bf16.msra.mxu0 0
      %6693 = vmatprep.subr.bf16.mxu0 0
      %6694 = vmatpush1.bf16.msra.mxu0 0
      %6695 = vmatprep.subr.bf16.mxu0 0
      %6696 = vmatpush1.bf16.msra.mxu0 0
      %6697 = vmatprep.subr.bf16.mxu0 0
      %6698 = vmatpush1.bf16.msra.mxu0 0
      %6699 = vmatprep.subr.bf16.mxu0 0
      %6700 = vmatpush1.bf16.msra.mxu0 0
      %6701 = vmatprep.subr.bf16.mxu0 0
      %6702 = vmatpush1.bf16.msra.mxu0 0
      %6703 = vmatprep.subr.bf16.mxu0 0
      %6704 = vmatpush1.bf16.msra.mxu0 0
      %6705 = vmatprep.subr.bf16.mxu0 0
      %6706 = vmatpush1.bf16.msra.mxu0 0
      %6707 = vmatprep.subr.bf16.mxu0 0
      %6708 = vmatpush1.bf16.msra.mxu0 0
      %6709 = vmatprep.subr.bf16.mxu0 0
      %6710 = vmatpush1.bf16.msra.mxu0 0
      %6711 = vmatprep.subr.bf16.mxu0 0
      %6712 = vmatpush1.bf16.msra.mxu0 0
      %6713 = vmatprep.subr.bf16.mxu0 0
      %6714 = vmatpush1.bf16.msra.mxu0 0
      %6715 = vmatprep.subr.bf16.mxu0 0
      %6716 = vmatpush1.bf16.msra.mxu0 0
      %6717 = vmatprep.subr.bf16.mxu0 0
      %6718 = vmatpush1.bf16.msra.mxu0 0
      %6719 = vmatprep.mubr.bf16.mxu0 0
      %6720 = vmatmul.mubr.bf16.gmra.mrb[0].mxu0 %v4101
      %v6721 = vpop.f32.mrb[0].mxu0
      %v6722 = vadd.f32 0.0, %v6721
      %v6723 = vpop.f32.mrb[0].mxu0
      %v6724 = vpop.f32.mrb[0].mxu0
      %v6725 = vadd.f32 0.0, %v6724
      %v6726 = vpop.f32.mrb[0].mxu0
      %6727 = vmatprep.mubr.bf16.mxu0 0
      %6728 = vmatmul.mubr.bf16.gmra.mrb[0].mxu0 %v4104
      %v6729 = vpop.f32.mrb[0].mxu0
      %v6730 = vadd.f32 0.0, %v6729
      %v6731 = vpop.f32.mrb[0].mxu0
      %v6732 = vpop.f32.mrb[0].mxu0
      %v6733 = vadd.f32 0.0, %v6732
      %v6734 = vpop.f32.mrb[0].mxu0
      %6735 = vmatprep.mubr.bf16.mxu0 0
      %6736 = vmatmul.mubr.bf16.gmra.mrb[0].mxu0 %v4107
      %v6737 = vpop.f32.mrb[0].mxu0
      %v6738 = vadd.f32 0.0, %v6737
      %v6739 = vpop.f32.mrb[0].mxu0
      %v6740 = vpop.f32.mrb[0].mxu0
      %v6741 = vpop.f32.mrb[0].mxu0
      %6742 = vdwg.mxu0
      %v6743 = vadd.f32 %v6682, %v6722
      %v6744 = vadd.f32 %v6683, %v6725
      %v6745 = vadd.f32 %v6684, %v6730
      %v6746 = vadd.f32 %v6685, %v6733
      %v6747 = vadd.f32 %v6686, %v6738
      %6748 = vmatprep.subr.bf16.mxu0 0
      %6749 = vmatpush1.bf16.msra.mxu0 %v917
      %6750 = vmatprep.subr.bf16.mxu0 0
      %6751 = vmatpush1.bf16.msra.mxu0 0
      %6752 = vmatprep.subr.bf16.mxu0 0
      %6753 = vmatpush1.bf16.msra.mxu0 0
      %6754 = vmatprep.subr.bf16.mxu0 0
      %6755 = vmatpush1.bf16.msra.mxu0 0
      %6756 = vmatprep.subr.bf16.mxu0 0
      %6757 = vmatpush1.bf16.msra.mxu0 0
      %6758 = vmatprep.subr.bf16.mxu0 0
      %6759 = vmatpush1.bf16.msra.mxu0 0
      %6760 = vmatprep.subr.bf16.mxu0 0
      %6761 = vmatpush1.bf16.msra.mxu0 0
      %6762 = vmatprep.subr.bf16.mxu0 0
      %6763 = vmatpush1.bf16.msra.mxu0 0
      %6764 = vmatprep.subr.bf16.mxu0 0
      %6765 = vmatpush1.bf16.msra.mxu0 0
      %6766 = vmatprep.subr.bf16.mxu0 0
      %6767 = vmatpush1.bf16.msra.mxu0 0
      %6768 = vmatprep.subr.bf16.mxu0 0
      %6769 = vmatpush1.bf16.msra.mxu0 0
      %6770 = vmatprep.subr.bf16.mxu0 0
      %6771 = vmatpush1.bf16.msra.mxu0 0
      %6772 = vmatprep.subr.bf16.mxu0 0
      %6773 = vmatpush1.bf16.msra.mxu0 0
      %6774 = vmatprep.subr.bf16.mxu0 0
      %6775 = vmatpush1.bf16.msra.mxu0 0
      %6776 = vmatprep.subr.bf16.mxu0 0
      %6777 = vmatpush1.bf16.msra.mxu0 0
      %6778 = vmatprep.subr.bf16.mxu0 0
      %6779 = vmatpush1.bf16.msra.mxu0 0
      %6780 = vmatprep.mubr.bf16.mxu0 0
      %6781 = vmatmul.mubr.bf16.gmra.mrb[0].mxu0 %v4801
      %v6782 = vpop.f32.mrb[0].mxu0
      %v6783 = vadd.f32 0.0, %v6782
      %v6784 = vpop.f32.mrb[0].mxu0
      %v6785 = vpop.f32.mrb[0].mxu0
      %v6786 = vadd.f32 0.0, %v6785
      %v6787 = vpop.f32.mrb[0].mxu0
      %6788 = vmatprep.mubr.bf16.mxu0 0
      %6789 = vmatmul.mubr.bf16.gmra.mrb[0].mxu0 %v4804
      %v6790 = vpop.f32.mrb[0].mxu0
      %v6791 = vadd.f32 0.0, %v6790
      %v6792 = vpop.f32.mrb[0].mxu0
      %v6793 = vpop.f32.mrb[0].mxu0
      %v6794 = vadd.f32 0.0, %v6793
      %v6795 = vpop.f32.mrb[0].mxu0
      %6796 = vmatprep.mubr.bf16.mxu0 0
      %6797 = vmatmul.mubr.bf16.gmra.mrb[0].mxu0 %v4807
      %v6798 = vpop.f32.mrb[0].mxu0
      %v6799 = vadd.f32 0.0, %v6798
      %v6800 = vpop.f32.mrb[0].mxu0
      %v6801 = vpop.f32.mrb[0].mxu0
      %v6802 = vpop.f32.mrb[0].mxu0
      %6803 = vdwg.mxu0
      %v6804 = vadd.f32 %v6743, %v6783
      %v6805 = vadd.f32 %v6744, %v6786
      %v6806 = vadd.f32 %v6745, %v6791
      %v6807 = vadd.f32 %v6746, %v6794
      %v6808 = vadd.f32 %v6747, %v6799
      %6809 = vmatprep.subr.bf16.mxu0 0
      %6810 = vmatpush1.bf16.msra.mxu0 %v1003
      %6811 = vmatprep.subr.bf16.mxu0 0
      %6812 = vmatpush1.bf16.msra.mxu0 0
      %6813 = vmatprep.subr.bf16.mxu0 0
      %6814 = vmatpush1.bf16.msra.mxu0 0
      %6815 = vmatprep.subr.bf16.mxu0 0
      %6816 = vmatpush1.bf16.msra.mxu0 0
      %6817 = vmatprep.subr.bf16.mxu0 0
      %6818 = vmatpush1.bf16.msra.mxu0 0
      %6819 = vmatprep.subr.bf16.mxu0 0
      %6820 = vmatpush1.bf16.msra.mxu0 0
      %6821 = vmatprep.subr.bf16.mxu0 0
      %6822 = vmatpush1.bf16.msra.mxu0 0
      %6823 = vmatprep.subr.bf16.mxu0 0
      %6824 = vmatpush1.bf16.msra.mxu0 0
      %6825 = vmatprep.subr.bf16.mxu0 0
      %6826 = vmatpush1.bf16.msra.mxu0 0
      %6827 = vmatprep.subr.bf16.mxu0 0
      %6828 = vmatpush1.bf16.msra.mxu0 0
      %6829 = vmatprep.subr.bf16.mxu0 0
      %6830 = vmatpush1.bf16.msra.mxu0 0
      %6831 = vmatprep.subr.bf16.mxu0 0
      %6832 = vmatpush1.bf16.msra.mxu0 0
      %6833 = vmatprep.subr.bf16.mxu0 0
      %6834 = vmatpush1.bf16.msra.mxu0 0
      %6835 = vmatprep.subr.bf16.mxu0 0
      %6836 = vmatpush1.bf16.msra.mxu0 0
      %6837 = vmatprep.subr.bf16.mxu0 0
      %6838 = vmatpush1.bf16.msra.mxu0 0
      %6839 = vmatprep.subr.bf16.mxu0 0
      %6840 = vmatpush1.bf16.msra.mxu0 0
      %6841 = vmatprep.mubr.bf16.mxu0 0
      %6842 = vmatmul.mubr.bf16.gmra.mrb[0].mxu0 %v5545
      %v6843 = vpop.f32.mrb[0].mxu0
      %v6844 = vadd.f32 0.0, %v6843
      %v6845 = vpop.f32.mrb[0].mxu0
      %v6846 = vpop.f32.mrb[0].mxu0
      %v6847 = vadd.f32 0.0, %v6846
      %v6848 = vpop.f32.mrb[0].mxu0
      %6849 = vmatprep.mubr.bf16.mxu0 0
      %6850 = vmatmul.mubr.bf16.gmra.mrb[0].mxu0 %v5548
      %v6851 = vpop.f32.mrb[0].mxu0
      %v6852 = vadd.f32 0.0, %v6851
      %v6853 = vpop.f32.mrb[0].mxu0
      %v6854 = vpop.f32.mrb[0].mxu0
      %v6855 = vadd.f32 0.0, %v6854
      %v6856 = vpop.f32.mrb[0].mxu0
      %6857 = vmatprep.mubr.bf16.mxu0 0
      %6858 = vmatmul.mubr.bf16.gmra.mrb[0].mxu0 %v5551
      %v6859 = vpop.f32.mrb[0].mxu0
      %v6860 = vadd.f32 0.0, %v6859
      %v6861 = vpop.f32.mrb[0].mxu0
      %v6862 = vpop.f32.mrb[0].mxu0
      %v6863 = vpop.f32.mrb[0].mxu0
      %6864 = vdwg.mxu0
      %v6865 = vadd.f32 %v6804, %v6844
      %v6866 = vadd.f32 %v6805, %v6847
      %v6867 = vadd.f32 %v6806, %v6852
      %v6868 = vadd.f32 %v6807, %v6855
      %v6869 = vadd.f32 %v6808, %v6860
      %6870 = vmatprep.subr.bf16.mxu0 0
      %6871 = vmatpush1.bf16.msra.mxu0 %v1089
      %6872 = vmatprep.subr.bf16.mxu0 0
      %6873 = vmatpush1.bf16.msra.mxu0 0
      %6874 = vmatprep.subr.bf16.mxu0 0
      %6875 = vmatpush1.bf16.msra.mxu0 0
      %6876 = vmatprep.subr.bf16.mxu0 0
      %6877 = vmatpush1.bf16.msra.mxu0 0
      %6878 = vmatprep.subr.bf16.mxu0 0
      %6879 = vmatpush1.bf16.msra.mxu0 0
      %6880 = vmatprep.subr.bf16.mxu0 0
      %6881 = vmatpush1.bf16.msra.mxu0 0
      %6882 = vmatprep.subr.bf16.mxu0 0
      %6883 = vmatpush1.bf16.msra.mxu0 0
      %6884 = vmatprep.subr.bf16.mxu0 0
      %6885 = vmatpush1.bf16.msra.mxu0 0
      %6886 = vmatprep.subr.bf16.mxu0 0
      %6887 = vmatpush1.bf16.msra.mxu0 0
      %6888 = vmatprep.subr.bf16.mxu0 0
      %6889 = vmatpush1.bf16.msra.mxu0 0
      %6890 = vmatprep.subr.bf16.mxu0 0
      %6891 = vmatpush1.bf16.msra.mxu0 0
      %6892 = vmatprep.subr.bf16.mxu0 0
      %6893 = vmatpush1.bf16.msra.mxu0 0
      %6894 = vmatprep.subr.bf16.mxu0 0
      %6895 = vmatpush1.bf16.msra.mxu0 0
      %6896 = vmatprep.subr.bf16.mxu0 0
      %6897 = vmatpush1.bf16.msra.mxu0 0
      %6898 = vmatprep.subr.bf16.mxu0 0
      %6899 = vmatpush1.bf16.msra.mxu0 0
      %6900 = vmatprep.subr.bf16.mxu0 0
      %6901 = vmatpush1.bf16.msra.mxu0 0
      %6902 = vmatprep.mubr.bf16.mxu0 0
      %6903 = vmatmul.mubr.bf16.gmra.mrb[0].mxu0 %v6245
      %v6904 = vpop.f32.mrb[0].mxu0
      %v6905 = vadd.f32 0.0, %v6904
      %v6906 = vpop.f32.mrb[0].mxu0
      %v6907 = vpop.f32.mrb[0].mxu0
      %v6908 = vadd.f32 0.0, %v6907
      %v6909 = vpop.f32.mrb[0].mxu0
      %6910 = vmatprep.mubr.bf16.mxu0 0
      %6911 = vmatmul.mubr.bf16.gmra.mrb[0].mxu0 %v6248
      %v6912 = vpop.f32.mrb[0].mxu0
      %v6913 = vadd.f32 0.0, %v6912
      %v6914 = vpop.f32.mrb[0].mxu0
      %v6915 = vpop.f32.mrb[0].mxu0
      %v6916 = vadd.f32 0.0, %v6915
      %v6917 = vpop.f32.mrb[0].mxu0
      %6918 = vmatprep.mubr.bf16.mxu0 0
      %6919 = vmatmul.mubr.bf16.gmra.mrb[0].mxu0 %v6251
      %v6920 = vpop.f32.mrb[0].mxu0
      %v6921 = vadd.f32 0.0, %v6920
      %v6922 = vpop.f32.mrb[0].mxu0
      %v6923 = vpop.f32.mrb[0].mxu0
      %v6924 = vpop.f32.mrb[0].mxu0
      %6925 = vdwg.mxu0
      %v6926 = vadd.f32 %v6865, %v6905
      %v6927 = vadd.f32 %v6866, %v6908
      %v6928 = vadd.f32 %v6867, %v6913
      %v6929 = vadd.f32 %v6868, %v6916
      %v6930 = vadd.f32 %v6869, %v6921
      %v6936 = vunpack.c.l.b16 %v424
      %v6937 = vunpack.c.l.b16 %v425
      %v6938 = vunpack.c.l.b16 %v426
      %v6939 = vunpack.c.l.b16 %v427
      %v6940 = vunpack.c.l.b16 %v428
      %v6941 = vpack.c.b16 %v6937, %v6936
      %v6942 = vpack.c.b16 %v6939, %v6938
      %v6943 = vpack.c.b16 %v6940, %v6940
      %v6945 = vsel %vm475, %v6941, 0
      %v6948 = vsel %vm475, %v6942, 0
      %v6951 = vsel %vm475, %v6943, 0
      %6953 = vmatprep.subr.bf16.mxu0 0
      %6954 = vmatpush1.bf16.msra.mxu0 %v1175
      %6955 = vmatprep.subr.bf16.mxu0 0
      %6956 = vmatpush1.bf16.msra.mxu0 0
      %6957 = vmatprep.subr.bf16.mxu0 0
      %6958 = vmatpush1.bf16.msra.mxu0 0
      %6959 = vmatprep.subr.bf16.mxu0 0
      %6960 = vmatpush1.bf16.msra.mxu0 0
      %6961 = vmatprep.subr.bf16.mxu0 0
      %6962 = vmatpush1.bf16.msra.mxu0 0
      %6963 = vmatprep.subr.bf16.mxu0 0
      %6964 = vmatpush1.bf16.msra.mxu0 0
      %6965 = vmatprep.subr.bf16.mxu0 0
      %6966 = vmatpush1.bf16.msra.mxu0 0
      %6967 = vmatprep.subr.bf16.mxu0 0
      %6968 = vmatpush1.bf16.msra.mxu0 0
      %6969 = vmatprep.subr.bf16.mxu0 0
      %6970 = vmatpush1.bf16.msra.mxu0 0
      %6971 = vmatprep.subr.bf16.mxu0 0
      %6972 = vmatpush1.bf16.msra.mxu0 0
      %6973 = vmatprep.subr.bf16.mxu0 0
      %6974 = vmatpush1.bf16.msra.mxu0 0
      %6975 = vmatprep.subr.bf16.mxu0 0
      %6976 = vmatpush1.bf16.msra.mxu0 0
      %6977 = vmatprep.subr.bf16.mxu0 0
      %6978 = vmatpush1.bf16.msra.mxu0 0
      %6979 = vmatprep.subr.bf16.mxu0 0
      %6980 = vmatpush1.bf16.msra.mxu0 0
      %6981 = vmatprep.subr.bf16.mxu0 0
      %6982 = vmatpush1.bf16.msra.mxu0 0
      %6983 = vmatprep.subr.bf16.mxu0 0
      %6984 = vmatpush1.bf16.msra.mxu0 0
      %6985 = vmatprep.mubr.bf16.mxu0 0
      %6986 = vmatmul.mubr.bf16.gmra.mrb[0].mxu0 %v6945
      %v6987 = vpop.f32.mrb[0].mxu0
      %v6988 = vadd.f32 0.0, %v6987
      %v6989 = vpop.f32.mrb[0].mxu0
      %v6990 = vpop.f32.mrb[0].mxu0
      %v6991 = vadd.f32 0.0, %v6990
      %v6992 = vpop.f32.mrb[0].mxu0
      %6993 = vmatprep.mubr.bf16.mxu0 0
      %6994 = vmatmul.mubr.bf16.gmra.mrb[0].mxu0 %v6948
      %v6995 = vpop.f32.mrb[0].mxu0
      %v6996 = vadd.f32 0.0, %v6995
      %v6997 = vpop.f32.mrb[0].mxu0
      %v6998 = vpop.f32.mrb[0].mxu0
      %v6999 = vadd.f32 0.0, %v6998
      %v7000 = vpop.f32.mrb[0].mxu0
      %7001 = vmatprep.mubr.bf16.mxu0 0
      %7002 = vmatmul.mubr.bf16.gmra.mrb[0].mxu0 %v6951
      %v7003 = vpop.f32.mrb[0].mxu0
      %v7004 = vadd.f32 0.0, %v7003
      %v7005 = vpop.f32.mrb[0].mxu0
      %v7006 = vpop.f32.mrb[0].mxu0
      %v7007 = vpop.f32.mrb[0].mxu0
      %7008 = vdwg.mxu0
      %v7009 = vadd.f32 %v6926, %v6988
      %v7010 = vadd.f32 %v6927, %v6991
      %v7011 = vadd.f32 %v6928, %v6996
      %v7012 = vadd.f32 %v6929, %v6999
      %v7013 = vadd.f32 %v6930, %v7004
      %vm7014 = vcmp.ge.f32.partialorder %v7009, 0.0
      %vm7015 = vcmp.ge.f32.partialorder %v7010, 0.0
      %vm7016 = vcmp.ge.f32.partialorder %v7011, 0.0
      %vm7017 = vcmp.ge.f32.partialorder %v7012, 0.0
      %vm7018 = vcmp.ge.f32.partialorder %v7013, 0.0
      %v7019 = vmul.f32 %v7009, 0.01
      %v7020 = vmul.f32 %v7010, 0.01
      %v7021 = vmul.f32 %v7011, 0.01
      %v7022 = vmul.f32 %v7012, 0.01
      %v7023 = vmul.f32 %v7013, 0.01
      %v7024 = vsel %vm7014, %v7009, %v7019
      %v7025 = vsel %vm7015, %v7010, %v7020
      %v7026 = vsel %vm7016, %v7011, %v7021
      %v7027 = vsel %vm7017, %v7012, %v7022
      %v7028 = vsel %vm7018, %v7013, %v7023
      %s7029 = scalar_lea.vmem %s1, 320
      %v7030 = vld [vmem:[%s7029] sm:$0xff]
      %v7031 = vld [vmem:[%s7029 + $0x8] sm:$0xff]
      %v7032 = vld [vmem:[%s7029 + $0x10] sm:$0xff]
      %v7033 = vld [vmem:[%s7029 + $0x18] sm:$0xff]
      %v7034 = vld [vmem:[%s7029 + $0x20] sm:$0xf]
      %7036 = vset.pattern.permute.xlu0 0
      %7037 = vperm.xlu0 %7036, %v7030
      %v7038 = vpop.permute.xlu0 %7037
      %7041 = vset.pattern.permute.xlu0 0
      %7042 = vperm.xlu0 %7041, %v7031
      %v7043 = vpop.permute.xlu0 %7042
      %7046 = vset.pattern.permute.xlu0 0
      %7047 = vperm.xlu0 %7046, %v7032
      %v7048 = vpop.permute.xlu0 %7047
      %7051 = vset.pattern.permute.xlu0 0
      %7052 = vperm.xlu0 %7051, %v7033
      %v7053 = vpop.permute.xlu0 %7052
      %7056 = vset.pattern.permute.xlu0 0
      %7057 = vperm.xlu0 %7056, %v7034
      %v7058 = vpop.permute.xlu0 %7057
      %v7060 = vmul.f32 %v7024, %v7038
      %v7061 = vmul.f32 %v7025, %v7043
      %v7062 = vmul.f32 %v7026, %v7048
      %v7063 = vmul.f32 %v7027, %v7053
      %v7064 = vmul.f32 %v7028, %v7058
      %v7065 = vpack.c.bf16 %v7061, %v7060
      %v7066 = vpack.c.bf16 %v7063, %v7062
      %v7067 = vpack.c.bf16 %v7064, %v7064
      %s7068 = scalar_lea.vmem %s4, 32
      %v7069 = vld [vmem:[%s7068] sm:$0xf]
      %v7071 = vsel %vm1292, %v7065, 0
      %v7074 = vsel %vm1292, %v7066, 0
      %v7077 = vsel %vm1292, %v7067, 0
      %v7080 = vsel %vm1302, %v7069, 0
      %7082 = vmatprep.subr.bf16.mxu0 0
      %7083 = vmatpush1.bf16.msra.mxu0 %v7080
      %7084 = vmatprep.subr.bf16.mxu0 0
      %7085 = vmatpush1.bf16.msra.mxu0 0
      %7086 = vmatprep.subr.bf16.mxu0 0
      %7087 = vmatpush1.bf16.msra.mxu0 0
      %7088 = vmatprep.subr.bf16.mxu0 0
      %7089 = vmatpush1.bf16.msra.mxu0 0
      %7090 = vmatprep.subr.bf16.mxu0 0
      %7091 = vmatpush1.bf16.msra.mxu0 0
      %7092 = vmatprep.subr.bf16.mxu0 0
      %7093 = vmatpush1.bf16.msra.mxu0 0
      %7094 = vmatprep.subr.bf16.mxu0 0
      %7095 = vmatpush1.bf16.msra.mxu0 0
      %7096 = vmatprep.subr.bf16.mxu0 0
      %7097 = vmatpush1.bf16.msra.mxu0 0
      %7098 = vmatprep.subr.bf16.mxu0 0
      %7099 = vmatpush1.bf16.msra.mxu0 0
      %7100 = vmatprep.subr.bf16.mxu0 0
      %7101 = vmatpush1.bf16.msra.mxu0 0
      %7102 = vmatprep.subr.bf16.mxu0 0
      %7103 = vmatpush1.bf16.msra.mxu0 0
      %7104 = vmatprep.subr.bf16.mxu0 0
      %7105 = vmatpush1.bf16.msra.mxu0 0
      %7106 = vmatprep.subr.bf16.mxu0 0
      %7107 = vmatpush1.bf16.msra.mxu0 0
      %7108 = vmatprep.subr.bf16.mxu0 0
      %7109 = vmatpush1.bf16.msra.mxu0 0
      %7110 = vmatprep.subr.bf16.mxu0 0
      %7111 = vmatpush1.bf16.msra.mxu0 0
      %7112 = vmatprep.subr.bf16.mxu0 0
      %7113 = vmatpush1.bf16.msra.mxu0 0
      %7114 = vmatprep.mubr.bf16.mxu0 0
      %7115 = vmatmul.mubr.bf16.gmra.mrb[0].mxu0 %v7071
      %v7116 = vpop.f32.mrb[0].mxu0
      %v7117 = vadd.f32 0.0, %v7116
      %v7118 = vpop.f32.mrb[0].mxu0
      %v7119 = vpop.f32.mrb[0].mxu0
      %v7120 = vadd.f32 0.0, %v7119
      %v7121 = vpop.f32.mrb[0].mxu0
      %7122 = vmatprep.mubr.bf16.mxu0 0
      %7123 = vmatmul.mubr.bf16.gmra.mrb[0].mxu0 %v7074
      %v7124 = vpop.f32.mrb[0].mxu0
      %v7125 = vadd.f32 0.0, %v7124
      %v7126 = vpop.f32.mrb[0].mxu0
      %v7127 = vpop.f32.mrb[0].mxu0
      %v7128 = vadd.f32 0.0, %v7127
      %v7129 = vpop.f32.mrb[0].mxu0
      %7130 = vmatprep.mubr.bf16.mxu0 0
      %7131 = vmatmul.mubr.bf16.gmra.mrb[0].mxu0 %v7077
      %v7132 = vpop.f32.mrb[0].mxu0
      %v7133 = vadd.f32 0.0, %v7132
      %v7134 = vpop.f32.mrb[0].mxu0
      %v7135 = vpop.f32.mrb[0].mxu0
      %v7136 = vpop.f32.mrb[0].mxu0
      %7137 = vdwg.mxu0
      %v7138 = vadd.f32 %v6438, %v7117
      %v7139 = vadd.f32 %v6439, %v7120
      %v7140 = vadd.f32 %v6440, %v7125
      %v7141 = vadd.f32 %v6441, %v7128
      %v7142 = vadd.f32 %v6442, %v7133
      %v7143 = vld [vmem:[%s3] sm:$0x3]
      %v7145 = vsel %vm485, %v7143, 0
      %7147 = vmatprep.subr.bf16.mxu0 0
      %7148 = vmatpush1.bf16.msra.mxu0 %v7145
      %7149 = vmatprep.subr.bf16.mxu0 0
      %7150 = vmatpush1.bf16.msra.mxu0 0
      %7151 = vmatprep.subr.bf16.mxu0 0
      %7152 = vmatpush1.bf16.msra.mxu0 0
      %7153 = vmatprep.subr.bf16.mxu0 0
      %7154 = vmatpush1.bf16.msra.mxu0 0
      %7155 = vmatprep.subr.bf16.mxu0 0
      %7156 = vmatpush1.bf16.msra.mxu0 0
      %7157 = vmatprep.subr.bf16.mxu0 0
      %7158 = vmatpush1.bf16.msra.mxu0 0
      %7159 = vmatprep.subr.bf16.mxu0 0
      %7160 = vmatpush1.bf16.msra.mxu0 0
      %7161 = vmatprep.subr.bf16.mxu0 0
      %7162 = vmatpush1.bf16.msra.mxu0 0
      %7163 = vmatprep.subr.bf16.mxu0 0
      %7164 = vmatpush1.bf16.msra.mxu0 0
      %7165 = vmatprep.subr.bf16.mxu0 0
      %7166 = vmatpush1.bf16.msra.mxu0 0
      %7167 = vmatprep.subr.bf16.mxu0 0
      %7168 = vmatpush1.bf16.msra.mxu0 0
      %7169 = vmatprep.subr.bf16.mxu0 0
      %7170 = vmatpush1.bf16.msra.mxu0 0
      %7171 = vmatprep.subr.bf16.mxu0 0
      %7172 = vmatpush1.bf16.msra.mxu0 0
      %7173 = vmatprep.subr.bf16.mxu0 0
      %7174 = vmatpush1.bf16.msra.mxu0 0
      %7175 = vmatprep.subr.bf16.mxu0 0
      %7176 = vmatpush1.bf16.msra.mxu0 0
      %7177 = vmatprep.subr.bf16.mxu0 0
      %7178 = vmatpush1.bf16.msra.mxu0 0
      %7179 = vmatprep.mubr.bf16.mxu0 0
      %7180 = vmatmul.mubr.bf16.gmra.mrb[0].mxu0 %v822
      %v7181 = vpop.f32.mrb[0].mxu0
      %v7182 = vadd.f32 0.0, %v7181
      %v7183 = vpop.f32.mrb[0].mxu0
      %v7184 = vpop.f32.mrb[0].mxu0
      %v7185 = vadd.f32 0.0, %v7184
      %v7186 = vpop.f32.mrb[0].mxu0
      %7187 = vmatprep.mubr.bf16.mxu0 0
      %7188 = vmatmul.mubr.bf16.gmra.mrb[0].mxu0 %v825
      %v7189 = vpop.f32.mrb[0].mxu0
      %v7190 = vadd.f32 0.0, %v7189
      %v7191 = vpop.f32.mrb[0].mxu0
      %v7192 = vpop.f32.mrb[0].mxu0
      %v7193 = vadd.f32 0.0, %v7192
      %v7194 = vpop.f32.mrb[0].mxu0
      %7195 = vmatprep.mubr.bf16.mxu0 0
      %7196 = vmatmul.mubr.bf16.gmra.mrb[0].mxu0 %v828
      %v7197 = vpop.f32.mrb[0].mxu0
      %v7198 = vadd.f32 0.0, %v7197
      %v7199 = vpop.f32.mrb[0].mxu0
      %v7200 = vpop.f32.mrb[0].mxu0
      %v7201 = vpop.f32.mrb[0].mxu0
      %7202 = vdwg.mxu0
      %v7203 = vadd.f32 %v7138, %v7182
      %v7204 = vadd.f32 %v7139, %v7185
      %v7205 = vadd.f32 %v7140, %v7190
      %v7206 = vadd.f32 %v7141, %v7193
      %v7207 = vadd.f32 %v7142, %v7198
      %s7208 = scalar_lea.vmem %s3, 2
      %v7209 = vld [vmem:[%s7208] sm:$0x3]
      %v7211 = vsel %vm485, %v7209, 0
      %7213 = vmatprep.subr.bf16.mxu0 0
      %7214 = vmatpush1.bf16.msra.mxu0 %v7211
      %7215 = vmatprep.subr.bf16.mxu0 0
      %7216 = vmatpush1.bf16.msra.mxu0 0
      %7217 = vmatprep.subr.bf16.mxu0 0
      %7218 = vmatpush1.bf16.msra.mxu0 0
      %7219 = vmatprep.subr.bf16.mxu0 0
      %7220 = vmatpush1.bf16.msra.mxu0 0
      %7221 = vmatprep.subr.bf16.mxu0 0
      %7222 = vmatpush1.bf16.msra.mxu0 0
      %7223 = vmatprep.subr.bf16.mxu0 0
      %7224 = vmatpush1.bf16.msra.mxu0 0
      %7225 = vmatprep.subr.bf16.mxu0 0
      %7226 = vmatpush1.bf16.msra.mxu0 0
      %7227 = vmatprep.subr.bf16.mxu0 0
      %7228 = vmatpush1.bf16.msra.mxu0 0
      %7229 = vmatprep.subr.bf16.mxu0 0
      %7230 = vmatpush1.bf16.msra.mxu0 0
      %7231 = vmatprep.subr.bf16.mxu0 0
      %7232 = vmatpush1.bf16.msra.mxu0 0
      %7233 = vmatprep.subr.bf16.mxu0 0
      %7234 = vmatpush1.bf16.msra.mxu0 0
      %7235 = vmatprep.subr.bf16.mxu0 0
      %7236 = vmatpush1.bf16.msra.mxu0 0
      %7237 = vmatprep.subr.bf16.mxu0 0
      %7238 = vmatpush1.bf16.msra.mxu0 0
      %7239 = vmatprep.subr.bf16.mxu0 0
      %7240 = vmatpush1.bf16.msra.mxu0 0
      %7241 = vmatprep.subr.bf16.mxu0 0
      %7242 = vmatpush1.bf16.msra.mxu0 0
      %7243 = vmatprep.subr.bf16.mxu0 0
      %7244 = vmatpush1.bf16.msra.mxu0 0
      %7245 = vmatprep.mubr.bf16.mxu0 0
      %7246 = vmatmul.mubr.bf16.gmra.mrb[0].mxu0 %v908
      %v7247 = vpop.f32.mrb[0].mxu0
      %v7248 = vadd.f32 0.0, %v7247
      %v7249 = vpop.f32.mrb[0].mxu0
      %v7250 = vpop.f32.mrb[0].mxu0
      %v7251 = vadd.f32 0.0, %v7250
      %v7252 = vpop.f32.mrb[0].mxu0
      %7253 = vmatprep.mubr.bf16.mxu0 0
      %7254 = vmatmul.mubr.bf16.gmra.mrb[0].mxu0 %v911
      %v7255 = vpop.f32.mrb[0].mxu0
      %v7256 = vadd.f32 0.0, %v7255
      %v7257 = vpop.f32.mrb[0].mxu0
      %v7258 = vpop.f32.mrb[0].mxu0
      %v7259 = vadd.f32 0.0, %v7258
      %v7260 = vpop.f32.mrb[0].mxu0
      %7261 = vmatprep.mubr.bf16.mxu0 0
      %7262 = vmatmul.mubr.bf16.gmra.mrb[0].mxu0 %v914
      %v7263 = vpop.f32.mrb[0].mxu0
      %v7264 = vadd.f32 0.0, %v7263
      %v7265 = vpop.f32.mrb[0].mxu0
      %v7266 = vpop.f32.mrb[0].mxu0
      %v7267 = vpop.f32.mrb[0].mxu0
      %7268 = vdwg.mxu0
      %v7269 = vadd.f32 %v7203, %v7248
      %v7270 = vadd.f32 %v7204, %v7251
      %v7271 = vadd.f32 %v7205, %v7256
      %v7272 = vadd.f32 %v7206, %v7259
      %v7273 = vadd.f32 %v7207, %v7264
      %s7274 = scalar_lea.vmem %s3, 4
      %v7275 = vld [vmem:[%s7274] sm:$0x3]
      %v7277 = vsel %vm485, %v7275, 0
      %7279 = vmatprep.subr.bf16.mxu0 0
      %7280 = vmatpush1.bf16.msra.mxu0 %v7277
      %7281 = vmatprep.subr.bf16.mxu0 0
      %7282 = vmatpush1.bf16.msra.mxu0 0
      %7283 = vmatprep.subr.bf16.mxu0 0
      %7284 = vmatpush1.bf16.msra.mxu0 0
      %7285 = vmatprep.subr.bf16.mxu0 0
      %7286 = vmatpush1.bf16.msra.mxu0 0
      %7287 = vmatprep.subr.bf16.mxu0 0
      %7288 = vmatpush1.bf16.msra.mxu0 0
      %7289 = vmatprep.subr.bf16.mxu0 0
      %7290 = vmatpush1.bf16.msra.mxu0 0
      %7291 = vmatprep.subr.bf16.mxu0 0
      %7292 = vmatpush1.bf16.msra.mxu0 0
      %7293 = vmatprep.subr.bf16.mxu0 0
      %7294 = vmatpush1.bf16.msra.mxu0 0
      %7295 = vmatprep.subr.bf16.mxu0 0
      %7296 = vmatpush1.bf16.msra.mxu0 0
      %7297 = vmatprep.subr.bf16.mxu0 0
      %7298 = vmatpush1.bf16.msra.mxu0 0
      %7299 = vmatprep.subr.bf16.mxu0 0
      %7300 = vmatpush1.bf16.msra.mxu0 0
      %7301 = vmatprep.subr.bf16.mxu0 0
      %7302 = vmatpush1.bf16.msra.mxu0 0
      %7303 = vmatprep.subr.bf16.mxu0 0
      %7304 = vmatpush1.bf16.msra.mxu0 0
      %7305 = vmatprep.subr.bf16.mxu0 0
      %7306 = vmatpush1.bf16.msra.mxu0 0
      %7307 = vmatprep.subr.bf16.mxu0 0
      %7308 = vmatpush1.bf16.msra.mxu0 0
      %7309 = vmatprep.subr.bf16.mxu0 0
      %7310 = vmatpush1.bf16.msra.mxu0 0
      %7311 = vmatprep.mubr.bf16.mxu0 0
      %7312 = vmatmul.mubr.bf16.gmra.mrb[0].mxu0 %v1708
      %v7313 = vpop.f32.mrb[0].mxu0
      %v7314 = vadd.f32 0.0, %v7313
      %v7315 = vpop.f32.mrb[0].mxu0
      %v7316 = vpop.f32.mrb[0].mxu0
      %v7317 = vadd.f32 0.0, %v7316
      %v7318 = vpop.f32.mrb[0].mxu0
      %7319 = vmatprep.mubr.bf16.mxu0 0
      %7320 = vmatmul.mubr.bf16.gmra.mrb[0].mxu0 %v1711
      %v7321 = vpop.f32.mrb[0].mxu0
      %v7322 = vadd.f32 0.0, %v7321
      %v7323 = vpop.f32.mrb[0].mxu0
      %v7324 = vpop.f32.mrb[0].mxu0
      %v7325 = vadd.f32 0.0, %v7324
      %v7326 = vpop.f32.mrb[0].mxu0
      %7327 = vmatprep.mubr.bf16.mxu0 0
      %7328 = vmatmul.mubr.bf16.gmra.mrb[0].mxu0 %v1714
      %v7329 = vpop.f32.mrb[0].mxu0
      %v7330 = vadd.f32 0.0, %v7329
      %v7331 = vpop.f32.mrb[0].mxu0
      %v7332 = vpop.f32.mrb[0].mxu0
      %v7333 = vpop.f32.mrb[0].mxu0
      %7334 = vdwg.mxu0
      %v7335 = vadd.f32 %v7269, %v7314
      %v7336 = vadd.f32 %v7270, %v7317
      %v7337 = vadd.f32 %v7271, %v7322
      %v7338 = vadd.f32 %v7272, %v7325
      %v7339 = vadd.f32 %v7273, %v7330
      %s7340 = scalar_lea.vmem %s3, 6
      %v7341 = vld [vmem:[%s7340] sm:$0x3]
      %v7343 = vsel %vm485, %v7341, 0
      %7345 = vmatprep.subr.bf16.mxu0 0
      %7346 = vmatpush1.bf16.msra.mxu0 %v7343
      %7347 = vmatprep.subr.bf16.mxu0 0
      %7348 = vmatpush1.bf16.msra.mxu0 0
      %7349 = vmatprep.subr.bf16.mxu0 0
      %7350 = vmatpush1.bf16.msra.mxu0 0
      %7351 = vmatprep.subr.bf16.mxu0 0
      %7352 = vmatpush1.bf16.msra.mxu0 0
      %7353 = vmatprep.subr.bf16.mxu0 0
      %7354 = vmatpush1.bf16.msra.mxu0 0
      %7355 = vmatprep.subr.bf16.mxu0 0
      %7356 = vmatpush1.bf16.msra.mxu0 0
      %7357 = vmatprep.subr.bf16.mxu0 0
      %7358 = vmatpush1.bf16.msra.mxu0 0
      %7359 = vmatprep.subr.bf16.mxu0 0
      %7360 = vmatpush1.bf16.msra.mxu0 0
      %7361 = vmatprep.subr.bf16.mxu0 0
      %7362 = vmatpush1.bf16.msra.mxu0 0
      %7363 = vmatprep.subr.bf16.mxu0 0
      %7364 = vmatpush1.bf16.msra.mxu0 0
      %7365 = vmatprep.subr.bf16.mxu0 0
      %7366 = vmatpush1.bf16.msra.mxu0 0
      %7367 = vmatprep.subr.bf16.mxu0 0
      %7368 = vmatpush1.bf16.msra.mxu0 0
      %7369 = vmatprep.subr.bf16.mxu0 0
      %7370 = vmatpush1.bf16.msra.mxu0 0
      %7371 = vmatprep.subr.bf16.mxu0 0
      %7372 = vmatpush1.bf16.msra.mxu0 0
      %7373 = vmatprep.subr.bf16.mxu0 0
      %7374 = vmatpush1.bf16.msra.mxu0 0
      %7375 = vmatprep.subr.bf16.mxu0 0
      %7376 = vmatpush1.bf16.msra.mxu0 0
      %7377 = vmatprep.mubr.bf16.mxu0 0
      %7378 = vmatmul.mubr.bf16.gmra.mrb[0].mxu0 %v1080
      %v7379 = vpop.f32.mrb[0].mxu0
      %v7380 = vadd.f32 0.0, %v7379
      %v7381 = vpop.f32.mrb[0].mxu0
      %v7382 = vpop.f32.mrb[0].mxu0
      %v7383 = vadd.f32 0.0, %v7382
      %v7384 = vpop.f32.mrb[0].mxu0
      %7385 = vmatprep.mubr.bf16.mxu0 0
      %7386 = vmatmul.mubr.bf16.gmra.mrb[0].mxu0 %v1083
      %v7387 = vpop.f32.mrb[0].mxu0
      %v7388 = vadd.f32 0.0, %v7387
      %v7389 = vpop.f32.mrb[0].mxu0
      %v7390 = vpop.f32.mrb[0].mxu0
      %v7391 = vadd.f32 0.0, %v7390
      %v7392 = vpop.f32.mrb[0].mxu0
      %7393 = vmatprep.mubr.bf16.mxu0 0
      %7394 = vmatmul.mubr.bf16.gmra.mrb[0].mxu0 %v1086
      %v7395 = vpop.f32.mrb[0].mxu0
      %v7396 = vadd.f32 0.0, %v7395
      %v7397 = vpop.f32.mrb[0].mxu0
      %v7398 = vpop.f32.mrb[0].mxu0
      %v7399 = vpop.f32.mrb[0].mxu0
      %7400 = vdwg.mxu0
      %v7401 = vadd.f32 %v7335, %v7380
      %v7402 = vadd.f32 %v7336, %v7383
      %v7403 = vadd.f32 %v7337, %v7388
      %v7404 = vadd.f32 %v7338, %v7391
      %v7405 = vadd.f32 %v7339, %v7396
      %s7406 = scalar_lea.vmem %s3, 8
      %v7407 = vld [vmem:[%s7406] sm:$0x3]
      %v7409 = vsel %vm485, %v7407, 0
      %7411 = vmatprep.subr.bf16.mxu0 0
      %7412 = vmatpush1.bf16.msra.mxu0 %v7409
      %7413 = vmatprep.subr.bf16.mxu0 0
      %7414 = vmatpush1.bf16.msra.mxu0 0
      %7415 = vmatprep.subr.bf16.mxu0 0
      %7416 = vmatpush1.bf16.msra.mxu0 0
      %7417 = vmatprep.subr.bf16.mxu0 0
      %7418 = vmatpush1.bf16.msra.mxu0 0
      %7419 = vmatprep.subr.bf16.mxu0 0
      %7420 = vmatpush1.bf16.msra.mxu0 0
      %7421 = vmatprep.subr.bf16.mxu0 0
      %7422 = vmatpush1.bf16.msra.mxu0 0
      %7423 = vmatprep.subr.bf16.mxu0 0
      %7424 = vmatpush1.bf16.msra.mxu0 0
      %7425 = vmatprep.subr.bf16.mxu0 0
      %7426 = vmatpush1.bf16.msra.mxu0 0
      %7427 = vmatprep.subr.bf16.mxu0 0
      %7428 = vmatpush1.bf16.msra.mxu0 0
      %7429 = vmatprep.subr.bf16.mxu0 0
      %7430 = vmatpush1.bf16.msra.mxu0 0
      %7431 = vmatprep.subr.bf16.mxu0 0
      %7432 = vmatpush1.bf16.msra.mxu0 0
      %7433 = vmatprep.subr.bf16.mxu0 0
      %7434 = vmatpush1.bf16.msra.mxu0 0
      %7435 = vmatprep.subr.bf16.mxu0 0
      %7436 = vmatpush1.bf16.msra.mxu0 0
      %7437 = vmatprep.subr.bf16.mxu0 0
      %7438 = vmatpush1.bf16.msra.mxu0 0
      %7439 = vmatprep.subr.bf16.mxu0 0
      %7440 = vmatpush1.bf16.msra.mxu0 0
      %7441 = vmatprep.subr.bf16.mxu0 0
      %7442 = vmatpush1.bf16.msra.mxu0 0
      %7443 = vmatprep.mubr.bf16.mxu0 0
      %7444 = vmatmul.mubr.bf16.gmra.mrb[0].mxu0 %v1166
      %v7445 = vpop.f32.mrb[0].mxu0
      %v7446 = vadd.f32 0.0, %v7445
      %v7447 = vpop.f32.mrb[0].mxu0
      %v7448 = vpop.f32.mrb[0].mxu0
      %v7449 = vadd.f32 0.0, %v7448
      %v7450 = vpop.f32.mrb[0].mxu0
      %7451 = vmatprep.mubr.bf16.mxu0 0
      %7452 = vmatmul.mubr.bf16.gmra.mrb[0].mxu0 %v1169
      %v7453 = vpop.f32.mrb[0].mxu0
      %v7454 = vadd.f32 0.0, %v7453
      %v7455 = vpop.f32.mrb[0].mxu0
      %v7456 = vpop.f32.mrb[0].mxu0
      %v7457 = vadd.f32 0.0, %v7456
      %v7458 = vpop.f32.mrb[0].mxu0
      %7459 = vmatprep.mubr.bf16.mxu0 0
      %7460 = vmatmul.mubr.bf16.gmra.mrb[0].mxu0 %v1172
      %v7461 = vpop.f32.mrb[0].mxu0
      %v7462 = vadd.f32 0.0, %v7461
      %v7463 = vpop.f32.mrb[0].mxu0
      %v7464 = vpop.f32.mrb[0].mxu0
      %v7465 = vpop.f32.mrb[0].mxu0
      %7466 = vdwg.mxu0
      %v7467 = vadd.f32 %v7401, %v7446
      %v7468 = vadd.f32 %v7402, %v7449
      %v7469 = vadd.f32 %v7403, %v7454
      %v7470 = vadd.f32 %v7404, %v7457
      %v7471 = vadd.f32 %v7405, %v7462
      %s7472 = scalar_lea.vmem %s3, 10
      %v7473 = vld [vmem:[%s7472] sm:$0x3]
      %v7475 = vsel %vm485, %v7473, 0
      %7477 = vmatprep.subr.bf16.mxu0 0
      %7478 = vmatpush1.bf16.msra.mxu0 %v7475
      %7479 = vmatprep.subr.bf16.mxu0 0
      %7480 = vmatpush1.bf16.msra.mxu0 0
      %7481 = vmatprep.subr.bf16.mxu0 0
      %7482 = vmatpush1.bf16.msra.mxu0 0
      %7483 = vmatprep.subr.bf16.mxu0 0
      %7484 = vmatpush1.bf16.msra.mxu0 0
      %7485 = vmatprep.subr.bf16.mxu0 0
      %7486 = vmatpush1.bf16.msra.mxu0 0
      %7487 = vmatprep.subr.bf16.mxu0 0
      %7488 = vmatpush1.bf16.msra.mxu0 0
      %7489 = vmatprep.subr.bf16.mxu0 0
      %7490 = vmatpush1.bf16.msra.mxu0 0
      %7491 = vmatprep.subr.bf16.mxu0 0
      %7492 = vmatpush1.bf16.msra.mxu0 0
      %7493 = vmatprep.subr.bf16.mxu0 0
      %7494 = vmatpush1.bf16.msra.mxu0 0
      %7495 = vmatprep.subr.bf16.mxu0 0
      %7496 = vmatpush1.bf16.msra.mxu0 0
      %7497 = vmatprep.subr.bf16.mxu0 0
      %7498 = vmatpush1.bf16.msra.mxu0 0
      %7499 = vmatprep.subr.bf16.mxu0 0
      %7500 = vmatpush1.bf16.msra.mxu0 0
      %7501 = vmatprep.subr.bf16.mxu0 0
      %7502 = vmatpush1.bf16.msra.mxu0 0
      %7503 = vmatprep.subr.bf16.mxu0 0
      %7504 = vmatpush1.bf16.msra.mxu0 0
      %7505 = vmatprep.subr.bf16.mxu0 0
      %7506 = vmatpush1.bf16.msra.mxu0 0
      %7507 = vmatprep.subr.bf16.mxu0 0
      %7508 = vmatpush1.bf16.msra.mxu0 0
      %7509 = vmatprep.mubr.bf16.mxu0 0
      %7510 = vmatmul.mubr.bf16.gmra.mrb[0].mxu0 %v1913
      %v7511 = vpop.f32.mrb[0].mxu0
      %v7512 = vadd.f32 0.0, %v7511
      %v7513 = vpop.f32.mrb[0].mxu0
      %v7514 = vpop.f32.mrb[0].mxu0
      %v7515 = vadd.f32 0.0, %v7514
      %v7516 = vpop.f32.mrb[0].mxu0
      %7517 = vmatprep.mubr.bf16.mxu0 0
      %7518 = vmatmul.mubr.bf16.gmra.mrb[0].mxu0 %v1916
      %v7519 = vpop.f32.mrb[0].mxu0
      %v7520 = vadd.f32 0.0, %v7519
      %v7521 = vpop.f32.mrb[0].mxu0
      %v7522 = vpop.f32.mrb[0].mxu0
      %v7523 = vadd.f32 0.0, %v7522
      %v7524 = vpop.f32.mrb[0].mxu0
      %7525 = vmatprep.mubr.bf16.mxu0 0
      %7526 = vmatmul.mubr.bf16.gmra.mrb[0].mxu0 %v1919
      %v7527 = vpop.f32.mrb[0].mxu0
      %v7528 = vadd.f32 0.0, %v7527
      %v7529 = vpop.f32.mrb[0].mxu0
      %v7530 = vpop.f32.mrb[0].mxu0
      %v7531 = vpop.f32.mrb[0].mxu0
      %7532 = vdwg.mxu0
      %v7533 = vadd.f32 %v7467, %v7512
      %v7534 = vadd.f32 %v7468, %v7515
      %v7535 = vadd.f32 %v7469, %v7520
      %v7536 = vadd.f32 %v7470, %v7523
      %v7537 = vadd.f32 %v7471, %v7528
      %s7538 = scalar_lea.vmem %s3, 12
      %v7539 = vld [vmem:[%s7538] sm:$0x3]
      %v7541 = vsel %vm485, %v7539, 0
      %7543 = vmatprep.subr.bf16.mxu0 0
      %7544 = vmatpush1.bf16.msra.mxu0 %v7541
      %7545 = vmatprep.subr.bf16.mxu0 0
      %7546 = vmatpush1.bf16.msra.mxu0 0
      %7547 = vmatprep.subr.bf16.mxu0 0
      %7548 = vmatpush1.bf16.msra.mxu0 0
      %7549 = vmatprep.subr.bf16.mxu0 0
      %7550 = vmatpush1.bf16.msra.mxu0 0
      %7551 = vmatprep.subr.bf16.mxu0 0
      %7552 = vmatpush1.bf16.msra.mxu0 0
      %7553 = vmatprep.subr.bf16.mxu0 0
      %7554 = vmatpush1.bf16.msra.mxu0 0
      %7555 = vmatprep.subr.bf16.mxu0 0
      %7556 = vmatpush1.bf16.msra.mxu0 0
      %7557 = vmatprep.subr.bf16.mxu0 0
      %7558 = vmatpush1.bf16.msra.mxu0 0
      %7559 = vmatprep.subr.bf16.mxu0 0
      %7560 = vmatpush1.bf16.msra.mxu0 0
      %7561 = vmatprep.subr.bf16.mxu0 0
      %7562 = vmatpush1.bf16.msra.mxu0 0
      %7563 = vmatprep.subr.bf16.mxu0 0
      %7564 = vmatpush1.bf16.msra.mxu0 0
      %7565 = vmatprep.subr.bf16.mxu0 0
      %7566 = vmatpush1.bf16.msra.mxu0 0
      %7567 = vmatprep.subr.bf16.mxu0 0
      %7568 = vmatpush1.bf16.msra.mxu0 0
      %7569 = vmatprep.subr.bf16.mxu0 0
      %7570 = vmatpush1.bf16.msra.mxu0 0
      %7571 = vmatprep.subr.bf16.mxu0 0
      %7572 = vmatpush1.bf16.msra.mxu0 0
      %7573 = vmatprep.subr.bf16.mxu0 0
      %7574 = vmatpush1.bf16.msra.mxu0 0
      %7575 = vmatprep.mubr.bf16.mxu0 0
      %7576 = vmatmul.mubr.bf16.gmra.mrb[0].mxu0 %v3318
      %v7577 = vpop.f32.mrb[0].mxu0
      %v7578 = vadd.f32 0.0, %v7577
      %v7579 = vpop.f32.mrb[0].mxu0
      %v7580 = vpop.f32.mrb[0].mxu0
      %v7581 = vadd.f32 0.0, %v7580
      %v7582 = vpop.f32.mrb[0].mxu0
      %7583 = vmatprep.mubr.bf16.mxu0 0
      %7584 = vmatmul.mubr.bf16.gmra.mrb[0].mxu0 %v3321
      %v7585 = vpop.f32.mrb[0].mxu0
      %v7586 = vadd.f32 0.0, %v7585
      %v7587 = vpop.f32.mrb[0].mxu0
      %v7588 = vpop.f32.mrb[0].mxu0
      %v7589 = vadd.f32 0.0, %v7588
      %v7590 = vpop.f32.mrb[0].mxu0
      %7591 = vmatprep.mubr.bf16.mxu0 0
      %7592 = vmatmul.mubr.bf16.gmra.mrb[0].mxu0 %v3324
      %v7593 = vpop.f32.mrb[0].mxu0
      %v7594 = vadd.f32 0.0, %v7593
      %v7595 = vpop.f32.mrb[0].mxu0
      %v7596 = vpop.f32.mrb[0].mxu0
      %v7597 = vpop.f32.mrb[0].mxu0
      %7598 = vdwg.mxu0
      %v7599 = vadd.f32 %v7533, %v7578
      %v7600 = vadd.f32 %v7534, %v7581
      %v7601 = vadd.f32 %v7535, %v7586
      %v7602 = vadd.f32 %v7536, %v7589
      %v7603 = vadd.f32 %v7537, %v7594
      %s7604 = scalar_lea.vmem %s3, 14
      %v7605 = vld [vmem:[%s7604] sm:$0x3]
      %v7607 = vsel %vm485, %v7605, 0
      %7609 = vmatprep.subr.bf16.mxu0 0
      %7610 = vmatpush1.bf16.msra.mxu0 %v7607
      %7611 = vmatprep.subr.bf16.mxu0 0
      %7612 = vmatpush1.bf16.msra.mxu0 0
      %7613 = vmatprep.subr.bf16.mxu0 0
      %7614 = vmatpush1.bf16.msra.mxu0 0
      %7615 = vmatprep.subr.bf16.mxu0 0
      %7616 = vmatpush1.bf16.msra.mxu0 0
      %7617 = vmatprep.subr.bf16.mxu0 0
      %7618 = vmatpush1.bf16.msra.mxu0 0
      %7619 = vmatprep.subr.bf16.mxu0 0
      %7620 = vmatpush1.bf16.msra.mxu0 0
      %7621 = vmatprep.subr.bf16.mxu0 0
      %7622 = vmatpush1.bf16.msra.mxu0 0
      %7623 = vmatprep.subr.bf16.mxu0 0
      %7624 = vmatpush1.bf16.msra.mxu0 0
      %7625 = vmatprep.subr.bf16.mxu0 0
      %7626 = vmatpush1.bf16.msra.mxu0 0
      %7627 = vmatprep.subr.bf16.mxu0 0
      %7628 = vmatpush1.bf16.msra.mxu0 0
      %7629 = vmatprep.subr.bf16.mxu0 0
      %7630 = vmatpush1.bf16.msra.mxu0 0
      %7631 = vmatprep.subr.bf16.mxu0 0
      %7632 = vmatpush1.bf16.msra.mxu0 0
      %7633 = vmatprep.subr.bf16.mxu0 0
      %7634 = vmatpush1.bf16.msra.mxu0 0
      %7635 = vmatprep.subr.bf16.mxu0 0
      %7636 = vmatpush1.bf16.msra.mxu0 0
      %7637 = vmatprep.subr.bf16.mxu0 0
      %7638 = vmatpush1.bf16.msra.mxu0 0
      %7639 = vmatprep.subr.bf16.mxu0 0
      %7640 = vmatpush1.bf16.msra.mxu0 0
      %7641 = vmatprep.mubr.bf16.mxu0 0
      %7642 = vmatmul.mubr.bf16.gmra.mrb[0].mxu0 %v3401
      %v7643 = vpop.f32.mrb[0].mxu0
      %v7644 = vadd.f32 0.0, %v7643
      %v7645 = vpop.f32.mrb[0].mxu0
      %v7646 = vpop.f32.mrb[0].mxu0
      %v7647 = vadd.f32 0.0, %v7646
      %v7648 = vpop.f32.mrb[0].mxu0
      %7649 = vmatprep.mubr.bf16.mxu0 0
      %7650 = vmatmul.mubr.bf16.gmra.mrb[0].mxu0 %v3404
      %v7651 = vpop.f32.mrb[0].mxu0
      %v7652 = vadd.f32 0.0, %v7651
      %v7653 = vpop.f32.mrb[0].mxu0
      %v7654 = vpop.f32.mrb[0].mxu0
      %v7655 = vadd.f32 0.0, %v7654
      %v7656 = vpop.f32.mrb[0].mxu0
      %7657 = vmatprep.mubr.bf16.mxu0 0
      %7658 = vmatmul.mubr.bf16.gmra.mrb[0].mxu0 %v3407
      %v7659 = vpop.f32.mrb[0].mxu0
      %v7660 = vadd.f32 0.0, %v7659
      %v7661 = vpop.f32.mrb[0].mxu0
      %v7662 = vpop.f32.mrb[0].mxu0
      %v7663 = vpop.f32.mrb[0].mxu0
      %7664 = vdwg.mxu0
      %v7665 = vadd.f32 %v7599, %v7644
      %v7666 = vadd.f32 %v7600, %v7647
      %v7667 = vadd.f32 %v7601, %v7652
      %v7668 = vadd.f32 %v7602, %v7655
      %v7669 = vadd.f32 %v7603, %v7660
      %s7670 = scalar_lea.vmem %s3, 16
      %v7671 = vld [vmem:[%s7670] sm:$0x3]
      %v7673 = vsel %vm485, %v7671, 0
      %7675 = vmatprep.subr.bf16.mxu0 0
      %7676 = vmatpush1.bf16.msra.mxu0 %v7673
      %7677 = vmatprep.subr.bf16.mxu0 0
      %7678 = vmatpush1.bf16.msra.mxu0 0
      %7679 = vmatprep.subr.bf16.mxu0 0
      %7680 = vmatpush1.bf16.msra.mxu0 0
      %7681 = vmatprep.subr.bf16.mxu0 0
      %7682 = vmatpush1.bf16.msra.mxu0 0
      %7683 = vmatprep.subr.bf16.mxu0 0
      %7684 = vmatpush1.bf16.msra.mxu0 0
      %7685 = vmatprep.subr.bf16.mxu0 0
      %7686 = vmatpush1.bf16.msra.mxu0 0
      %7687 = vmatprep.subr.bf16.mxu0 0
      %7688 = vmatpush1.bf16.msra.mxu0 0
      %7689 = vmatprep.subr.bf16.mxu0 0
      %7690 = vmatpush1.bf16.msra.mxu0 0
      %7691 = vmatprep.subr.bf16.mxu0 0
      %7692 = vmatpush1.bf16.msra.mxu0 0
      %7693 = vmatprep.subr.bf16.mxu0 0
      %7694 = vmatpush1.bf16.msra.mxu0 0
      %7695 = vmatprep.subr.bf16.mxu0 0
      %7696 = vmatpush1.bf16.msra.mxu0 0
      %7697 = vmatprep.subr.bf16.mxu0 0
      %7698 = vmatpush1.bf16.msra.mxu0 0
      %7699 = vmatprep.subr.bf16.mxu0 0
      %7700 = vmatpush1.bf16.msra.mxu0 0
      %7701 = vmatprep.subr.bf16.mxu0 0
      %7702 = vmatpush1.bf16.msra.mxu0 0
      %7703 = vmatprep.subr.bf16.mxu0 0
      %7704 = vmatpush1.bf16.msra.mxu0 0
      %7705 = vmatprep.subr.bf16.mxu0 0
      %7706 = vmatpush1.bf16.msra.mxu0 0
      %7707 = vmatprep.mubr.bf16.mxu0 0
      %7708 = vmatmul.mubr.bf16.gmra.mrb[0].mxu0 %v4101
      %v7709 = vpop.f32.mrb[0].mxu0
      %v7710 = vadd.f32 0.0, %v7709
      %v7711 = vpop.f32.mrb[0].mxu0
      %v7712 = vpop.f32.mrb[0].mxu0
      %v7713 = vadd.f32 0.0, %v7712
      %v7714 = vpop.f32.mrb[0].mxu0
      %7715 = vmatprep.mubr.bf16.mxu0 0
      %7716 = vmatmul.mubr.bf16.gmra.mrb[0].mxu0 %v4104
      %v7717 = vpop.f32.mrb[0].mxu0
      %v7718 = vadd.f32 0.0, %v7717
      %v7719 = vpop.f32.mrb[0].mxu0
      %v7720 = vpop.f32.mrb[0].mxu0
      %v7721 = vadd.f32 0.0, %v7720
      %v7722 = vpop.f32.mrb[0].mxu0
      %7723 = vmatprep.mubr.bf16.mxu0 0
      %7724 = vmatmul.mubr.bf16.gmra.mrb[0].mxu0 %v4107
      %v7725 = vpop.f32.mrb[0].mxu0
      %v7726 = vadd.f32 0.0, %v7725
      %v7727 = vpop.f32.mrb[0].mxu0
      %v7728 = vpop.f32.mrb[0].mxu0
      %v7729 = vpop.f32.mrb[0].mxu0
      %7730 = vdwg.mxu0
      %v7731 = vadd.f32 %v7665, %v7710
      %v7732 = vadd.f32 %v7666, %v7713
      %v7733 = vadd.f32 %v7667, %v7718
      %v7734 = vadd.f32 %v7668, %v7721
      %v7735 = vadd.f32 %v7669, %v7726
      %7736 = vst.msk [vmem:[%s278] sm:$0xff] %vm1292, %v7731
      %7737 = vst.msk [vmem:[%s278 + $0x8] sm:$0xff] %vm1292, %v7732
      %7738 = vst.msk [vmem:[%s278 + $0x10] sm:$0xff] %vm1292, %v7733
      %7739 = vst.msk [vmem:[%s278 + $0x18] sm:$0xff] %vm1292, %v7734
      %vm7740 = vcmask 60416
      %7741 = vst.msk [vmem:[%s278 + $0x20] sm:$0xf] %vm7740, %v7735
      %p7742 = scmp.lt.s32.totalorder %s18, 1
      %s7743 = scalar_select %p7742, %s18, 1
      %s7744 = smul.addr %s7743, 5
      %s7745 = smul.addr %s7744, 8
      %s7746 = scalar_lea.vmem %s7, %s7745
      // Predicated region
      $region49: #{resnet_block_forward.1} parent=47 // pred_check
        %p7747 = pneg %p188
      $region50: #{resnet_block_forward.1} parent=47 // pred_check_branch
        %7749 = sbr.rel (%p7747) target = $region52
      $region51: #{resnet_block_forward.1} parent=47 // pred_region
        _
      $region52: #{resnet_block_forward.1} parent=47 // pred_fallthru
        _
    $region48: #{resnet_block_forward.1} parent=5 // pred_fallthru
      _
    %p7750 = scmp.le.s32.totalorder 2, %s13
    // Predicated region
    $region53: #{resnet_block_forward.1} parent=5 // pred_check
      %p7751 = pneg %p7750
    $region54: #{resnet_block_forward.1} parent=5 // pred_check_branch
      %7753 = sbr.rel (%p7751) target = $region56
    $region55: #{resnet_block_forward.1} parent=5 // pred_region
      %s7754 = ssub.s32 %s13, 2
      // Predicated region
      $region57: #{resnet_block_forward.1} parent=55 // pred_check
        %p7755 = pneg %p194
      $region58: #{resnet_block_forward.1} parent=55 // pred_check_branch
        %7757 = sbr.rel (%p7755) target = $region60
      $region59: #{resnet_block_forward.1} parent=55 // pred_region
        %p7758 = scmp.lt.s32.totalorder %s19, 1
        %s7759 = scalar_select %p7758, %s19, 1
        %s7760 = smul.addr %s7759, 5
        %s7761 = smul.addr %s7760, 8
        %s7762 = scalar_lea.vmem %s7, %s7761
      $region60: #{resnet_block_forward.1} parent=55 // pred_fallthru
        _
    $region56: #{resnet_block_forward.1} parent=5 // pred_fallthru
      _
  $region6: #{resnet_block_forward.1} parent=0 // loop_footer
    %s17 = sadd.s32 1, %s13
  $region7: #{resnet_block_forward.1} parent=0 // loop_footer_branch
    %12 = sbr.rel target = $region3
  $region8: #{resnet_block_forward.1} parent=0 // loop_exit
    _

</llo_original>
